<compile_context>
chip_gen: v5e
topology: v5e:2x2
jax: 0.10.0
libtpu: 0.0.40
codegen_flags: <defaults>
</compile_context>

<pallas_src>
import functools

import jax
import jax.numpy as jnp
from jax.experimental import pallas as pl
from jax.experimental.pallas import tpu as pltpu


# ----------------------------------------------------------------------------
# Pallas kernels
# ----------------------------------------------------------------------------
def _fused_matmul_kernel(x_ref, w_ref, b_ref, o_ref, *, apply_act,
                         negative_slope):
    """y = leaky_relu((x @ w) + b)   (activation optional; BN pre-folded)."""
    y = jnp.dot(x_ref[...], w_ref[...], preferred_element_type=jnp.float32)
    y = y + b_ref[...]
    if apply_act:
        y = jnp.where(y >= 0.0, y, negative_slope * y)
    o_ref[...] = y


def _latent_kernel(x_ref, wcat_ref, bcat_ref, eps_ref, wdec_ref, bdec_ref,
                   mu_ref, lv_ref, z_ref, d_ref):
    """Fused latent path:
       [mu | logvar] = flat @ [Wmu | Wvar] + [bmu | bvar]
       logvar += 1e-8 ; z = eps * exp(0.5*logvar) + mu ; d = z @ Wdec + bdec."""
    y = jnp.dot(x_ref[...], wcat_ref[...], preferred_element_type=jnp.float32)
    y = y + bcat_ref[...]
    mu = y[:, :128]
    log_var = y[:, 128:] + 1e-8
    z = eps_ref[...] * jnp.exp(0.5 * log_var) + mu
    mu_ref[...] = mu
    lv_ref[...] = log_var
    z_ref[...] = z
    d_ref[...] = jnp.dot(z.astype(jnp.bfloat16), wdec_ref[...],
                         preferred_element_type=jnp.float32) + bdec_ref[...]


# ----------------------------------------------------------------------------
# Wrappers (padding / tiling glue around the kernels)
# ----------------------------------------------------------------------------
def _round_up(x, m):
    return (x + m - 1) // m * m


def _pad2d(a, rows, cols):
    return jnp.pad(a, ((0, rows - a.shape[0]), (0, cols - a.shape[1])))


def fused_matmul(x, w, b, *, apply_act, negative_slope=0.01):
    """x: [M, K], w: [K, N], b: [N] -> f32 [M, N].
    Matmul runs in bf16 on the MXU with f32 accumulation."""
    M, K = x.shape
    N = w.shape[1]
    tm = min(128, _round_up(max(M, 1), 8))
    Mp = _round_up(M, tm)
    Kp = _round_up(K, 128)
    Np = _round_up(N, 128)

    xp = _pad2d(x, Mp, Kp).astype(jnp.bfloat16)
    wp = _pad2d(w, Kp, Np).astype(jnp.bfloat16)
    bp = jnp.pad(b.astype(jnp.float32), (0, Np - N)).reshape(1, Np)

    out = pl.pallas_call(
        functools.partial(_fused_matmul_kernel, apply_act=apply_act,
                          negative_slope=negative_slope),
        out_shape=jax.ShapeDtypeStruct((Mp, Np), jnp.float32),
        grid=(Mp // tm,),
        in_specs=[
            pl.BlockSpec((tm, Kp), lambda i: (i, 0)),
            pl.BlockSpec((Kp, Np), lambda i: (0, 0)),
            pl.BlockSpec((1, Np), lambda i: (0, 0)),
        ],
        out_specs=pl.BlockSpec((tm, Np), lambda i: (i, 0)),
        compiler_params=pltpu.CompilerParams(
            dimension_semantics=("parallel",)),
    )(xp, wp, bp)
    if Mp == M and Np == N:
        return out
    return out[:M, :N]


def latent_path(flat, p_mu, p_var, p_dec, eps_noise, latent_dim):
    """One Pallas call for fc_mu + fc_var (+1e-8), reparameterize, decoder_input."""
    B, K = flat.shape
    L = latent_dim
    Lp = 128
    D = p_dec["w"].shape[0]
    Mp = _round_up(B, 8)
    Kp = _round_up(K, 128)
    Dp = _round_up(D, 128)

    xp = _pad2d(flat, Mp, Kp).astype(jnp.bfloat16)
    wmu = _pad2d(p_mu["w"].T, Kp, Lp)
    wvar = _pad2d(p_var["w"].T, Kp, Lp)
    wcat = jnp.concatenate([wmu, wvar], axis=1).astype(jnp.bfloat16)     # [Kp, 256]
    bcat = jnp.concatenate([jnp.pad(p_mu["b"], (0, Lp - L)),
                            jnp.pad(p_var["b"], (0, Lp - L))]
                           ).reshape(1, 2 * Lp).astype(jnp.float32)
    epsp = _pad2d(eps_noise, Mp, Lp).astype(jnp.float32)
    wdec = _pad2d(p_dec["w"].T, Lp, Dp).astype(jnp.bfloat16)             # [128, Dp]
    bdec = jnp.pad(p_dec["b"], (0, Dp - D)).reshape(1, Dp).astype(jnp.float32)

    mu, lv, z, d = pl.pallas_call(
        _latent_kernel,
        out_shape=(jax.ShapeDtypeStruct((Mp, Lp), jnp.float32),
                   jax.ShapeDtypeStruct((Mp, Lp), jnp.float32),
                   jax.ShapeDtypeStruct((Mp, Lp), jnp.float32),
                   jax.ShapeDtypeStruct((Mp, Dp), jnp.float32)),
    )(xp, wcat, bcat, epsp, wdec, bdec)
    return mu[:B, :L], lv[:B, :L], z[:B, :L], d[:B, :D]


# ----------------------------------------------------------------------------
# Conv / conv-transpose / upsample built on the fused matmul kernel (NHWC)
# ----------------------------------------------------------------------------
def _im2col3x3_nhwc(xp, stride):
    """xp: padded [N, Hp, Wp, C] -> cols [N*Ho*Wo, 9*C] with feature order (kh,kw,c)."""
    N, Hp, Wp, C = xp.shape
    Ho = (Hp - 3) // stride + 1
    Wo = (Wp - 3) // stride + 1
    patches = []
    for kh in range(3):
        for kw in range(3):
            patches.append(xp[:, kh:kh + stride * (Ho - 1) + 1:stride,
                              kw:kw + stride * (Wo - 1) + 1:stride, :])
    cols = jnp.concatenate(patches, axis=-1)            # [N, Ho, Wo, 9*C]
    return cols.reshape(N * Ho * Wo, 9 * C), Ho, Wo


def conv2d_nhwc(x, w, b, scale, shift, *, stride, padding, apply_act=True):
    """x: [N, H, W, C]; w: [OC, C, 3, 3] (PyTorch Conv2d layout)."""
    N = x.shape[0]
    C = x.shape[3]
    OC = w.shape[0]
    xp = jnp.pad(x, ((0, 0), (padding, padding), (padding, padding), (0, 0)))
    cols, Ho, Wo = _im2col3x3_nhwc(xp, stride)
    wm = jnp.transpose(w, (2, 3, 1, 0)).reshape(9 * C, OC)   # rows (kh,kw,c)
    if scale is not None:                                    # fold eval-mode BN
        wm = wm * scale[None, :]
        bb = b * scale + shift
    else:
        bb = b
    y = fused_matmul(cols, wm, bb, apply_act=apply_act)
    return y.reshape(N, Ho, Wo, OC)


def _subpixel_weight(w):
    """ConvTranspose2d weight [C, OC, 3, 3] -> sub-pixel weight [4*C, 4*OC].
    Row index (dh*2+dw)*C + c ; column index (rh*2+rw)*OC + oc."""
    C, OC = w.shape[0], w.shape[1]
    tap = {(0, 0): 1, (1, 0): 2, (1, 1): 0}    # (output parity r, input offset d) -> k
    big = jnp.zeros((2, 2, C, 2, 2, OC), w.dtype)
    for rh in range(2):
        for rw in range(2):
            for dh in range(2):
                for dw in range(2):
                    kh = tap.get((rh, dh))
                    kw = tap.get((rw, dw))
                    if kh is None or kw is None:
                        continue
                    big = big.at[dh, dw, :, rh, rw, :].set(w[:, :, kh, kw])
    return big.reshape(4 * C, 4 * OC)


def convtranspose2d_nhwc(x, w, b, scale, shift, *, output_padding,
                         apply_act=True):
    """ConvTranspose2d(k=3, stride=2, padding=1) via sub-pixel decomposition.
    x: [N, H, W, C]; w: [C, OC, 3, 3] (PyTorch ConvTranspose2d layout)."""
    N, H, W, C = x.shape
    OC = w.shape[1]
    # 2x2 neighbourhoods with one-sided high padding; features ordered (dh,dw,c).
    xp = jnp.pad(x, ((0, 0), (0, 1), (0, 1), (0, 0)))
    patches = [xp[:, dh:dh + H, dw:dw + W, :]
               for dh in range(2) for dw in range(2)]
    cols = jnp.concatenate(patches, axis=-1).reshape(N * H * W, 4 * C)
    wbig = _subpixel_weight(w)                               # [4C, 4OC]
    scale4 = jnp.tile(scale, 4)
    shift4 = jnp.tile(shift, 4)
    b4 = jnp.tile(b, 4)
    wbig = wbig * scale4[None, :]                            # fold eval-mode BN
    bb = b4 * scale4 + shift4
    y = fused_matmul(cols, wbig, bb, apply_act=apply_act)
    # depth-to-space: [N,H,W,rh,rw,OC] -> [N, 2H, 2W, OC]
    y = y.reshape(N, H, W, 2, 2, OC).transpose(0, 1, 3, 2, 4, 5)
    y = y.reshape(N, 2 * H, 2 * W, OC)
    Ho = 2 * H - 1 + output_padding
    Wo = 2 * W - 1 + output_padding
    return y[:, :Ho, :Wo, :]


def _bilinear_matrix(in_size, out_size):
    """1-D interpolation matrix for F.interpolate(mode='bilinear', align_corners=False)."""
    scale = in_size / out_size
    i = jnp.arange(out_size, dtype=jnp.float32)
    src = jnp.maximum((i + 0.5) * scale - 0.5, 0.0)
    i0 = jnp.minimum(jnp.floor(src).astype(jnp.int32), in_size - 1)
    i1 = jnp.minimum(i0 + 1, in_size - 1)
    lam = src - i0.astype(jnp.float32)
    cols = jnp.arange(in_size)
    L = ((1.0 - lam)[:, None] * (cols[None, :] == i0[:, None]) +
         lam[:, None] * (cols[None, :] == i1[:, None]))
    return L.astype(jnp.float32)                             # [out, in]


def bilinear_upsample_combined(x_flat, in_h, in_w, out_h, out_w):
    """x_flat: [N, in_h*in_w] (single channel) -> [N, out_h*out_w] with one matmul."""
    Lh = _bilinear_matrix(in_h, out_h)                       # [out_h, in_h]
    Lw = _bilinear_matrix(in_w, out_w)                       # [out_w, in_w]
    Mcomb = jnp.einsum('ij,kl->ikjl', Lh, Lw).reshape(out_h * out_w,
                                                      in_h * in_w)
    zeros = jnp.zeros((out_h * out_w,), jnp.float32)
    return fused_matmul(x_flat, Mcomb.T, zeros, apply_act=False)


# ----------------------------------------------------------------------------
# Parameter init (deterministic, synthetic) and full forward pass
# ----------------------------------------------------------------------------
HIDDEN_DIMS = (32, 64, 128, 256)
BN_EPS = 1e-5


def init_params(key, in_channels=1, latent_dim=16, hidden_dims=HIDDEN_DIMS):
    keys = iter(jax.random.split(key, 64))

    def nrm(shape, s=0.05):
        return s * jax.random.normal(next(keys), shape, jnp.float32)

    p = {}
    enc, c = [], in_channels
    for h in hidden_dims:
        enc.append(dict(w=nrm((h, c, 3, 3)), b=nrm((h,)),
                        gamma=1.0 + nrm((h,)), beta=nrm((h,))))
        c = h
    p["encoder"] = enc

    flat = hidden_dims[-1] * 4
    p["fc_mu"] = dict(w=nrm((latent_dim, flat)), b=nrm((latent_dim,)))
    p["fc_var"] = dict(w=nrm((latent_dim, flat)), b=nrm((latent_dim,)))
    p["decoder_input"] = dict(w=nrm((flat, latent_dim)), b=nrm((flat,)))

    rev = list(hidden_dims)[::-1]
    dec = []
    for i in range(len(rev) - 1):
        dec.append(dict(w=nrm((rev[i], rev[i + 1], 3, 3)), b=nrm((rev[i + 1],)),
                        gamma=1.0 + nrm((rev[i + 1],)), beta=nrm((rev[i + 1],))))
    p["decoder"] = dec

    p["final_ct"] = dict(w=nrm((32, 32, 3, 3)), b=nrm((32,)),
                         gamma=1.0 + nrm((32,)), beta=nrm((32,)))
    p["final_conv"] = dict(w=nrm((1, 32, 3, 3)), b=nrm((1,)))
    return p


def _bn_scale_shift(layer):
    # eval-mode BN with running_mean=0, running_var=1
    scale = layer["gamma"] / jnp.sqrt(1.0 + BN_EPS)
    shift = layer["beta"]
    return scale, shift


def vae_forward(params, x, eps_noise, latent_dim=16, hidden_dims=HIDDEN_DIMS):
    B = x.shape[0]
    # ---- encode (NHWC internally) ----
    h = jnp.transpose(x, (0, 2, 3, 1))
    for layer in params["encoder"]:
        s, sh = _bn_scale_shift(layer)
        h = conv2d_nhwc(h, layer["w"], layer["b"], s, sh,
                        stride=2, padding=1, apply_act=True)
    # torch.flatten(start_dim=1) flattens in (c, h, w) order
    flat = jnp.transpose(h, (0, 3, 1, 2)).reshape(B, -1)

    # ---- fused latent path: fc_mu/fc_var (+1e-8), reparameterize, decoder_input ----
    mu, log_var, z, d = latent_path(flat, params["fc_mu"], params["fc_var"],
                                    params["decoder_input"], eps_noise,
                                    latent_dim)

    # ---- decode ----
    d = d.reshape(B, hidden_dims[-1], 2, 2).transpose(0, 2, 3, 1)   # -> NHWC
    for layer in params["decoder"]:
        s, sh = _bn_scale_shift(layer)
        d = convtranspose2d_nhwc(d, layer["w"], layer["b"], s, sh,
                                 output_padding=1, apply_act=True)
    fl = params["final_ct"]
    s, sh = _bn_scale_shift(fl)
    d = convtranspose2d_nhwc(d, fl["w"], fl["b"], s, sh,
                             output_padding=0, apply_act=True)
    fc = params["final_conv"]
    d = conv2d_nhwc(d, fc["w"], fc["b"], None, None,
                    stride=1, padding=1, apply_act=False)
    # d: [B, 31, 31, 1] -> bilinear Upsample(28, 28) as one combined matmul
    N, Hc, Wc, _ = d.shape
    out_flat = bilinear_upsample_combined(d.reshape(N, Hc * Wc), Hc, Wc, 28, 28)
    out = out_flat.reshape(N, 1, 28, 28)
    return dict(output=out, input=x, mu=mu, log_var=log_var, latents=z)


# ----------------------------------------------------------------------------
if __name__ == "__main__":
    key = jax.random.PRNGKey(0)
    k_param, k_x, k_eps = jax.random.split(key, 3)

    in_channels, latent_dim, batch = 1, 16, 2
    # spatial 32x32 is required: four stride-2 convs -> 2x2, so 256*4 = fc_mu in-features
    x = jax.random.normal(k_x, (batch, in_channels, 32, 32), jnp.float32)
    eps_noise = jax.random.normal(k_eps, (batch, latent_dim), jnp.float32)

    params = init_params(k_param, in_channels=in_channels, latent_dim=latent_dim)
    fwd = jax.jit(functools.partial(vae_forward, latent_dim=latent_dim))
    result = fwd(params, x, eps_noise)

    out = jax.block_until_ready(result["output"])
    assert out.shape == (batch, 1, 28, 28), out.shape
    assert result["mu"].shape == (batch, latent_dim)
    assert result["latents"].shape == (batch, latent_dim)
    assert bool(jnp.all(jnp.isfinite(out)))
    print("KERNEL_OK")
</pallas_src>

<mosaic_0001>
module attributes {stable_mosaic.version = 11 : i64} {
  func.func @_fused_matmul_kernel(%arg0: i32, %arg1: memref<128x128xbf16, #tpu.memory_space<vmem>>, %arg2: memref<128x128xbf16, #tpu.memory_space<vmem>>, %arg3: memref<1x128xf32, #tpu.memory_space<vmem>>, %arg4: memref<128x128xf32, #tpu.memory_space<vmem>>) attributes {dimension_semantics = [#tpu.dimension_semantics<parallel>], iteration_bounds = array<i64: 4>, scalar_prefetch = 0 : i64, scratch_operands = 0 : i64, tpu.core_type = #tpu.core_type<tc>, window_params = [{transform_indices = @transform_0, window_bounds = array<i64: 128, 128>}, {pipeline_mode = #tpu.pipeline_mode<synchronous>, transform_indices = @transform_1, window_bounds = array<i64: 128, 128>}, {pipeline_mode = #tpu.pipeline_mode<synchronous>, transform_indices = @transform_2, window_bounds = array<i64: 1, 128>}, {transform_indices = @transform_3, window_bounds = array<i64: 128, 128>}]} {
    %c0 = arith.constant 0 : index
    %c0_0 = arith.constant 0 : index
    %0 = vector.load %arg1[%c0, %c0_0] : memref<128x128xbf16, #tpu.memory_space<vmem>>, vector<128x128xbf16>
    %c0_1 = arith.constant 0 : index
    %c0_2 = arith.constant 0 : index
    %1 = vector.load %arg2[%c0_1, %c0_2] : memref<128x128xbf16, #tpu.memory_space<vmem>>, vector<128x128xbf16>
    %cst = arith.constant dense<0.000000e+00> : vector<128x128xf32>
    %2 = tpu.matmul %0, %1, %cst {dimension_numbers = #tpu.dot_dimension_numbers<[1], [0], [0], [1], [0, 0, 1, 1], [], []>} : vector<128x128xbf16>, vector<128x128xbf16>, vector<128x128xf32> -> vector<128x128xf32>
    %c0_3 = arith.constant 0 : index
    %c0_4 = arith.constant 0 : index
    %3 = vector.load %arg3[%c0_3, %c0_4] : memref<1x128xf32, #tpu.memory_space<vmem>>, vector<1x128xf32>
    %4 = vector.broadcast %3 : vector<1x128xf32> to vector<128x128xf32>
    %5 = arith.addf %2, %4 : vector<128x128xf32>
    %cst_5 = arith.constant 0.000000e+00 : f32
    %6 = vector.broadcast %cst_5 : f32 to vector<128x128xf32>
    %7 = arith.cmpf oge, %5, %6 : vector<128x128xf32>
    %cst_6 = arith.constant 0.00999999977 : f32
    %8 = vector.broadcast %cst_6 : f32 to vector<128x128xf32>
    %9 = arith.mulf %8, %5 : vector<128x128xf32>
    %10 = arith.select %7, %5, %9 : vector<128x128xi1>, vector<128x128xf32>
    %c0_7 = arith.constant 0 : index
    %c0_8 = arith.constant 0 : index
    %11 = vector.load %arg4[%c0_7, %c0_8] : memref<128x128xf32, #tpu.memory_space<vmem>>, vector<128x128xf32>
    tpu.vector_store %arg4[%c0_7, %c0_8], %10 {strides = array<i32>} : memref<128x128xf32, #tpu.memory_space<vmem>>, vector<128x128xf32>,
    return
  }
  func.func @transform_0(%arg0: i32) -> (i32, i32) {
    %c0_i32 = arith.constant 0 : i32
    %c0_i32_0 = arith.constant 0 : i32
    return %arg0, %c0_i32 : i32, i32
  }
  func.func @transform_1(%arg0: i32) -> (i32, i32) {
    %c0_i32 = arith.constant 0 : i32
    %c0_i32_0 = arith.constant 0 : i32
    %c0_i32_1 = arith.constant 0 : i32
    return %c0_i32, %c0_i32_0 : i32, i32
  }
  func.func @transform_2(%arg0: i32) -> (i32, i32) {
    %c0_i32 = arith.constant 0 : i32
    %c0_i32_0 = arith.constant 0 : i32
    %c0_i32_1 = arith.constant 0 : i32
    return %c0_i32, %c0_i32_0 : i32, i32
  }
  func.func @transform_3(%arg0: i32) -> (i32, i32) {
    %c0_i32 = arith.constant 0 : i32
    %c0_i32_0 = arith.constant 0 : i32
    return %arg0, %c0_i32 : i32, i32
  }
}

module attributes {stable_mosaic.version = 11 : i64} {
  func.func @_fused_matmul_kernel(%arg0: i32, %arg1: memref<128x384xbf16, #tpu.memory_space<vmem>>, %arg2: memref<384x128xbf16, #tpu.memory_space<vmem>>, %arg3: memref<1x128xf32, #tpu.memory_space<vmem>>, %arg4: memref<128x128xf32, #tpu.memory_space<vmem>>) attributes {dimension_semantics = [#tpu.dimension_semantics<parallel>], iteration_bounds = array<i64: 1>, scalar_prefetch = 0 : i64, scratch_operands = 0 : i64, tpu.core_type = #tpu.core_type<tc>, window_params = [{transform_indices = @transform_0, window_bounds = array<i64: 128, 384>}, {pipeline_mode = #tpu.pipeline_mode<synchronous>, transform_indices = @transform_1, window_bounds = array<i64: 384, 128>}, {pipeline_mode = #tpu.pipeline_mode<synchronous>, transform_indices = @transform_2, window_bounds = array<i64: 1, 128>}, {transform_indices = @transform_3, window_bounds = array<i64: 128, 128>}]} {
    %c0 = arith.constant 0 : index
    %c0_0 = arith.constant 0 : index
    %0 = vector.load %arg1[%c0, %c0_0] : memref<128x384xbf16, #tpu.memory_space<vmem>>, vector<128x384xbf16>
    %c0_1 = arith.constant 0 : index
    %c0_2 = arith.constant 0 : index
    %1 = vector.load %arg2[%c0_1, %c0_2] : memref<384x128xbf16, #tpu.memory_space<vmem>>, vector<384x128xbf16>
    %cst = arith.constant dense<0.000000e+00> : vector<128x128xf32>
    %2 = tpu.matmul %0, %1, %cst {dimension_numbers = #tpu.dot_dimension_numbers<[1], [0], [0], [1], [0, 0, 1, 1], [], []>} : vector<128x384xbf16>, vector<384x128xbf16>, vector<128x128xf32> -> vector<128x128xf32>
    %c0_3 = arith.constant 0 : index
    %c0_4 = arith.constant 0 : index
    %3 = vector.load %arg3[%c0_3, %c0_4] : memref<1x128xf32, #tpu.memory_space<vmem>>, vector<1x128xf32>
    %4 = vector.broadcast %3 : vector<1x128xf32> to vector<128x128xf32>
    %5 = arith.addf %2, %4 : vector<128x128xf32>
    %cst_5 = arith.constant 0.000000e+00 : f32
    %6 = vector.broadcast %cst_5 : f32 to vector<128x128xf32>
    %7 = arith.cmpf oge, %5, %6 : vector<128x128xf32>
    %cst_6 = arith.constant 0.00999999977 : f32
    %8 = vector.broadcast %cst_6 : f32 to vector<128x128xf32>
    %9 = arith.mulf %8, %5 : vector<128x128xf32>
    %10 = arith.select %7, %5, %9 : vector<128x128xi1>, vector<128x128xf32>
    %c0_7 = arith.constant 0 : index
    %c0_8 = arith.constant 0 : index
    %11 = vector.load %arg4[%c0_7, %c0_8] : memref<128x128xf32, #tpu.memory_space<vmem>>, vector<128x128xf32>
    tpu.vector_store %arg4[%c0_7, %c0_8], %10 {strides = array<i32>} : memref<128x128xf32, #tpu.memory_space<vmem>>, vector<128x128xf32>,
    return
  }
  func.func @transform_0(%arg0: i32) -> (i32, i32) {
    %c0_i32 = arith.constant 0 : i32
    %c0_i32_0 = arith.constant 0 : i32
    return %arg0, %c0_i32 : i32, i32
  }
  func.func @transform_1(%arg0: i32) -> (i32, i32) {
    %c0_i32 = arith.constant 0 : i32
    %c0_i32_0 = arith.constant 0 : i32
    %c0_i32_1 = arith.constant 0 : i32
    return %c0_i32, %c0_i32_0 : i32, i32
  }
  func.func @transform_2(%arg0: i32) -> (i32, i32) {
    %c0_i32 = arith.constant 0 : i32
    %c0_i32_0 = arith.constant 0 : i32
    %c0_i32_1 = arith.constant 0 : i32
    return %c0_i32, %c0_i32_0 : i32, i32
  }
  func.func @transform_3(%arg0: i32) -> (i32, i32) {
    %c0_i32 = arith.constant 0 : i32
    %c0_i32_0 = arith.constant 0 : i32
    return %arg0, %c0_i32 : i32, i32
  }
}

module attributes {stable_mosaic.version = 11 : i64} {
  func.func @_fused_matmul_kernel(%arg0: i32, %arg1: memref<32x640xbf16, #tpu.memory_space<vmem>>, %arg2: memref<640x128xbf16, #tpu.memory_space<vmem>>, %arg3: memref<1x128xf32, #tpu.memory_space<vmem>>, %arg4: memref<32x128xf32, #tpu.memory_space<vmem>>) attributes {dimension_semantics = [#tpu.dimension_semantics<parallel>], iteration_bounds = array<i64: 1>, scalar_prefetch = 0 : i64, scratch_operands = 0 : i64, tpu.core_type = #tpu.core_type<tc>, window_params = [{transform_indices = @transform_0, window_bounds = array<i64: 32, 640>}, {pipeline_mode = #tpu.pipeline_mode<synchronous>, transform_indices = @transform_1, window_bounds = array<i64: 640, 128>}, {pipeline_mode = #tpu.pipeline_mode<synchronous>, transform_indices = @transform_2, window_bounds = array<i64: 1, 128>}, {transform_indices = @transform_3, window_bounds = array<i64: 32, 128>}]} {
    %c0 = arith.constant 0 : index
    %c0_0 = arith.constant 0 : index
    %0 = vector.load %arg1[%c0, %c0_0] : memref<32x640xbf16, #tpu.memory_space<vmem>>, vector<32x640xbf16>
    %c0_1 = arith.constant 0 : index
    %c0_2 = arith.constant 0 : index
    %1 = vector.load %arg2[%c0_1, %c0_2] : memref<640x128xbf16, #tpu.memory_space<vmem>>, vector<640x128xbf16>
    %cst = arith.constant dense<0.000000e+00> : vector<32x128xf32>
    %2 = tpu.matmul %0, %1, %cst {dimension_numbers = #tpu.dot_dimension_numbers<[1], [0], [0], [1], [0, 0, 1, 1], [], []>} : vector<32x640xbf16>, vector<640x128xbf16>, vector<32x128xf32> -> vector<32x128xf32>
    %c0_3 = arith.constant 0 : index
    %c0_4 = arith.constant 0 : index
    %3 = vector.load %arg3[%c0_3, %c0_4] : memref<1x128xf32, #tpu.memory_space<vmem>>, vector<1x128xf32>
    %4 = vector.broadcast %3 : vector<1x128xf32> to vector<32x128xf32>
    %5 = arith.addf %2, %4 : vector<32x128xf32>
    %cst_5 = arith.constant 0.000000e+00 : f32
    %6 = vector.broadcast %cst_5 : f32 to vector<32x128xf32>
    %7 = arith.cmpf oge, %5, %6 : vector<32x128xf32>
    %cst_6 = arith.constant 0.00999999977 : f32
    %8 = vector.broadcast %cst_6 : f32 to vector<32x128xf32>
    %9 = arith.mulf %8, %5 : vector<32x128xf32>
    %10 = arith.select %7, %5, %9 : vector<32x128xi1>, vector<32x128xf32>
    %c0_7 = arith.constant 0 : index
    %c0_8 = arith.constant 0 : index
    %11 = vector.load %arg4[%c0_7, %c0_8] : memref<32x128xf32, #tpu.memory_space<vmem>>, vector<32x128xf32>
    tpu.vector_store %arg4[%c0_7, %c0_8], %10 {strides = array<i32>} : memref<32x128xf32, #tpu.memory_space<vmem>>, vector<32x128xf32>,
    return
  }
  func.func @transform_0(%arg0: i32) -> (i32, i32) {
    %c0_i32 = arith.constant 0 : i32
    %c0_i32_0 = arith.constant 0 : i32
    return %arg0, %c0_i32 : i32, i32
  }
  func.func @transform_1(%arg0: i32) -> (i32, i32) {
    %c0_i32 = arith.constant 0 : i32
    %c0_i32_0 = arith.constant 0 : i32
    %c0_i32_1 = arith.constant 0 : i32
    return %c0_i32, %c0_i32_0 : i32, i32
  }
  func.func @transform_2(%arg0: i32) -> (i32, i32) {
    %c0_i32 = arith.constant 0 : i32
    %c0_i32_0 = arith.constant 0 : i32
    %c0_i32_1 = arith.constant 0 : i32
    return %c0_i32, %c0_i32_0 : i32, i32
  }
  func.func @transform_3(%arg0: i32) -> (i32, i32) {
    %c0_i32 = arith.constant 0 : i32
    %c0_i32_0 = arith.constant 0 : i32
    return %arg0, %c0_i32 : i32, i32
  }
}

module attributes {stable_mosaic.version = 11 : i64} {
  func.func @_fused_matmul_kernel(%arg0: i32, %arg1: memref<8x1152xbf16, #tpu.memory_space<vmem>>, %arg2: memref<1152x256xbf16, #tpu.memory_space<vmem>>, %arg3: memref<1x256xf32, #tpu.memory_space<vmem>>, %arg4: memref<8x256xf32, #tpu.memory_space<vmem>>) attributes {dimension_semantics = [#tpu.dimension_semantics<parallel>], iteration_bounds = array<i64: 1>, scalar_prefetch = 0 : i64, scratch_operands = 0 : i64, tpu.core_type = #tpu.core_type<tc>, window_params = [{transform_indices = @transform_0, window_bounds = array<i64: 8, 1152>}, {pipeline_mode = #tpu.pipeline_mode<synchronous>, transform_indices = @transform_1, window_bounds = array<i64: 1152, 256>}, {pipeline_mode = #tpu.pipeline_mode<synchronous>, transform_indices = @transform_2, window_bounds = array<i64: 1, 256>}, {transform_indices = @transform_3, window_bounds = array<i64: 8, 256>}]} {
    %c0 = arith.constant 0 : index
    %c0_0 = arith.constant 0 : index
    %0 = vector.load %arg1[%c0, %c0_0] : memref<8x1152xbf16, #tpu.memory_space<vmem>>, vector<8x1152xbf16>
    %c0_1 = arith.constant 0 : index
    %c0_2 = arith.constant 0 : index
    %1 = vector.load %arg2[%c0_1, %c0_2] : memref<1152x256xbf16, #tpu.memory_space<vmem>>, vector<1152x256xbf16>
    %cst = arith.constant dense<0.000000e+00> : vector<8x256xf32>
    %2 = tpu.matmul %0, %1, %cst {dimension_numbers = #tpu.dot_dimension_numbers<[1], [0], [0], [1], [0, 0, 1, 1], [], []>} : vector<8x1152xbf16>, vector<1152x256xbf16>, vector<8x256xf32> -> vector<8x256xf32>
    %c0_3 = arith.constant 0 : index
    %c0_4 = arith.constant 0 : index
    %3 = vector.load %arg3[%c0_3, %c0_4] : memref<1x256xf32, #tpu.memory_space<vmem>>, vector<1x256xf32>
    %4 = vector.broadcast %3 : vector<1x256xf32> to vector<8x256xf32>
    %5 = arith.addf %2, %4 : vector<8x256xf32>
    %cst_5 = arith.constant 0.000000e+00 : f32
    %6 = vector.broadcast %cst_5 : f32 to vector<8x256xf32>
    %7 = arith.cmpf oge, %5, %6 : vector<8x256xf32>
    %cst_6 = arith.constant 0.00999999977 : f32
    %8 = vector.broadcast %cst_6 : f32 to vector<8x256xf32>
    %9 = arith.mulf %8, %5 : vector<8x256xf32>
    %10 = arith.select %7, %5, %9 : vector<8x256xi1>, vector<8x256xf32>
    %c0_7 = arith.constant 0 : index
    %c0_8 = arith.constant 0 : index
    %11 = vector.load %arg4[%c0_7, %c0_8] : memref<8x256xf32, #tpu.memory_space<vmem>>, vector<8x256xf32>
    tpu.vector_store %arg4[%c0_7, %c0_8], %10 {strides = array<i32>} : memref<8x256xf32, #tpu.memory_space<vmem>>, vector<8x256xf32>,
    return
  }
  func.func @transform_0(%arg0: i32) -> (i32, i32) {
    %c0_i32 = arith.constant 0 : i32
    %c0_i32_0 = arith.constant 0 : i32
    return %arg0, %c0_i32 : i32, i32
  }
  func.func @transform_1(%arg0: i32) -> (i32, i32) {
    %c0_i32 = arith.constant 0 : i32
    %c0_i32_0 = arith.constant 0 : i32
    %c0_i32_1 = arith.constant 0 : i32
    return %c0_i32, %c0_i32_0 : i32, i32
  }
  func.func @transform_2(%arg0: i32) -> (i32, i32) {
    %c0_i32 = arith.constant 0 : i32
    %c0_i32_0 = arith.constant 0 : i32
    %c0_i32_1 = arith.constant 0 : i32
    return %c0_i32, %c0_i32_0 : i32, i32
  }
  func.func @transform_3(%arg0: i32) -> (i32, i32) {
    %c0_i32 = arith.constant 0 : i32
    %c0_i32_0 = arith.constant 0 : i32
    return %arg0, %c0_i32 : i32, i32
  }
}

module attributes {stable_mosaic.version = 11 : i64} {
  func.func @_latent_kernel(%arg0: memref<8x1024xbf16, #tpu.memory_space<vmem>>, %arg1: memref<1024x256xbf16, #tpu.memory_space<vmem>>, %arg2: memref<1x256xf32, #tpu.memory_space<vmem>>, %arg3: memref<8x128xf32, #tpu.memory_space<vmem>>, %arg4: memref<128x1024xbf16, #tpu.memory_space<vmem>>, %arg5: memref<1x1024xf32, #tpu.memory_space<vmem>>, %arg6: memref<8x128xf32, #tpu.memory_space<vmem>>, %arg7: memref<8x128xf32, #tpu.memory_space<vmem>>, %arg8: memref<8x128xf32, #tpu.memory_space<vmem>>, %arg9: memref<8x1024xf32, #tpu.memory_space<vmem>>) attributes {dimension_semantics = [], scalar_prefetch = 0 : i64, scratch_operands = 0 : i64, tpu.core_type = #tpu.core_type<tc>} {
    %c0 = arith.constant 0 : index
    %c0_0 = arith.constant 0 : index
    %0 = vector.load %arg0[%c0, %c0_0] : memref<8x1024xbf16, #tpu.memory_space<vmem>>, vector<8x1024xbf16>
    %c0_1 = arith.constant 0 : index
    %c0_2 = arith.constant 0 : index
    %1 = vector.load %arg1[%c0_1, %c0_2] : memref<1024x256xbf16, #tpu.memory_space<vmem>>, vector<1024x256xbf16>
    %cst = arith.constant dense<0.000000e+00> : vector<8x256xf32>
    %2 = tpu.matmul %0, %1, %cst {dimension_numbers = #tpu.dot_dimension_numbers<[1], [0], [0], [1], [0, 0, 1, 1], [], []>} : vector<8x1024xbf16>, vector<1024x256xbf16>, vector<8x256xf32> -> vector<8x256xf32>
    %c0_3 = arith.constant 0 : index
    %c0_4 = arith.constant 0 : index
    %3 = vector.load %arg2[%c0_3, %c0_4] : memref<1x256xf32, #tpu.memory_space<vmem>>, vector<1x256xf32>
    %4 = vector.broadcast %3 : vector<1x256xf32> to vector<8x256xf32>
    %5 = arith.addf %2, %4 : vector<8x256xf32>
    %6 = vector.extract_strided_slice %5 {offsets = [0, 0], sizes = [8, 128], strides = [1, 1]} : vector<8x256xf32> to vector<8x128xf32>
    %7 = vector.extract_strided_slice %5 {offsets = [0, 128], sizes = [8, 128], strides = [1, 1]} : vector<8x256xf32> to vector<8x128xf32>
    %cst_5 = arith.constant 9.99999993E-9 : f32
    %8 = vector.broadcast %cst_5 : f32 to vector<8x128xf32>
    %9 = arith.addf %7, %8 : vector<8x128xf32>
    %c0_6 = arith.constant 0 : index
    %c0_7 = arith.constant 0 : index
    %10 = vector.load %arg3[%c0_6, %c0_7] : memref<8x128xf32, #tpu.memory_space<vmem>>, vector<8x128xf32>
    %cst_8 = arith.constant 5.000000e-01 : f32
    %11 = vector.broadcast %cst_8 : f32 to vector<8x128xf32>
    %12 = arith.mulf %11, %9 : vector<8x128xf32>
    %13 = math.exp %12 : vector<8x128xf32>
    %14 = arith.mulf %10, %13 : vector<8x128xf32>
    %15 = arith.addf %14, %6 : vector<8x128xf32>
    %c0_9 = arith.constant 0 : index
    %c0_10 = arith.constant 0 : index
    %16 = vector.load %arg6[%c0_9, %c0_10] : memref<8x128xf32, #tpu.memory_space<vmem>>, vector<8x128xf32>
    tpu.vector_store %arg6[%c0_9, %c0_10], %6 {strides = array<i32>} : memref<8x128xf32, #tpu.memory_space<vmem>>, vector<8x128xf32>,
    %c0_11 = arith.constant 0 : index
    %c0_12 = arith.constant 0 : index
    %17 = vector.load %arg7[%c0_11, %c0_12] : memref<8x128xf32, #tpu.memory_space<vmem>>, vector<8x128xf32>
    tpu.vector_store %arg7[%c0_11, %c0_12], %9 {strides = array<i32>} : memref<8x128xf32, #tpu.memory_space<vmem>>, vector<8x128xf32>,
    %c0_13 = arith.constant 0 : index
    %c0_14 = arith.constant 0 : index
    %18 = vector.load %arg8[%c0_13, %c0_14] : memref<8x128xf32, #tpu.memory_space<vmem>>, vector<8x128xf32>
    tpu.vector_store %arg8[%c0_13, %c0_14], %15 {strides = array<i32>} : memref<8x128xf32, #tpu.memory_space<vmem>>, vector<8x128xf32>,
    %19 = arith.truncf %15 : vector<8x128xf32> to vector<8x128xbf16>
    %c0_15 = arith.constant 0 : index
    %c0_16 = arith.constant 0 : index
    %20 = vector.load %arg4[%c0_15, %c0_16] : memref<128x1024xbf16, #tpu.memory_space<vmem>>, vector<128x1024xbf16>
    %cst_17 = arith.constant dense<0.000000e+00> : vector<8x1024xf32>
    %21 = tpu.matmul %19, %20, %cst_17 {dimension_numbers = #tpu.dot_dimension_numbers<[1], [0], [0], [1], [0, 0, 1, 1], [], []>} : vector<8x128xbf16>, vector<128x1024xbf16>, vector<8x1024xf32> -> vector<8x1024xf32>
    %c0_18 = arith.constant 0 : index
    %c0_19 = arith.constant 0 : index
    %22 = vector.load %arg5[%c0_18, %c0_19] : memref<1x1024xf32, #tpu.memory_space<vmem>>, vector<1x1024xf32>
    %23 = vector.broadcast %22 : vector<1x1024xf32> to vector<8x1024xf32>
    %24 = arith.addf %21, %23 : vector<8x1024xf32>
    %c0_20 = arith.constant 0 : index
    %c0_21 = arith.constant 0 : index
    %25 = vector.load %arg9[%c0_20, %c0_21] : memref<8x1024xf32, #tpu.memory_space<vmem>>, vector<8x1024xf32>
    tpu.vector_store %arg9[%c0_20, %c0_21], %24 {strides = array<i32>} : memref<8x1024xf32, #tpu.memory_space<vmem>>, vector<8x1024xf32>,
    return
  }
}

module attributes {stable_mosaic.version = 11 : i64} {
  func.func @_fused_matmul_kernel(%arg0: i32, %arg1: memref<8x1024xbf16, #tpu.memory_space<vmem>>, %arg2: memref<1024x512xbf16, #tpu.memory_space<vmem>>, %arg3: memref<1x512xf32, #tpu.memory_space<vmem>>, %arg4: memref<8x512xf32, #tpu.memory_space<vmem>>) attributes {dimension_semantics = [#tpu.dimension_semantics<parallel>], iteration_bounds = array<i64: 1>, scalar_prefetch = 0 : i64, scratch_operands = 0 : i64, tpu.core_type = #tpu.core_type<tc>, window_params = [{transform_indices = @transform_0, window_bounds = array<i64: 8, 1024>}, {pipeline_mode = #tpu.pipeline_mode<synchronous>, transform_indices = @transform_1, window_bounds = array<i64: 1024, 512>}, {pipeline_mode = #tpu.pipeline_mode<synchronous>, transform_indices = @transform_2, window_bounds = array<i64: 1, 512>}, {transform_indices = @transform_3, window_bounds = array<i64: 8, 512>}]} {
    %c0 = arith.constant 0 : index
    %c0_0 = arith.constant 0 : index
    %0 = vector.load %arg1[%c0, %c0_0] : memref<8x1024xbf16, #tpu.memory_space<vmem>>, vector<8x1024xbf16>
    %c0_1 = arith.constant 0 : index
    %c0_2 = arith.constant 0 : index
    %1 = vector.load %arg2[%c0_1, %c0_2] : memref<1024x512xbf16, #tpu.memory_space<vmem>>, vector<1024x512xbf16>
    %cst = arith.constant dense<0.000000e+00> : vector<8x512xf32>
    %2 = tpu.matmul %0, %1, %cst {dimension_numbers = #tpu.dot_dimension_numbers<[1], [0], [0], [1], [0, 0, 1, 1], [], []>} : vector<8x1024xbf16>, vector<1024x512xbf16>, vector<8x512xf32> -> vector<8x512xf32>
    %c0_3 = arith.constant 0 : index
    %c0_4 = arith.constant 0 : index
    %3 = vector.load %arg3[%c0_3, %c0_4] : memref<1x512xf32, #tpu.memory_space<vmem>>, vector<1x512xf32>
    %4 = vector.broadcast %3 : vector<1x512xf32> to vector<8x512xf32>
    %5 = arith.addf %2, %4 : vector<8x512xf32>
    %cst_5 = arith.constant 0.000000e+00 : f32
    %6 = vector.broadcast %cst_5 : f32 to vector<8x512xf32>
    %7 = arith.cmpf oge, %5, %6 : vector<8x512xf32>
    %cst_6 = arith.constant 0.00999999977 : f32
    %8 = vector.broadcast %cst_6 : f32 to vector<8x512xf32>
    %9 = arith.mulf %8, %5 : vector<8x512xf32>
    %10 = arith.select %7, %5, %9 : vector<8x512xi1>, vector<8x512xf32>
    %c0_7 = arith.constant 0 : index
    %c0_8 = arith.constant 0 : index
    %11 = vector.load %arg4[%c0_7, %c0_8] : memref<8x512xf32, #tpu.memory_space<vmem>>, vector<8x512xf32>
    tpu.vector_store %arg4[%c0_7, %c0_8], %10 {strides = array<i32>} : memref<8x512xf32, #tpu.memory_space<vmem>>, vector<8x512xf32>,
    return
  }
  func.func @transform_0(%arg0: i32) -> (i32, i32) {
    %c0_i32 = arith.constant 0 : i32
    %c0_i32_0 = arith.constant 0 : i32
    return %arg0, %c0_i32 : i32, i32
  }
  func.func @transform_1(%arg0: i32) -> (i32, i32) {
    %c0_i32 = arith.constant 0 : i32
    %c0_i32_0 = arith.constant 0 : i32
    %c0_i32_1 = arith.constant 0 : i32
    return %c0_i32, %c0_i32_0 : i32, i32
  }
  func.func @transform_2(%arg0: i32) -> (i32, i32) {
    %c0_i32 = arith.constant 0 : i32
    %c0_i32_0 = arith.constant 0 : i32
    %c0_i32_1 = arith.constant 0 : i32
    return %c0_i32, %c0_i32_0 : i32, i32
  }
  func.func @transform_3(%arg0: i32) -> (i32, i32) {
    %c0_i32 = arith.constant 0 : i32
    %c0_i32_0 = arith.constant 0 : i32
    return %arg0, %c0_i32 : i32, i32
  }
}

module attributes {stable_mosaic.version = 11 : i64} {
  func.func @_fused_matmul_kernel(%arg0: i32, %arg1: memref<32x512xbf16, #tpu.memory_space<vmem>>, %arg2: memref<512x256xbf16, #tpu.memory_space<vmem>>, %arg3: memref<1x256xf32, #tpu.memory_space<vmem>>, %arg4: memref<32x256xf32, #tpu.memory_space<vmem>>) attributes {dimension_semantics = [#tpu.dimension_semantics<parallel>], iteration_bounds = array<i64: 1>, scalar_prefetch = 0 : i64, scratch_operands = 0 : i64, tpu.core_type = #tpu.core_type<tc>, window_params = [{transform_indices = @transform_0, window_bounds = array<i64: 32, 512>}, {pipeline_mode = #tpu.pipeline_mode<synchronous>, transform_indices = @transform_1, window_bounds = array<i64: 512, 256>}, {pipeline_mode = #tpu.pipeline_mode<synchronous>, transform_indices = @transform_2, window_bounds = array<i64: 1, 256>}, {transform_indices = @transform_3, window_bounds = array<i64: 32, 256>}]} {
    %c0 = arith.constant 0 : index
    %c0_0 = arith.constant 0 : index
    %0 = vector.load %arg1[%c0, %c0_0] : memref<32x512xbf16, #tpu.memory_space<vmem>>, vector<32x512xbf16>
    %c0_1 = arith.constant 0 : index
    %c0_2 = arith.constant 0 : index
    %1 = vector.load %arg2[%c0_1, %c0_2] : memref<512x256xbf16, #tpu.memory_space<vmem>>, vector<512x256xbf16>
    %cst = arith.constant dense<0.000000e+00> : vector<32x256xf32>
    %2 = tpu.matmul %0, %1, %cst {dimension_numbers = #tpu.dot_dimension_numbers<[1], [0], [0], [1], [0, 0, 1, 1], [], []>} : vector<32x512xbf16>, vector<512x256xbf16>, vector<32x256xf32> -> vector<32x256xf32>
    %c0_3 = arith.constant 0 : index
    %c0_4 = arith.constant 0 : index
    %3 = vector.load %arg3[%c0_3, %c0_4] : memref<1x256xf32, #tpu.memory_space<vmem>>, vector<1x256xf32>
    %4 = vector.broadcast %3 : vector<1x256xf32> to vector<32x256xf32>
    %5 = arith.addf %2, %4 : vector<32x256xf32>
    %cst_5 = arith.constant 0.000000e+00 : f32
    %6 = vector.broadcast %cst_5 : f32 to vector<32x256xf32>
    %7 = arith.cmpf oge, %5, %6 : vector<32x256xf32>
    %cst_6 = arith.constant 0.00999999977 : f32
    %8 = vector.broadcast %cst_6 : f32 to vector<32x256xf32>
    %9 = arith.mulf %8, %5 : vector<32x256xf32>
    %10 = arith.select %7, %5, %9 : vector<32x256xi1>, vector<32x256xf32>
    %c0_7 = arith.constant 0 : index
    %c0_8 = arith.constant 0 : index
    %11 = vector.load %arg4[%c0_7, %c0_8] : memref<32x256xf32, #tpu.memory_space<vmem>>, vector<32x256xf32>
    tpu.vector_store %arg4[%c0_7, %c0_8], %10 {strides = array<i32>} : memref<32x256xf32, #tpu.memory_space<vmem>>, vector<32x256xf32>,
    return
  }
  func.func @transform_0(%arg0: i32) -> (i32, i32) {
    %c0_i32 = arith.constant 0 : i32
    %c0_i32_0 = arith.constant 0 : i32
    return %arg0, %c0_i32 : i32, i32
  }
  func.func @transform_1(%arg0: i32) -> (i32, i32) {
    %c0_i32 = arith.constant 0 : i32
    %c0_i32_0 = arith.constant 0 : i32
    %c0_i32_1 = arith.constant 0 : i32
    return %c0_i32, %c0_i32_0 : i32, i32
  }
  func.func @transform_2(%arg0: i32) -> (i32, i32) {
    %c0_i32 = arith.constant 0 : i32
    %c0_i32_0 = arith.constant 0 : i32
    %c0_i32_1 = arith.constant 0 : i32
    return %c0_i32, %c0_i32_0 : i32, i32
  }
  func.func @transform_3(%arg0: i32) -> (i32, i32) {
    %c0_i32 = arith.constant 0 : i32
    %c0_i32_0 = arith.constant 0 : i32
    return %arg0, %c0_i32 : i32, i32
  }
}

module attributes {stable_mosaic.version = 11 : i64} {
  func.func @_fused_matmul_kernel(%arg0: i32, %arg1: memref<128x256xbf16, #tpu.memory_space<vmem>>, %arg2: memref<256x128xbf16, #tpu.memory_space<vmem>>, %arg3: memref<1x128xf32, #tpu.memory_space<vmem>>, %arg4: memref<128x128xf32, #tpu.memory_space<vmem>>) attributes {dimension_semantics = [#tpu.dimension_semantics<parallel>], iteration_bounds = array<i64: 1>, scalar_prefetch = 0 : i64, scratch_operands = 0 : i64, tpu.core_type = #tpu.core_type<tc>, window_params = [{transform_indices = @transform_0, window_bounds = array<i64: 128, 256>}, {pipeline_mode = #tpu.pipeline_mode<synchronous>, transform_indices = @transform_1, window_bounds = array<i64: 256, 128>}, {pipeline_mode = #tpu.pipeline_mode<synchronous>, transform_indices = @transform_2, window_bounds = array<i64: 1, 128>}, {transform_indices = @transform_3, window_bounds = array<i64: 128, 128>}]} {
    %c0 = arith.constant 0 : index
    %c0_0 = arith.constant 0 : index
    %0 = vector.load %arg1[%c0, %c0_0] : memref<128x256xbf16, #tpu.memory_space<vmem>>, vector<128x256xbf16>
    %c0_1 = arith.constant 0 : index
    %c0_2 = arith.constant 0 : index
    %1 = vector.load %arg2[%c0_1, %c0_2] : memref<256x128xbf16, #tpu.memory_space<vmem>>, vector<256x128xbf16>
    %cst = arith.constant dense<0.000000e+00> : vector<128x128xf32>
    %2 = tpu.matmul %0, %1, %cst {dimension_numbers = #tpu.dot_dimension_numbers<[1], [0], [0], [1], [0, 0, 1, 1], [], []>} : vector<128x256xbf16>, vector<256x128xbf16>, vector<128x128xf32> -> vector<128x128xf32>
    %c0_3 = arith.constant 0 : index
    %c0_4 = arith.constant 0 : index
    %3 = vector.load %arg3[%c0_3, %c0_4] : memref<1x128xf32, #tpu.memory_space<vmem>>, vector<1x128xf32>
    %4 = vector.broadcast %3 : vector<1x128xf32> to vector<128x128xf32>
    %5 = arith.addf %2, %4 : vector<128x128xf32>
    %cst_5 = arith.constant 0.000000e+00 : f32
    %6 = vector.broadcast %cst_5 : f32 to vector<128x128xf32>
    %7 = arith.cmpf oge, %5, %6 : vector<128x128xf32>
    %cst_6 = arith.constant 0.00999999977 : f32
    %8 = vector.broadcast %cst_6 : f32 to vector<128x128xf32>
    %9 = arith.mulf %8, %5 : vector<128x128xf32>
    %10 = arith.select %7, %5, %9 : vector<128x128xi1>, vector<128x128xf32>
    %c0_7 = arith.constant 0 : index
    %c0_8 = arith.constant 0 : index
    %11 = vector.load %arg4[%c0_7, %c0_8] : memref<128x128xf32, #tpu.memory_space<vmem>>, vector<128x128xf32>
    tpu.vector_store %arg4[%c0_7, %c0_8], %10 {strides = array<i32>} : memref<128x128xf32, #tpu.memory_space<vmem>>, vector<128x128xf32>,
    return
  }
  func.func @transform_0(%arg0: i32) -> (i32, i32) {
    %c0_i32 = arith.constant 0 : i32
    %c0_i32_0 = arith.constant 0 : i32
    return %arg0, %c0_i32 : i32, i32
  }
  func.func @transform_1(%arg0: i32) -> (i32, i32) {
    %c0_i32 = arith.constant 0 : i32
    %c0_i32_0 = arith.constant 0 : i32
    %c0_i32_1 = arith.constant 0 : i32
    return %c0_i32, %c0_i32_0 : i32, i32
  }
  func.func @transform_2(%arg0: i32) -> (i32, i32) {
    %c0_i32 = arith.constant 0 : i32
    %c0_i32_0 = arith.constant 0 : i32
    %c0_i32_1 = arith.constant 0 : i32
    return %c0_i32, %c0_i32_0 : i32, i32
  }
  func.func @transform_3(%arg0: i32) -> (i32, i32) {
    %c0_i32 = arith.constant 0 : i32
    %c0_i32_0 = arith.constant 0 : i32
    return %arg0, %c0_i32 : i32, i32
  }
}

module attributes {stable_mosaic.version = 11 : i64} {
  func.func @_fused_matmul_kernel(%arg0: i32, %arg1: memref<128x384xbf16, #tpu.memory_space<vmem>>, %arg2: memref<384x128xbf16, #tpu.memory_space<vmem>>, %arg3: memref<1x128xf32, #tpu.memory_space<vmem>>, %arg4: memref<128x128xf32, #tpu.memory_space<vmem>>) attributes {dimension_semantics = [#tpu.dimension_semantics<parallel>], iteration_bounds = array<i64: 16>, scalar_prefetch = 0 : i64, scratch_operands = 0 : i64, tpu.core_type = #tpu.core_type<tc>, window_params = [{transform_indices = @transform_0, window_bounds = array<i64: 128, 384>}, {pipeline_mode = #tpu.pipeline_mode<synchronous>, transform_indices = @transform_1, window_bounds = array<i64: 384, 128>}, {pipeline_mode = #tpu.pipeline_mode<synchronous>, transform_indices = @transform_2, window_bounds = array<i64: 1, 128>}, {transform_indices = @transform_3, window_bounds = array<i64: 128, 128>}]} {
    %c0 = arith.constant 0 : index
    %c0_0 = arith.constant 0 : index
    %0 = vector.load %arg1[%c0, %c0_0] : memref<128x384xbf16, #tpu.memory_space<vmem>>, vector<128x384xbf16>
    %c0_1 = arith.constant 0 : index
    %c0_2 = arith.constant 0 : index
    %1 = vector.load %arg2[%c0_1, %c0_2] : memref<384x128xbf16, #tpu.memory_space<vmem>>, vector<384x128xbf16>
    %cst = arith.constant dense<0.000000e+00> : vector<128x128xf32>
    %2 = tpu.matmul %0, %1, %cst {dimension_numbers = #tpu.dot_dimension_numbers<[1], [0], [0], [1], [0, 0, 1, 1], [], []>} : vector<128x384xbf16>, vector<384x128xbf16>, vector<128x128xf32> -> vector<128x128xf32>
    %c0_3 = arith.constant 0 : index
    %c0_4 = arith.constant 0 : index
    %3 = vector.load %arg3[%c0_3, %c0_4] : memref<1x128xf32, #tpu.memory_space<vmem>>, vector<1x128xf32>
    %4 = vector.broadcast %3 : vector<1x128xf32> to vector<128x128xf32>
    %5 = arith.addf %2, %4 : vector<128x128xf32>
    %c0_5 = arith.constant 0 : index
    %c0_6 = arith.constant 0 : index
    %6 = vector.load %arg4[%c0_5, %c0_6] : memref<128x128xf32, #tpu.memory_space<vmem>>, vector<128x128xf32>
    tpu.vector_store %arg4[%c0_5, %c0_6], %5 {strides = array<i32>} : memref<128x128xf32, #tpu.memory_space<vmem>>, vector<128x128xf32>,
    return
  }
  func.func @transform_0(%arg0: i32) -> (i32, i32) {
    %c0_i32 = arith.constant 0 : i32
    %c0_i32_0 = arith.constant 0 : i32
    return %arg0, %c0_i32 : i32, i32
  }
  func.func @transform_1(%arg0: i32) -> (i32, i32) {
    %c0_i32 = arith.constant 0 : i32
    %c0_i32_0 = arith.constant 0 : i32
    %c0_i32_1 = arith.constant 0 : i32
    return %c0_i32, %c0_i32_0 : i32, i32
  }
  func.func @transform_2(%arg0: i32) -> (i32, i32) {
    %c0_i32 = arith.constant 0 : i32
    %c0_i32_0 = arith.constant 0 : i32
    %c0_i32_1 = arith.constant 0 : i32
    return %c0_i32, %c0_i32_0 : i32, i32
  }
  func.func @transform_3(%arg0: i32) -> (i32, i32) {
    %c0_i32 = arith.constant 0 : i32
    %c0_i32_0 = arith.constant 0 : i32
    return %arg0, %c0_i32 : i32, i32
  }
}

module attributes {stable_mosaic.version = 11 : i64} {
  func.func @_fused_matmul_kernel(%arg0: i32, %arg1: memref<8x1024xbf16, #tpu.memory_space<vmem>>, %arg2: memref<1024x896xbf16, #tpu.memory_space<vmem>>, %arg3: memref<1x896xf32, #tpu.memory_space<vmem>>, %arg4: memref<8x896xf32, #tpu.memory_space<vmem>>) attributes {dimension_semantics = [#tpu.dimension_semantics<parallel>], iteration_bounds = array<i64: 1>, scalar_prefetch = 0 : i64, scratch_operands = 0 : i64, tpu.core_type = #tpu.core_type<tc>, window_params = [{transform_indices = @transform_0, window_bounds = array<i64: 8, 1024>}, {pipeline_mode = #tpu.pipeline_mode<synchronous>, transform_indices = @transform_1, window_bounds = array<i64: 1024, 896>}, {pipeline_mode = #tpu.pipeline_mode<synchronous>, transform_indices = @transform_2, window_bounds = array<i64: 1, 896>}, {transform_indices = @transform_3, window_bounds = array<i64: 8, 896>}]} {
    %c0 = arith.constant 0 : index
    %c0_0 = arith.constant 0 : index
    %0 = vector.load %arg1[%c0, %c0_0] : memref<8x1024xbf16, #tpu.memory_space<vmem>>, vector<8x1024xbf16>
    %c0_1 = arith.constant 0 : index
    %c0_2 = arith.constant 0 : index
    %1 = vector.load %arg2[%c0_1, %c0_2] : memref<1024x896xbf16, #tpu.memory_space<vmem>>, vector<1024x896xbf16>
    %cst = arith.constant dense<0.000000e+00> : vector<8x896xf32>
    %2 = tpu.matmul %0, %1, %cst {dimension_numbers = #tpu.dot_dimension_numbers<[1], [0], [0], [1], [0, 0, 1, 1], [], []>} : vector<8x1024xbf16>, vector<1024x896xbf16>, vector<8x896xf32> -> vector<8x896xf32>
    %c0_3 = arith.constant 0 : index
    %c0_4 = arith.constant 0 : index
    %3 = vector.load %arg3[%c0_3, %c0_4] : memref<1x896xf32, #tpu.memory_space<vmem>>, vector<1x896xf32>
    %4 = vector.broadcast %3 : vector<1x896xf32> to vector<8x896xf32>
    %5 = arith.addf %2, %4 : vector<8x896xf32>
    %c0_5 = arith.constant 0 : index
    %c0_6 = arith.constant 0 : index
    %6 = vector.load %arg4[%c0_5, %c0_6] : memref<8x896xf32, #tpu.memory_space<vmem>>, vector<8x896xf32>
    tpu.vector_store %arg4[%c0_5, %c0_6], %5 {strides = array<i32>} : memref<8x896xf32, #tpu.memory_space<vmem>>, vector<8x896xf32>,
    return
  }
  func.func @transform_0(%arg0: i32) -> (i32, i32) {
    %c0_i32 = arith.constant 0 : i32
    %c0_i32_0 = arith.constant 0 : i32
    return %arg0, %c0_i32 : i32, i32
  }
  func.func @transform_1(%arg0: i32) -> (i32, i32) {
    %c0_i32 = arith.constant 0 : i32
    %c0_i32_0 = arith.constant 0 : i32
    %c0_i32_1 = arith.constant 0 : i32
    return %c0_i32, %c0_i32_0 : i32, i32
  }
  func.func @transform_2(%arg0: i32) -> (i32, i32) {
    %c0_i32 = arith.constant 0 : i32
    %c0_i32_0 = arith.constant 0 : i32
    %c0_i32_1 = arith.constant 0 : i32
    return %c0_i32, %c0_i32_0 : i32, i32
  }
  func.func @transform_3(%arg0: i32) -> (i32, i32) {
    %c0_i32 = arith.constant 0 : i32
    %c0_i32_0 = arith.constant 0 : i32
    return %arg0, %c0_i32 : i32, i32
  }
}

</mosaic_0001>

<llo_original>
// kernel: vae_forward.11
$region0: #{vae_forward.11}
  #allocation0 [shape = 'u32[]', space=smem, size = 0x4, offset = 0x4, fixed_abs, tag = 'smem constant byte address 0x4 - core index']
  #allocation1 [shape = 'u32[72,128]{1,0:T(1,128)}', space=vmem, size = 0x9000, scoped, tag = 'internal scratch']
  %s0 = inlined_call_operand.vmem [shape: bf16[512,128], index: 0, kind: input, shape index: {}]
  %s1 = inlined_call_operand.vmem [shape: bf16[128,128], index: 1, kind: input, shape index: {}]
  %s2 = inlined_call_operand.vmem [shape: f32[1,128], index: 2, kind: input, shape index: {}]
  %s3 = inlined_call_operand.vmem [shape: f32[512,128], index: 3, kind: output, shape index: {}]
  %s4 = sld [smem:[#allocation0]]
  $region45: #{vae_forward.11} parent=0
    _
  %s6 = ssub.s32 1, %s4
  %s7 = scalar_select 0, %s6, %s4
  loop: start=0, step=1, limit=6
  $region2: #{vae_forward.11} parent=0 // loop_pre_header
    _
  $region3: #{vae_forward.11} parent=0 // loop_header
    %s9 = sphi 0, %s13
    %p10 = scmp.ge.s32.totalorder %s9, 6
    %s19 = sphi 0, %s21
    %s22 = sphi 0, %s19
    %s23 = sphi 0, %s22
    %s39 = sphi 0, %s23
    %s43 = sphi 0, %s43
    %s45 = sphi 0, %s43
    %s46 = sphi 0, %s45
    %s60 = sphi 0, %s46
    %s64 = sphi 0, %s64
    %s66 = sphi 0, %s64
    %s67 = sphi 0, %s66
    %s81 = sphi 0, %s67
    %s87 = sphi 0, %s89
    %s90 = sphi 0, %s87
    %s91 = sphi 0, %s90
    %s107 = sphi 0, %s91
  $region4: #{vae_forward.11} parent=0 // loop_header_branch
    %12 = sbr.rel (%p10) target = $region8
  $region5: #{vae_forward.11} parent=0 // loop_body
    %s14 = ssub.s32 %s9, 1
    %s15 = ssub.s32 %s9, 2
    %s16 = sadd.s32 %s9, 1
    %s17 = ssub.s32 %s9, %s16
    %p18 = scmp.eq.s32.totalorder %s17, 0
    %s20 = sadd.s32 %s19, 1
    %s21 = scalar_select %p18, %s19, %s20
    %p24 = pneg %p18
    %p25 = scmp.eq.s32.totalorder %s9, 3
    %p26 = por %p24, %p25
    %p27 = scmp.ne.s32.totalorder %s19, %s22
    %p28 = scmp.eq.s32.totalorder %s9, 0
    %p29 = por %p27, %p28
    %p30 = scmp.ne.s32.totalorder %s19, %s22
    %p31 = scmp.eq.s32.totalorder %s14, 3
    %p32 = por %p30, %p31
    %p33 = scmp.ne.s32.totalorder %s22, %s23
    %p34 = scmp.eq.s32.totalorder %s14, 0
    %p35 = por %p33, %p34
    %p36 = scmp.ne.s32.totalorder %s22, %s23
    %p37 = scmp.eq.s32.totalorder %s15, 3
    %p38 = por %p36, %p37
    %p40 = scmp.ne.s32.totalorder %s23, %s39
    %p41 = scmp.eq.s32.totalorder %s15, 0
    %p42 = por %p40, %p41
    %s44 = sadd.s32 %s43, 1
    %p47 = scmp.eq.s32.totalorder %s9, 3
    %p48 = scmp.ne.s32.totalorder %s43, %s45
    %p49 = scmp.eq.s32.totalorder %s9, 0
    %p50 = por %p48, %p49
    %p51 = scmp.ne.s32.totalorder %s43, %s45
    %p52 = scmp.eq.s32.totalorder %s14, 3
    %p53 = por %p51, %p52
    %p54 = scmp.ne.s32.totalorder %s45, %s46
    %p55 = scmp.eq.s32.totalorder %s14, 0
    %p56 = por %p54, %p55
    %p57 = scmp.ne.s32.totalorder %s45, %s46
    %p58 = scmp.eq.s32.totalorder %s15, 3
    %p59 = por %p57, %p58
    %p61 = scmp.ne.s32.totalorder %s46, %s60
    %p62 = scmp.eq.s32.totalorder %s15, 0
    %p63 = por %p61, %p62
    %s65 = sadd.s32 %s64, 1
    %p68 = scmp.eq.s32.totalorder %s9, 3
    %p69 = scmp.ne.s32.totalorder %s64, %s66
    %p70 = scmp.eq.s32.totalorder %s9, 0
    %p71 = por %p69, %p70
    %p72 = scmp.ne.s32.totalorder %s64, %s66
    %p73 = scmp.eq.s32.totalorder %s14, 3
    %p74 = por %p72, %p73
    %p75 = scmp.ne.s32.totalorder %s66, %s67
    %p76 = scmp.eq.s32.totalorder %s14, 0
    %p77 = por %p75, %p76
    %p78 = scmp.ne.s32.totalorder %s66, %s67
    %p79 = scmp.eq.s32.totalorder %s15, 3
    %p80 = por %p78, %p79
    %p82 = scmp.ne.s32.totalorder %s67, %s81
    %p83 = scmp.eq.s32.totalorder %s15, 0
    %p84 = por %p82, %p83
    %s85 = ssub.s32 %s9, %s16
    %p86 = scmp.eq.s32.totalorder %s85, 0
    %s88 = sadd.s32 %s87, 1
    %s89 = scalar_select %p86, %s87, %s88
    %p92 = pneg %p86
    %p93 = scmp.eq.s32.totalorder %s9, 3
    %p94 = por %p92, %p93
    %p95 = scmp.ne.s32.totalorder %s87, %s90
    %p96 = scmp.eq.s32.totalorder %s9, 0
    %p97 = por %p95, %p96
    %p98 = scmp.ne.s32.totalorder %s87, %s90
    %p99 = scmp.eq.s32.totalorder %s14, 3
    %p100 = por %p98, %p99
    %p101 = scmp.ne.s32.totalorder %s90, %s91
    %p102 = scmp.eq.s32.totalorder %s14, 0
    %p103 = por %p101, %p102
    %p104 = scmp.ne.s32.totalorder %s90, %s91
    %p105 = scmp.eq.s32.totalorder %s15, 3
    %p106 = por %p104, %p105
    %p108 = scmp.ne.s32.totalorder %s91, %s107
    %p109 = scmp.eq.s32.totalorder %s15, 0
    %p110 = por %p108, %p109
    %p111 = scmp.le.s32.totalorder 1, %s9
    %p112 = scmp.lt.s32.totalorder %s9, 5
    %p113 = pnand %p111, %p112
    %p114 = pneg %p113
    // Predicated region
    $region9: #{vae_forward.11} parent=5 // pred_check
      _
    $region10: #{vae_forward.11} parent=5 // pred_check_branch
      %116 = sbr.rel (%p113) target = $region12
    $region11: #{vae_forward.11} parent=5 // pred_region
      %s117 = ssub.s32 %s9, 1
      // Predicated region
      $region13: #{vae_forward.11} parent=11 // pred_check
        %p118 = pneg %p56
      $region14: #{vae_forward.11} parent=11 // pred_check_branch
        %120 = sbr.rel (%p118) target = $region16
      $region15: #{vae_forward.11} parent=11 // pred_region
        _
      $region16: #{vae_forward.11} parent=11 // pred_fallthru
        _
      // Predicated region
      $region17: #{vae_forward.11} parent=11 // pred_check
        %p121 = pneg %p77
      $region18: #{vae_forward.11} parent=11 // pred_check_branch
        %123 = sbr.rel (%p121) target = $region20
      $region19: #{vae_forward.11} parent=11 // pred_region
        _
      $region20: #{vae_forward.11} parent=11 // pred_fallthru
        _
    $region12: #{vae_forward.11} parent=5 // pred_fallthru
      _
    %p124 = scmp.lt.s32.totalorder %s9, 4
    // Predicated region
    $region21: #{vae_forward.11} parent=5 // pred_check
      %p125 = pneg %p124
    $region22: #{vae_forward.11} parent=5 // pred_check_branch
      %127 = sbr.rel (%p125) target = $region24
    $region23: #{vae_forward.11} parent=5 // pred_region
      // Predicated region
      $region25: #{vae_forward.11} parent=23 // pred_check
        %p128 = pneg %p29
      $region26: #{vae_forward.11} parent=23 // pred_check_branch
        %130 = sbr.rel (%p128) target = $region28
      $region27: #{vae_forward.11} parent=23 // pred_region
        %s131 = smul.u32 16, %s9
        %p132 = scmp.lt.s32.totalorder %s131, 63
        %s133 = scalar_select %p132, %s131, 63
        %s134 = smul.addr %s133, 4
        %s135 = scalar_lea.vmem %s0, %s134
        %s136 = smul.u32 16, %s9
      $region28: #{vae_forward.11} parent=23 // pred_fallthru
        _
    $region24: #{vae_forward.11} parent=5 // pred_fallthru
      _
    %p137 = scmp.le.s32.totalorder 1, %s9
    %p138 = scmp.lt.s32.totalorder %s9, 5
    %p139 = pnand %p137, %p138
    %p140 = pneg %p139
    // Predicated region
    $region29: #{vae_forward.11} parent=5 // pred_check
      _
    $region30: #{vae_forward.11} parent=5 // pred_check_branch
      %142 = sbr.rel (%p139) target = $region32
    $region31: #{vae_forward.11} parent=5 // pred_region
      %s143 = ssub.s32 %s9, 1
      %s144 = smul.u32 16, %s14
      %p145 = scmp.lt.s32.totalorder %s144, 63
      %s146 = scalar_select %p145, %s144, 63
      %s147 = smul.addr %s146, 4
      %s148 = scalar_lea.vmem %s0, %s147
      %p149 = pneg %p35
      %p150 = pneg %p32
      %p151 = pneg %p56
      %p152 = pneg %p53
      %p153 = pneg %p77
      %p154 = pneg %p74
      %p155 = pneg %p103
      %p156 = pneg %p100
      %s157 = smul.u32 16, %s14
      %p158 = scmp.lt.s32.totalorder %s157, 63
      %s159 = scalar_select %p158, %s157, 63
      %s160 = smul.addr %s159, 8
      %s161 = scalar_lea.vmem %s3, %s160
      %s162 = smul.u32 16, %s14
      %p163 = scmp.lt.s32.totalorder %s162, 63
      %s164 = scalar_select %p163, %s162, 63
      %s165 = smul.addr %s164, 4
      %s166 = scalar_lea.vmem %s0, %s165
      %s167 = smul.u32 16, %s14
      %s168 = smul.u32 16, %s14
      %p169 = scmp.lt.s32.totalorder %s168, 63
      %s170 = scalar_select %p169, %s168, 63
      %s171 = smul.addr %s170, 8
      %s172 = scalar_lea.vmem %s3, %s171
      %s173 = smul.u32 16, %s14
      %v174 = vld [vmem:[%s166] sm:$0xf]
      %v175 = vld [vmem:[%s166 + $0x4] sm:$0xf]
      %v176 = vld [vmem:[%s166 + $0x8] sm:$0xf]
      %v177 = vld [vmem:[%s166 + $0xc] sm:$0xf]
      %v178 = vld [vmem:[%s166 + $0x10] sm:$0xf]
      %v179 = vld [vmem:[%s166 + $0x14] sm:$0xf]
      %v180 = vld [vmem:[%s166 + $0x18] sm:$0xf]
      %v181 = vld [vmem:[%s166 + $0x1c] sm:$0xf]
      %v182 = vld [vmem:[%s166 + $0x20] sm:$0xf]
      %v183 = vld [vmem:[%s166 + $0x24] sm:$0xf]
      %v184 = vld [vmem:[%s166 + $0x28] sm:$0xf]
      %v185 = vld [vmem:[%s166 + $0x2c] sm:$0xf]
      %v186 = vld [vmem:[%s166 + $0x30] sm:$0xf]
      %v187 = vld [vmem:[%s166 + $0x34] sm:$0xf]
      %v188 = vld [vmem:[%s166 + $0x38] sm:$0xf]
      %v189 = vld [vmem:[%s166 + $0x3c] sm:$0xf]
      %v190 = vld [vmem:[%s1] sm:$0xf]
      %v191 = vld [vmem:[%s1 + $0x4] sm:$0xf]
      %v192 = vld [vmem:[%s1 + $0x8] sm:$0xf]
      %v193 = vld [vmem:[%s1 + $0xc] sm:$0xf]
      %v194 = vld [vmem:[%s1 + $0x10] sm:$0xf]
      %v195 = vld [vmem:[%s1 + $0x14] sm:$0xf]
      %v196 = vld [vmem:[%s1 + $0x18] sm:$0xf]
      %v197 = vld [vmem:[%s1 + $0x1c] sm:$0xf]
      %v198 = vld [vmem:[%s1 + $0x20] sm:$0xf]
      %v199 = vld [vmem:[%s1 + $0x24] sm:$0xf]
      %v200 = vld [vmem:[%s1 + $0x28] sm:$0xf]
      %v201 = vld [vmem:[%s1 + $0x2c] sm:$0xf]
      %v202 = vld [vmem:[%s1 + $0x30] sm:$0xf]
      %v203 = vld [vmem:[%s1 + $0x34] sm:$0xf]
      %v204 = vld [vmem:[%s1 + $0x38] sm:$0xf]
      %v205 = vld [vmem:[%s1 + $0x3c] sm:$0xf]
      %v206 = vld [vmem:[%s2] sm:$0x1]
      %v208 = vperm.slane %v206, 0
      %v226 = vunpack.c.l.b16 %v174
      %v227 = vunpack.c.l.b16 %v175
      %v228 = vunpack.c.l.b16 %v176
      %v229 = vunpack.c.l.b16 %v177
      %v230 = vunpack.c.l.b16 %v178
      %v231 = vunpack.c.l.b16 %v179
      %v232 = vunpack.c.l.b16 %v180
      %v233 = vunpack.c.l.b16 %v181
      %v234 = vunpack.c.l.b16 %v182
      %v235 = vunpack.c.l.b16 %v183
      %v236 = vunpack.c.l.b16 %v184
      %v237 = vunpack.c.l.b16 %v185
      %v238 = vunpack.c.l.b16 %v186
      %v239 = vunpack.c.l.b16 %v187
      %v240 = vunpack.c.l.b16 %v188
      %v241 = vunpack.c.l.b16 %v189
      %v242 = vpack.c.b16 %v227, %v226
      %v243 = vpack.c.b16 %v229, %v228
      %v244 = vpack.c.b16 %v231, %v230
      %v245 = vpack.c.b16 %v233, %v232
      %v246 = vpack.c.b16 %v235, %v234
      %v247 = vpack.c.b16 %v237, %v236
      %v248 = vpack.c.b16 %v239, %v238
      %v249 = vpack.c.b16 %v241, %v240
      %v274 = vunpack.c.l.b16 %v190
      %v275 = vunpack.c.l.b16 %v191
      %v276 = vunpack.c.l.b16 %v192
      %v277 = vunpack.c.l.b16 %v193
      %v278 = vunpack.c.l.b16 %v194
      %v279 = vunpack.c.l.b16 %v195
      %v280 = vunpack.c.l.b16 %v196
      %v281 = vunpack.c.l.b16 %v197
      %v282 = vunpack.c.l.b16 %v198
      %v283 = vunpack.c.l.b16 %v199
      %v284 = vunpack.c.l.b16 %v200
      %v285 = vunpack.c.l.b16 %v201
      %v286 = vunpack.c.l.b16 %v202
      %v287 = vunpack.c.l.b16 %v203
      %v288 = vunpack.c.l.b16 %v204
      %v289 = vunpack.c.l.b16 %v205
      %v290 = vpack.c.b16 %v275, %v274
      %v291 = vpack.c.b16 %v277, %v276
      %v292 = vpack.c.b16 %v279, %v278
      %v293 = vpack.c.b16 %v281, %v280
      %v294 = vpack.c.b16 %v283, %v282
      %v295 = vpack.c.b16 %v285, %v284
      %v296 = vpack.c.b16 %v287, %v286
      %v297 = vpack.c.b16 %v289, %v288
      %306 = vmatpush.bf16.msra.mxu0 %v297
      %307 = vmatpush.bf16.msra.mxu0 %v296
      %308 = vmatpush.bf16.msra.mxu0 %v295
      %309 = vmatpush.bf16.msra.mxu0 %v294
      %310 = vmatpush.bf16.msra.mxu0 %v293
      %311 = vmatpush.bf16.msra.mxu0 %v292
      %312 = vmatpush.bf16.msra.mxu0 %v291
      %313 = vmatpush.bf16.msra.mxu0 %v290
      %314 = vmatmul.bf16.gmra.mxu0 %v242
      %v315 = vpop.f32.mrf.mxu0
      %v316 = vadd.f32 %v208, %v315
      %v317 = vpop.f32.mrf.mxu0
      %v318 = vadd.f32 %v208, %v317
      %319 = vmatmul.bf16.gmra.mxu0 %v243
      %v320 = vpop.f32.mrf.mxu0
      %v321 = vadd.f32 %v208, %v320
      %v322 = vpop.f32.mrf.mxu0
      %v323 = vadd.f32 %v208, %v322
      %324 = vmatmul.bf16.gmra.mxu0 %v244
      %v325 = vpop.f32.mrf.mxu0
      %v326 = vadd.f32 %v208, %v325
      %v327 = vpop.f32.mrf.mxu0
      %v328 = vadd.f32 %v208, %v327
      %329 = vmatmul.bf16.gmra.mxu0 %v245
      %v330 = vpop.f32.mrf.mxu0
      %v331 = vadd.f32 %v208, %v330
      %v332 = vpop.f32.mrf.mxu0
      %v333 = vadd.f32 %v208, %v332
      %334 = vmatmul.bf16.gmra.mxu0 %v246
      %v335 = vpop.f32.mrf.mxu0
      %v336 = vadd.f32 %v208, %v335
      %v337 = vpop.f32.mrf.mxu0
      %v338 = vadd.f32 %v208, %v337
      %339 = vmatmul.bf16.gmra.mxu0 %v247
      %v340 = vpop.f32.mrf.mxu0
      %v341 = vadd.f32 %v208, %v340
      %v342 = vpop.f32.mrf.mxu0
      %v343 = vadd.f32 %v208, %v342
      %344 = vmatmul.bf16.gmra.mxu0 %v248
      %v345 = vpop.f32.mrf.mxu0
      %v346 = vadd.f32 %v208, %v345
      %v347 = vpop.f32.mrf.mxu0
      %v348 = vadd.f32 %v208, %v347
      %349 = vmatmul.bf16.gmra.mxu0 %v249
      %v350 = vpop.f32.mrf.mxu0
      %v351 = vadd.f32 %v208, %v350
      %v352 = vpop.f32.mrf.mxu0
      %v353 = vadd.f32 %v208, %v352
      %354 = vdwg.mxu0
      %vm355 = vcmp.ge.f32.partialorder %v316, 0.0
      %vm356 = vcmp.ge.f32.partialorder %v318, 0.0
      %vm357 = vcmp.ge.f32.partialorder %v321, 0.0
      %vm358 = vcmp.ge.f32.partialorder %v323, 0.0
      %vm359 = vcmp.ge.f32.partialorder %v326, 0.0
      %vm360 = vcmp.ge.f32.partialorder %v328, 0.0
      %vm361 = vcmp.ge.f32.partialorder %v331, 0.0
      %vm362 = vcmp.ge.f32.partialorder %v333, 0.0
      %vm363 = vcmp.ge.f32.partialorder %v336, 0.0
      %vm364 = vcmp.ge.f32.partialorder %v338, 0.0
      %vm365 = vcmp.ge.f32.partialorder %v341, 0.0
      %vm366 = vcmp.ge.f32.partialorder %v343, 0.0
      %vm367 = vcmp.ge.f32.partialorder %v346, 0.0
      %vm368 = vcmp.ge.f32.partialorder %v348, 0.0
      %vm369 = vcmp.ge.f32.partialorder %v351, 0.0
      %vm370 = vcmp.ge.f32.partialorder %v353, 0.0
      %v371 = vmul.f32 %v316, 0.01
      %v372 = vmul.f32 %v318, 0.01
      %v373 = vmul.f32 %v321, 0.01
      %v374 = vmul.f32 %v323, 0.01
      %v375 = vmul.f32 %v326, 0.01
      %v376 = vmul.f32 %v328, 0.01
      %v377 = vmul.f32 %v331, 0.01
      %v378 = vmul.f32 %v333, 0.01
      %v379 = vmul.f32 %v336, 0.01
      %v380 = vmul.f32 %v338, 0.01
      %v381 = vmul.f32 %v341, 0.01
      %v382 = vmul.f32 %v343, 0.01
      %v383 = vmul.f32 %v346, 0.01
      %v384 = vmul.f32 %v348, 0.01
      %v385 = vmul.f32 %v351, 0.01
      %v386 = vmul.f32 %v353, 0.01
      %v387 = vsel %vm355, %v316, %v371
      %v388 = vsel %vm356, %v318, %v372
      %v389 = vsel %vm357, %v321, %v373
      %v390 = vsel %vm358, %v323, %v374
      %v391 = vsel %vm359, %v326, %v375
      %v392 = vsel %vm360, %v328, %v376
      %v393 = vsel %vm361, %v331, %v377
      %v394 = vsel %vm362, %v333, %v378
      %v395 = vsel %vm363, %v336, %v379
      %v396 = vsel %vm364, %v338, %v380
      %v397 = vsel %vm365, %v341, %v381
      %v398 = vsel %vm366, %v343, %v382
      %v399 = vsel %vm367, %v346, %v383
      %v400 = vsel %vm368, %v348, %v384
      %v401 = vsel %vm369, %v351, %v385
      %v402 = vsel %vm370, %v353, %v386
      %403 = vst [vmem:[%s172] sm:$0xff] %v387
      %404 = vst [vmem:[%s172 + $0x8] sm:$0xff] %v388
      %405 = vst [vmem:[%s172 + $0x10] sm:$0xff] %v389
      %406 = vst [vmem:[%s172 + $0x18] sm:$0xff] %v390
      %407 = vst [vmem:[%s172 + $0x20] sm:$0xff] %v391
      %408 = vst [vmem:[%s172 + $0x28] sm:$0xff] %v392
      %409 = vst [vmem:[%s172 + $0x30] sm:$0xff] %v393
      %410 = vst [vmem:[%s172 + $0x38] sm:$0xff] %v394
      %411 = vst [vmem:[%s172 + $0x40] sm:$0xff] %v395
      %412 = vst [vmem:[%s172 + $0x48] sm:$0xff] %v396
      %413 = vst [vmem:[%s172 + $0x50] sm:$0xff] %v397
      %414 = vst [vmem:[%s172 + $0x58] sm:$0xff] %v398
      %415 = vst [vmem:[%s172 + $0x60] sm:$0xff] %v399
      %416 = vst [vmem:[%s172 + $0x68] sm:$0xff] %v400
      %417 = vst [vmem:[%s172 + $0x70] sm:$0xff] %v401
      %418 = vst [vmem:[%s172 + $0x78] sm:$0xff] %v402
      %s419 = smul.u32 16, %s14
      %p420 = scmp.lt.s32.totalorder %s419, 63
      %s421 = scalar_select %p420, %s419, 63
      %s422 = smul.addr %s421, 8
      %s423 = scalar_lea.vmem %s3, %s422
      // Predicated region
      $region33: #{vae_forward.11} parent=31 // pred_check
        %p424 = pneg %p100
      $region34: #{vae_forward.11} parent=31 // pred_check_branch
        %426 = sbr.rel (%p424) target = $region36
      $region35: #{vae_forward.11} parent=31 // pred_region
        %s427 = smul.u32 16, %s14
      $region36: #{vae_forward.11} parent=31 // pred_fallthru
        _
    $region32: #{vae_forward.11} parent=5 // pred_fallthru
      _
    %p428 = scmp.le.s32.totalorder 2, %s9
    // Predicated region
    $region37: #{vae_forward.11} parent=5 // pred_check
      %p429 = pneg %p428
    $region38: #{vae_forward.11} parent=5 // pred_check_branch
      %431 = sbr.rel (%p429) target = $region40
    $region39: #{vae_forward.11} parent=5 // pred_region
      %s432 = ssub.s32 %s9, 2
      // Predicated region
      $region41: #{vae_forward.11} parent=39 // pred_check
        %p433 = pneg %p106
      $region42: #{vae_forward.11} parent=39 // pred_check_branch
        %435 = sbr.rel (%p433) target = $region44
      $region43: #{vae_forward.11} parent=39 // pred_region
        %s436 = smul.u32 16, %s15
        %p437 = scmp.lt.s32.totalorder %s436, 63
        %s438 = scalar_select %p437, %s436, 63
        %s439 = smul.addr %s438, 8
        %s440 = scalar_lea.vmem %s3, %s439
      $region44: #{vae_forward.11} parent=39 // pred_fallthru
        _
    $region40: #{vae_forward.11} parent=5 // pred_fallthru
      _
  $region6: #{vae_forward.11} parent=0 // loop_footer
    %s13 = sadd.s32 1, %s9
  $region7: #{vae_forward.11} parent=0 // loop_footer_branch
    %8 = sbr.rel target = $region3
  $region8: #{vae_forward.11} parent=0 // loop_exit
    _

// kernel: vae_forward.12
$region0: #{vae_forward.12}
  #allocation0 [shape = 'u32[]', space=smem, size = 0x4, offset = 0x4, fixed_abs, tag = 'smem constant byte address 0x4 - core index']
  #allocation1 [shape = 'u32[72,128]{1,0:T(1,128)}', space=vmem, size = 0x9000, scoped, tag = 'internal scratch']
  %s0 = inlined_call_operand.vmem [shape: bf16[128,384], index: 0, kind: input, shape index: {}]
  %s1 = inlined_call_operand.vmem [shape: bf16[384,128], index: 1, kind: input, shape index: {}]
  %s2 = inlined_call_operand.vmem [shape: f32[1,128], index: 2, kind: input, shape index: {}]
  %s3 = inlined_call_operand.vmem [shape: f32[128,128], index: 3, kind: output, shape index: {}]
  %s4 = sld [smem:[#allocation0]]
  $region22: #{vae_forward.12} parent=0
    _
  %s6 = ssub.s32 1, %s4
  %s7 = scalar_select 0, %s6, %s4
  // Predicated region
  $region2: #{vae_forward.12} parent=0 // pred_check
    _
  $region3: #{vae_forward.12} parent=0 // pred_check_branch
    %9 = sbr.rel (0) target = $region5
  $region4: #{vae_forward.12} parent=0 // pred_region
    _
  $region5: #{vae_forward.12} parent=0 // pred_fallthru
    _
  // Predicated region
  $region6: #{vae_forward.12} parent=0 // pred_check
    _
  $region7: #{vae_forward.12} parent=0 // pred_check_branch
    %11 = sbr.rel (0) target = $region9
  $region8: #{vae_forward.12} parent=0 // pred_region
    _
  $region9: #{vae_forward.12} parent=0 // pred_fallthru
    _
  // Predicated region
  $region10: #{vae_forward.12} parent=0 // pred_check
    _
  $region11: #{vae_forward.12} parent=0 // pred_check_branch
    %13 = sbr.rel (0) target = $region13
  $region12: #{vae_forward.12} parent=0 // pred_region
    _
  $region13: #{vae_forward.12} parent=0 // pred_fallthru
    _
  %v14 = vld [vmem:[%s0] sm:$0xff]
  %v15 = vld [vmem:[%s0 + $0x8] sm:$0xf]
  %v16 = vld [vmem:[%s0 + $0xc] sm:$0xff]
  %v17 = vld [vmem:[%s0 + $0x14] sm:$0xf]
  %v18 = vld [vmem:[%s0 + $0x18] sm:$0xff]
  %v19 = vld [vmem:[%s0 + $0x20] sm:$0xf]
  %v20 = vld [vmem:[%s0 + $0x24] sm:$0xff]
  %v21 = vld [vmem:[%s0 + $0x2c] sm:$0xf]
  %v22 = vld [vmem:[%s0 + $0x30] sm:$0xff]
  %v23 = vld [vmem:[%s0 + $0x38] sm:$0xf]
  %v24 = vld [vmem:[%s0 + $0x3c] sm:$0xff]
  %v25 = vld [vmem:[%s0 + $0x44] sm:$0xf]
  %v26 = vld [vmem:[%s0 + $0x48] sm:$0xff]
  %v27 = vld [vmem:[%s0 + $0x50] sm:$0xf]
  %v28 = vld [vmem:[%s0 + $0x54] sm:$0xff]
  %v29 = vld [vmem:[%s0 + $0x5c] sm:$0xf]
  %v30 = vld [vmem:[%s0 + $0x60] sm:$0xff]
  %v31 = vld [vmem:[%s0 + $0x68] sm:$0xf]
  %v32 = vld [vmem:[%s0 + $0x6c] sm:$0xff]
  %v33 = vld [vmem:[%s0 + $0x74] sm:$0xf]
  %v34 = vld [vmem:[%s0 + $0x78] sm:$0xff]
  %v35 = vld [vmem:[%s0 + $0x80] sm:$0xf]
  %v36 = vld [vmem:[%s0 + $0x84] sm:$0xff]
  %v37 = vld [vmem:[%s0 + $0x8c] sm:$0xf]
  %v38 = vld [vmem:[%s0 + $0x90] sm:$0xff]
  %v39 = vld [vmem:[%s0 + $0x98] sm:$0xf]
  %v40 = vld [vmem:[%s0 + $0x9c] sm:$0xff]
  %v41 = vld [vmem:[%s0 + $0xa4] sm:$0xf]
  %v42 = vld [vmem:[%s0 + $0xa8] sm:$0xff]
  %v43 = vld [vmem:[%s0 + $0xb0] sm:$0xf]
  %v44 = vld [vmem:[%s0 + $0xb4] sm:$0xff]
  %v45 = vld [vmem:[%s0 + $0xbc] sm:$0xf]
  %v46 = vld [vmem:[%s1] sm:$0xf]
  %v47 = vld [vmem:[%s1 + $0x4] sm:$0xf]
  %v48 = vld [vmem:[%s1 + $0x8] sm:$0xf]
  %v49 = vld [vmem:[%s1 + $0xc] sm:$0xf]
  %v50 = vld [vmem:[%s1 + $0x10] sm:$0xf]
  %v51 = vld [vmem:[%s1 + $0x14] sm:$0xf]
  %v52 = vld [vmem:[%s1 + $0x18] sm:$0xf]
  %v53 = vld [vmem:[%s1 + $0x1c] sm:$0xf]
  %v54 = vld [vmem:[%s1 + $0x20] sm:$0xf]
  %v55 = vld [vmem:[%s1 + $0x24] sm:$0xf]
  %v56 = vld [vmem:[%s1 + $0x28] sm:$0xf]
  %v57 = vld [vmem:[%s1 + $0x2c] sm:$0xf]
  %v58 = vld [vmem:[%s1 + $0x30] sm:$0xf]
  %v59 = vld [vmem:[%s1 + $0x34] sm:$0xf]
  %v60 = vld [vmem:[%s1 + $0x38] sm:$0xf]
  %v61 = vld [vmem:[%s1 + $0x3c] sm:$0xf]
  %v62 = vld [vmem:[%s1 + $0x40] sm:$0xf]
  %v63 = vld [vmem:[%s1 + $0x44] sm:$0xf]
  %v64 = vld [vmem:[%s1 + $0x48] sm:$0xf]
  %v65 = vld [vmem:[%s1 + $0x4c] sm:$0xf]
  %v66 = vld [vmem:[%s1 + $0x50] sm:$0xf]
  %v67 = vld [vmem:[%s1 + $0x54] sm:$0xf]
  %v68 = vld [vmem:[%s1 + $0x58] sm:$0xf]
  %v69 = vld [vmem:[%s1 + $0x5c] sm:$0xf]
  %v70 = vld [vmem:[%s1 + $0x60] sm:$0xf]
  %v71 = vld [vmem:[%s1 + $0x64] sm:$0xf]
  %v72 = vld [vmem:[%s1 + $0x68] sm:$0xf]
  %v73 = vld [vmem:[%s1 + $0x6c] sm:$0xf]
  %v74 = vld [vmem:[%s1 + $0x70] sm:$0xf]
  %v75 = vld [vmem:[%s1 + $0x74] sm:$0xf]
  %v76 = vld [vmem:[%s1 + $0x78] sm:$0xf]
  %v77 = vld [vmem:[%s1 + $0x7c] sm:$0xf]
  %v78 = vld [vmem:[%s1 + $0x80] sm:$0xf]
  %v79 = vld [vmem:[%s1 + $0x84] sm:$0xf]
  %v80 = vld [vmem:[%s1 + $0x88] sm:$0xf]
  %v81 = vld [vmem:[%s1 + $0x8c] sm:$0xf]
  %v82 = vld [vmem:[%s1 + $0x90] sm:$0xf]
  %v83 = vld [vmem:[%s1 + $0x94] sm:$0xf]
  %v84 = vld [vmem:[%s1 + $0x98] sm:$0xf]
  %v85 = vld [vmem:[%s1 + $0x9c] sm:$0xf]
  %v86 = vld [vmem:[%s1 + $0xa0] sm:$0xf]
  %v87 = vld [vmem:[%s1 + $0xa4] sm:$0xf]
  %v88 = vld [vmem:[%s1 + $0xa8] sm:$0xf]
  %v89 = vld [vmem:[%s1 + $0xac] sm:$0xf]
  %v90 = vld [vmem:[%s1 + $0xb0] sm:$0xf]
  %v91 = vld [vmem:[%s1 + $0xb4] sm:$0xf]
  %v92 = vld [vmem:[%s1 + $0xb8] sm:$0xf]
  %v93 = vld [vmem:[%s1 + $0xbc] sm:$0xf]
  %v94 = vld [vmem:[%s2] sm:$0x1]
  %v96 = vperm.slane %v94, 0
  %v130 = vunpack.c.l.b16 %v14
  %v131 = vunpack.c.h.b16 %v14
  %v132 = vunpack.c.l.b16 %v15
  %v133 = vunpack.c.l.b16 %v16
  %v134 = vunpack.c.h.b16 %v16
  %v135 = vunpack.c.l.b16 %v17
  %v136 = vunpack.c.l.b16 %v18
  %v137 = vunpack.c.h.b16 %v18
  %v138 = vunpack.c.l.b16 %v19
  %v139 = vunpack.c.l.b16 %v20
  %v140 = vunpack.c.h.b16 %v20
  %v141 = vunpack.c.l.b16 %v21
  %v142 = vunpack.c.l.b16 %v22
  %v143 = vunpack.c.h.b16 %v22
  %v144 = vunpack.c.l.b16 %v23
  %v145 = vunpack.c.l.b16 %v24
  %v146 = vunpack.c.h.b16 %v24
  %v147 = vunpack.c.l.b16 %v25
  %v148 = vunpack.c.l.b16 %v26
  %v149 = vunpack.c.h.b16 %v26
  %v150 = vunpack.c.l.b16 %v27
  %v151 = vunpack.c.l.b16 %v28
  %v152 = vunpack.c.h.b16 %v28
  %v153 = vunpack.c.l.b16 %v29
  %v154 = vunpack.c.l.b16 %v30
  %v155 = vunpack.c.h.b16 %v30
  %v156 = vunpack.c.l.b16 %v31
  %v157 = vunpack.c.l.b16 %v32
  %v158 = vunpack.c.h.b16 %v32
  %v159 = vunpack.c.l.b16 %v33
  %v160 = vunpack.c.l.b16 %v34
  %v161 = vunpack.c.h.b16 %v34
  %v162 = vunpack.c.l.b16 %v35
  %v163 = vunpack.c.l.b16 %v36
  %v164 = vunpack.c.h.b16 %v36
  %v165 = vunpack.c.l.b16 %v37
  %v166 = vunpack.c.l.b16 %v38
  %v167 = vunpack.c.h.b16 %v38
  %v168 = vunpack.c.l.b16 %v39
  %v169 = vunpack.c.l.b16 %v40
  %v170 = vunpack.c.h.b16 %v40
  %v171 = vunpack.c.l.b16 %v41
  %v172 = vunpack.c.l.b16 %v42
  %v173 = vunpack.c.h.b16 %v42
  %v174 = vunpack.c.l.b16 %v43
  %v175 = vunpack.c.l.b16 %v44
  %v176 = vunpack.c.h.b16 %v44
  %v177 = vunpack.c.l.b16 %v45
  %v178 = vpack.c.b16 %v133, %v130
  %v179 = vpack.c.b16 %v134, %v131
  %v180 = vpack.c.b16 %v135, %v132
  %v181 = vpack.c.b16 %v139, %v136
  %v182 = vpack.c.b16 %v140, %v137
  %v183 = vpack.c.b16 %v141, %v138
  %v184 = vpack.c.b16 %v145, %v142
  %v185 = vpack.c.b16 %v146, %v143
  %v186 = vpack.c.b16 %v147, %v144
  %v187 = vpack.c.b16 %v151, %v148
  %v188 = vpack.c.b16 %v152, %v149
  %v189 = vpack.c.b16 %v153, %v150
  %v190 = vpack.c.b16 %v157, %v154
  %v191 = vpack.c.b16 %v158, %v155
  %v192 = vpack.c.b16 %v159, %v156
  %v193 = vpack.c.b16 %v163, %v160
  %v194 = vpack.c.b16 %v164, %v161
  %v195 = vpack.c.b16 %v165, %v162
  %v196 = vpack.c.b16 %v169, %v166
  %v197 = vpack.c.b16 %v170, %v167
  %v198 = vpack.c.b16 %v171, %v168
  %v199 = vpack.c.b16 %v175, %v172
  %v200 = vpack.c.b16 %v176, %v173
  %v201 = vpack.c.b16 %v177, %v174
  %v274 = vunpack.c.l.b16 %v46
  %v275 = vunpack.c.l.b16 %v47
  %v276 = vunpack.c.l.b16 %v48
  %v277 = vunpack.c.l.b16 %v49
  %v278 = vunpack.c.l.b16 %v50
  %v279 = vunpack.c.l.b16 %v51
  %v280 = vunpack.c.l.b16 %v52
  %v281 = vunpack.c.l.b16 %v53
  %v282 = vunpack.c.l.b16 %v54
  %v283 = vunpack.c.l.b16 %v55
  %v284 = vunpack.c.l.b16 %v56
  %v285 = vunpack.c.l.b16 %v57
  %v286 = vunpack.c.l.b16 %v58
  %v287 = vunpack.c.l.b16 %v59
  %v288 = vunpack.c.l.b16 %v60
  %v289 = vunpack.c.l.b16 %v61
  %v290 = vunpack.c.l.b16 %v62
  %v291 = vunpack.c.l.b16 %v63
  %v292 = vunpack.c.l.b16 %v64
  %v293 = vunpack.c.l.b16 %v65
  %v294 = vunpack.c.l.b16 %v66
  %v295 = vunpack.c.l.b16 %v67
  %v296 = vunpack.c.l.b16 %v68
  %v297 = vunpack.c.l.b16 %v69
  %v298 = vunpack.c.l.b16 %v70
  %v299 = vunpack.c.l.b16 %v71
  %v300 = vunpack.c.l.b16 %v72
  %v301 = vunpack.c.l.b16 %v73
  %v302 = vunpack.c.l.b16 %v74
  %v303 = vunpack.c.l.b16 %v75
  %v304 = vunpack.c.l.b16 %v76
  %v305 = vunpack.c.l.b16 %v77
  %v306 = vunpack.c.l.b16 %v78
  %v307 = vunpack.c.l.b16 %v79
  %v308 = vunpack.c.l.b16 %v80
  %v309 = vunpack.c.l.b16 %v81
  %v310 = vunpack.c.l.b16 %v82
  %v311 = vunpack.c.l.b16 %v83
  %v312 = vunpack.c.l.b16 %v84
  %v313 = vunpack.c.l.b16 %v85
  %v314 = vunpack.c.l.b16 %v86
  %v315 = vunpack.c.l.b16 %v87
  %v316 = vunpack.c.l.b16 %v88
  %v317 = vunpack.c.l.b16 %v89
  %v318 = vunpack.c.l.b16 %v90
  %v319 = vunpack.c.l.b16 %v91
  %v320 = vunpack.c.l.b16 %v92
  %v321 = vunpack.c.l.b16 %v93
  %v322 = vpack.c.b16 %v275, %v274
  %v323 = vpack.c.b16 %v277, %v276
  %v324 = vpack.c.b16 %v279, %v278
  %v325 = vpack.c.b16 %v281, %v280
  %v326 = vpack.c.b16 %v283, %v282
  %v327 = vpack.c.b16 %v285, %v284
  %v328 = vpack.c.b16 %v287, %v286
  %v329 = vpack.c.b16 %v289, %v288
  %v330 = vpack.c.b16 %v291, %v290
  %v331 = vpack.c.b16 %v293, %v292
  %v332 = vpack.c.b16 %v295, %v294
  %v333 = vpack.c.b16 %v297, %v296
  %v334 = vpack.c.b16 %v299, %v298
  %v335 = vpack.c.b16 %v301, %v300
  %v336 = vpack.c.b16 %v303, %v302
  %v337 = vpack.c.b16 %v305, %v304
  %v338 = vpack.c.b16 %v307, %v306
  %v339 = vpack.c.b16 %v309, %v308
  %v340 = vpack.c.b16 %v311, %v310
  %v341 = vpack.c.b16 %v313, %v312
  %v342 = vpack.c.b16 %v315, %v314
  %v343 = vpack.c.b16 %v317, %v316
  %v344 = vpack.c.b16 %v319, %v318
  %v345 = vpack.c.b16 %v321, %v320
  %370 = vmatpush.bf16.msra.mxu0 %v329
  %371 = vmatpush.bf16.msra.mxu0 %v328
  %372 = vmatpush.bf16.msra.mxu0 %v327
  %373 = vmatpush.bf16.msra.mxu0 %v326
  %374 = vmatpush.bf16.msra.mxu0 %v325
  %375 = vmatpush.bf16.msra.mxu0 %v324
  %376 = vmatpush.bf16.msra.mxu0 %v323
  %377 = vmatpush.bf16.msra.mxu0 %v322
  %378 = vmatmul.bf16.gmra.mxu0 %v178
  %v379 = vpop.f32.mrf.mxu0
  %v380 = vadd.f32 %v96, %v379
  %v381 = vpop.f32.mrf.mxu0
  %v382 = vadd.f32 %v96, %v381
  %383 = vmatmul.bf16.gmra.mxu0 %v181
  %v384 = vpop.f32.mrf.mxu0
  %v385 = vadd.f32 %v96, %v384
  %v386 = vpop.f32.mrf.mxu0
  %v387 = vadd.f32 %v96, %v386
  %388 = vmatmul.bf16.gmra.mxu0 %v184
  %v389 = vpop.f32.mrf.mxu0
  %v390 = vadd.f32 %v96, %v389
  %v391 = vpop.f32.mrf.mxu0
  %v392 = vadd.f32 %v96, %v391
  %393 = vmatmul.bf16.gmra.mxu0 %v187
  %v394 = vpop.f32.mrf.mxu0
  %v395 = vadd.f32 %v96, %v394
  %v396 = vpop.f32.mrf.mxu0
  %v397 = vadd.f32 %v96, %v396
  %398 = vmatmul.bf16.gmra.mxu0 %v190
  %v399 = vpop.f32.mrf.mxu0
  %v400 = vadd.f32 %v96, %v399
  %v401 = vpop.f32.mrf.mxu0
  %v402 = vadd.f32 %v96, %v401
  %403 = vmatmul.bf16.gmra.mxu0 %v193
  %v404 = vpop.f32.mrf.mxu0
  %v405 = vadd.f32 %v96, %v404
  %v406 = vpop.f32.mrf.mxu0
  %v407 = vadd.f32 %v96, %v406
  %408 = vmatmul.bf16.gmra.mxu0 %v196
  %v409 = vpop.f32.mrf.mxu0
  %v410 = vadd.f32 %v96, %v409
  %v411 = vpop.f32.mrf.mxu0
  %v412 = vadd.f32 %v96, %v411
  %413 = vmatmul.bf16.gmra.mxu0 %v199
  %v414 = vpop.f32.mrf.mxu0
  %v415 = vadd.f32 %v96, %v414
  %v416 = vpop.f32.mrf.mxu0
  %v417 = vadd.f32 %v96, %v416
  %418 = vdwg.mxu0
  %419 = vmatpush.bf16.msra.mxu0 %v337
  %420 = vmatpush.bf16.msra.mxu0 %v336
  %421 = vmatpush.bf16.msra.mxu0 %v335
  %422 = vmatpush.bf16.msra.mxu0 %v334
  %423 = vmatpush.bf16.msra.mxu0 %v333
  %424 = vmatpush.bf16.msra.mxu0 %v332
  %425 = vmatpush.bf16.msra.mxu0 %v331
  %426 = vmatpush.bf16.msra.mxu0 %v330
  %427 = vmatmul.bf16.gmra.mxu0 %v179
  %v428 = vpop.f32.mrf.mxu0
  %v429 = vadd.f32 %v380, %v428
  %v430 = vpop.f32.mrf.mxu0
  %v431 = vadd.f32 %v382, %v430
  %432 = vmatmul.bf16.gmra.mxu0 %v182
  %v433 = vpop.f32.mrf.mxu0
  %v434 = vadd.f32 %v385, %v433
  %v435 = vpop.f32.mrf.mxu0
  %v436 = vadd.f32 %v387, %v435
  %437 = vmatmul.bf16.gmra.mxu0 %v185
  %v438 = vpop.f32.mrf.mxu0
  %v439 = vadd.f32 %v390, %v438
  %v440 = vpop.f32.mrf.mxu0
  %v441 = vadd.f32 %v392, %v440
  %442 = vmatmul.bf16.gmra.mxu0 %v188
  %v443 = vpop.f32.mrf.mxu0
  %v444 = vadd.f32 %v395, %v443
  %v445 = vpop.f32.mrf.mxu0
  %v446 = vadd.f32 %v397, %v445
  %447 = vmatmul.bf16.gmra.mxu0 %v191
  %v448 = vpop.f32.mrf.mxu0
  %v449 = vadd.f32 %v400, %v448
  %v450 = vpop.f32.mrf.mxu0
  %v451 = vadd.f32 %v402, %v450
  %452 = vmatmul.bf16.gmra.mxu0 %v194
  %v453 = vpop.f32.mrf.mxu0
  %v454 = vadd.f32 %v405, %v453
  %v455 = vpop.f32.mrf.mxu0
  %v456 = vadd.f32 %v407, %v455
  %457 = vmatmul.bf16.gmra.mxu0 %v197
  %v458 = vpop.f32.mrf.mxu0
  %v459 = vadd.f32 %v410, %v458
  %v460 = vpop.f32.mrf.mxu0
  %v461 = vadd.f32 %v412, %v460
  %462 = vmatmul.bf16.gmra.mxu0 %v200
  %v463 = vpop.f32.mrf.mxu0
  %v464 = vadd.f32 %v415, %v463
  %v465 = vpop.f32.mrf.mxu0
  %v466 = vadd.f32 %v417, %v465
  %467 = vdwg.mxu0
  %468 = vmatpush.bf16.msra.mxu0 %v345
  %469 = vmatpush.bf16.msra.mxu0 %v344
  %470 = vmatpush.bf16.msra.mxu0 %v343
  %471 = vmatpush.bf16.msra.mxu0 %v342
  %472 = vmatpush.bf16.msra.mxu0 %v341
  %473 = vmatpush.bf16.msra.mxu0 %v340
  %474 = vmatpush.bf16.msra.mxu0 %v339
  %475 = vmatpush.bf16.msra.mxu0 %v338
  %476 = vmatmul.bf16.gmra.mxu0 %v180
  %v477 = vpop.f32.mrf.mxu0
  %v478 = vadd.f32 %v429, %v477
  %v479 = vpop.f32.mrf.mxu0
  %v480 = vadd.f32 %v431, %v479
  %481 = vmatmul.bf16.gmra.mxu0 %v183
  %v482 = vpop.f32.mrf.mxu0
  %v483 = vadd.f32 %v434, %v482
  %v484 = vpop.f32.mrf.mxu0
  %v485 = vadd.f32 %v436, %v484
  %486 = vmatmul.bf16.gmra.mxu0 %v186
  %v487 = vpop.f32.mrf.mxu0
  %v488 = vadd.f32 %v439, %v487
  %v489 = vpop.f32.mrf.mxu0
  %v490 = vadd.f32 %v441, %v489
  %491 = vmatmul.bf16.gmra.mxu0 %v189
  %v492 = vpop.f32.mrf.mxu0
  %v493 = vadd.f32 %v444, %v492
  %v494 = vpop.f32.mrf.mxu0
  %v495 = vadd.f32 %v446, %v494
  %496 = vmatmul.bf16.gmra.mxu0 %v192
  %v497 = vpop.f32.mrf.mxu0
  %v498 = vadd.f32 %v449, %v497
  %v499 = vpop.f32.mrf.mxu0
  %v500 = vadd.f32 %v451, %v499
  %501 = vmatmul.bf16.gmra.mxu0 %v195
  %v502 = vpop.f32.mrf.mxu0
  %v503 = vadd.f32 %v454, %v502
  %v504 = vpop.f32.mrf.mxu0
  %v505 = vadd.f32 %v456, %v504
  %506 = vmatmul.bf16.gmra.mxu0 %v198
  %v507 = vpop.f32.mrf.mxu0
  %v508 = vadd.f32 %v459, %v507
  %v509 = vpop.f32.mrf.mxu0
  %v510 = vadd.f32 %v461, %v509
  %511 = vmatmul.bf16.gmra.mxu0 %v201
  %v512 = vpop.f32.mrf.mxu0
  %v513 = vadd.f32 %v464, %v512
  %v514 = vpop.f32.mrf.mxu0
  %v515 = vadd.f32 %v466, %v514
  %516 = vdwg.mxu0
  %vm517 = vcmp.ge.f32.partialorder %v478, 0.0
  %vm518 = vcmp.ge.f32.partialorder %v480, 0.0
  %vm519 = vcmp.ge.f32.partialorder %v483, 0.0
  %vm520 = vcmp.ge.f32.partialorder %v485, 0.0
  %vm521 = vcmp.ge.f32.partialorder %v488, 0.0
  %vm522 = vcmp.ge.f32.partialorder %v490, 0.0
  %vm523 = vcmp.ge.f32.partialorder %v493, 0.0
  %vm524 = vcmp.ge.f32.partialorder %v495, 0.0
  %vm525 = vcmp.ge.f32.partialorder %v498, 0.0
  %vm526 = vcmp.ge.f32.partialorder %v500, 0.0
  %vm527 = vcmp.ge.f32.partialorder %v503, 0.0
  %vm528 = vcmp.ge.f32.partialorder %v505, 0.0
  %vm529 = vcmp.ge.f32.partialorder %v508, 0.0
  %vm530 = vcmp.ge.f32.partialorder %v510, 0.0
  %vm531 = vcmp.ge.f32.partialorder %v513, 0.0
  %vm532 = vcmp.ge.f32.partialorder %v515, 0.0
  %v533 = vmul.f32 %v478, 0.01
  %v534 = vmul.f32 %v480, 0.01
  %v535 = vmul.f32 %v483, 0.01
  %v536 = vmul.f32 %v485, 0.01
  %v537 = vmul.f32 %v488, 0.01
  %v538 = vmul.f32 %v490, 0.01
  %v539 = vmul.f32 %v493, 0.01
  %v540 = vmul.f32 %v495, 0.01
  %v541 = vmul.f32 %v498, 0.01
  %v542 = vmul.f32 %v500, 0.01
  %v543 = vmul.f32 %v503, 0.01
  %v544 = vmul.f32 %v505, 0.01
  %v545 = vmul.f32 %v508, 0.01
  %v546 = vmul.f32 %v510, 0.01
  %v547 = vmul.f32 %v513, 0.01
  %v548 = vmul.f32 %v515, 0.01
  %v549 = vsel %vm517, %v478, %v533
  %v550 = vsel %vm518, %v480, %v534
  %v551 = vsel %vm519, %v483, %v535
  %v552 = vsel %vm520, %v485, %v536
  %v553 = vsel %vm521, %v488, %v537
  %v554 = vsel %vm522, %v490, %v538
  %v555 = vsel %vm523, %v493, %v539
  %v556 = vsel %vm524, %v495, %v540
  %v557 = vsel %vm525, %v498, %v541
  %v558 = vsel %vm526, %v500, %v542
  %v559 = vsel %vm527, %v503, %v543
  %v560 = vsel %vm528, %v505, %v544
  %v561 = vsel %vm529, %v508, %v545
  %v562 = vsel %vm530, %v510, %v546
  %v563 = vsel %vm531, %v513, %v547
  %v564 = vsel %vm532, %v515, %v548
  %565 = vst [vmem:[%s3] sm:$0xff] %v549
  %566 = vst [vmem:[%s3 + $0x8] sm:$0xff] %v550
  %567 = vst [vmem:[%s3 + $0x10] sm:$0xff] %v551
  %568 = vst [vmem:[%s3 + $0x18] sm:$0xff] %v552
  %569 = vst [vmem:[%s3 + $0x20] sm:$0xff] %v553
  %570 = vst [vmem:[%s3 + $0x28] sm:$0xff] %v554
  %571 = vst [vmem:[%s3 + $0x30] sm:$0xff] %v555
  %572 = vst [vmem:[%s3 + $0x38] sm:$0xff] %v556
  %573 = vst [vmem:[%s3 + $0x40] sm:$0xff] %v557
  %574 = vst [vmem:[%s3 + $0x48] sm:$0xff] %v558
  %575 = vst [vmem:[%s3 + $0x50] sm:$0xff] %v559
  %576 = vst [vmem:[%s3 + $0x58] sm:$0xff] %v560
  %577 = vst [vmem:[%s3 + $0x60] sm:$0xff] %v561
  %578 = vst [vmem:[%s3 + $0x68] sm:$0xff] %v562
  %579 = vst [vmem:[%s3 + $0x70] sm:$0xff] %v563
  %580 = vst [vmem:[%s3 + $0x78] sm:$0xff] %v564
  // Predicated region
  $region14: #{vae_forward.12} parent=0 // pred_check
    _
  $region15: #{vae_forward.12} parent=0 // pred_check_branch
    %582 = sbr.rel (0) target = $region17
  $region16: #{vae_forward.12} parent=0 // pred_region
    _
  $region17: #{vae_forward.12} parent=0 // pred_fallthru
    _
  // Predicated region
  $region18: #{vae_forward.12} parent=0 // pred_check
    _
  $region19: #{vae_forward.12} parent=0 // pred_check_branch
    %584 = sbr.rel (0) target = $region21
  $region20: #{vae_forward.12} parent=0 // pred_region
    _
  $region21: #{vae_forward.12} parent=0 // pred_fallthru
    _

// kernel: vae_forward.13
$region0: #{vae_forward.13}
  #allocation0 [shape = 'u32[]', space=smem, size = 0x4, offset = 0x4, fixed_abs, tag = 'smem constant byte address 0x4 - core index']
  #allocation1 [shape = 'u32[72,128]{1,0:T(1,128)}', space=vmem, size = 0x9000, scoped, tag = 'internal scratch']
  %s0 = inlined_call_operand.vmem [shape: bf16[32,640], index: 0, kind: input, shape index: {}]
  %s1 = inlined_call_operand.vmem [shape: bf16[640,128], index: 1, kind: input, shape index: {}]
  %s2 = inlined_call_operand.vmem [shape: f32[1,128], index: 2, kind: input, shape index: {}]
  %s3 = inlined_call_operand.vmem [shape: f32[32,128], index: 3, kind: output, shape index: {}]
  %s4 = sld [smem:[#allocation0]]
  $region22: #{vae_forward.13} parent=0
    _
  %s6 = ssub.s32 1, %s4
  %s7 = scalar_select 0, %s6, %s4
  // Predicated region
  $region2: #{vae_forward.13} parent=0 // pred_check
    _
  $region3: #{vae_forward.13} parent=0 // pred_check_branch
    %9 = sbr.rel (0) target = $region5
  $region4: #{vae_forward.13} parent=0 // pred_region
    _
  $region5: #{vae_forward.13} parent=0 // pred_fallthru
    _
  // Predicated region
  $region6: #{vae_forward.13} parent=0 // pred_check
    _
  $region7: #{vae_forward.13} parent=0 // pred_check_branch
    %11 = sbr.rel (0) target = $region9
  $region8: #{vae_forward.13} parent=0 // pred_region
    _
  $region9: #{vae_forward.13} parent=0 // pred_fallthru
    _
  // Predicated region
  $region10: #{vae_forward.13} parent=0 // pred_check
    _
  $region11: #{vae_forward.13} parent=0 // pred_check_branch
    %13 = sbr.rel (0) target = $region13
  $region12: #{vae_forward.13} parent=0 // pred_region
    _
  $region13: #{vae_forward.13} parent=0 // pred_fallthru
    _
  %v14 = vld [vmem:[%s0] sm:$0xff]
  %v15 = vld [vmem:[%s0 + $0x8] sm:$0xff]
  %v16 = vld [vmem:[%s0 + $0x10] sm:$0xf]
  %v17 = vld [vmem:[%s0 + $0x14] sm:$0xff]
  %v18 = vld [vmem:[%s0 + $0x1c] sm:$0xff]
  %v19 = vld [vmem:[%s0 + $0x24] sm:$0xf]
  %v20 = vld [vmem:[%s0 + $0x28] sm:$0xff]
  %v21 = vld [vmem:[%s0 + $0x30] sm:$0xff]
  %v22 = vld [vmem:[%s0 + $0x38] sm:$0xf]
  %v23 = vld [vmem:[%s0 + $0x3c] sm:$0xff]
  %v24 = vld [vmem:[%s0 + $0x44] sm:$0xff]
  %v25 = vld [vmem:[%s0 + $0x4c] sm:$0xf]
  %v26 = vld [vmem:[%s1] sm:$0xf]
  %v27 = vld [vmem:[%s1 + $0x4] sm:$0xf]
  %v28 = vld [vmem:[%s1 + $0x8] sm:$0xf]
  %v29 = vld [vmem:[%s1 + $0xc] sm:$0xf]
  %v30 = vld [vmem:[%s1 + $0x10] sm:$0xf]
  %v31 = vld [vmem:[%s1 + $0x14] sm:$0xf]
  %v32 = vld [vmem:[%s1 + $0x18] sm:$0xf]
  %v33 = vld [vmem:[%s1 + $0x1c] sm:$0xf]
  %v34 = vld [vmem:[%s1 + $0x20] sm:$0xf]
  %v35 = vld [vmem:[%s1 + $0x24] sm:$0xf]
  %v36 = vld [vmem:[%s1 + $0x28] sm:$0xf]
  %v37 = vld [vmem:[%s1 + $0x2c] sm:$0xf]
  %v38 = vld [vmem:[%s1 + $0x30] sm:$0xf]
  %v39 = vld [vmem:[%s1 + $0x34] sm:$0xf]
  %v40 = vld [vmem:[%s1 + $0x38] sm:$0xf]
  %v41 = vld [vmem:[%s1 + $0x3c] sm:$0xf]
  %v42 = vld [vmem:[%s1 + $0x40] sm:$0xf]
  %v43 = vld [vmem:[%s1 + $0x44] sm:$0xf]
  %v44 = vld [vmem:[%s1 + $0x48] sm:$0xf]
  %v45 = vld [vmem:[%s1 + $0x4c] sm:$0xf]
  %v46 = vld [vmem:[%s1 + $0x50] sm:$0xf]
  %v47 = vld [vmem:[%s1 + $0x54] sm:$0xf]
  %v48 = vld [vmem:[%s1 + $0x58] sm:$0xf]
  %v49 = vld [vmem:[%s1 + $0x5c] sm:$0xf]
  %v50 = vld [vmem:[%s1 + $0x60] sm:$0xf]
  %v51 = vld [vmem:[%s1 + $0x64] sm:$0xf]
  %v52 = vld [vmem:[%s1 + $0x68] sm:$0xf]
  %v53 = vld [vmem:[%s1 + $0x6c] sm:$0xf]
  %v54 = vld [vmem:[%s1 + $0x70] sm:$0xf]
  %v55 = vld [vmem:[%s1 + $0x74] sm:$0xf]
  %v56 = vld [vmem:[%s1 + $0x78] sm:$0xf]
  %v57 = vld [vmem:[%s1 + $0x7c] sm:$0xf]
  %v58 = vld [vmem:[%s1 + $0x80] sm:$0xf]
  %v59 = vld [vmem:[%s1 + $0x84] sm:$0xf]
  %v60 = vld [vmem:[%s1 + $0x88] sm:$0xf]
  %v61 = vld [vmem:[%s1 + $0x8c] sm:$0xf]
  %v62 = vld [vmem:[%s1 + $0x90] sm:$0xf]
  %v63 = vld [vmem:[%s1 + $0x94] sm:$0xf]
  %v64 = vld [vmem:[%s1 + $0x98] sm:$0xf]
  %v65 = vld [vmem:[%s1 + $0x9c] sm:$0xf]
  %v66 = vld [vmem:[%s1 + $0xa0] sm:$0xf]
  %v67 = vld [vmem:[%s1 + $0xa4] sm:$0xf]
  %v68 = vld [vmem:[%s1 + $0xa8] sm:$0xf]
  %v69 = vld [vmem:[%s1 + $0xac] sm:$0xf]
  %v70 = vld [vmem:[%s1 + $0xb0] sm:$0xf]
  %v71 = vld [vmem:[%s1 + $0xb4] sm:$0xf]
  %v72 = vld [vmem:[%s1 + $0xb8] sm:$0xf]
  %v73 = vld [vmem:[%s1 + $0xbc] sm:$0xf]
  %v74 = vld [vmem:[%s1 + $0xc0] sm:$0xf]
  %v75 = vld [vmem:[%s1 + $0xc4] sm:$0xf]
  %v76 = vld [vmem:[%s1 + $0xc8] sm:$0xf]
  %v77 = vld [vmem:[%s1 + $0xcc] sm:$0xf]
  %v78 = vld [vmem:[%s1 + $0xd0] sm:$0xf]
  %v79 = vld [vmem:[%s1 + $0xd4] sm:$0xf]
  %v80 = vld [vmem:[%s1 + $0xd8] sm:$0xf]
  %v81 = vld [vmem:[%s1 + $0xdc] sm:$0xf]
  %v82 = vld [vmem:[%s1 + $0xe0] sm:$0xf]
  %v83 = vld [vmem:[%s1 + $0xe4] sm:$0xf]
  %v84 = vld [vmem:[%s1 + $0xe8] sm:$0xf]
  %v85 = vld [vmem:[%s1 + $0xec] sm:$0xf]
  %v86 = vld [vmem:[%s1 + $0xf0] sm:$0xf]
  %v87 = vld [vmem:[%s1 + $0xf4] sm:$0xf]
  %v88 = vld [vmem:[%s1 + $0xf8] sm:$0xf]
  %v89 = vld [vmem:[%s1 + $0xfc] sm:$0xf]
  %v90 = vld [vmem:[%s1 + $0x100] sm:$0xf]
  %v91 = vld [vmem:[%s1 + $0x104] sm:$0xf]
  %v92 = vld [vmem:[%s1 + $0x108] sm:$0xf]
  %v93 = vld [vmem:[%s1 + $0x10c] sm:$0xf]
  %v94 = vld [vmem:[%s1 + $0x110] sm:$0xf]
  %v95 = vld [vmem:[%s1 + $0x114] sm:$0xf]
  %v96 = vld [vmem:[%s1 + $0x118] sm:$0xf]
  %v97 = vld [vmem:[%s1 + $0x11c] sm:$0xf]
  %v98 = vld [vmem:[%s1 + $0x120] sm:$0xf]
  %v99 = vld [vmem:[%s1 + $0x124] sm:$0xf]
  %v100 = vld [vmem:[%s1 + $0x128] sm:$0xf]
  %v101 = vld [vmem:[%s1 + $0x12c] sm:$0xf]
  %v102 = vld [vmem:[%s1 + $0x130] sm:$0xf]
  %v103 = vld [vmem:[%s1 + $0x134] sm:$0xf]
  %v104 = vld [vmem:[%s1 + $0x138] sm:$0xf]
  %v105 = vld [vmem:[%s1 + $0x13c] sm:$0xf]
  %v106 = vld [vmem:[%s2] sm:$0x1]
  %v108 = vperm.slane %v106, 0
  %v122 = vunpack.c.l.b16 %v14
  %v123 = vunpack.c.h.b16 %v14
  %v124 = vunpack.c.l.b16 %v15
  %v125 = vunpack.c.h.b16 %v15
  %v126 = vunpack.c.l.b16 %v16
  %v127 = vunpack.c.l.b16 %v17
  %v128 = vunpack.c.h.b16 %v17
  %v129 = vunpack.c.l.b16 %v18
  %v130 = vunpack.c.h.b16 %v18
  %v131 = vunpack.c.l.b16 %v19
  %v132 = vunpack.c.l.b16 %v20
  %v133 = vunpack.c.h.b16 %v20
  %v134 = vunpack.c.l.b16 %v21
  %v135 = vunpack.c.h.b16 %v21
  %v136 = vunpack.c.l.b16 %v22
  %v137 = vunpack.c.l.b16 %v23
  %v138 = vunpack.c.h.b16 %v23
  %v139 = vunpack.c.l.b16 %v24
  %v140 = vunpack.c.h.b16 %v24
  %v141 = vunpack.c.l.b16 %v25
  %v142 = vpack.c.b16 %v127, %v122
  %v143 = vpack.c.b16 %v128, %v123
  %v144 = vpack.c.b16 %v129, %v124
  %v145 = vpack.c.b16 %v130, %v125
  %v146 = vpack.c.b16 %v131, %v126
  %v147 = vpack.c.b16 %v137, %v132
  %v148 = vpack.c.b16 %v138, %v133
  %v149 = vpack.c.b16 %v139, %v134
  %v150 = vpack.c.b16 %v140, %v135
  %v151 = vpack.c.b16 %v141, %v136
  %v242 = vunpack.c.l.b16 %v26
  %v243 = vunpack.c.l.b16 %v27
  %v244 = vunpack.c.l.b16 %v28
  %v245 = vunpack.c.l.b16 %v29
  %v246 = vunpack.c.l.b16 %v30
  %v247 = vunpack.c.l.b16 %v31
  %v248 = vunpack.c.l.b16 %v32
  %v249 = vunpack.c.l.b16 %v33
  %v250 = vunpack.c.l.b16 %v34
  %v251 = vunpack.c.l.b16 %v35
  %v252 = vunpack.c.l.b16 %v36
  %v253 = vunpack.c.l.b16 %v37
  %v254 = vunpack.c.l.b16 %v38
  %v255 = vunpack.c.l.b16 %v39
  %v256 = vunpack.c.l.b16 %v40
  %v257 = vunpack.c.l.b16 %v41
  %v258 = vunpack.c.l.b16 %v42
  %v259 = vunpack.c.l.b16 %v43
  %v260 = vunpack.c.l.b16 %v44
  %v261 = vunpack.c.l.b16 %v45
  %v262 = vunpack.c.l.b16 %v46
  %v263 = vunpack.c.l.b16 %v47
  %v264 = vunpack.c.l.b16 %v48
  %v265 = vunpack.c.l.b16 %v49
  %v266 = vunpack.c.l.b16 %v50
  %v267 = vunpack.c.l.b16 %v51
  %v268 = vunpack.c.l.b16 %v52
  %v269 = vunpack.c.l.b16 %v53
  %v270 = vunpack.c.l.b16 %v54
  %v271 = vunpack.c.l.b16 %v55
  %v272 = vunpack.c.l.b16 %v56
  %v273 = vunpack.c.l.b16 %v57
  %v274 = vunpack.c.l.b16 %v58
  %v275 = vunpack.c.l.b16 %v59
  %v276 = vunpack.c.l.b16 %v60
  %v277 = vunpack.c.l.b16 %v61
  %v278 = vunpack.c.l.b16 %v62
  %v279 = vunpack.c.l.b16 %v63
  %v280 = vunpack.c.l.b16 %v64
  %v281 = vunpack.c.l.b16 %v65
  %v282 = vunpack.c.l.b16 %v66
  %v283 = vunpack.c.l.b16 %v67
  %v284 = vunpack.c.l.b16 %v68
  %v285 = vunpack.c.l.b16 %v69
  %v286 = vunpack.c.l.b16 %v70
  %v287 = vunpack.c.l.b16 %v71
  %v288 = vunpack.c.l.b16 %v72
  %v289 = vunpack.c.l.b16 %v73
  %v290 = vunpack.c.l.b16 %v74
  %v291 = vunpack.c.l.b16 %v75
  %v292 = vunpack.c.l.b16 %v76
  %v293 = vunpack.c.l.b16 %v77
  %v294 = vunpack.c.l.b16 %v78
  %v295 = vunpack.c.l.b16 %v79
  %v296 = vunpack.c.l.b16 %v80
  %v297 = vunpack.c.l.b16 %v81
  %v298 = vunpack.c.l.b16 %v82
  %v299 = vunpack.c.l.b16 %v83
  %v300 = vunpack.c.l.b16 %v84
  %v301 = vunpack.c.l.b16 %v85
  %v302 = vunpack.c.l.b16 %v86
  %v303 = vunpack.c.l.b16 %v87
  %v304 = vunpack.c.l.b16 %v88
  %v305 = vunpack.c.l.b16 %v89
  %v306 = vunpack.c.l.b16 %v90
  %v307 = vunpack.c.l.b16 %v91
  %v308 = vunpack.c.l.b16 %v92
  %v309 = vunpack.c.l.b16 %v93
  %v310 = vunpack.c.l.b16 %v94
  %v311 = vunpack.c.l.b16 %v95
  %v312 = vunpack.c.l.b16 %v96
  %v313 = vunpack.c.l.b16 %v97
  %v314 = vunpack.c.l.b16 %v98
  %v315 = vunpack.c.l.b16 %v99
  %v316 = vunpack.c.l.b16 %v100
  %v317 = vunpack.c.l.b16 %v101
  %v318 = vunpack.c.l.b16 %v102
  %v319 = vunpack.c.l.b16 %v103
  %v320 = vunpack.c.l.b16 %v104
  %v321 = vunpack.c.l.b16 %v105
  %v322 = vpack.c.b16 %v243, %v242
  %v323 = vpack.c.b16 %v245, %v244
  %v324 = vpack.c.b16 %v247, %v246
  %v325 = vpack.c.b16 %v249, %v248
  %v326 = vpack.c.b16 %v251, %v250
  %v327 = vpack.c.b16 %v253, %v252
  %v328 = vpack.c.b16 %v255, %v254
  %v329 = vpack.c.b16 %v257, %v256
  %v330 = vpack.c.b16 %v259, %v258
  %v331 = vpack.c.b16 %v261, %v260
  %v332 = vpack.c.b16 %v263, %v262
  %v333 = vpack.c.b16 %v265, %v264
  %v334 = vpack.c.b16 %v267, %v266
  %v335 = vpack.c.b16 %v269, %v268
  %v336 = vpack.c.b16 %v271, %v270
  %v337 = vpack.c.b16 %v273, %v272
  %v338 = vpack.c.b16 %v275, %v274
  %v339 = vpack.c.b16 %v277, %v276
  %v340 = vpack.c.b16 %v279, %v278
  %v341 = vpack.c.b16 %v281, %v280
  %v342 = vpack.c.b16 %v283, %v282
  %v343 = vpack.c.b16 %v285, %v284
  %v344 = vpack.c.b16 %v287, %v286
  %v345 = vpack.c.b16 %v289, %v288
  %v346 = vpack.c.b16 %v291, %v290
  %v347 = vpack.c.b16 %v293, %v292
  %v348 = vpack.c.b16 %v295, %v294
  %v349 = vpack.c.b16 %v297, %v296
  %v350 = vpack.c.b16 %v299, %v298
  %v351 = vpack.c.b16 %v301, %v300
  %v352 = vpack.c.b16 %v303, %v302
  %v353 = vpack.c.b16 %v305, %v304
  %v354 = vpack.c.b16 %v307, %v306
  %v355 = vpack.c.b16 %v309, %v308
  %v356 = vpack.c.b16 %v311, %v310
  %v357 = vpack.c.b16 %v313, %v312
  %v358 = vpack.c.b16 %v315, %v314
  %v359 = vpack.c.b16 %v317, %v316
  %v360 = vpack.c.b16 %v319, %v318
  %v361 = vpack.c.b16 %v321, %v320
  %402 = vmatpush.bf16.msra.mxu0 %v329
  %403 = vmatpush.bf16.msra.mxu0 %v328
  %404 = vmatpush.bf16.msra.mxu0 %v327
  %405 = vmatpush.bf16.msra.mxu0 %v326
  %406 = vmatpush.bf16.msra.mxu0 %v325
  %407 = vmatpush.bf16.msra.mxu0 %v324
  %408 = vmatpush.bf16.msra.mxu0 %v323
  %409 = vmatpush.bf16.msra.mxu0 %v322
  %410 = vmatmul.bf16.gmra.mxu0 %v142
  %v411 = vpop.f32.mrf.mxu0
  %v412 = vadd.f32 %v108, %v411
  %v413 = vpop.f32.mrf.mxu0
  %v414 = vadd.f32 %v108, %v413
  %415 = vmatmul.bf16.gmra.mxu0 %v147
  %v416 = vpop.f32.mrf.mxu0
  %v417 = vadd.f32 %v108, %v416
  %v418 = vpop.f32.mrf.mxu0
  %v419 = vadd.f32 %v108, %v418
  %420 = vdwg.mxu0
  %421 = vmatpush.bf16.msra.mxu0 %v337
  %422 = vmatpush.bf16.msra.mxu0 %v336
  %423 = vmatpush.bf16.msra.mxu0 %v335
  %424 = vmatpush.bf16.msra.mxu0 %v334
  %425 = vmatpush.bf16.msra.mxu0 %v333
  %426 = vmatpush.bf16.msra.mxu0 %v332
  %427 = vmatpush.bf16.msra.mxu0 %v331
  %428 = vmatpush.bf16.msra.mxu0 %v330
  %429 = vmatmul.bf16.gmra.mxu0 %v143
  %v430 = vpop.f32.mrf.mxu0
  %v431 = vadd.f32 %v412, %v430
  %v432 = vpop.f32.mrf.mxu0
  %v433 = vadd.f32 %v414, %v432
  %434 = vmatmul.bf16.gmra.mxu0 %v148
  %v435 = vpop.f32.mrf.mxu0
  %v436 = vadd.f32 %v417, %v435
  %v437 = vpop.f32.mrf.mxu0
  %v438 = vadd.f32 %v419, %v437
  %439 = vdwg.mxu0
  %440 = vmatpush.bf16.msra.mxu0 %v345
  %441 = vmatpush.bf16.msra.mxu0 %v344
  %442 = vmatpush.bf16.msra.mxu0 %v343
  %443 = vmatpush.bf16.msra.mxu0 %v342
  %444 = vmatpush.bf16.msra.mxu0 %v341
  %445 = vmatpush.bf16.msra.mxu0 %v340
  %446 = vmatpush.bf16.msra.mxu0 %v339
  %447 = vmatpush.bf16.msra.mxu0 %v338
  %448 = vmatmul.bf16.gmra.mxu0 %v144
  %v449 = vpop.f32.mrf.mxu0
  %v450 = vadd.f32 %v431, %v449
  %v451 = vpop.f32.mrf.mxu0
  %v452 = vadd.f32 %v433, %v451
  %453 = vmatmul.bf16.gmra.mxu0 %v149
  %v454 = vpop.f32.mrf.mxu0
  %v455 = vadd.f32 %v436, %v454
  %v456 = vpop.f32.mrf.mxu0
  %v457 = vadd.f32 %v438, %v456
  %458 = vdwg.mxu0
  %459 = vmatpush.bf16.msra.mxu0 %v353
  %460 = vmatpush.bf16.msra.mxu0 %v352
  %461 = vmatpush.bf16.msra.mxu0 %v351
  %462 = vmatpush.bf16.msra.mxu0 %v350
  %463 = vmatpush.bf16.msra.mxu0 %v349
  %464 = vmatpush.bf16.msra.mxu0 %v348
  %465 = vmatpush.bf16.msra.mxu0 %v347
  %466 = vmatpush.bf16.msra.mxu0 %v346
  %467 = vmatmul.bf16.gmra.mxu0 %v145
  %v468 = vpop.f32.mrf.mxu0
  %v469 = vadd.f32 %v450, %v468
  %v470 = vpop.f32.mrf.mxu0
  %v471 = vadd.f32 %v452, %v470
  %472 = vmatmul.bf16.gmra.mxu0 %v150
  %v473 = vpop.f32.mrf.mxu0
  %v474 = vadd.f32 %v455, %v473
  %v475 = vpop.f32.mrf.mxu0
  %v476 = vadd.f32 %v457, %v475
  %477 = vdwg.mxu0
  %478 = vmatpush.bf16.msra.mxu0 %v361
  %479 = vmatpush.bf16.msra.mxu0 %v360
  %480 = vmatpush.bf16.msra.mxu0 %v359
  %481 = vmatpush.bf16.msra.mxu0 %v358
  %482 = vmatpush.bf16.msra.mxu0 %v357
  %483 = vmatpush.bf16.msra.mxu0 %v356
  %484 = vmatpush.bf16.msra.mxu0 %v355
  %485 = vmatpush.bf16.msra.mxu0 %v354
  %486 = vmatmul.bf16.gmra.mxu0 %v146
  %v487 = vpop.f32.mrf.mxu0
  %v488 = vadd.f32 %v469, %v487
  %v489 = vpop.f32.mrf.mxu0
  %v490 = vadd.f32 %v471, %v489
  %491 = vmatmul.bf16.gmra.mxu0 %v151
  %v492 = vpop.f32.mrf.mxu0
  %v493 = vadd.f32 %v474, %v492
  %v494 = vpop.f32.mrf.mxu0
  %v495 = vadd.f32 %v476, %v494
  %496 = vdwg.mxu0
  %vm497 = vcmp.ge.f32.partialorder %v488, 0.0
  %vm498 = vcmp.ge.f32.partialorder %v490, 0.0
  %vm499 = vcmp.ge.f32.partialorder %v493, 0.0
  %vm500 = vcmp.ge.f32.partialorder %v495, 0.0
  %v501 = vmul.f32 %v488, 0.01
  %v502 = vmul.f32 %v490, 0.01
  %v503 = vmul.f32 %v493, 0.01
  %v504 = vmul.f32 %v495, 0.01
  %v505 = vsel %vm497, %v488, %v501
  %v506 = vsel %vm498, %v490, %v502
  %v507 = vsel %vm499, %v493, %v503
  %v508 = vsel %vm500, %v495, %v504
  %509 = vst [vmem:[%s3] sm:$0xff] %v505
  %510 = vst [vmem:[%s3 + $0x8] sm:$0xff] %v506
  %511 = vst [vmem:[%s3 + $0x10] sm:$0xff] %v507
  %512 = vst [vmem:[%s3 + $0x18] sm:$0xff] %v508
  // Predicated region
  $region14: #{vae_forward.13} parent=0 // pred_check
    _
  $region15: #{vae_forward.13} parent=0 // pred_check_branch
    %514 = sbr.rel (0) target = $region17
  $region16: #{vae_forward.13} parent=0 // pred_region
    _
  $region17: #{vae_forward.13} parent=0 // pred_fallthru
    _
  // Predicated region
  $region18: #{vae_forward.13} parent=0 // pred_check
    _
  $region19: #{vae_forward.13} parent=0 // pred_check_branch
    %516 = sbr.rel (0) target = $region21
  $region20: #{vae_forward.13} parent=0 // pred_region
    _
  $region21: #{vae_forward.13} parent=0 // pred_fallthru
    _

// kernel: vae_forward.14
$region0: #{vae_forward.14}
  #allocation0 [shape = 'u32[]', space=smem, size = 0x4, offset = 0x4, fixed_abs, tag = 'smem constant byte address 0x4 - core index']
  #allocation1 [shape = 'u32[72,128]{1,0:T(1,128)}', space=vmem, size = 0x9000, scoped, tag = 'internal scratch']
  %s0 = inlined_call_operand.vmem [shape: bf16[8,1152], index: 0, kind: input, shape index: {}]
  %s1 = inlined_call_operand.vmem [shape: bf16[1152,256], index: 1, kind: input, shape index: {}]
  %s2 = inlined_call_operand.vmem [shape: f32[1,256], index: 2, kind: input, shape index: {}]
  %s3 = inlined_call_operand.vmem [shape: f32[8,256], index: 3, kind: output, shape index: {}]
  %s4 = sld [smem:[#allocation0]]
  $region22: #{vae_forward.14} parent=0
    _
  %s6 = ssub.s32 1, %s4
  %s7 = scalar_select 0, %s6, %s4
  // Predicated region
  $region2: #{vae_forward.14} parent=0 // pred_check
    _
  $region3: #{vae_forward.14} parent=0 // pred_check_branch
    %9 = sbr.rel (0) target = $region5
  $region4: #{vae_forward.14} parent=0 // pred_region
    _
  $region5: #{vae_forward.14} parent=0 // pred_fallthru
    _
  // Predicated region
  $region6: #{vae_forward.14} parent=0 // pred_check
    _
  $region7: #{vae_forward.14} parent=0 // pred_check_branch
    %11 = sbr.rel (0) target = $region9
  $region8: #{vae_forward.14} parent=0 // pred_region
    _
  $region9: #{vae_forward.14} parent=0 // pred_fallthru
    _
  // Predicated region
  $region10: #{vae_forward.14} parent=0 // pred_check
    _
  $region11: #{vae_forward.14} parent=0 // pred_check_branch
    %13 = sbr.rel (0) target = $region13
  $region12: #{vae_forward.14} parent=0 // pred_region
    _
  $region13: #{vae_forward.14} parent=0 // pred_fallthru
    _
  %v14 = vld [vmem:[%s0] sm:$0xff]
  %v15 = vld [vmem:[%s0 + $0x8] sm:$0xff]
  %v16 = vld [vmem:[%s0 + $0x10] sm:$0xff]
  %v17 = vld [vmem:[%s0 + $0x18] sm:$0xff]
  %v18 = vld [vmem:[%s0 + $0x20] sm:$0xf]
  %v19 = vld [vmem:[%s1] sm:$0xff]
  %v20 = vld [vmem:[%s1 + $0x8] sm:$0xff]
  %v21 = vld [vmem:[%s1 + $0x10] sm:$0xff]
  %v22 = vld [vmem:[%s1 + $0x18] sm:$0xff]
  %v23 = vld [vmem:[%s1 + $0x20] sm:$0xff]
  %v24 = vld [vmem:[%s1 + $0x28] sm:$0xff]
  %v25 = vld [vmem:[%s1 + $0x30] sm:$0xff]
  %v26 = vld [vmem:[%s1 + $0x38] sm:$0xff]
  %v27 = vld [vmem:[%s1 + $0x40] sm:$0xff]
  %v28 = vld [vmem:[%s1 + $0x48] sm:$0xff]
  %v29 = vld [vmem:[%s1 + $0x50] sm:$0xff]
  %v30 = vld [vmem:[%s1 + $0x58] sm:$0xff]
  %v31 = vld [vmem:[%s1 + $0x60] sm:$0xff]
  %v32 = vld [vmem:[%s1 + $0x68] sm:$0xff]
  %v33 = vld [vmem:[%s1 + $0x70] sm:$0xff]
  %v34 = vld [vmem:[%s1 + $0x78] sm:$0xff]
  %v35 = vld [vmem:[%s1 + $0x80] sm:$0xff]
  %v36 = vld [vmem:[%s1 + $0x88] sm:$0xff]
  %v37 = vld [vmem:[%s1 + $0x90] sm:$0xff]
  %v38 = vld [vmem:[%s1 + $0x98] sm:$0xff]
  %v39 = vld [vmem:[%s1 + $0xa0] sm:$0xff]
  %v40 = vld [vmem:[%s1 + $0xa8] sm:$0xff]
  %v41 = vld [vmem:[%s1 + $0xb0] sm:$0xff]
  %v42 = vld [vmem:[%s1 + $0xb8] sm:$0xff]
  %v43 = vld [vmem:[%s1 + $0xc0] sm:$0xff]
  %v44 = vld [vmem:[%s1 + $0xc8] sm:$0xff]
  %v45 = vld [vmem:[%s1 + $0xd0] sm:$0xff]
  %v46 = vld [vmem:[%s1 + $0xd8] sm:$0xff]
  %v47 = vld [vmem:[%s1 + $0xe0] sm:$0xff]
  %v48 = vld [vmem:[%s1 + $0xe8] sm:$0xff]
  %v49 = vld [vmem:[%s1 + $0xf0] sm:$0xff]
  %v50 = vld [vmem:[%s1 + $0xf8] sm:$0xff]
  %v51 = vld [vmem:[%s1 + $0x100] sm:$0xff]
  %v52 = vld [vmem:[%s1 + $0x108] sm:$0xff]
  %v53 = vld [vmem:[%s1 + $0x110] sm:$0xff]
  %v54 = vld [vmem:[%s1 + $0x118] sm:$0xff]
  %v55 = vld [vmem:[%s1 + $0x120] sm:$0xff]
  %v56 = vld [vmem:[%s1 + $0x128] sm:$0xff]
  %v57 = vld [vmem:[%s1 + $0x130] sm:$0xff]
  %v58 = vld [vmem:[%s1 + $0x138] sm:$0xff]
  %v59 = vld [vmem:[%s1 + $0x140] sm:$0xff]
  %v60 = vld [vmem:[%s1 + $0x148] sm:$0xff]
  %v61 = vld [vmem:[%s1 + $0x150] sm:$0xff]
  %v62 = vld [vmem:[%s1 + $0x158] sm:$0xff]
  %v63 = vld [vmem:[%s1 + $0x160] sm:$0xff]
  %v64 = vld [vmem:[%s1 + $0x168] sm:$0xff]
  %v65 = vld [vmem:[%s1 + $0x170] sm:$0xff]
  %v66 = vld [vmem:[%s1 + $0x178] sm:$0xff]
  %v67 = vld [vmem:[%s1 + $0x180] sm:$0xff]
  %v68 = vld [vmem:[%s1 + $0x188] sm:$0xff]
  %v69 = vld [vmem:[%s1 + $0x190] sm:$0xff]
  %v70 = vld [vmem:[%s1 + $0x198] sm:$0xff]
  %v71 = vld [vmem:[%s1 + $0x1a0] sm:$0xff]
  %v72 = vld [vmem:[%s1 + $0x1a8] sm:$0xff]
  %v73 = vld [vmem:[%s1 + $0x1b0] sm:$0xff]
  %v74 = vld [vmem:[%s1 + $0x1b8] sm:$0xff]
  %v75 = vld [vmem:[%s1 + $0x1c0] sm:$0xff]
  %v76 = vld [vmem:[%s1 + $0x1c8] sm:$0xff]
  %v77 = vld [vmem:[%s1 + $0x1d0] sm:$0xff]
  %v78 = vld [vmem:[%s1 + $0x1d8] sm:$0xff]
  %v79 = vld [vmem:[%s1 + $0x1e0] sm:$0xff]
  %v80 = vld [vmem:[%s1 + $0x1e8] sm:$0xff]
  %v81 = vld [vmem:[%s1 + $0x1f0] sm:$0xff]
  %v82 = vld [vmem:[%s1 + $0x1f8] sm:$0xff]
  %v83 = vld [vmem:[%s1 + $0x200] sm:$0xff]
  %v84 = vld [vmem:[%s1 + $0x208] sm:$0xff]
  %v85 = vld [vmem:[%s1 + $0x210] sm:$0xff]
  %v86 = vld [vmem:[%s1 + $0x218] sm:$0xff]
  %v87 = vld [vmem:[%s1 + $0x220] sm:$0xff]
  %v88 = vld [vmem:[%s1 + $0x228] sm:$0xff]
  %v89 = vld [vmem:[%s1 + $0x230] sm:$0xff]
  %v90 = vld [vmem:[%s1 + $0x238] sm:$0xff]
  %v91 = vld [vmem:[%s1 + $0x240] sm:$0xff]
  %v92 = vld [vmem:[%s1 + $0x248] sm:$0xff]
  %v93 = vld [vmem:[%s1 + $0x250] sm:$0xff]
  %v94 = vld [vmem:[%s1 + $0x258] sm:$0xff]
  %v95 = vld [vmem:[%s1 + $0x260] sm:$0xff]
  %v96 = vld [vmem:[%s1 + $0x268] sm:$0xff]
  %v97 = vld [vmem:[%s1 + $0x270] sm:$0xff]
  %v98 = vld [vmem:[%s1 + $0x278] sm:$0xff]
  %v99 = vld [vmem:[%s1 + $0x280] sm:$0xff]
  %v100 = vld [vmem:[%s1 + $0x288] sm:$0xff]
  %v101 = vld [vmem:[%s1 + $0x290] sm:$0xff]
  %v102 = vld [vmem:[%s1 + $0x298] sm:$0xff]
  %v103 = vld [vmem:[%s1 + $0x2a0] sm:$0xff]
  %v104 = vld [vmem:[%s1 + $0x2a8] sm:$0xff]
  %v105 = vld [vmem:[%s1 + $0x2b0] sm:$0xff]
  %v106 = vld [vmem:[%s1 + $0x2b8] sm:$0xff]
  %v107 = vld [vmem:[%s1 + $0x2c0] sm:$0xff]
  %v108 = vld [vmem:[%s1 + $0x2c8] sm:$0xff]
  %v109 = vld [vmem:[%s1 + $0x2d0] sm:$0xff]
  %v110 = vld [vmem:[%s1 + $0x2d8] sm:$0xff]
  %v111 = vld [vmem:[%s1 + $0x2e0] sm:$0xff]
  %v112 = vld [vmem:[%s1 + $0x2e8] sm:$0xff]
  %v113 = vld [vmem:[%s1 + $0x2f0] sm:$0xff]
  %v114 = vld [vmem:[%s1 + $0x2f8] sm:$0xff]
  %v115 = vld [vmem:[%s1 + $0x300] sm:$0xff]
  %v116 = vld [vmem:[%s1 + $0x308] sm:$0xff]
  %v117 = vld [vmem:[%s1 + $0x310] sm:$0xff]
  %v118 = vld [vmem:[%s1 + $0x318] sm:$0xff]
  %v119 = vld [vmem:[%s1 + $0x320] sm:$0xff]
  %v120 = vld [vmem:[%s1 + $0x328] sm:$0xff]
  %v121 = vld [vmem:[%s1 + $0x330] sm:$0xff]
  %v122 = vld [vmem:[%s1 + $0x338] sm:$0xff]
  %v123 = vld [vmem:[%s1 + $0x340] sm:$0xff]
  %v124 = vld [vmem:[%s1 + $0x348] sm:$0xff]
  %v125 = vld [vmem:[%s1 + $0x350] sm:$0xff]
  %v126 = vld [vmem:[%s1 + $0x358] sm:$0xff]
  %v127 = vld [vmem:[%s1 + $0x360] sm:$0xff]
  %v128 = vld [vmem:[%s1 + $0x368] sm:$0xff]
  %v129 = vld [vmem:[%s1 + $0x370] sm:$0xff]
  %v130 = vld [vmem:[%s1 + $0x378] sm:$0xff]
  %v131 = vld [vmem:[%s1 + $0x380] sm:$0xff]
  %v132 = vld [vmem:[%s1 + $0x388] sm:$0xff]
  %v133 = vld [vmem:[%s1 + $0x390] sm:$0xff]
  %v134 = vld [vmem:[%s1 + $0x398] sm:$0xff]
  %v135 = vld [vmem:[%s1 + $0x3a0] sm:$0xff]
  %v136 = vld [vmem:[%s1 + $0x3a8] sm:$0xff]
  %v137 = vld [vmem:[%s1 + $0x3b0] sm:$0xff]
  %v138 = vld [vmem:[%s1 + $0x3b8] sm:$0xff]
  %v139 = vld [vmem:[%s1 + $0x3c0] sm:$0xff]
  %v140 = vld [vmem:[%s1 + $0x3c8] sm:$0xff]
  %v141 = vld [vmem:[%s1 + $0x3d0] sm:$0xff]
  %v142 = vld [vmem:[%s1 + $0x3d8] sm:$0xff]
  %v143 = vld [vmem:[%s1 + $0x3e0] sm:$0xff]
  %v144 = vld [vmem:[%s1 + $0x3e8] sm:$0xff]
  %v145 = vld [vmem:[%s1 + $0x3f0] sm:$0xff]
  %v146 = vld [vmem:[%s1 + $0x3f8] sm:$0xff]
  %v147 = vld [vmem:[%s1 + $0x400] sm:$0xff]
  %v148 = vld [vmem:[%s1 + $0x408] sm:$0xff]
  %v149 = vld [vmem:[%s1 + $0x410] sm:$0xff]
  %v150 = vld [vmem:[%s1 + $0x418] sm:$0xff]
  %v151 = vld [vmem:[%s1 + $0x420] sm:$0xff]
  %v152 = vld [vmem:[%s1 + $0x428] sm:$0xff]
  %v153 = vld [vmem:[%s1 + $0x430] sm:$0xff]
  %v154 = vld [vmem:[%s1 + $0x438] sm:$0xff]
  %v155 = vld [vmem:[%s1 + $0x440] sm:$0xff]
  %v156 = vld [vmem:[%s1 + $0x448] sm:$0xff]
  %v157 = vld [vmem:[%s1 + $0x450] sm:$0xff]
  %v158 = vld [vmem:[%s1 + $0x458] sm:$0xff]
  %v159 = vld [vmem:[%s1 + $0x460] sm:$0xff]
  %v160 = vld [vmem:[%s1 + $0x468] sm:$0xff]
  %v161 = vld [vmem:[%s1 + $0x470] sm:$0xff]
  %v162 = vld [vmem:[%s1 + $0x478] sm:$0xff]
  %v163 = vld [vmem:[%s2] sm:$0x3]
  %v165 = vperm.slane %v163, 0
  %v166 = vperm.slane %v163, 1
  %v174 = vunpack.c.l.b16 %v14
  %v175 = vunpack.c.h.b16 %v14
  %v176 = vunpack.c.l.b16 %v15
  %v177 = vunpack.c.h.b16 %v15
  %v178 = vunpack.c.l.b16 %v16
  %v179 = vunpack.c.h.b16 %v16
  %v180 = vunpack.c.l.b16 %v17
  %v181 = vunpack.c.h.b16 %v17
  %v182 = vunpack.c.l.b16 %v18
  %v183 = vpack.c.b16 %v174, %v174
  %v184 = vpack.c.b16 %v175, %v175
  %v185 = vpack.c.b16 %v176, %v176
  %v186 = vpack.c.b16 %v177, %v177
  %v187 = vpack.c.b16 %v178, %v178
  %v188 = vpack.c.b16 %v179, %v179
  %v189 = vpack.c.b16 %v180, %v180
  %v190 = vpack.c.b16 %v181, %v181
  %v191 = vpack.c.b16 %v182, %v182
  %v345 = vunpack.c.l.b16 %v19
  %v346 = vunpack.c.h.b16 %v19
  %v347 = vunpack.c.l.b16 %v20
  %v348 = vunpack.c.h.b16 %v20
  %v349 = vunpack.c.l.b16 %v21
  %v350 = vunpack.c.h.b16 %v21
  %v351 = vunpack.c.l.b16 %v22
  %v352 = vunpack.c.h.b16 %v22
  %v353 = vunpack.c.l.b16 %v23
  %v354 = vunpack.c.h.b16 %v23
  %v355 = vunpack.c.l.b16 %v24
  %v356 = vunpack.c.h.b16 %v24
  %v357 = vunpack.c.l.b16 %v25
  %v358 = vunpack.c.h.b16 %v25
  %v359 = vunpack.c.l.b16 %v26
  %v360 = vunpack.c.h.b16 %v26
  %v361 = vunpack.c.l.b16 %v27
  %v362 = vunpack.c.h.b16 %v27
  %v363 = vunpack.c.l.b16 %v28
  %v364 = vunpack.c.h.b16 %v28
  %v365 = vunpack.c.l.b16 %v29
  %v366 = vunpack.c.h.b16 %v29
  %v367 = vunpack.c.l.b16 %v30
  %v368 = vunpack.c.h.b16 %v30
  %v369 = vunpack.c.l.b16 %v31
  %v370 = vunpack.c.h.b16 %v31
  %v371 = vunpack.c.l.b16 %v32
  %v372 = vunpack.c.h.b16 %v32
  %v373 = vunpack.c.l.b16 %v33
  %v374 = vunpack.c.h.b16 %v33
  %v375 = vunpack.c.l.b16 %v34
  %v376 = vunpack.c.h.b16 %v34
  %v377 = vunpack.c.l.b16 %v35
  %v378 = vunpack.c.h.b16 %v35
  %v379 = vunpack.c.l.b16 %v36
  %v380 = vunpack.c.h.b16 %v36
  %v381 = vunpack.c.l.b16 %v37
  %v382 = vunpack.c.h.b16 %v37
  %v383 = vunpack.c.l.b16 %v38
  %v384 = vunpack.c.h.b16 %v38
  %v385 = vunpack.c.l.b16 %v39
  %v386 = vunpack.c.h.b16 %v39
  %v387 = vunpack.c.l.b16 %v40
  %v388 = vunpack.c.h.b16 %v40
  %v389 = vunpack.c.l.b16 %v41
  %v390 = vunpack.c.h.b16 %v41
  %v391 = vunpack.c.l.b16 %v42
  %v392 = vunpack.c.h.b16 %v42
  %v393 = vunpack.c.l.b16 %v43
  %v394 = vunpack.c.h.b16 %v43
  %v395 = vunpack.c.l.b16 %v44
  %v396 = vunpack.c.h.b16 %v44
  %v397 = vunpack.c.l.b16 %v45
  %v398 = vunpack.c.h.b16 %v45
  %v399 = vunpack.c.l.b16 %v46
  %v400 = vunpack.c.h.b16 %v46
  %v401 = vunpack.c.l.b16 %v47
  %v402 = vunpack.c.h.b16 %v47
  %v403 = vunpack.c.l.b16 %v48
  %v404 = vunpack.c.h.b16 %v48
  %v405 = vunpack.c.l.b16 %v49
  %v406 = vunpack.c.h.b16 %v49
  %v407 = vunpack.c.l.b16 %v50
  %v408 = vunpack.c.h.b16 %v50
  %v409 = vunpack.c.l.b16 %v51
  %v410 = vunpack.c.h.b16 %v51
  %v411 = vunpack.c.l.b16 %v52
  %v412 = vunpack.c.h.b16 %v52
  %v413 = vunpack.c.l.b16 %v53
  %v414 = vunpack.c.h.b16 %v53
  %v415 = vunpack.c.l.b16 %v54
  %v416 = vunpack.c.h.b16 %v54
  %v417 = vunpack.c.l.b16 %v55
  %v418 = vunpack.c.h.b16 %v55
  %v419 = vunpack.c.l.b16 %v56
  %v420 = vunpack.c.h.b16 %v56
  %v421 = vunpack.c.l.b16 %v57
  %v422 = vunpack.c.h.b16 %v57
  %v423 = vunpack.c.l.b16 %v58
  %v424 = vunpack.c.h.b16 %v58
  %v425 = vunpack.c.l.b16 %v59
  %v426 = vunpack.c.h.b16 %v59
  %v427 = vunpack.c.l.b16 %v60
  %v428 = vunpack.c.h.b16 %v60
  %v429 = vunpack.c.l.b16 %v61
  %v430 = vunpack.c.h.b16 %v61
  %v431 = vunpack.c.l.b16 %v62
  %v432 = vunpack.c.h.b16 %v62
  %v433 = vunpack.c.l.b16 %v63
  %v434 = vunpack.c.h.b16 %v63
  %v435 = vunpack.c.l.b16 %v64
  %v436 = vunpack.c.h.b16 %v64
  %v437 = vunpack.c.l.b16 %v65
  %v438 = vunpack.c.h.b16 %v65
  %v439 = vunpack.c.l.b16 %v66
  %v440 = vunpack.c.h.b16 %v66
  %v441 = vunpack.c.l.b16 %v67
  %v442 = vunpack.c.h.b16 %v67
  %v443 = vunpack.c.l.b16 %v68
  %v444 = vunpack.c.h.b16 %v68
  %v445 = vunpack.c.l.b16 %v69
  %v446 = vunpack.c.h.b16 %v69
  %v447 = vunpack.c.l.b16 %v70
  %v448 = vunpack.c.h.b16 %v70
  %v449 = vunpack.c.l.b16 %v71
  %v450 = vunpack.c.h.b16 %v71
  %v451 = vunpack.c.l.b16 %v72
  %v452 = vunpack.c.h.b16 %v72
  %v453 = vunpack.c.l.b16 %v73
  %v454 = vunpack.c.h.b16 %v73
  %v455 = vunpack.c.l.b16 %v74
  %v456 = vunpack.c.h.b16 %v74
  %v457 = vunpack.c.l.b16 %v75
  %v458 = vunpack.c.h.b16 %v75
  %v459 = vunpack.c.l.b16 %v76
  %v460 = vunpack.c.h.b16 %v76
  %v461 = vunpack.c.l.b16 %v77
  %v462 = vunpack.c.h.b16 %v77
  %v463 = vunpack.c.l.b16 %v78
  %v464 = vunpack.c.h.b16 %v78
  %v465 = vunpack.c.l.b16 %v79
  %v466 = vunpack.c.h.b16 %v79
  %v467 = vunpack.c.l.b16 %v80
  %v468 = vunpack.c.h.b16 %v80
  %v469 = vunpack.c.l.b16 %v81
  %v470 = vunpack.c.h.b16 %v81
  %v471 = vunpack.c.l.b16 %v82
  %v472 = vunpack.c.h.b16 %v82
  %v473 = vunpack.c.l.b16 %v83
  %v474 = vunpack.c.h.b16 %v83
  %v475 = vunpack.c.l.b16 %v84
  %v476 = vunpack.c.h.b16 %v84
  %v477 = vunpack.c.l.b16 %v85
  %v478 = vunpack.c.h.b16 %v85
  %v479 = vunpack.c.l.b16 %v86
  %v480 = vunpack.c.h.b16 %v86
  %v481 = vunpack.c.l.b16 %v87
  %v482 = vunpack.c.h.b16 %v87
  %v483 = vunpack.c.l.b16 %v88
  %v484 = vunpack.c.h.b16 %v88
  %v485 = vunpack.c.l.b16 %v89
  %v486 = vunpack.c.h.b16 %v89
  %v487 = vunpack.c.l.b16 %v90
  %v488 = vunpack.c.h.b16 %v90
  %v489 = vunpack.c.l.b16 %v91
  %v490 = vunpack.c.h.b16 %v91
  %v491 = vunpack.c.l.b16 %v92
  %v492 = vunpack.c.h.b16 %v92
  %v493 = vunpack.c.l.b16 %v93
  %v494 = vunpack.c.h.b16 %v93
  %v495 = vunpack.c.l.b16 %v94
  %v496 = vunpack.c.h.b16 %v94
  %v497 = vunpack.c.l.b16 %v95
  %v498 = vunpack.c.h.b16 %v95
  %v499 = vunpack.c.l.b16 %v96
  %v500 = vunpack.c.h.b16 %v96
  %v501 = vunpack.c.l.b16 %v97
  %v502 = vunpack.c.h.b16 %v97
  %v503 = vunpack.c.l.b16 %v98
  %v504 = vunpack.c.h.b16 %v98
  %v505 = vunpack.c.l.b16 %v99
  %v506 = vunpack.c.h.b16 %v99
  %v507 = vunpack.c.l.b16 %v100
  %v508 = vunpack.c.h.b16 %v100
  %v509 = vunpack.c.l.b16 %v101
  %v510 = vunpack.c.h.b16 %v101
  %v511 = vunpack.c.l.b16 %v102
  %v512 = vunpack.c.h.b16 %v102
  %v513 = vunpack.c.l.b16 %v103
  %v514 = vunpack.c.h.b16 %v103
  %v515 = vunpack.c.l.b16 %v104
  %v516 = vunpack.c.h.b16 %v104
  %v517 = vunpack.c.l.b16 %v105
  %v518 = vunpack.c.h.b16 %v105
  %v519 = vunpack.c.l.b16 %v106
  %v520 = vunpack.c.h.b16 %v106
  %v521 = vunpack.c.l.b16 %v107
  %v522 = vunpack.c.h.b16 %v107
  %v523 = vunpack.c.l.b16 %v108
  %v524 = vunpack.c.h.b16 %v108
  %v525 = vunpack.c.l.b16 %v109
  %v526 = vunpack.c.h.b16 %v109
  %v527 = vunpack.c.l.b16 %v110
  %v528 = vunpack.c.h.b16 %v110
  %v529 = vunpack.c.l.b16 %v111
  %v530 = vunpack.c.h.b16 %v111
  %v531 = vunpack.c.l.b16 %v112
  %v532 = vunpack.c.h.b16 %v112
  %v533 = vunpack.c.l.b16 %v113
  %v534 = vunpack.c.h.b16 %v113
  %v535 = vunpack.c.l.b16 %v114
  %v536 = vunpack.c.h.b16 %v114
  %v537 = vunpack.c.l.b16 %v115
  %v538 = vunpack.c.h.b16 %v115
  %v539 = vunpack.c.l.b16 %v116
  %v540 = vunpack.c.h.b16 %v116
  %v541 = vunpack.c.l.b16 %v117
  %v542 = vunpack.c.h.b16 %v117
  %v543 = vunpack.c.l.b16 %v118
  %v544 = vunpack.c.h.b16 %v118
  %v545 = vunpack.c.l.b16 %v119
  %v546 = vunpack.c.h.b16 %v119
  %v547 = vunpack.c.l.b16 %v120
  %v548 = vunpack.c.h.b16 %v120
  %v549 = vunpack.c.l.b16 %v121
  %v550 = vunpack.c.h.b16 %v121
  %v551 = vunpack.c.l.b16 %v122
  %v552 = vunpack.c.h.b16 %v122
  %v553 = vunpack.c.l.b16 %v123
  %v554 = vunpack.c.h.b16 %v123
  %v555 = vunpack.c.l.b16 %v124
  %v556 = vunpack.c.h.b16 %v124
  %v557 = vunpack.c.l.b16 %v125
  %v558 = vunpack.c.h.b16 %v125
  %v559 = vunpack.c.l.b16 %v126
  %v560 = vunpack.c.h.b16 %v126
  %v561 = vunpack.c.l.b16 %v127
  %v562 = vunpack.c.h.b16 %v127
  %v563 = vunpack.c.l.b16 %v128
  %v564 = vunpack.c.h.b16 %v128
  %v565 = vunpack.c.l.b16 %v129
  %v566 = vunpack.c.h.b16 %v129
  %v567 = vunpack.c.l.b16 %v130
  %v568 = vunpack.c.h.b16 %v130
  %v569 = vunpack.c.l.b16 %v131
  %v570 = vunpack.c.h.b16 %v131
  %v571 = vunpack.c.l.b16 %v132
  %v572 = vunpack.c.h.b16 %v132
  %v573 = vunpack.c.l.b16 %v133
  %v574 = vunpack.c.h.b16 %v133
  %v575 = vunpack.c.l.b16 %v134
  %v576 = vunpack.c.h.b16 %v134
  %v577 = vunpack.c.l.b16 %v135
  %v578 = vunpack.c.h.b16 %v135
  %v579 = vunpack.c.l.b16 %v136
  %v580 = vunpack.c.h.b16 %v136
  %v581 = vunpack.c.l.b16 %v137
  %v582 = vunpack.c.h.b16 %v137
  %v583 = vunpack.c.l.b16 %v138
  %v584 = vunpack.c.h.b16 %v138
  %v585 = vunpack.c.l.b16 %v139
  %v586 = vunpack.c.h.b16 %v139
  %v587 = vunpack.c.l.b16 %v140
  %v588 = vunpack.c.h.b16 %v140
  %v589 = vunpack.c.l.b16 %v141
  %v590 = vunpack.c.h.b16 %v141
  %v591 = vunpack.c.l.b16 %v142
  %v592 = vunpack.c.h.b16 %v142
  %v593 = vunpack.c.l.b16 %v143
  %v594 = vunpack.c.h.b16 %v143
  %v595 = vunpack.c.l.b16 %v144
  %v596 = vunpack.c.h.b16 %v144
  %v597 = vunpack.c.l.b16 %v145
  %v598 = vunpack.c.h.b16 %v145
  %v599 = vunpack.c.l.b16 %v146
  %v600 = vunpack.c.h.b16 %v146
  %v601 = vunpack.c.l.b16 %v147
  %v602 = vunpack.c.h.b16 %v147
  %v603 = vunpack.c.l.b16 %v148
  %v604 = vunpack.c.h.b16 %v148
  %v605 = vunpack.c.l.b16 %v149
  %v606 = vunpack.c.h.b16 %v149
  %v607 = vunpack.c.l.b16 %v150
  %v608 = vunpack.c.h.b16 %v150
  %v609 = vunpack.c.l.b16 %v151
  %v610 = vunpack.c.h.b16 %v151
  %v611 = vunpack.c.l.b16 %v152
  %v612 = vunpack.c.h.b16 %v152
  %v613 = vunpack.c.l.b16 %v153
  %v614 = vunpack.c.h.b16 %v153
  %v615 = vunpack.c.l.b16 %v154
  %v616 = vunpack.c.h.b16 %v154
  %v617 = vunpack.c.l.b16 %v155
  %v618 = vunpack.c.h.b16 %v155
  %v619 = vunpack.c.l.b16 %v156
  %v620 = vunpack.c.h.b16 %v156
  %v621 = vunpack.c.l.b16 %v157
  %v622 = vunpack.c.h.b16 %v157
  %v623 = vunpack.c.l.b16 %v158
  %v624 = vunpack.c.h.b16 %v158
  %v625 = vunpack.c.l.b16 %v159
  %v626 = vunpack.c.h.b16 %v159
  %v627 = vunpack.c.l.b16 %v160
  %v628 = vunpack.c.h.b16 %v160
  %v629 = vunpack.c.l.b16 %v161
  %v630 = vunpack.c.h.b16 %v161
  %v631 = vunpack.c.l.b16 %v162
  %v632 = vunpack.c.h.b16 %v162
  %v633 = vpack.c.b16 %v347, %v345
  %v634 = vpack.c.b16 %v348, %v346
  %v635 = vpack.c.b16 %v351, %v349
  %v636 = vpack.c.b16 %v352, %v350
  %v637 = vpack.c.b16 %v355, %v353
  %v638 = vpack.c.b16 %v356, %v354
  %v639 = vpack.c.b16 %v359, %v357
  %v640 = vpack.c.b16 %v360, %v358
  %v641 = vpack.c.b16 %v363, %v361
  %v642 = vpack.c.b16 %v364, %v362
  %v643 = vpack.c.b16 %v367, %v365
  %v644 = vpack.c.b16 %v368, %v366
  %v645 = vpack.c.b16 %v371, %v369
  %v646 = vpack.c.b16 %v372, %v370
  %v647 = vpack.c.b16 %v375, %v373
  %v648 = vpack.c.b16 %v376, %v374
  %v649 = vpack.c.b16 %v379, %v377
  %v650 = vpack.c.b16 %v380, %v378
  %v651 = vpack.c.b16 %v383, %v381
  %v652 = vpack.c.b16 %v384, %v382
  %v653 = vpack.c.b16 %v387, %v385
  %v654 = vpack.c.b16 %v388, %v386
  %v655 = vpack.c.b16 %v391, %v389
  %v656 = vpack.c.b16 %v392, %v390
  %v657 = vpack.c.b16 %v395, %v393
  %v658 = vpack.c.b16 %v396, %v394
  %v659 = vpack.c.b16 %v399, %v397
  %v660 = vpack.c.b16 %v400, %v398
  %v661 = vpack.c.b16 %v403, %v401
  %v662 = vpack.c.b16 %v404, %v402
  %v663 = vpack.c.b16 %v407, %v405
  %v664 = vpack.c.b16 %v408, %v406
  %v665 = vpack.c.b16 %v411, %v409
  %v666 = vpack.c.b16 %v412, %v410
  %v667 = vpack.c.b16 %v415, %v413
  %v668 = vpack.c.b16 %v416, %v414
  %v669 = vpack.c.b16 %v419, %v417
  %v670 = vpack.c.b16 %v420, %v418
  %v671 = vpack.c.b16 %v423, %v421
  %v672 = vpack.c.b16 %v424, %v422
  %v673 = vpack.c.b16 %v427, %v425
  %v674 = vpack.c.b16 %v428, %v426
  %v675 = vpack.c.b16 %v431, %v429
  %v676 = vpack.c.b16 %v432, %v430
  %v677 = vpack.c.b16 %v435, %v433
  %v678 = vpack.c.b16 %v436, %v434
  %v679 = vpack.c.b16 %v439, %v437
  %v680 = vpack.c.b16 %v440, %v438
  %v681 = vpack.c.b16 %v443, %v441
  %v682 = vpack.c.b16 %v444, %v442
  %v683 = vpack.c.b16 %v447, %v445
  %v684 = vpack.c.b16 %v448, %v446
  %v685 = vpack.c.b16 %v451, %v449
  %v686 = vpack.c.b16 %v452, %v450
  %v687 = vpack.c.b16 %v455, %v453
  %v688 = vpack.c.b16 %v456, %v454
  %v689 = vpack.c.b16 %v459, %v457
  %v690 = vpack.c.b16 %v460, %v458
  %v691 = vpack.c.b16 %v463, %v461
  %v692 = vpack.c.b16 %v464, %v462
  %v693 = vpack.c.b16 %v467, %v465
  %v694 = vpack.c.b16 %v468, %v466
  %v695 = vpack.c.b16 %v471, %v469
  %v696 = vpack.c.b16 %v472, %v470
  %v697 = vpack.c.b16 %v475, %v473
  %v698 = vpack.c.b16 %v476, %v474
  %v699 = vpack.c.b16 %v479, %v477
  %v700 = vpack.c.b16 %v480, %v478
  %v701 = vpack.c.b16 %v483, %v481
  %v702 = vpack.c.b16 %v484, %v482
  %v703 = vpack.c.b16 %v487, %v485
  %v704 = vpack.c.b16 %v488, %v486
  %v705 = vpack.c.b16 %v491, %v489
  %v706 = vpack.c.b16 %v492, %v490
  %v707 = vpack.c.b16 %v495, %v493
  %v708 = vpack.c.b16 %v496, %v494
  %v709 = vpack.c.b16 %v499, %v497
  %v710 = vpack.c.b16 %v500, %v498
  %v711 = vpack.c.b16 %v503, %v501
  %v712 = vpack.c.b16 %v504, %v502
  %v713 = vpack.c.b16 %v507, %v505
  %v714 = vpack.c.b16 %v508, %v506
  %v715 = vpack.c.b16 %v511, %v509
  %v716 = vpack.c.b16 %v512, %v510
  %v717 = vpack.c.b16 %v515, %v513
  %v718 = vpack.c.b16 %v516, %v514
  %v719 = vpack.c.b16 %v519, %v517
  %v720 = vpack.c.b16 %v520, %v518
  %v721 = vpack.c.b16 %v523, %v521
  %v722 = vpack.c.b16 %v524, %v522
  %v723 = vpack.c.b16 %v527, %v525
  %v724 = vpack.c.b16 %v528, %v526
  %v725 = vpack.c.b16 %v531, %v529
  %v726 = vpack.c.b16 %v532, %v530
  %v727 = vpack.c.b16 %v535, %v533
  %v728 = vpack.c.b16 %v536, %v534
  %v729 = vpack.c.b16 %v539, %v537
  %v730 = vpack.c.b16 %v540, %v538
  %v731 = vpack.c.b16 %v543, %v541
  %v732 = vpack.c.b16 %v544, %v542
  %v733 = vpack.c.b16 %v547, %v545
  %v734 = vpack.c.b16 %v548, %v546
  %v735 = vpack.c.b16 %v551, %v549
  %v736 = vpack.c.b16 %v552, %v550
  %v737 = vpack.c.b16 %v555, %v553
  %v738 = vpack.c.b16 %v556, %v554
  %v739 = vpack.c.b16 %v559, %v557
  %v740 = vpack.c.b16 %v560, %v558
  %v741 = vpack.c.b16 %v563, %v561
  %v742 = vpack.c.b16 %v564, %v562
  %v743 = vpack.c.b16 %v567, %v565
  %v744 = vpack.c.b16 %v568, %v566
  %v745 = vpack.c.b16 %v571, %v569
  %v746 = vpack.c.b16 %v572, %v570
  %v747 = vpack.c.b16 %v575, %v573
  %v748 = vpack.c.b16 %v576, %v574
  %v749 = vpack.c.b16 %v579, %v577
  %v750 = vpack.c.b16 %v580, %v578
  %v751 = vpack.c.b16 %v583, %v581
  %v752 = vpack.c.b16 %v584, %v582
  %v753 = vpack.c.b16 %v587, %v585
  %v754 = vpack.c.b16 %v588, %v586
  %v755 = vpack.c.b16 %v591, %v589
  %v756 = vpack.c.b16 %v592, %v590
  %v757 = vpack.c.b16 %v595, %v593
  %v758 = vpack.c.b16 %v596, %v594
  %v759 = vpack.c.b16 %v599, %v597
  %v760 = vpack.c.b16 %v600, %v598
  %v761 = vpack.c.b16 %v603, %v601
  %v762 = vpack.c.b16 %v604, %v602
  %v763 = vpack.c.b16 %v607, %v605
  %v764 = vpack.c.b16 %v608, %v606
  %v765 = vpack.c.b16 %v611, %v609
  %v766 = vpack.c.b16 %v612, %v610
  %v767 = vpack.c.b16 %v615, %v613
  %v768 = vpack.c.b16 %v616, %v614
  %v769 = vpack.c.b16 %v619, %v617
  %v770 = vpack.c.b16 %v620, %v618
  %v771 = vpack.c.b16 %v623, %v621
  %v772 = vpack.c.b16 %v624, %v622
  %v773 = vpack.c.b16 %v627, %v625
  %v774 = vpack.c.b16 %v628, %v626
  %v775 = vpack.c.b16 %v631, %v629
  %v776 = vpack.c.b16 %v632, %v630
  %921 = vmatpush.bf16.msra.mxu0 %v647
  %922 = vmatpush.bf16.msra.mxu0 %v645
  %923 = vmatpush.bf16.msra.mxu0 %v643
  %924 = vmatpush.bf16.msra.mxu0 %v641
  %925 = vmatpush.bf16.msra.mxu0 %v639
  %926 = vmatpush.bf16.msra.mxu0 %v637
  %927 = vmatpush.bf16.msra.mxu0 %v635
  %928 = vmatpush.bf16.msra.mxu0 %v633
  %929 = vmatmul.bf16.gmra.mxu0 %v183
  %v930 = vpop.f32.mrf.mxu0
  %v931 = vadd.f32 %v165, %v930
  %v932 = vpop.f32.mrf.mxu0
  %933 = vdwg.mxu0
  %934 = vmatpush.bf16.msra.mxu0 %v663
  %935 = vmatpush.bf16.msra.mxu0 %v661
  %936 = vmatpush.bf16.msra.mxu0 %v659
  %937 = vmatpush.bf16.msra.mxu0 %v657
  %938 = vmatpush.bf16.msra.mxu0 %v655
  %939 = vmatpush.bf16.msra.mxu0 %v653
  %940 = vmatpush.bf16.msra.mxu0 %v651
  %941 = vmatpush.bf16.msra.mxu0 %v649
  %942 = vmatmul.bf16.gmra.mxu0 %v184
  %v943 = vpop.f32.mrf.mxu0
  %v944 = vadd.f32 %v931, %v943
  %v945 = vpop.f32.mrf.mxu0
  %946 = vdwg.mxu0
  %947 = vmatpush.bf16.msra.mxu0 %v679
  %948 = vmatpush.bf16.msra.mxu0 %v677
  %949 = vmatpush.bf16.msra.mxu0 %v675
  %950 = vmatpush.bf16.msra.mxu0 %v673
  %951 = vmatpush.bf16.msra.mxu0 %v671
  %952 = vmatpush.bf16.msra.mxu0 %v669
  %953 = vmatpush.bf16.msra.mxu0 %v667
  %954 = vmatpush.bf16.msra.mxu0 %v665
  %955 = vmatmul.bf16.gmra.mxu0 %v185
  %v956 = vpop.f32.mrf.mxu0
  %v957 = vadd.f32 %v944, %v956
  %v958 = vpop.f32.mrf.mxu0
  %959 = vdwg.mxu0
  %960 = vmatpush.bf16.msra.mxu0 %v695
  %961 = vmatpush.bf16.msra.mxu0 %v693
  %962 = vmatpush.bf16.msra.mxu0 %v691
  %963 = vmatpush.bf16.msra.mxu0 %v689
  %964 = vmatpush.bf16.msra.mxu0 %v687
  %965 = vmatpush.bf16.msra.mxu0 %v685
  %966 = vmatpush.bf16.msra.mxu0 %v683
  %967 = vmatpush.bf16.msra.mxu0 %v681
  %968 = vmatmul.bf16.gmra.mxu0 %v186
  %v969 = vpop.f32.mrf.mxu0
  %v970 = vadd.f32 %v957, %v969
  %v971 = vpop.f32.mrf.mxu0
  %972 = vdwg.mxu0
  %973 = vmatpush.bf16.msra.mxu0 %v711
  %974 = vmatpush.bf16.msra.mxu0 %v709
  %975 = vmatpush.bf16.msra.mxu0 %v707
  %976 = vmatpush.bf16.msra.mxu0 %v705
  %977 = vmatpush.bf16.msra.mxu0 %v703
  %978 = vmatpush.bf16.msra.mxu0 %v701
  %979 = vmatpush.bf16.msra.mxu0 %v699
  %980 = vmatpush.bf16.msra.mxu0 %v697
  %981 = vmatmul.bf16.gmra.mxu0 %v187
  %v982 = vpop.f32.mrf.mxu0
  %v983 = vadd.f32 %v970, %v982
  %v984 = vpop.f32.mrf.mxu0
  %985 = vdwg.mxu0
  %986 = vmatpush.bf16.msra.mxu0 %v727
  %987 = vmatpush.bf16.msra.mxu0 %v725
  %988 = vmatpush.bf16.msra.mxu0 %v723
  %989 = vmatpush.bf16.msra.mxu0 %v721
  %990 = vmatpush.bf16.msra.mxu0 %v719
  %991 = vmatpush.bf16.msra.mxu0 %v717
  %992 = vmatpush.bf16.msra.mxu0 %v715
  %993 = vmatpush.bf16.msra.mxu0 %v713
  %994 = vmatmul.bf16.gmra.mxu0 %v188
  %v995 = vpop.f32.mrf.mxu0
  %v996 = vadd.f32 %v983, %v995
  %v997 = vpop.f32.mrf.mxu0
  %998 = vdwg.mxu0
  %999 = vmatpush.bf16.msra.mxu0 %v743
  %1000 = vmatpush.bf16.msra.mxu0 %v741
  %1001 = vmatpush.bf16.msra.mxu0 %v739
  %1002 = vmatpush.bf16.msra.mxu0 %v737
  %1003 = vmatpush.bf16.msra.mxu0 %v735
  %1004 = vmatpush.bf16.msra.mxu0 %v733
  %1005 = vmatpush.bf16.msra.mxu0 %v731
  %1006 = vmatpush.bf16.msra.mxu0 %v729
  %1007 = vmatmul.bf16.gmra.mxu0 %v189
  %v1008 = vpop.f32.mrf.mxu0
  %v1009 = vadd.f32 %v996, %v1008
  %v1010 = vpop.f32.mrf.mxu0
  %1011 = vdwg.mxu0
  %1012 = vmatpush.bf16.msra.mxu0 %v759
  %1013 = vmatpush.bf16.msra.mxu0 %v757
  %1014 = vmatpush.bf16.msra.mxu0 %v755
  %1015 = vmatpush.bf16.msra.mxu0 %v753
  %1016 = vmatpush.bf16.msra.mxu0 %v751
  %1017 = vmatpush.bf16.msra.mxu0 %v749
  %1018 = vmatpush.bf16.msra.mxu0 %v747
  %1019 = vmatpush.bf16.msra.mxu0 %v745
  %1020 = vmatmul.bf16.gmra.mxu0 %v190
  %v1021 = vpop.f32.mrf.mxu0
  %v1022 = vadd.f32 %v1009, %v1021
  %v1023 = vpop.f32.mrf.mxu0
  %1024 = vdwg.mxu0
  %1025 = vmatpush.bf16.msra.mxu0 %v775
  %1026 = vmatpush.bf16.msra.mxu0 %v773
  %1027 = vmatpush.bf16.msra.mxu0 %v771
  %1028 = vmatpush.bf16.msra.mxu0 %v769
  %1029 = vmatpush.bf16.msra.mxu0 %v767
  %1030 = vmatpush.bf16.msra.mxu0 %v765
  %1031 = vmatpush.bf16.msra.mxu0 %v763
  %1032 = vmatpush.bf16.msra.mxu0 %v761
  %1033 = vmatmul.bf16.gmra.mxu0 %v191
  %v1034 = vpop.f32.mrf.mxu0
  %v1035 = vadd.f32 %v1022, %v1034
  %v1036 = vpop.f32.mrf.mxu0
  %1037 = vdwg.mxu0
  %1038 = vmatpush.bf16.msra.mxu0 %v648
  %1039 = vmatpush.bf16.msra.mxu0 %v646
  %1040 = vmatpush.bf16.msra.mxu0 %v644
  %1041 = vmatpush.bf16.msra.mxu0 %v642
  %1042 = vmatpush.bf16.msra.mxu0 %v640
  %1043 = vmatpush.bf16.msra.mxu0 %v638
  %1044 = vmatpush.bf16.msra.mxu0 %v636
  %1045 = vmatpush.bf16.msra.mxu0 %v634
  %1046 = vmatmul.bf16.gmra.mxu0 %v183
  %v1047 = vpop.f32.mrf.mxu0
  %v1048 = vadd.f32 %v166, %v1047
  %v1049 = vpop.f32.mrf.mxu0
  %1050 = vdwg.mxu0
  %1051 = vmatpush.bf16.msra.mxu0 %v664
  %1052 = vmatpush.bf16.msra.mxu0 %v662
  %1053 = vmatpush.bf16.msra.mxu0 %v660
  %1054 = vmatpush.bf16.msra.mxu0 %v658
  %1055 = vmatpush.bf16.msra.mxu0 %v656
  %1056 = vmatpush.bf16.msra.mxu0 %v654
  %1057 = vmatpush.bf16.msra.mxu0 %v652
  %1058 = vmatpush.bf16.msra.mxu0 %v650
  %1059 = vmatmul.bf16.gmra.mxu0 %v184
  %v1060 = vpop.f32.mrf.mxu0
  %v1061 = vadd.f32 %v1048, %v1060
  %v1062 = vpop.f32.mrf.mxu0
  %1063 = vdwg.mxu0
  %1064 = vmatpush.bf16.msra.mxu0 %v680
  %1065 = vmatpush.bf16.msra.mxu0 %v678
  %1066 = vmatpush.bf16.msra.mxu0 %v676
  %1067 = vmatpush.bf16.msra.mxu0 %v674
  %1068 = vmatpush.bf16.msra.mxu0 %v672
  %1069 = vmatpush.bf16.msra.mxu0 %v670
  %1070 = vmatpush.bf16.msra.mxu0 %v668
  %1071 = vmatpush.bf16.msra.mxu0 %v666
  %1072 = vmatmul.bf16.gmra.mxu0 %v185
  %v1073 = vpop.f32.mrf.mxu0
  %v1074 = vadd.f32 %v1061, %v1073
  %v1075 = vpop.f32.mrf.mxu0
  %1076 = vdwg.mxu0
  %1077 = vmatpush.bf16.msra.mxu0 %v696
  %1078 = vmatpush.bf16.msra.mxu0 %v694
  %1079 = vmatpush.bf16.msra.mxu0 %v692
  %1080 = vmatpush.bf16.msra.mxu0 %v690
  %1081 = vmatpush.bf16.msra.mxu0 %v688
  %1082 = vmatpush.bf16.msra.mxu0 %v686
  %1083 = vmatpush.bf16.msra.mxu0 %v684
  %1084 = vmatpush.bf16.msra.mxu0 %v682
  %1085 = vmatmul.bf16.gmra.mxu0 %v186
  %v1086 = vpop.f32.mrf.mxu0
  %v1087 = vadd.f32 %v1074, %v1086
  %v1088 = vpop.f32.mrf.mxu0
  %1089 = vdwg.mxu0
  %1090 = vmatpush.bf16.msra.mxu0 %v712
  %1091 = vmatpush.bf16.msra.mxu0 %v710
  %1092 = vmatpush.bf16.msra.mxu0 %v708
  %1093 = vmatpush.bf16.msra.mxu0 %v706
  %1094 = vmatpush.bf16.msra.mxu0 %v704
  %1095 = vmatpush.bf16.msra.mxu0 %v702
  %1096 = vmatpush.bf16.msra.mxu0 %v700
  %1097 = vmatpush.bf16.msra.mxu0 %v698
  %1098 = vmatmul.bf16.gmra.mxu0 %v187
  %v1099 = vpop.f32.mrf.mxu0
  %v1100 = vadd.f32 %v1087, %v1099
  %v1101 = vpop.f32.mrf.mxu0
  %1102 = vdwg.mxu0
  %1103 = vmatpush.bf16.msra.mxu0 %v728
  %1104 = vmatpush.bf16.msra.mxu0 %v726
  %1105 = vmatpush.bf16.msra.mxu0 %v724
  %1106 = vmatpush.bf16.msra.mxu0 %v722
  %1107 = vmatpush.bf16.msra.mxu0 %v720
  %1108 = vmatpush.bf16.msra.mxu0 %v718
  %1109 = vmatpush.bf16.msra.mxu0 %v716
  %1110 = vmatpush.bf16.msra.mxu0 %v714
  %1111 = vmatmul.bf16.gmra.mxu0 %v188
  %v1112 = vpop.f32.mrf.mxu0
  %v1113 = vadd.f32 %v1100, %v1112
  %v1114 = vpop.f32.mrf.mxu0
  %1115 = vdwg.mxu0
  %1116 = vmatpush.bf16.msra.mxu0 %v744
  %1117 = vmatpush.bf16.msra.mxu0 %v742
  %1118 = vmatpush.bf16.msra.mxu0 %v740
  %1119 = vmatpush.bf16.msra.mxu0 %v738
  %1120 = vmatpush.bf16.msra.mxu0 %v736
  %1121 = vmatpush.bf16.msra.mxu0 %v734
  %1122 = vmatpush.bf16.msra.mxu0 %v732
  %1123 = vmatpush.bf16.msra.mxu0 %v730
  %1124 = vmatmul.bf16.gmra.mxu0 %v189
  %v1125 = vpop.f32.mrf.mxu0
  %v1126 = vadd.f32 %v1113, %v1125
  %v1127 = vpop.f32.mrf.mxu0
  %1128 = vdwg.mxu0
  %1129 = vmatpush.bf16.msra.mxu0 %v760
  %1130 = vmatpush.bf16.msra.mxu0 %v758
  %1131 = vmatpush.bf16.msra.mxu0 %v756
  %1132 = vmatpush.bf16.msra.mxu0 %v754
  %1133 = vmatpush.bf16.msra.mxu0 %v752
  %1134 = vmatpush.bf16.msra.mxu0 %v750
  %1135 = vmatpush.bf16.msra.mxu0 %v748
  %1136 = vmatpush.bf16.msra.mxu0 %v746
  %1137 = vmatmul.bf16.gmra.mxu0 %v190
  %v1138 = vpop.f32.mrf.mxu0
  %v1139 = vadd.f32 %v1126, %v1138
  %v1140 = vpop.f32.mrf.mxu0
  %1141 = vdwg.mxu0
  %1142 = vmatpush.bf16.msra.mxu0 %v776
  %1143 = vmatpush.bf16.msra.mxu0 %v774
  %1144 = vmatpush.bf16.msra.mxu0 %v772
  %1145 = vmatpush.bf16.msra.mxu0 %v770
  %1146 = vmatpush.bf16.msra.mxu0 %v768
  %1147 = vmatpush.bf16.msra.mxu0 %v766
  %1148 = vmatpush.bf16.msra.mxu0 %v764
  %1149 = vmatpush.bf16.msra.mxu0 %v762
  %1150 = vmatmul.bf16.gmra.mxu0 %v191
  %v1151 = vpop.f32.mrf.mxu0
  %v1152 = vadd.f32 %v1139, %v1151
  %v1153 = vpop.f32.mrf.mxu0
  %1154 = vdwg.mxu0
  %vm1155 = vcmp.ge.f32.partialorder %v1035, 0.0
  %vm1156 = vcmp.ge.f32.partialorder %v1152, 0.0
  %v1157 = vmul.f32 %v1035, 0.01
  %v1158 = vmul.f32 %v1152, 0.01
  %v1159 = vsel %vm1155, %v1035, %v1157
  %v1160 = vsel %vm1156, %v1152, %v1158
  %1161 = vst [vmem:[%s3] sm:$0xff] %v1159
  %1162 = vst [vmem:[%s3 + $0x8] sm:$0xff] %v1160
  // Predicated region
  $region14: #{vae_forward.14} parent=0 // pred_check
    _
  $region15: #{vae_forward.14} parent=0 // pred_check_branch
    %1164 = sbr.rel (0) target = $region17
  $region16: #{vae_forward.14} parent=0 // pred_region
    _
  $region17: #{vae_forward.14} parent=0 // pred_fallthru
    _
  // Predicated region
  $region18: #{vae_forward.14} parent=0 // pred_check
    _
  $region19: #{vae_forward.14} parent=0 // pred_check_branch
    %1166 = sbr.rel (0) target = $region21
  $region20: #{vae_forward.14} parent=0 // pred_region
    _
  $region21: #{vae_forward.14} parent=0 // pred_fallthru
    _

// kernel: vae_forward.15
$region0: #{vae_forward.15}
  #allocation0 [shape = 'u32[]', space=smem, size = 0x4, offset = 0x4, fixed_abs, tag = 'smem constant byte address 0x4 - core index']
  #allocation1 [shape = 'u32[72,128]{1,0:T(1,128)}', space=vmem, size = 0x9000, scoped, tag = 'internal scratch']
  %s0 = inlined_call_operand.vmem [shape: bf16[8,1024], index: 0, kind: input, shape index: {}]
  %s1 = inlined_call_operand.vmem [shape: bf16[1024,256], index: 1, kind: input, shape index: {}]
  %s2 = inlined_call_operand.vmem [shape: f32[1,256], index: 2, kind: input, shape index: {}]
  %s3 = inlined_call_operand.vmem [shape: f32[8,128], index: 3, kind: input, shape index: {}]
  %s4 = inlined_call_operand.vmem [shape: bf16[128,1024], index: 4, kind: input, shape index: {}]
  %s5 = inlined_call_operand.vmem [shape: f32[1,1024], index: 5, kind: input, shape index: {}]
  %s6 = inlined_call_operand.vmem [shape: f32[8,128], index: 6, kind: output, shape index: {0}]
  %s7 = inlined_call_operand.vmem [shape: f32[8,128], index: 7, kind: output, shape index: {1}]
  %s8 = inlined_call_operand.vmem [shape: f32[8,128], index: 8, kind: output, shape index: {2}]
  %s9 = inlined_call_operand.vmem [shape: f32[8,1024], index: 9, kind: output, shape index: {3}]
  %10 = xla_tuple %s6, %s7, %s8, %s9
  %s11 = sld [smem:[#allocation0]]
  $region58: #{vae_forward.15} parent=0
    _
  %s13 = ssub.s32 1, %s11
  %s14 = scalar_select 0, %s13, %s11
  // Predicated region
  $region2: #{vae_forward.15} parent=0 // pred_check
    _
  $region3: #{vae_forward.15} parent=0 // pred_check_branch
    %16 = sbr.rel (0) target = $region5
  $region4: #{vae_forward.15} parent=0 // pred_region
    _
  $region5: #{vae_forward.15} parent=0 // pred_fallthru
    _
  // Predicated region
  $region6: #{vae_forward.15} parent=0 // pred_check
    _
  $region7: #{vae_forward.15} parent=0 // pred_check_branch
    %18 = sbr.rel (0) target = $region9
  $region8: #{vae_forward.15} parent=0 // pred_region
    _
  $region9: #{vae_forward.15} parent=0 // pred_fallthru
    _
  // Predicated region
  $region10: #{vae_forward.15} parent=0 // pred_check
    _
  $region11: #{vae_forward.15} parent=0 // pred_check_branch
    %20 = sbr.rel (0) target = $region13
  $region12: #{vae_forward.15} parent=0 // pred_region
    _
  $region13: #{vae_forward.15} parent=0 // pred_fallthru
    _
  // Predicated region
  $region14: #{vae_forward.15} parent=0 // pred_check
    _
  $region15: #{vae_forward.15} parent=0 // pred_check_branch
    %22 = sbr.rel (0) target = $region17
  $region16: #{vae_forward.15} parent=0 // pred_region
    _
  $region17: #{vae_forward.15} parent=0 // pred_fallthru
    _
  // Predicated region
  $region18: #{vae_forward.15} parent=0 // pred_check
    _
  $region19: #{vae_forward.15} parent=0 // pred_check_branch
    %24 = sbr.rel (0) target = $region21
  $region20: #{vae_forward.15} parent=0 // pred_region
    _
  $region21: #{vae_forward.15} parent=0 // pred_fallthru
    _
  // Predicated region
  $region22: #{vae_forward.15} parent=0 // pred_check
    _
  $region23: #{vae_forward.15} parent=0 // pred_check_branch
    %26 = sbr.rel (0) target = $region25
  $region24: #{vae_forward.15} parent=0 // pred_region
    _
  $region25: #{vae_forward.15} parent=0 // pred_fallthru
    _
  %v27 = vld [vmem:[%s0] sm:$0xff]
  %v28 = vld [vmem:[%s0 + $0x8] sm:$0xff]
  %v29 = vld [vmem:[%s0 + $0x10] sm:$0xff]
  %v30 = vld [vmem:[%s0 + $0x18] sm:$0xff]
  %v31 = vld [vmem:[%s1] sm:$0xff]
  %v32 = vld [vmem:[%s1 + $0x8] sm:$0xff]
  %v33 = vld [vmem:[%s1 + $0x10] sm:$0xff]
  %v34 = vld [vmem:[%s1 + $0x18] sm:$0xff]
  %v35 = vld [vmem:[%s1 + $0x20] sm:$0xff]
  %v36 = vld [vmem:[%s1 + $0x28] sm:$0xff]
  %v37 = vld [vmem:[%s1 + $0x30] sm:$0xff]
  %v38 = vld [vmem:[%s1 + $0x38] sm:$0xff]
  %v39 = vld [vmem:[%s1 + $0x40] sm:$0xff]
  %v40 = vld [vmem:[%s1 + $0x48] sm:$0xff]
  %v41 = vld [vmem:[%s1 + $0x50] sm:$0xff]
  %v42 = vld [vmem:[%s1 + $0x58] sm:$0xff]
  %v43 = vld [vmem:[%s1 + $0x60] sm:$0xff]
  %v44 = vld [vmem:[%s1 + $0x68] sm:$0xff]
  %v45 = vld [vmem:[%s1 + $0x70] sm:$0xff]
  %v46 = vld [vmem:[%s1 + $0x78] sm:$0xff]
  %v47 = vld [vmem:[%s1 + $0x80] sm:$0xff]
  %v48 = vld [vmem:[%s1 + $0x88] sm:$0xff]
  %v49 = vld [vmem:[%s1 + $0x90] sm:$0xff]
  %v50 = vld [vmem:[%s1 + $0x98] sm:$0xff]
  %v51 = vld [vmem:[%s1 + $0xa0] sm:$0xff]
  %v52 = vld [vmem:[%s1 + $0xa8] sm:$0xff]
  %v53 = vld [vmem:[%s1 + $0xb0] sm:$0xff]
  %v54 = vld [vmem:[%s1 + $0xb8] sm:$0xff]
  %v55 = vld [vmem:[%s1 + $0xc0] sm:$0xff]
  %v56 = vld [vmem:[%s1 + $0xc8] sm:$0xff]
  %v57 = vld [vmem:[%s1 + $0xd0] sm:$0xff]
  %v58 = vld [vmem:[%s1 + $0xd8] sm:$0xff]
  %v59 = vld [vmem:[%s1 + $0xe0] sm:$0xff]
  %v60 = vld [vmem:[%s1 + $0xe8] sm:$0xff]
  %v61 = vld [vmem:[%s1 + $0xf0] sm:$0xff]
  %v62 = vld [vmem:[%s1 + $0xf8] sm:$0xff]
  %v63 = vld [vmem:[%s1 + $0x100] sm:$0xff]
  %v64 = vld [vmem:[%s1 + $0x108] sm:$0xff]
  %v65 = vld [vmem:[%s1 + $0x110] sm:$0xff]
  %v66 = vld [vmem:[%s1 + $0x118] sm:$0xff]
  %v67 = vld [vmem:[%s1 + $0x120] sm:$0xff]
  %v68 = vld [vmem:[%s1 + $0x128] sm:$0xff]
  %v69 = vld [vmem:[%s1 + $0x130] sm:$0xff]
  %v70 = vld [vmem:[%s1 + $0x138] sm:$0xff]
  %v71 = vld [vmem:[%s1 + $0x140] sm:$0xff]
  %v72 = vld [vmem:[%s1 + $0x148] sm:$0xff]
  %v73 = vld [vmem:[%s1 + $0x150] sm:$0xff]
  %v74 = vld [vmem:[%s1 + $0x158] sm:$0xff]
  %v75 = vld [vmem:[%s1 + $0x160] sm:$0xff]
  %v76 = vld [vmem:[%s1 + $0x168] sm:$0xff]
  %v77 = vld [vmem:[%s1 + $0x170] sm:$0xff]
  %v78 = vld [vmem:[%s1 + $0x178] sm:$0xff]
  %v79 = vld [vmem:[%s1 + $0x180] sm:$0xff]
  %v80 = vld [vmem:[%s1 + $0x188] sm:$0xff]
  %v81 = vld [vmem:[%s1 + $0x190] sm:$0xff]
  %v82 = vld [vmem:[%s1 + $0x198] sm:$0xff]
  %v83 = vld [vmem:[%s1 + $0x1a0] sm:$0xff]
  %v84 = vld [vmem:[%s1 + $0x1a8] sm:$0xff]
  %v85 = vld [vmem:[%s1 + $0x1b0] sm:$0xff]
  %v86 = vld [vmem:[%s1 + $0x1b8] sm:$0xff]
  %v87 = vld [vmem:[%s1 + $0x1c0] sm:$0xff]
  %v88 = vld [vmem:[%s1 + $0x1c8] sm:$0xff]
  %v89 = vld [vmem:[%s1 + $0x1d0] sm:$0xff]
  %v90 = vld [vmem:[%s1 + $0x1d8] sm:$0xff]
  %v91 = vld [vmem:[%s1 + $0x1e0] sm:$0xff]
  %v92 = vld [vmem:[%s1 + $0x1e8] sm:$0xff]
  %v93 = vld [vmem:[%s1 + $0x1f0] sm:$0xff]
  %v94 = vld [vmem:[%s1 + $0x1f8] sm:$0xff]
  %v95 = vld [vmem:[%s1 + $0x200] sm:$0xff]
  %v96 = vld [vmem:[%s1 + $0x208] sm:$0xff]
  %v97 = vld [vmem:[%s1 + $0x210] sm:$0xff]
  %v98 = vld [vmem:[%s1 + $0x218] sm:$0xff]
  %v99 = vld [vmem:[%s1 + $0x220] sm:$0xff]
  %v100 = vld [vmem:[%s1 + $0x228] sm:$0xff]
  %v101 = vld [vmem:[%s1 + $0x230] sm:$0xff]
  %v102 = vld [vmem:[%s1 + $0x238] sm:$0xff]
  %v103 = vld [vmem:[%s1 + $0x240] sm:$0xff]
  %v104 = vld [vmem:[%s1 + $0x248] sm:$0xff]
  %v105 = vld [vmem:[%s1 + $0x250] sm:$0xff]
  %v106 = vld [vmem:[%s1 + $0x258] sm:$0xff]
  %v107 = vld [vmem:[%s1 + $0x260] sm:$0xff]
  %v108 = vld [vmem:[%s1 + $0x268] sm:$0xff]
  %v109 = vld [vmem:[%s1 + $0x270] sm:$0xff]
  %v110 = vld [vmem:[%s1 + $0x278] sm:$0xff]
  %v111 = vld [vmem:[%s1 + $0x280] sm:$0xff]
  %v112 = vld [vmem:[%s1 + $0x288] sm:$0xff]
  %v113 = vld [vmem:[%s1 + $0x290] sm:$0xff]
  %v114 = vld [vmem:[%s1 + $0x298] sm:$0xff]
  %v115 = vld [vmem:[%s1 + $0x2a0] sm:$0xff]
  %v116 = vld [vmem:[%s1 + $0x2a8] sm:$0xff]
  %v117 = vld [vmem:[%s1 + $0x2b0] sm:$0xff]
  %v118 = vld [vmem:[%s1 + $0x2b8] sm:$0xff]
  %v119 = vld [vmem:[%s1 + $0x2c0] sm:$0xff]
  %v120 = vld [vmem:[%s1 + $0x2c8] sm:$0xff]
  %v121 = vld [vmem:[%s1 + $0x2d0] sm:$0xff]
  %v122 = vld [vmem:[%s1 + $0x2d8] sm:$0xff]
  %v123 = vld [vmem:[%s1 + $0x2e0] sm:$0xff]
  %v124 = vld [vmem:[%s1 + $0x2e8] sm:$0xff]
  %v125 = vld [vmem:[%s1 + $0x2f0] sm:$0xff]
  %v126 = vld [vmem:[%s1 + $0x2f8] sm:$0xff]
  %v127 = vld [vmem:[%s1 + $0x300] sm:$0xff]
  %v128 = vld [vmem:[%s1 + $0x308] sm:$0xff]
  %v129 = vld [vmem:[%s1 + $0x310] sm:$0xff]
  %v130 = vld [vmem:[%s1 + $0x318] sm:$0xff]
  %v131 = vld [vmem:[%s1 + $0x320] sm:$0xff]
  %v132 = vld [vmem:[%s1 + $0x328] sm:$0xff]
  %v133 = vld [vmem:[%s1 + $0x330] sm:$0xff]
  %v134 = vld [vmem:[%s1 + $0x338] sm:$0xff]
  %v135 = vld [vmem:[%s1 + $0x340] sm:$0xff]
  %v136 = vld [vmem:[%s1 + $0x348] sm:$0xff]
  %v137 = vld [vmem:[%s1 + $0x350] sm:$0xff]
  %v138 = vld [vmem:[%s1 + $0x358] sm:$0xff]
  %v139 = vld [vmem:[%s1 + $0x360] sm:$0xff]
  %v140 = vld [vmem:[%s1 + $0x368] sm:$0xff]
  %v141 = vld [vmem:[%s1 + $0x370] sm:$0xff]
  %v142 = vld [vmem:[%s1 + $0x378] sm:$0xff]
  %v143 = vld [vmem:[%s1 + $0x380] sm:$0xff]
  %v144 = vld [vmem:[%s1 + $0x388] sm:$0xff]
  %v145 = vld [vmem:[%s1 + $0x390] sm:$0xff]
  %v146 = vld [vmem:[%s1 + $0x398] sm:$0xff]
  %v147 = vld [vmem:[%s1 + $0x3a0] sm:$0xff]
  %v148 = vld [vmem:[%s1 + $0x3a8] sm:$0xff]
  %v149 = vld [vmem:[%s1 + $0x3b0] sm:$0xff]
  %v150 = vld [vmem:[%s1 + $0x3b8] sm:$0xff]
  %v151 = vld [vmem:[%s1 + $0x3c0] sm:$0xff]
  %v152 = vld [vmem:[%s1 + $0x3c8] sm:$0xff]
  %v153 = vld [vmem:[%s1 + $0x3d0] sm:$0xff]
  %v154 = vld [vmem:[%s1 + $0x3d8] sm:$0xff]
  %v155 = vld [vmem:[%s1 + $0x3e0] sm:$0xff]
  %v156 = vld [vmem:[%s1 + $0x3e8] sm:$0xff]
  %v157 = vld [vmem:[%s1 + $0x3f0] sm:$0xff]
  %v158 = vld [vmem:[%s1 + $0x3f8] sm:$0xff]
  %v159 = vld [vmem:[%s2] sm:$0x3]
  %v161 = vperm.slane %v159, 0
  %v162 = vperm.slane %v159, 1
  %v169 = vunpack.c.l.b16 %v27
  %v170 = vunpack.c.h.b16 %v27
  %v171 = vunpack.c.l.b16 %v28
  %v172 = vunpack.c.h.b16 %v28
  %v173 = vunpack.c.l.b16 %v29
  %v174 = vunpack.c.h.b16 %v29
  %v175 = vunpack.c.l.b16 %v30
  %v176 = vunpack.c.h.b16 %v30
  %v177 = vpack.c.b16 %v169, %v169
  %v178 = vpack.c.b16 %v170, %v170
  %v179 = vpack.c.b16 %v171, %v171
  %v180 = vpack.c.b16 %v172, %v172
  %v181 = vpack.c.b16 %v173, %v173
  %v182 = vpack.c.b16 %v174, %v174
  %v183 = vpack.c.b16 %v175, %v175
  %v184 = vpack.c.b16 %v176, %v176
  %v321 = vunpack.c.l.b16 %v31
  %v322 = vunpack.c.h.b16 %v31
  %v323 = vunpack.c.l.b16 %v32
  %v324 = vunpack.c.h.b16 %v32
  %v325 = vunpack.c.l.b16 %v33
  %v326 = vunpack.c.h.b16 %v33
  %v327 = vunpack.c.l.b16 %v34
  %v328 = vunpack.c.h.b16 %v34
  %v329 = vunpack.c.l.b16 %v35
  %v330 = vunpack.c.h.b16 %v35
  %v331 = vunpack.c.l.b16 %v36
  %v332 = vunpack.c.h.b16 %v36
  %v333 = vunpack.c.l.b16 %v37
  %v334 = vunpack.c.h.b16 %v37
  %v335 = vunpack.c.l.b16 %v38
  %v336 = vunpack.c.h.b16 %v38
  %v337 = vunpack.c.l.b16 %v39
  %v338 = vunpack.c.h.b16 %v39
  %v339 = vunpack.c.l.b16 %v40
  %v340 = vunpack.c.h.b16 %v40
  %v341 = vunpack.c.l.b16 %v41
  %v342 = vunpack.c.h.b16 %v41
  %v343 = vunpack.c.l.b16 %v42
  %v344 = vunpack.c.h.b16 %v42
  %v345 = vunpack.c.l.b16 %v43
  %v346 = vunpack.c.h.b16 %v43
  %v347 = vunpack.c.l.b16 %v44
  %v348 = vunpack.c.h.b16 %v44
  %v349 = vunpack.c.l.b16 %v45
  %v350 = vunpack.c.h.b16 %v45
  %v351 = vunpack.c.l.b16 %v46
  %v352 = vunpack.c.h.b16 %v46
  %v353 = vunpack.c.l.b16 %v47
  %v354 = vunpack.c.h.b16 %v47
  %v355 = vunpack.c.l.b16 %v48
  %v356 = vunpack.c.h.b16 %v48
  %v357 = vunpack.c.l.b16 %v49
  %v358 = vunpack.c.h.b16 %v49
  %v359 = vunpack.c.l.b16 %v50
  %v360 = vunpack.c.h.b16 %v50
  %v361 = vunpack.c.l.b16 %v51
  %v362 = vunpack.c.h.b16 %v51
  %v363 = vunpack.c.l.b16 %v52
  %v364 = vunpack.c.h.b16 %v52
  %v365 = vunpack.c.l.b16 %v53
  %v366 = vunpack.c.h.b16 %v53
  %v367 = vunpack.c.l.b16 %v54
  %v368 = vunpack.c.h.b16 %v54
  %v369 = vunpack.c.l.b16 %v55
  %v370 = vunpack.c.h.b16 %v55
  %v371 = vunpack.c.l.b16 %v56
  %v372 = vunpack.c.h.b16 %v56
  %v373 = vunpack.c.l.b16 %v57
  %v374 = vunpack.c.h.b16 %v57
  %v375 = vunpack.c.l.b16 %v58
  %v376 = vunpack.c.h.b16 %v58
  %v377 = vunpack.c.l.b16 %v59
  %v378 = vunpack.c.h.b16 %v59
  %v379 = vunpack.c.l.b16 %v60
  %v380 = vunpack.c.h.b16 %v60
  %v381 = vunpack.c.l.b16 %v61
  %v382 = vunpack.c.h.b16 %v61
  %v383 = vunpack.c.l.b16 %v62
  %v384 = vunpack.c.h.b16 %v62
  %v385 = vunpack.c.l.b16 %v63
  %v386 = vunpack.c.h.b16 %v63
  %v387 = vunpack.c.l.b16 %v64
  %v388 = vunpack.c.h.b16 %v64
  %v389 = vunpack.c.l.b16 %v65
  %v390 = vunpack.c.h.b16 %v65
  %v391 = vunpack.c.l.b16 %v66
  %v392 = vunpack.c.h.b16 %v66
  %v393 = vunpack.c.l.b16 %v67
  %v394 = vunpack.c.h.b16 %v67
  %v395 = vunpack.c.l.b16 %v68
  %v396 = vunpack.c.h.b16 %v68
  %v397 = vunpack.c.l.b16 %v69
  %v398 = vunpack.c.h.b16 %v69
  %v399 = vunpack.c.l.b16 %v70
  %v400 = vunpack.c.h.b16 %v70
  %v401 = vunpack.c.l.b16 %v71
  %v402 = vunpack.c.h.b16 %v71
  %v403 = vunpack.c.l.b16 %v72
  %v404 = vunpack.c.h.b16 %v72
  %v405 = vunpack.c.l.b16 %v73
  %v406 = vunpack.c.h.b16 %v73
  %v407 = vunpack.c.l.b16 %v74
  %v408 = vunpack.c.h.b16 %v74
  %v409 = vunpack.c.l.b16 %v75
  %v410 = vunpack.c.h.b16 %v75
  %v411 = vunpack.c.l.b16 %v76
  %v412 = vunpack.c.h.b16 %v76
  %v413 = vunpack.c.l.b16 %v77
  %v414 = vunpack.c.h.b16 %v77
  %v415 = vunpack.c.l.b16 %v78
  %v416 = vunpack.c.h.b16 %v78
  %v417 = vunpack.c.l.b16 %v79
  %v418 = vunpack.c.h.b16 %v79
  %v419 = vunpack.c.l.b16 %v80
  %v420 = vunpack.c.h.b16 %v80
  %v421 = vunpack.c.l.b16 %v81
  %v422 = vunpack.c.h.b16 %v81
  %v423 = vunpack.c.l.b16 %v82
  %v424 = vunpack.c.h.b16 %v82
  %v425 = vunpack.c.l.b16 %v83
  %v426 = vunpack.c.h.b16 %v83
  %v427 = vunpack.c.l.b16 %v84
  %v428 = vunpack.c.h.b16 %v84
  %v429 = vunpack.c.l.b16 %v85
  %v430 = vunpack.c.h.b16 %v85
  %v431 = vunpack.c.l.b16 %v86
  %v432 = vunpack.c.h.b16 %v86
  %v433 = vunpack.c.l.b16 %v87
  %v434 = vunpack.c.h.b16 %v87
  %v435 = vunpack.c.l.b16 %v88
  %v436 = vunpack.c.h.b16 %v88
  %v437 = vunpack.c.l.b16 %v89
  %v438 = vunpack.c.h.b16 %v89
  %v439 = vunpack.c.l.b16 %v90
  %v440 = vunpack.c.h.b16 %v90
  %v441 = vunpack.c.l.b16 %v91
  %v442 = vunpack.c.h.b16 %v91
  %v443 = vunpack.c.l.b16 %v92
  %v444 = vunpack.c.h.b16 %v92
  %v445 = vunpack.c.l.b16 %v93
  %v446 = vunpack.c.h.b16 %v93
  %v447 = vunpack.c.l.b16 %v94
  %v448 = vunpack.c.h.b16 %v94
  %v449 = vunpack.c.l.b16 %v95
  %v450 = vunpack.c.h.b16 %v95
  %v451 = vunpack.c.l.b16 %v96
  %v452 = vunpack.c.h.b16 %v96
  %v453 = vunpack.c.l.b16 %v97
  %v454 = vunpack.c.h.b16 %v97
  %v455 = vunpack.c.l.b16 %v98
  %v456 = vunpack.c.h.b16 %v98
  %v457 = vunpack.c.l.b16 %v99
  %v458 = vunpack.c.h.b16 %v99
  %v459 = vunpack.c.l.b16 %v100
  %v460 = vunpack.c.h.b16 %v100
  %v461 = vunpack.c.l.b16 %v101
  %v462 = vunpack.c.h.b16 %v101
  %v463 = vunpack.c.l.b16 %v102
  %v464 = vunpack.c.h.b16 %v102
  %v465 = vunpack.c.l.b16 %v103
  %v466 = vunpack.c.h.b16 %v103
  %v467 = vunpack.c.l.b16 %v104
  %v468 = vunpack.c.h.b16 %v104
  %v469 = vunpack.c.l.b16 %v105
  %v470 = vunpack.c.h.b16 %v105
  %v471 = vunpack.c.l.b16 %v106
  %v472 = vunpack.c.h.b16 %v106
  %v473 = vunpack.c.l.b16 %v107
  %v474 = vunpack.c.h.b16 %v107
  %v475 = vunpack.c.l.b16 %v108
  %v476 = vunpack.c.h.b16 %v108
  %v477 = vunpack.c.l.b16 %v109
  %v478 = vunpack.c.h.b16 %v109
  %v479 = vunpack.c.l.b16 %v110
  %v480 = vunpack.c.h.b16 %v110
  %v481 = vunpack.c.l.b16 %v111
  %v482 = vunpack.c.h.b16 %v111
  %v483 = vunpack.c.l.b16 %v112
  %v484 = vunpack.c.h.b16 %v112
  %v485 = vunpack.c.l.b16 %v113
  %v486 = vunpack.c.h.b16 %v113
  %v487 = vunpack.c.l.b16 %v114
  %v488 = vunpack.c.h.b16 %v114
  %v489 = vunpack.c.l.b16 %v115
  %v490 = vunpack.c.h.b16 %v115
  %v491 = vunpack.c.l.b16 %v116
  %v492 = vunpack.c.h.b16 %v116
  %v493 = vunpack.c.l.b16 %v117
  %v494 = vunpack.c.h.b16 %v117
  %v495 = vunpack.c.l.b16 %v118
  %v496 = vunpack.c.h.b16 %v118
  %v497 = vunpack.c.l.b16 %v119
  %v498 = vunpack.c.h.b16 %v119
  %v499 = vunpack.c.l.b16 %v120
  %v500 = vunpack.c.h.b16 %v120
  %v501 = vunpack.c.l.b16 %v121
  %v502 = vunpack.c.h.b16 %v121
  %v503 = vunpack.c.l.b16 %v122
  %v504 = vunpack.c.h.b16 %v122
  %v505 = vunpack.c.l.b16 %v123
  %v506 = vunpack.c.h.b16 %v123
  %v507 = vunpack.c.l.b16 %v124
  %v508 = vunpack.c.h.b16 %v124
  %v509 = vunpack.c.l.b16 %v125
  %v510 = vunpack.c.h.b16 %v125
  %v511 = vunpack.c.l.b16 %v126
  %v512 = vunpack.c.h.b16 %v126
  %v513 = vunpack.c.l.b16 %v127
  %v514 = vunpack.c.h.b16 %v127
  %v515 = vunpack.c.l.b16 %v128
  %v516 = vunpack.c.h.b16 %v128
  %v517 = vunpack.c.l.b16 %v129
  %v518 = vunpack.c.h.b16 %v129
  %v519 = vunpack.c.l.b16 %v130
  %v520 = vunpack.c.h.b16 %v130
  %v521 = vunpack.c.l.b16 %v131
  %v522 = vunpack.c.h.b16 %v131
  %v523 = vunpack.c.l.b16 %v132
  %v524 = vunpack.c.h.b16 %v132
  %v525 = vunpack.c.l.b16 %v133
  %v526 = vunpack.c.h.b16 %v133
  %v527 = vunpack.c.l.b16 %v134
  %v528 = vunpack.c.h.b16 %v134
  %v529 = vunpack.c.l.b16 %v135
  %v530 = vunpack.c.h.b16 %v135
  %v531 = vunpack.c.l.b16 %v136
  %v532 = vunpack.c.h.b16 %v136
  %v533 = vunpack.c.l.b16 %v137
  %v534 = vunpack.c.h.b16 %v137
  %v535 = vunpack.c.l.b16 %v138
  %v536 = vunpack.c.h.b16 %v138
  %v537 = vunpack.c.l.b16 %v139
  %v538 = vunpack.c.h.b16 %v139
  %v539 = vunpack.c.l.b16 %v140
  %v540 = vunpack.c.h.b16 %v140
  %v541 = vunpack.c.l.b16 %v141
  %v542 = vunpack.c.h.b16 %v141
  %v543 = vunpack.c.l.b16 %v142
  %v544 = vunpack.c.h.b16 %v142
  %v545 = vunpack.c.l.b16 %v143
  %v546 = vunpack.c.h.b16 %v143
  %v547 = vunpack.c.l.b16 %v144
  %v548 = vunpack.c.h.b16 %v144
  %v549 = vunpack.c.l.b16 %v145
  %v550 = vunpack.c.h.b16 %v145
  %v551 = vunpack.c.l.b16 %v146
  %v552 = vunpack.c.h.b16 %v146
  %v553 = vunpack.c.l.b16 %v147
  %v554 = vunpack.c.h.b16 %v147
  %v555 = vunpack.c.l.b16 %v148
  %v556 = vunpack.c.h.b16 %v148
  %v557 = vunpack.c.l.b16 %v149
  %v558 = vunpack.c.h.b16 %v149
  %v559 = vunpack.c.l.b16 %v150
  %v560 = vunpack.c.h.b16 %v150
  %v561 = vunpack.c.l.b16 %v151
  %v562 = vunpack.c.h.b16 %v151
  %v563 = vunpack.c.l.b16 %v152
  %v564 = vunpack.c.h.b16 %v152
  %v565 = vunpack.c.l.b16 %v153
  %v566 = vunpack.c.h.b16 %v153
  %v567 = vunpack.c.l.b16 %v154
  %v568 = vunpack.c.h.b16 %v154
  %v569 = vunpack.c.l.b16 %v155
  %v570 = vunpack.c.h.b16 %v155
  %v571 = vunpack.c.l.b16 %v156
  %v572 = vunpack.c.h.b16 %v156
  %v573 = vunpack.c.l.b16 %v157
  %v574 = vunpack.c.h.b16 %v157
  %v575 = vunpack.c.l.b16 %v158
  %v576 = vunpack.c.h.b16 %v158
  %v577 = vpack.c.b16 %v323, %v321
  %v578 = vpack.c.b16 %v324, %v322
  %v579 = vpack.c.b16 %v327, %v325
  %v580 = vpack.c.b16 %v328, %v326
  %v581 = vpack.c.b16 %v331, %v329
  %v582 = vpack.c.b16 %v332, %v330
  %v583 = vpack.c.b16 %v335, %v333
  %v584 = vpack.c.b16 %v336, %v334
  %v585 = vpack.c.b16 %v339, %v337
  %v586 = vpack.c.b16 %v340, %v338
  %v587 = vpack.c.b16 %v343, %v341
  %v588 = vpack.c.b16 %v344, %v342
  %v589 = vpack.c.b16 %v347, %v345
  %v590 = vpack.c.b16 %v348, %v346
  %v591 = vpack.c.b16 %v351, %v349
  %v592 = vpack.c.b16 %v352, %v350
  %v593 = vpack.c.b16 %v355, %v353
  %v594 = vpack.c.b16 %v356, %v354
  %v595 = vpack.c.b16 %v359, %v357
  %v596 = vpack.c.b16 %v360, %v358
  %v597 = vpack.c.b16 %v363, %v361
  %v598 = vpack.c.b16 %v364, %v362
  %v599 = vpack.c.b16 %v367, %v365
  %v600 = vpack.c.b16 %v368, %v366
  %v601 = vpack.c.b16 %v371, %v369
  %v602 = vpack.c.b16 %v372, %v370
  %v603 = vpack.c.b16 %v375, %v373
  %v604 = vpack.c.b16 %v376, %v374
  %v605 = vpack.c.b16 %v379, %v377
  %v606 = vpack.c.b16 %v380, %v378
  %v607 = vpack.c.b16 %v383, %v381
  %v608 = vpack.c.b16 %v384, %v382
  %v609 = vpack.c.b16 %v387, %v385
  %v610 = vpack.c.b16 %v388, %v386
  %v611 = vpack.c.b16 %v391, %v389
  %v612 = vpack.c.b16 %v392, %v390
  %v613 = vpack.c.b16 %v395, %v393
  %v614 = vpack.c.b16 %v396, %v394
  %v615 = vpack.c.b16 %v399, %v397
  %v616 = vpack.c.b16 %v400, %v398
  %v617 = vpack.c.b16 %v403, %v401
  %v618 = vpack.c.b16 %v404, %v402
  %v619 = vpack.c.b16 %v407, %v405
  %v620 = vpack.c.b16 %v408, %v406
  %v621 = vpack.c.b16 %v411, %v409
  %v622 = vpack.c.b16 %v412, %v410
  %v623 = vpack.c.b16 %v415, %v413
  %v624 = vpack.c.b16 %v416, %v414
  %v625 = vpack.c.b16 %v419, %v417
  %v626 = vpack.c.b16 %v420, %v418
  %v627 = vpack.c.b16 %v423, %v421
  %v628 = vpack.c.b16 %v424, %v422
  %v629 = vpack.c.b16 %v427, %v425
  %v630 = vpack.c.b16 %v428, %v426
  %v631 = vpack.c.b16 %v431, %v429
  %v632 = vpack.c.b16 %v432, %v430
  %v633 = vpack.c.b16 %v435, %v433
  %v634 = vpack.c.b16 %v436, %v434
  %v635 = vpack.c.b16 %v439, %v437
  %v636 = vpack.c.b16 %v440, %v438
  %v637 = vpack.c.b16 %v443, %v441
  %v638 = vpack.c.b16 %v444, %v442
  %v639 = vpack.c.b16 %v447, %v445
  %v640 = vpack.c.b16 %v448, %v446
  %v641 = vpack.c.b16 %v451, %v449
  %v642 = vpack.c.b16 %v452, %v450
  %v643 = vpack.c.b16 %v455, %v453
  %v644 = vpack.c.b16 %v456, %v454
  %v645 = vpack.c.b16 %v459, %v457
  %v646 = vpack.c.b16 %v460, %v458
  %v647 = vpack.c.b16 %v463, %v461
  %v648 = vpack.c.b16 %v464, %v462
  %v649 = vpack.c.b16 %v467, %v465
  %v650 = vpack.c.b16 %v468, %v466
  %v651 = vpack.c.b16 %v471, %v469
  %v652 = vpack.c.b16 %v472, %v470
  %v653 = vpack.c.b16 %v475, %v473
  %v654 = vpack.c.b16 %v476, %v474
  %v655 = vpack.c.b16 %v479, %v477
  %v656 = vpack.c.b16 %v480, %v478
  %v657 = vpack.c.b16 %v483, %v481
  %v658 = vpack.c.b16 %v484, %v482
  %v659 = vpack.c.b16 %v487, %v485
  %v660 = vpack.c.b16 %v488, %v486
  %v661 = vpack.c.b16 %v491, %v489
  %v662 = vpack.c.b16 %v492, %v490
  %v663 = vpack.c.b16 %v495, %v493
  %v664 = vpack.c.b16 %v496, %v494
  %v665 = vpack.c.b16 %v499, %v497
  %v666 = vpack.c.b16 %v500, %v498
  %v667 = vpack.c.b16 %v503, %v501
  %v668 = vpack.c.b16 %v504, %v502
  %v669 = vpack.c.b16 %v507, %v505
  %v670 = vpack.c.b16 %v508, %v506
  %v671 = vpack.c.b16 %v511, %v509
  %v672 = vpack.c.b16 %v512, %v510
  %v673 = vpack.c.b16 %v515, %v513
  %v674 = vpack.c.b16 %v516, %v514
  %v675 = vpack.c.b16 %v519, %v517
  %v676 = vpack.c.b16 %v520, %v518
  %v677 = vpack.c.b16 %v523, %v521
  %v678 = vpack.c.b16 %v524, %v522
  %v679 = vpack.c.b16 %v527, %v525
  %v680 = vpack.c.b16 %v528, %v526
  %v681 = vpack.c.b16 %v531, %v529
  %v682 = vpack.c.b16 %v532, %v530
  %v683 = vpack.c.b16 %v535, %v533
  %v684 = vpack.c.b16 %v536, %v534
  %v685 = vpack.c.b16 %v539, %v537
  %v686 = vpack.c.b16 %v540, %v538
  %v687 = vpack.c.b16 %v543, %v541
  %v688 = vpack.c.b16 %v544, %v542
  %v689 = vpack.c.b16 %v547, %v545
  %v690 = vpack.c.b16 %v548, %v546
  %v691 = vpack.c.b16 %v551, %v549
  %v692 = vpack.c.b16 %v552, %v550
  %v693 = vpack.c.b16 %v555, %v553
  %v694 = vpack.c.b16 %v556, %v554
  %v695 = vpack.c.b16 %v559, %v557
  %v696 = vpack.c.b16 %v560, %v558
  %v697 = vpack.c.b16 %v563, %v561
  %v698 = vpack.c.b16 %v564, %v562
  %v699 = vpack.c.b16 %v567, %v565
  %v700 = vpack.c.b16 %v568, %v566
  %v701 = vpack.c.b16 %v571, %v569
  %v702 = vpack.c.b16 %v572, %v570
  %v703 = vpack.c.b16 %v575, %v573
  %v704 = vpack.c.b16 %v576, %v574
  %833 = vmatpush.bf16.msra.mxu0 %v591
  %834 = vmatpush.bf16.msra.mxu0 %v589
  %835 = vmatpush.bf16.msra.mxu0 %v587
  %836 = vmatpush.bf16.msra.mxu0 %v585
  %837 = vmatpush.bf16.msra.mxu0 %v583
  %838 = vmatpush.bf16.msra.mxu0 %v581
  %839 = vmatpush.bf16.msra.mxu0 %v579
  %840 = vmatpush.bf16.msra.mxu0 %v577
  %841 = vmatmul.bf16.gmra.mxu0 %v177
  %v842 = vpop.f32.mrf.mxu0
  %v843 = vadd.f32 %v161, %v842
  %v844 = vpop.f32.mrf.mxu0
  %845 = vdwg.mxu0
  %846 = vmatpush.bf16.msra.mxu0 %v607
  %847 = vmatpush.bf16.msra.mxu0 %v605
  %848 = vmatpush.bf16.msra.mxu0 %v603
  %849 = vmatpush.bf16.msra.mxu0 %v601
  %850 = vmatpush.bf16.msra.mxu0 %v599
  %851 = vmatpush.bf16.msra.mxu0 %v597
  %852 = vmatpush.bf16.msra.mxu0 %v595
  %853 = vmatpush.bf16.msra.mxu0 %v593
  %854 = vmatmul.bf16.gmra.mxu0 %v178
  %v855 = vpop.f32.mrf.mxu0
  %v856 = vadd.f32 %v843, %v855
  %v857 = vpop.f32.mrf.mxu0
  %858 = vdwg.mxu0
  %859 = vmatpush.bf16.msra.mxu0 %v623
  %860 = vmatpush.bf16.msra.mxu0 %v621
  %861 = vmatpush.bf16.msra.mxu0 %v619
  %862 = vmatpush.bf16.msra.mxu0 %v617
  %863 = vmatpush.bf16.msra.mxu0 %v615
  %864 = vmatpush.bf16.msra.mxu0 %v613
  %865 = vmatpush.bf16.msra.mxu0 %v611
  %866 = vmatpush.bf16.msra.mxu0 %v609
  %867 = vmatmul.bf16.gmra.mxu0 %v179
  %v868 = vpop.f32.mrf.mxu0
  %v869 = vadd.f32 %v856, %v868
  %v870 = vpop.f32.mrf.mxu0
  %871 = vdwg.mxu0
  %872 = vmatpush.bf16.msra.mxu0 %v639
  %873 = vmatpush.bf16.msra.mxu0 %v637
  %874 = vmatpush.bf16.msra.mxu0 %v635
  %875 = vmatpush.bf16.msra.mxu0 %v633
  %876 = vmatpush.bf16.msra.mxu0 %v631
  %877 = vmatpush.bf16.msra.mxu0 %v629
  %878 = vmatpush.bf16.msra.mxu0 %v627
  %879 = vmatpush.bf16.msra.mxu0 %v625
  %880 = vmatmul.bf16.gmra.mxu0 %v180
  %v881 = vpop.f32.mrf.mxu0
  %v882 = vadd.f32 %v869, %v881
  %v883 = vpop.f32.mrf.mxu0
  %884 = vdwg.mxu0
  %885 = vmatpush.bf16.msra.mxu0 %v655
  %886 = vmatpush.bf16.msra.mxu0 %v653
  %887 = vmatpush.bf16.msra.mxu0 %v651
  %888 = vmatpush.bf16.msra.mxu0 %v649
  %889 = vmatpush.bf16.msra.mxu0 %v647
  %890 = vmatpush.bf16.msra.mxu0 %v645
  %891 = vmatpush.bf16.msra.mxu0 %v643
  %892 = vmatpush.bf16.msra.mxu0 %v641
  %893 = vmatmul.bf16.gmra.mxu0 %v181
  %v894 = vpop.f32.mrf.mxu0
  %v895 = vadd.f32 %v882, %v894
  %v896 = vpop.f32.mrf.mxu0
  %897 = vdwg.mxu0
  %898 = vmatpush.bf16.msra.mxu0 %v671
  %899 = vmatpush.bf16.msra.mxu0 %v669
  %900 = vmatpush.bf16.msra.mxu0 %v667
  %901 = vmatpush.bf16.msra.mxu0 %v665
  %902 = vmatpush.bf16.msra.mxu0 %v663
  %903 = vmatpush.bf16.msra.mxu0 %v661
  %904 = vmatpush.bf16.msra.mxu0 %v659
  %905 = vmatpush.bf16.msra.mxu0 %v657
  %906 = vmatmul.bf16.gmra.mxu0 %v182
  %v907 = vpop.f32.mrf.mxu0
  %v908 = vadd.f32 %v895, %v907
  %v909 = vpop.f32.mrf.mxu0
  %910 = vdwg.mxu0
  %911 = vmatpush.bf16.msra.mxu0 %v687
  %912 = vmatpush.bf16.msra.mxu0 %v685
  %913 = vmatpush.bf16.msra.mxu0 %v683
  %914 = vmatpush.bf16.msra.mxu0 %v681
  %915 = vmatpush.bf16.msra.mxu0 %v679
  %916 = vmatpush.bf16.msra.mxu0 %v677
  %917 = vmatpush.bf16.msra.mxu0 %v675
  %918 = vmatpush.bf16.msra.mxu0 %v673
  %919 = vmatmul.bf16.gmra.mxu0 %v183
  %v920 = vpop.f32.mrf.mxu0
  %v921 = vadd.f32 %v908, %v920
  %v922 = vpop.f32.mrf.mxu0
  %923 = vdwg.mxu0
  %924 = vmatpush.bf16.msra.mxu0 %v703
  %925 = vmatpush.bf16.msra.mxu0 %v701
  %926 = vmatpush.bf16.msra.mxu0 %v699
  %927 = vmatpush.bf16.msra.mxu0 %v697
  %928 = vmatpush.bf16.msra.mxu0 %v695
  %929 = vmatpush.bf16.msra.mxu0 %v693
  %930 = vmatpush.bf16.msra.mxu0 %v691
  %931 = vmatpush.bf16.msra.mxu0 %v689
  %932 = vmatmul.bf16.gmra.mxu0 %v184
  %v933 = vpop.f32.mrf.mxu0
  %v934 = vadd.f32 %v921, %v933
  %v935 = vpop.f32.mrf.mxu0
  %936 = vdwg.mxu0
  %937 = vmatpush.bf16.msra.mxu0 %v592
  %938 = vmatpush.bf16.msra.mxu0 %v590
  %939 = vmatpush.bf16.msra.mxu0 %v588
  %940 = vmatpush.bf16.msra.mxu0 %v586
  %941 = vmatpush.bf16.msra.mxu0 %v584
  %942 = vmatpush.bf16.msra.mxu0 %v582
  %943 = vmatpush.bf16.msra.mxu0 %v580
  %944 = vmatpush.bf16.msra.mxu0 %v578
  %945 = vmatmul.bf16.gmra.mxu0 %v177
  %v946 = vpop.f32.mrf.mxu0
  %v947 = vadd.f32 %v162, %v946
  %v948 = vpop.f32.mrf.mxu0
  %949 = vdwg.mxu0
  %950 = vmatpush.bf16.msra.mxu0 %v608
  %951 = vmatpush.bf16.msra.mxu0 %v606
  %952 = vmatpush.bf16.msra.mxu0 %v604
  %953 = vmatpush.bf16.msra.mxu0 %v602
  %954 = vmatpush.bf16.msra.mxu0 %v600
  %955 = vmatpush.bf16.msra.mxu0 %v598
  %956 = vmatpush.bf16.msra.mxu0 %v596
  %957 = vmatpush.bf16.msra.mxu0 %v594
  %958 = vmatmul.bf16.gmra.mxu0 %v178
  %v959 = vpop.f32.mrf.mxu0
  %v960 = vadd.f32 %v947, %v959
  %v961 = vpop.f32.mrf.mxu0
  %962 = vdwg.mxu0
  %963 = vmatpush.bf16.msra.mxu0 %v624
  %964 = vmatpush.bf16.msra.mxu0 %v622
  %965 = vmatpush.bf16.msra.mxu0 %v620
  %966 = vmatpush.bf16.msra.mxu0 %v618
  %967 = vmatpush.bf16.msra.mxu0 %v616
  %968 = vmatpush.bf16.msra.mxu0 %v614
  %969 = vmatpush.bf16.msra.mxu0 %v612
  %970 = vmatpush.bf16.msra.mxu0 %v610
  %971 = vmatmul.bf16.gmra.mxu0 %v179
  %v972 = vpop.f32.mrf.mxu0
  %v973 = vadd.f32 %v960, %v972
  %v974 = vpop.f32.mrf.mxu0
  %975 = vdwg.mxu0
  %976 = vmatpush.bf16.msra.mxu0 %v640
  %977 = vmatpush.bf16.msra.mxu0 %v638
  %978 = vmatpush.bf16.msra.mxu0 %v636
  %979 = vmatpush.bf16.msra.mxu0 %v634
  %980 = vmatpush.bf16.msra.mxu0 %v632
  %981 = vmatpush.bf16.msra.mxu0 %v630
  %982 = vmatpush.bf16.msra.mxu0 %v628
  %983 = vmatpush.bf16.msra.mxu0 %v626
  %984 = vmatmul.bf16.gmra.mxu0 %v180
  %v985 = vpop.f32.mrf.mxu0
  %v986 = vadd.f32 %v973, %v985
  %v987 = vpop.f32.mrf.mxu0
  %988 = vdwg.mxu0
  %989 = vmatpush.bf16.msra.mxu0 %v656
  %990 = vmatpush.bf16.msra.mxu0 %v654
  %991 = vmatpush.bf16.msra.mxu0 %v652
  %992 = vmatpush.bf16.msra.mxu0 %v650
  %993 = vmatpush.bf16.msra.mxu0 %v648
  %994 = vmatpush.bf16.msra.mxu0 %v646
  %995 = vmatpush.bf16.msra.mxu0 %v644
  %996 = vmatpush.bf16.msra.mxu0 %v642
  %997 = vmatmul.bf16.gmra.mxu0 %v181
  %v998 = vpop.f32.mrf.mxu0
  %v999 = vadd.f32 %v986, %v998
  %v1000 = vpop.f32.mrf.mxu0
  %1001 = vdwg.mxu0
  %1002 = vmatpush.bf16.msra.mxu0 %v672
  %1003 = vmatpush.bf16.msra.mxu0 %v670
  %1004 = vmatpush.bf16.msra.mxu0 %v668
  %1005 = vmatpush.bf16.msra.mxu0 %v666
  %1006 = vmatpush.bf16.msra.mxu0 %v664
  %1007 = vmatpush.bf16.msra.mxu0 %v662
  %1008 = vmatpush.bf16.msra.mxu0 %v660
  %1009 = vmatpush.bf16.msra.mxu0 %v658
  %1010 = vmatmul.bf16.gmra.mxu0 %v182
  %v1011 = vpop.f32.mrf.mxu0
  %v1012 = vadd.f32 %v999, %v1011
  %v1013 = vpop.f32.mrf.mxu0
  %1014 = vdwg.mxu0
  %1015 = vmatpush.bf16.msra.mxu0 %v688
  %1016 = vmatpush.bf16.msra.mxu0 %v686
  %1017 = vmatpush.bf16.msra.mxu0 %v684
  %1018 = vmatpush.bf16.msra.mxu0 %v682
  %1019 = vmatpush.bf16.msra.mxu0 %v680
  %1020 = vmatpush.bf16.msra.mxu0 %v678
  %1021 = vmatpush.bf16.msra.mxu0 %v676
  %1022 = vmatpush.bf16.msra.mxu0 %v674
  %1023 = vmatmul.bf16.gmra.mxu0 %v183
  %v1024 = vpop.f32.mrf.mxu0
  %v1025 = vadd.f32 %v1012, %v1024
  %v1026 = vpop.f32.mrf.mxu0
  %1027 = vdwg.mxu0
  %1028 = vmatpush.bf16.msra.mxu0 %v704
  %1029 = vmatpush.bf16.msra.mxu0 %v702
  %1030 = vmatpush.bf16.msra.mxu0 %v700
  %1031 = vmatpush.bf16.msra.mxu0 %v698
  %1032 = vmatpush.bf16.msra.mxu0 %v696
  %1033 = vmatpush.bf16.msra.mxu0 %v694
  %1034 = vmatpush.bf16.msra.mxu0 %v692
  %1035 = vmatpush.bf16.msra.mxu0 %v690
  %1036 = vmatmul.bf16.gmra.mxu0 %v184
  %v1037 = vpop.f32.mrf.mxu0
  %v1038 = vadd.f32 %v1025, %v1037
  %v1039 = vpop.f32.mrf.mxu0
  %1040 = vdwg.mxu0
  %v1041 = vadd.f32 %v1038, 1e-08
  %v1042 = vld [vmem:[%s3] sm:$0xff]
  %v1043 = vmul.f32 %v1041, 0.5
  %v1044 = vmul.f32 %v1043, 1.442695
  %v1045 = vpow.pop %v1044
  %v1046 = vmul.f32 %v1042, %v1045
  %v1047 = vadd.f32 %v1046, %v934
  %1048 = vst [vmem:[%s6] sm:$0xff] %v934
  %1049 = vst [vmem:[%s7] sm:$0xff] %v1041
  %1050 = vst [vmem:[%s8] sm:$0xff] %v1047
  %v1051 = vpack.c.bf16 %v1047, %v1047
  %v1052 = vld [vmem:[%s4] sm:$0xff]
  %v1053 = vld [vmem:[%s4 + $0x8] sm:$0xff]
  %v1054 = vld [vmem:[%s4 + $0x10] sm:$0xff]
  %v1055 = vld [vmem:[%s4 + $0x18] sm:$0xff]
  %v1056 = vld [vmem:[%s4 + $0x20] sm:$0xff]
  %v1057 = vld [vmem:[%s4 + $0x28] sm:$0xff]
  %v1058 = vld [vmem:[%s4 + $0x30] sm:$0xff]
  %v1059 = vld [vmem:[%s4 + $0x38] sm:$0xff]
  %v1060 = vld [vmem:[%s4 + $0x40] sm:$0xff]
  %v1061 = vld [vmem:[%s4 + $0x48] sm:$0xff]
  %v1062 = vld [vmem:[%s4 + $0x50] sm:$0xff]
  %v1063 = vld [vmem:[%s4 + $0x58] sm:$0xff]
  %v1064 = vld [vmem:[%s4 + $0x60] sm:$0xff]
  %v1065 = vld [vmem:[%s4 + $0x68] sm:$0xff]
  %v1066 = vld [vmem:[%s4 + $0x70] sm:$0xff]
  %v1067 = vld [vmem:[%s4 + $0x78] sm:$0xff]
  %v1068 = vld [vmem:[%s4 + $0x80] sm:$0xff]
  %v1069 = vld [vmem:[%s4 + $0x88] sm:$0xff]
  %v1070 = vld [vmem:[%s4 + $0x90] sm:$0xff]
  %v1071 = vld [vmem:[%s4 + $0x98] sm:$0xff]
  %v1072 = vld [vmem:[%s4 + $0xa0] sm:$0xff]
  %v1073 = vld [vmem:[%s4 + $0xa8] sm:$0xff]
  %v1074 = vld [vmem:[%s4 + $0xb0] sm:$0xff]
  %v1075 = vld [vmem:[%s4 + $0xb8] sm:$0xff]
  %v1076 = vld [vmem:[%s4 + $0xc0] sm:$0xff]
  %v1077 = vld [vmem:[%s4 + $0xc8] sm:$0xff]
  %v1078 = vld [vmem:[%s4 + $0xd0] sm:$0xff]
  %v1079 = vld [vmem:[%s4 + $0xd8] sm:$0xff]
  %v1080 = vld [vmem:[%s4 + $0xe0] sm:$0xff]
  %v1081 = vld [vmem:[%s4 + $0xe8] sm:$0xff]
  %v1082 = vld [vmem:[%s4 + $0xf0] sm:$0xff]
  %v1083 = vld [vmem:[%s4 + $0xf8] sm:$0xff]
  %v1084 = vld [vmem:[%s4 + $0x100] sm:$0xff]
  %v1085 = vld [vmem:[%s4 + $0x108] sm:$0xff]
  %v1086 = vld [vmem:[%s4 + $0x110] sm:$0xff]
  %v1087 = vld [vmem:[%s4 + $0x118] sm:$0xff]
  %v1088 = vld [vmem:[%s4 + $0x120] sm:$0xff]
  %v1089 = vld [vmem:[%s4 + $0x128] sm:$0xff]
  %v1090 = vld [vmem:[%s4 + $0x130] sm:$0xff]
  %v1091 = vld [vmem:[%s4 + $0x138] sm:$0xff]
  %v1092 = vld [vmem:[%s4 + $0x140] sm:$0xff]
  %v1093 = vld [vmem:[%s4 + $0x148] sm:$0xff]
  %v1094 = vld [vmem:[%s4 + $0x150] sm:$0xff]
  %v1095 = vld [vmem:[%s4 + $0x158] sm:$0xff]
  %v1096 = vld [vmem:[%s4 + $0x160] sm:$0xff]
  %v1097 = vld [vmem:[%s4 + $0x168] sm:$0xff]
  %v1098 = vld [vmem:[%s4 + $0x170] sm:$0xff]
  %v1099 = vld [vmem:[%s4 + $0x178] sm:$0xff]
  %v1100 = vld [vmem:[%s4 + $0x180] sm:$0xff]
  %v1101 = vld [vmem:[%s4 + $0x188] sm:$0xff]
  %v1102 = vld [vmem:[%s4 + $0x190] sm:$0xff]
  %v1103 = vld [vmem:[%s4 + $0x198] sm:$0xff]
  %v1104 = vld [vmem:[%s4 + $0x1a0] sm:$0xff]
  %v1105 = vld [vmem:[%s4 + $0x1a8] sm:$0xff]
  %v1106 = vld [vmem:[%s4 + $0x1b0] sm:$0xff]
  %v1107 = vld [vmem:[%s4 + $0x1b8] sm:$0xff]
  %v1108 = vld [vmem:[%s4 + $0x1c0] sm:$0xff]
  %v1109 = vld [vmem:[%s4 + $0x1c8] sm:$0xff]
  %v1110 = vld [vmem:[%s4 + $0x1d0] sm:$0xff]
  %v1111 = vld [vmem:[%s4 + $0x1d8] sm:$0xff]
  %v1112 = vld [vmem:[%s4 + $0x1e0] sm:$0xff]
  %v1113 = vld [vmem:[%s4 + $0x1e8] sm:$0xff]
  %v1114 = vld [vmem:[%s4 + $0x1f0] sm:$0xff]
  %v1115 = vld [vmem:[%s4 + $0x1f8] sm:$0xff]
  %v1116 = vld [vmem:[%s5] sm:$0xff]
  %v1118 = vperm.slane %v1116, 0
  %v1119 = vperm.slane %v1116, 1
  %v1120 = vperm.slane %v1116, 2
  %v1121 = vperm.slane %v1116, 3
  %v1122 = vperm.slane %v1116, 4
  %v1123 = vperm.slane %v1116, 5
  %v1124 = vperm.slane %v1116, 6
  %v1125 = vperm.slane %v1116, 7
  %v1198 = vunpack.c.l.b16 %v1052
  %v1199 = vunpack.c.h.b16 %v1052
  %v1200 = vunpack.c.l.b16 %v1053
  %v1201 = vunpack.c.h.b16 %v1053
  %v1202 = vunpack.c.l.b16 %v1054
  %v1203 = vunpack.c.h.b16 %v1054
  %v1204 = vunpack.c.l.b16 %v1055
  %v1205 = vunpack.c.h.b16 %v1055
  %v1206 = vunpack.c.l.b16 %v1056
  %v1207 = vunpack.c.h.b16 %v1056
  %v1208 = vunpack.c.l.b16 %v1057
  %v1209 = vunpack.c.h.b16 %v1057
  %v1210 = vunpack.c.l.b16 %v1058
  %v1211 = vunpack.c.h.b16 %v1058
  %v1212 = vunpack.c.l.b16 %v1059
  %v1213 = vunpack.c.h.b16 %v1059
  %v1214 = vunpack.c.l.b16 %v1060
  %v1215 = vunpack.c.h.b16 %v1060
  %v1216 = vunpack.c.l.b16 %v1061
  %v1217 = vunpack.c.h.b16 %v1061
  %v1218 = vunpack.c.l.b16 %v1062
  %v1219 = vunpack.c.h.b16 %v1062
  %v1220 = vunpack.c.l.b16 %v1063
  %v1221 = vunpack.c.h.b16 %v1063
  %v1222 = vunpack.c.l.b16 %v1064
  %v1223 = vunpack.c.h.b16 %v1064
  %v1224 = vunpack.c.l.b16 %v1065
  %v1225 = vunpack.c.h.b16 %v1065
  %v1226 = vunpack.c.l.b16 %v1066
  %v1227 = vunpack.c.h.b16 %v1066
  %v1228 = vunpack.c.l.b16 %v1067
  %v1229 = vunpack.c.h.b16 %v1067
  %v1230 = vunpack.c.l.b16 %v1068
  %v1231 = vunpack.c.h.b16 %v1068
  %v1232 = vunpack.c.l.b16 %v1069
  %v1233 = vunpack.c.h.b16 %v1069
  %v1234 = vunpack.c.l.b16 %v1070
  %v1235 = vunpack.c.h.b16 %v1070
  %v1236 = vunpack.c.l.b16 %v1071
  %v1237 = vunpack.c.h.b16 %v1071
  %v1238 = vunpack.c.l.b16 %v1072
  %v1239 = vunpack.c.h.b16 %v1072
  %v1240 = vunpack.c.l.b16 %v1073
  %v1241 = vunpack.c.h.b16 %v1073
  %v1242 = vunpack.c.l.b16 %v1074
  %v1243 = vunpack.c.h.b16 %v1074
  %v1244 = vunpack.c.l.b16 %v1075
  %v1245 = vunpack.c.h.b16 %v1075
  %v1246 = vunpack.c.l.b16 %v1076
  %v1247 = vunpack.c.h.b16 %v1076
  %v1248 = vunpack.c.l.b16 %v1077
  %v1249 = vunpack.c.h.b16 %v1077
  %v1250 = vunpack.c.l.b16 %v1078
  %v1251 = vunpack.c.h.b16 %v1078
  %v1252 = vunpack.c.l.b16 %v1079
  %v1253 = vunpack.c.h.b16 %v1079
  %v1254 = vunpack.c.l.b16 %v1080
  %v1255 = vunpack.c.h.b16 %v1080
  %v1256 = vunpack.c.l.b16 %v1081
  %v1257 = vunpack.c.h.b16 %v1081
  %v1258 = vunpack.c.l.b16 %v1082
  %v1259 = vunpack.c.h.b16 %v1082
  %v1260 = vunpack.c.l.b16 %v1083
  %v1261 = vunpack.c.h.b16 %v1083
  %v1262 = vunpack.c.l.b16 %v1084
  %v1263 = vunpack.c.h.b16 %v1084
  %v1264 = vunpack.c.l.b16 %v1085
  %v1265 = vunpack.c.h.b16 %v1085
  %v1266 = vunpack.c.l.b16 %v1086
  %v1267 = vunpack.c.h.b16 %v1086
  %v1268 = vunpack.c.l.b16 %v1087
  %v1269 = vunpack.c.h.b16 %v1087
  %v1270 = vunpack.c.l.b16 %v1088
  %v1271 = vunpack.c.h.b16 %v1088
  %v1272 = vunpack.c.l.b16 %v1089
  %v1273 = vunpack.c.h.b16 %v1089
  %v1274 = vunpack.c.l.b16 %v1090
  %v1275 = vunpack.c.h.b16 %v1090
  %v1276 = vunpack.c.l.b16 %v1091
  %v1277 = vunpack.c.h.b16 %v1091
  %v1278 = vunpack.c.l.b16 %v1092
  %v1279 = vunpack.c.h.b16 %v1092
  %v1280 = vunpack.c.l.b16 %v1093
  %v1281 = vunpack.c.h.b16 %v1093
  %v1282 = vunpack.c.l.b16 %v1094
  %v1283 = vunpack.c.h.b16 %v1094
  %v1284 = vunpack.c.l.b16 %v1095
  %v1285 = vunpack.c.h.b16 %v1095
  %v1286 = vunpack.c.l.b16 %v1096
  %v1287 = vunpack.c.h.b16 %v1096
  %v1288 = vunpack.c.l.b16 %v1097
  %v1289 = vunpack.c.h.b16 %v1097
  %v1290 = vunpack.c.l.b16 %v1098
  %v1291 = vunpack.c.h.b16 %v1098
  %v1292 = vunpack.c.l.b16 %v1099
  %v1293 = vunpack.c.h.b16 %v1099
  %v1294 = vunpack.c.l.b16 %v1100
  %v1295 = vunpack.c.h.b16 %v1100
  %v1296 = vunpack.c.l.b16 %v1101
  %v1297 = vunpack.c.h.b16 %v1101
  %v1298 = vunpack.c.l.b16 %v1102
  %v1299 = vunpack.c.h.b16 %v1102
  %v1300 = vunpack.c.l.b16 %v1103
  %v1301 = vunpack.c.h.b16 %v1103
  %v1302 = vunpack.c.l.b16 %v1104
  %v1303 = vunpack.c.h.b16 %v1104
  %v1304 = vunpack.c.l.b16 %v1105
  %v1305 = vunpack.c.h.b16 %v1105
  %v1306 = vunpack.c.l.b16 %v1106
  %v1307 = vunpack.c.h.b16 %v1106
  %v1308 = vunpack.c.l.b16 %v1107
  %v1309 = vunpack.c.h.b16 %v1107
  %v1310 = vunpack.c.l.b16 %v1108
  %v1311 = vunpack.c.h.b16 %v1108
  %v1312 = vunpack.c.l.b16 %v1109
  %v1313 = vunpack.c.h.b16 %v1109
  %v1314 = vunpack.c.l.b16 %v1110
  %v1315 = vunpack.c.h.b16 %v1110
  %v1316 = vunpack.c.l.b16 %v1111
  %v1317 = vunpack.c.h.b16 %v1111
  %v1318 = vunpack.c.l.b16 %v1112
  %v1319 = vunpack.c.h.b16 %v1112
  %v1320 = vunpack.c.l.b16 %v1113
  %v1321 = vunpack.c.h.b16 %v1113
  %v1322 = vunpack.c.l.b16 %v1114
  %v1323 = vunpack.c.h.b16 %v1114
  %v1324 = vunpack.c.l.b16 %v1115
  %v1325 = vunpack.c.h.b16 %v1115
  %v1326 = vpack.c.b16 %v1206, %v1198
  %v1327 = vpack.c.b16 %v1207, %v1199
  %v1328 = vpack.c.b16 %v1208, %v1200
  %v1329 = vpack.c.b16 %v1209, %v1201
  %v1330 = vpack.c.b16 %v1210, %v1202
  %v1331 = vpack.c.b16 %v1211, %v1203
  %v1332 = vpack.c.b16 %v1212, %v1204
  %v1333 = vpack.c.b16 %v1213, %v1205
  %v1334 = vpack.c.b16 %v1222, %v1214
  %v1335 = vpack.c.b16 %v1223, %v1215
  %v1336 = vpack.c.b16 %v1224, %v1216
  %v1337 = vpack.c.b16 %v1225, %v1217
  %v1338 = vpack.c.b16 %v1226, %v1218
  %v1339 = vpack.c.b16 %v1227, %v1219
  %v1340 = vpack.c.b16 %v1228, %v1220
  %v1341 = vpack.c.b16 %v1229, %v1221
  %v1342 = vpack.c.b16 %v1238, %v1230
  %v1343 = vpack.c.b16 %v1239, %v1231
  %v1344 = vpack.c.b16 %v1240, %v1232
  %v1345 = vpack.c.b16 %v1241, %v1233
  %v1346 = vpack.c.b16 %v1242, %v1234
  %v1347 = vpack.c.b16 %v1243, %v1235
  %v1348 = vpack.c.b16 %v1244, %v1236
  %v1349 = vpack.c.b16 %v1245, %v1237
  %v1350 = vpack.c.b16 %v1254, %v1246
  %v1351 = vpack.c.b16 %v1255, %v1247
  %v1352 = vpack.c.b16 %v1256, %v1248
  %v1353 = vpack.c.b16 %v1257, %v1249
  %v1354 = vpack.c.b16 %v1258, %v1250
  %v1355 = vpack.c.b16 %v1259, %v1251
  %v1356 = vpack.c.b16 %v1260, %v1252
  %v1357 = vpack.c.b16 %v1261, %v1253
  %v1358 = vpack.c.b16 %v1270, %v1262
  %v1359 = vpack.c.b16 %v1271, %v1263
  %v1360 = vpack.c.b16 %v1272, %v1264
  %v1361 = vpack.c.b16 %v1273, %v1265
  %v1362 = vpack.c.b16 %v1274, %v1266
  %v1363 = vpack.c.b16 %v1275, %v1267
  %v1364 = vpack.c.b16 %v1276, %v1268
  %v1365 = vpack.c.b16 %v1277, %v1269
  %v1366 = vpack.c.b16 %v1286, %v1278
  %v1367 = vpack.c.b16 %v1287, %v1279
  %v1368 = vpack.c.b16 %v1288, %v1280
  %v1369 = vpack.c.b16 %v1289, %v1281
  %v1370 = vpack.c.b16 %v1290, %v1282
  %v1371 = vpack.c.b16 %v1291, %v1283
  %v1372 = vpack.c.b16 %v1292, %v1284
  %v1373 = vpack.c.b16 %v1293, %v1285
  %v1374 = vpack.c.b16 %v1302, %v1294
  %v1375 = vpack.c.b16 %v1303, %v1295
  %v1376 = vpack.c.b16 %v1304, %v1296
  %v1377 = vpack.c.b16 %v1305, %v1297
  %v1378 = vpack.c.b16 %v1306, %v1298
  %v1379 = vpack.c.b16 %v1307, %v1299
  %v1380 = vpack.c.b16 %v1308, %v1300
  %v1381 = vpack.c.b16 %v1309, %v1301
  %v1382 = vpack.c.b16 %v1318, %v1310
  %v1383 = vpack.c.b16 %v1319, %v1311
  %v1384 = vpack.c.b16 %v1320, %v1312
  %v1385 = vpack.c.b16 %v1321, %v1313
  %v1386 = vpack.c.b16 %v1322, %v1314
  %v1387 = vpack.c.b16 %v1323, %v1315
  %v1388 = vpack.c.b16 %v1324, %v1316
  %v1389 = vpack.c.b16 %v1325, %v1317
  %1454 = vmatpush.bf16.msra.mxu0 %v1382
  %1455 = vmatpush.bf16.msra.mxu0 %v1374
  %1456 = vmatpush.bf16.msra.mxu0 %v1366
  %1457 = vmatpush.bf16.msra.mxu0 %v1358
  %1458 = vmatpush.bf16.msra.mxu0 %v1350
  %1459 = vmatpush.bf16.msra.mxu0 %v1342
  %1460 = vmatpush.bf16.msra.mxu0 %v1334
  %1461 = vmatpush.bf16.msra.mxu0 %v1326
  %1462 = vmatmul.bf16.gmra.mxu0 %v1051
  %v1463 = vpop.f32.mrf.mxu0
  %v1464 = vadd.f32 %v1118, %v1463
  %v1465 = vpop.f32.mrf.mxu0
  %1466 = vdwg.mxu0
  %1467 = vmatpush.bf16.msra.mxu0 %v1383
  %1468 = vmatpush.bf16.msra.mxu0 %v1375
  %1469 = vmatpush.bf16.msra.mxu0 %v1367
  %1470 = vmatpush.bf16.msra.mxu0 %v1359
  %1471 = vmatpush.bf16.msra.mxu0 %v1351
  %1472 = vmatpush.bf16.msra.mxu0 %v1343
  %1473 = vmatpush.bf16.msra.mxu0 %v1335
  %1474 = vmatpush.bf16.msra.mxu0 %v1327
  %1475 = vmatmul.bf16.gmra.mxu0 %v1051
  %v1476 = vpop.f32.mrf.mxu0
  %v1477 = vadd.f32 %v1119, %v1476
  %v1478 = vpop.f32.mrf.mxu0
  %1479 = vdwg.mxu0
  %1480 = vmatpush.bf16.msra.mxu0 %v1384
  %1481 = vmatpush.bf16.msra.mxu0 %v1376
  %1482 = vmatpush.bf16.msra.mxu0 %v1368
  %1483 = vmatpush.bf16.msra.mxu0 %v1360
  %1484 = vmatpush.bf16.msra.mxu0 %v1352
  %1485 = vmatpush.bf16.msra.mxu0 %v1344
  %1486 = vmatpush.bf16.msra.mxu0 %v1336
  %1487 = vmatpush.bf16.msra.mxu0 %v1328
  %1488 = vmatmul.bf16.gmra.mxu0 %v1051
  %v1489 = vpop.f32.mrf.mxu0
  %v1490 = vadd.f32 %v1120, %v1489
  %v1491 = vpop.f32.mrf.mxu0
  %1492 = vdwg.mxu0
  %1493 = vmatpush.bf16.msra.mxu0 %v1385
  %1494 = vmatpush.bf16.msra.mxu0 %v1377
  %1495 = vmatpush.bf16.msra.mxu0 %v1369
  %1496 = vmatpush.bf16.msra.mxu0 %v1361
  %1497 = vmatpush.bf16.msra.mxu0 %v1353
  %1498 = vmatpush.bf16.msra.mxu0 %v1345
  %1499 = vmatpush.bf16.msra.mxu0 %v1337
  %1500 = vmatpush.bf16.msra.mxu0 %v1329
  %1501 = vmatmul.bf16.gmra.mxu0 %v1051
  %v1502 = vpop.f32.mrf.mxu0
  %v1503 = vadd.f32 %v1121, %v1502
  %v1504 = vpop.f32.mrf.mxu0
  %1505 = vdwg.mxu0
  %1506 = vmatpush.bf16.msra.mxu0 %v1386
  %1507 = vmatpush.bf16.msra.mxu0 %v1378
  %1508 = vmatpush.bf16.msra.mxu0 %v1370
  %1509 = vmatpush.bf16.msra.mxu0 %v1362
  %1510 = vmatpush.bf16.msra.mxu0 %v1354
  %1511 = vmatpush.bf16.msra.mxu0 %v1346
  %1512 = vmatpush.bf16.msra.mxu0 %v1338
  %1513 = vmatpush.bf16.msra.mxu0 %v1330
  %1514 = vmatmul.bf16.gmra.mxu0 %v1051
  %v1515 = vpop.f32.mrf.mxu0
  %v1516 = vadd.f32 %v1122, %v1515
  %v1517 = vpop.f32.mrf.mxu0
  %1518 = vdwg.mxu0
  %1519 = vmatpush.bf16.msra.mxu0 %v1387
  %1520 = vmatpush.bf16.msra.mxu0 %v1379
  %1521 = vmatpush.bf16.msra.mxu0 %v1371
  %1522 = vmatpush.bf16.msra.mxu0 %v1363
  %1523 = vmatpush.bf16.msra.mxu0 %v1355
  %1524 = vmatpush.bf16.msra.mxu0 %v1347
  %1525 = vmatpush.bf16.msra.mxu0 %v1339
  %1526 = vmatpush.bf16.msra.mxu0 %v1331
  %1527 = vmatmul.bf16.gmra.mxu0 %v1051
  %v1528 = vpop.f32.mrf.mxu0
  %v1529 = vadd.f32 %v1123, %v1528
  %v1530 = vpop.f32.mrf.mxu0
  %1531 = vdwg.mxu0
  %1532 = vmatpush.bf16.msra.mxu0 %v1388
  %1533 = vmatpush.bf16.msra.mxu0 %v1380
  %1534 = vmatpush.bf16.msra.mxu0 %v1372
  %1535 = vmatpush.bf16.msra.mxu0 %v1364
  %1536 = vmatpush.bf16.msra.mxu0 %v1356
  %1537 = vmatpush.bf16.msra.mxu0 %v1348
  %1538 = vmatpush.bf16.msra.mxu0 %v1340
  %1539 = vmatpush.bf16.msra.mxu0 %v1332
  %1540 = vmatmul.bf16.gmra.mxu0 %v1051
  %v1541 = vpop.f32.mrf.mxu0
  %v1542 = vadd.f32 %v1124, %v1541
  %v1543 = vpop.f32.mrf.mxu0
  %1544 = vdwg.mxu0
  %1545 = vmatpush.bf16.msra.mxu0 %v1389
  %1546 = vmatpush.bf16.msra.mxu0 %v1381
  %1547 = vmatpush.bf16.msra.mxu0 %v1373
  %1548 = vmatpush.bf16.msra.mxu0 %v1365
  %1549 = vmatpush.bf16.msra.mxu0 %v1357
  %1550 = vmatpush.bf16.msra.mxu0 %v1349
  %1551 = vmatpush.bf16.msra.mxu0 %v1341
  %1552 = vmatpush.bf16.msra.mxu0 %v1333
  %1553 = vmatmul.bf16.gmra.mxu0 %v1051
  %v1554 = vpop.f32.mrf.mxu0
  %v1555 = vadd.f32 %v1125, %v1554
  %v1556 = vpop.f32.mrf.mxu0
  %1557 = vdwg.mxu0
  %1558 = vst [vmem:[%s9] sm:$0xff] %v1464
  %1559 = vst [vmem:[%s9 + $0x8] sm:$0xff] %v1477
  %1560 = vst [vmem:[%s9 + $0x10] sm:$0xff] %v1490
  %1561 = vst [vmem:[%s9 + $0x18] sm:$0xff] %v1503
  %1562 = vst [vmem:[%s9 + $0x20] sm:$0xff] %v1516
  %1563 = vst [vmem:[%s9 + $0x28] sm:$0xff] %v1529
  %1564 = vst [vmem:[%s9 + $0x30] sm:$0xff] %v1542
  %1565 = vst [vmem:[%s9 + $0x38] sm:$0xff] %v1555
  // Predicated region
  $region26: #{vae_forward.15} parent=0 // pred_check
    _
  $region27: #{vae_forward.15} parent=0 // pred_check_branch
    %1567 = sbr.rel (0) target = $region29
  $region28: #{vae_forward.15} parent=0 // pred_region
    _
  $region29: #{vae_forward.15} parent=0 // pred_fallthru
    _
  // Predicated region
  $region30: #{vae_forward.15} parent=0 // pred_check
    _
  $region31: #{vae_forward.15} parent=0 // pred_check_branch
    %1569 = sbr.rel (0) target = $region33
  $region32: #{vae_forward.15} parent=0 // pred_region
    _
  $region33: #{vae_forward.15} parent=0 // pred_fallthru
    _
  // Predicated region
  $region34: #{vae_forward.15} parent=0 // pred_check
    _
  $region35: #{vae_forward.15} parent=0 // pred_check_branch
    %1571 = sbr.rel (0) target = $region37
  $region36: #{vae_forward.15} parent=0 // pred_region
    _
  $region37: #{vae_forward.15} parent=0 // pred_fallthru
    _
  // Predicated region
  $region38: #{vae_forward.15} parent=0 // pred_check
    _
  $region39: #{vae_forward.15} parent=0 // pred_check_branch
    %1573 = sbr.rel (0) target = $region41
  $region40: #{vae_forward.15} parent=0 // pred_region
    _
  $region41: #{vae_forward.15} parent=0 // pred_fallthru
    _
  // Predicated region
  $region42: #{vae_forward.15} parent=0 // pred_check
    _
  $region43: #{vae_forward.15} parent=0 // pred_check_branch
    %1575 = sbr.rel (0) target = $region45
  $region44: #{vae_forward.15} parent=0 // pred_region
    _
  $region45: #{vae_forward.15} parent=0 // pred_fallthru
    _
  // Predicated region
  $region46: #{vae_forward.15} parent=0 // pred_check
    _
  $region47: #{vae_forward.15} parent=0 // pred_check_branch
    %1577 = sbr.rel (0) target = $region49
  $region48: #{vae_forward.15} parent=0 // pred_region
    _
  $region49: #{vae_forward.15} parent=0 // pred_fallthru
    _
  // Predicated region
  $region50: #{vae_forward.15} parent=0 // pred_check
    _
  $region51: #{vae_forward.15} parent=0 // pred_check_branch
    %1579 = sbr.rel (0) target = $region53
  $region52: #{vae_forward.15} parent=0 // pred_region
    _
  $region53: #{vae_forward.15} parent=0 // pred_fallthru
    _
  // Predicated region
  $region54: #{vae_forward.15} parent=0 // pred_check
    _
  $region55: #{vae_forward.15} parent=0 // pred_check_branch
    %1581 = sbr.rel (0) target = $region57
  $region56: #{vae_forward.15} parent=0 // pred_region
    _
  $region57: #{vae_forward.15} parent=0 // pred_fallthru
    _

// kernel: vae_forward.16
$region0: #{vae_forward.16}
  #allocation0 [shape = 'u32[]', space=smem, size = 0x4, offset = 0x4, fixed_abs, tag = 'smem constant byte address 0x4 - core index']
  #allocation1 [shape = 'u32[72,128]{1,0:T(1,128)}', space=vmem, size = 0x9000, scoped, tag = 'internal scratch']
  %s0 = inlined_call_operand.vmem [shape: bf16[8,1024], index: 0, kind: input, shape index: {}]
  %s1 = inlined_call_operand.vmem [shape: bf16[1024,512], index: 1, kind: input, shape index: {}]
  %s2 = inlined_call_operand.vmem [shape: f32[1,512], index: 2, kind: input, shape index: {}]
  %s3 = inlined_call_operand.vmem [shape: f32[8,512], index: 3, kind: output, shape index: {}]
  %s4 = sld [smem:[#allocation0]]
  $region22: #{vae_forward.16} parent=0
    _
  %s6 = ssub.s32 1, %s4
  %s7 = scalar_select 0, %s6, %s4
  // Predicated region
  $region2: #{vae_forward.16} parent=0 // pred_check
    _
  $region3: #{vae_forward.16} parent=0 // pred_check_branch
    %9 = sbr.rel (0) target = $region5
  $region4: #{vae_forward.16} parent=0 // pred_region
    _
  $region5: #{vae_forward.16} parent=0 // pred_fallthru
    _
  // Predicated region
  $region6: #{vae_forward.16} parent=0 // pred_check
    _
  $region7: #{vae_forward.16} parent=0 // pred_check_branch
    %11 = sbr.rel (0) target = $region9
  $region8: #{vae_forward.16} parent=0 // pred_region
    _
  $region9: #{vae_forward.16} parent=0 // pred_fallthru
    _
  // Predicated region
  $region10: #{vae_forward.16} parent=0 // pred_check
    _
  $region11: #{vae_forward.16} parent=0 // pred_check_branch
    %13 = sbr.rel (0) target = $region13
  $region12: #{vae_forward.16} parent=0 // pred_region
    _
  $region13: #{vae_forward.16} parent=0 // pred_fallthru
    _
  %v14 = vld [vmem:[%s0] sm:$0xff]
  %v15 = vld [vmem:[%s0 + $0x8] sm:$0xff]
  %v16 = vld [vmem:[%s0 + $0x10] sm:$0xff]
  %v17 = vld [vmem:[%s0 + $0x18] sm:$0xff]
  %v18 = vld [vmem:[%s1] sm:$0xff]
  %v19 = vld [vmem:[%s1 + $0x8] sm:$0xff]
  %v20 = vld [vmem:[%s1 + $0x10] sm:$0xff]
  %v21 = vld [vmem:[%s1 + $0x18] sm:$0xff]
  %v22 = vld [vmem:[%s1 + $0x20] sm:$0xff]
  %v23 = vld [vmem:[%s1 + $0x28] sm:$0xff]
  %v24 = vld [vmem:[%s1 + $0x30] sm:$0xff]
  %v25 = vld [vmem:[%s1 + $0x38] sm:$0xff]
  %v26 = vld [vmem:[%s1 + $0x40] sm:$0xff]
  %v27 = vld [vmem:[%s1 + $0x48] sm:$0xff]
  %v28 = vld [vmem:[%s1 + $0x50] sm:$0xff]
  %v29 = vld [vmem:[%s1 + $0x58] sm:$0xff]
  %v30 = vld [vmem:[%s1 + $0x60] sm:$0xff]
  %v31 = vld [vmem:[%s1 + $0x68] sm:$0xff]
  %v32 = vld [vmem:[%s1 + $0x70] sm:$0xff]
  %v33 = vld [vmem:[%s1 + $0x78] sm:$0xff]
  %v34 = vld [vmem:[%s1 + $0x80] sm:$0xff]
  %v35 = vld [vmem:[%s1 + $0x88] sm:$0xff]
  %v36 = vld [vmem:[%s1 + $0x90] sm:$0xff]
  %v37 = vld [vmem:[%s1 + $0x98] sm:$0xff]
  %v38 = vld [vmem:[%s1 + $0xa0] sm:$0xff]
  %v39 = vld [vmem:[%s1 + $0xa8] sm:$0xff]
  %v40 = vld [vmem:[%s1 + $0xb0] sm:$0xff]
  %v41 = vld [vmem:[%s1 + $0xb8] sm:$0xff]
  %v42 = vld [vmem:[%s1 + $0xc0] sm:$0xff]
  %v43 = vld [vmem:[%s1 + $0xc8] sm:$0xff]
  %v44 = vld [vmem:[%s1 + $0xd0] sm:$0xff]
  %v45 = vld [vmem:[%s1 + $0xd8] sm:$0xff]
  %v46 = vld [vmem:[%s1 + $0xe0] sm:$0xff]
  %v47 = vld [vmem:[%s1 + $0xe8] sm:$0xff]
  %v48 = vld [vmem:[%s1 + $0xf0] sm:$0xff]
  %v49 = vld [vmem:[%s1 + $0xf8] sm:$0xff]
  %v50 = vld [vmem:[%s1 + $0x100] sm:$0xff]
  %v51 = vld [vmem:[%s1 + $0x108] sm:$0xff]
  %v52 = vld [vmem:[%s1 + $0x110] sm:$0xff]
  %v53 = vld [vmem:[%s1 + $0x118] sm:$0xff]
  %v54 = vld [vmem:[%s1 + $0x120] sm:$0xff]
  %v55 = vld [vmem:[%s1 + $0x128] sm:$0xff]
  %v56 = vld [vmem:[%s1 + $0x130] sm:$0xff]
  %v57 = vld [vmem:[%s1 + $0x138] sm:$0xff]
  %v58 = vld [vmem:[%s1 + $0x140] sm:$0xff]
  %v59 = vld [vmem:[%s1 + $0x148] sm:$0xff]
  %v60 = vld [vmem:[%s1 + $0x150] sm:$0xff]
  %v61 = vld [vmem:[%s1 + $0x158] sm:$0xff]
  %v62 = vld [vmem:[%s1 + $0x160] sm:$0xff]
  %v63 = vld [vmem:[%s1 + $0x168] sm:$0xff]
  %v64 = vld [vmem:[%s1 + $0x170] sm:$0xff]
  %v65 = vld [vmem:[%s1 + $0x178] sm:$0xff]
  %v66 = vld [vmem:[%s1 + $0x180] sm:$0xff]
  %v67 = vld [vmem:[%s1 + $0x188] sm:$0xff]
  %v68 = vld [vmem:[%s1 + $0x190] sm:$0xff]
  %v69 = vld [vmem:[%s1 + $0x198] sm:$0xff]
  %v70 = vld [vmem:[%s1 + $0x1a0] sm:$0xff]
  %v71 = vld [vmem:[%s1 + $0x1a8] sm:$0xff]
  %v72 = vld [vmem:[%s1 + $0x1b0] sm:$0xff]
  %v73 = vld [vmem:[%s1 + $0x1b8] sm:$0xff]
  %v74 = vld [vmem:[%s1 + $0x1c0] sm:$0xff]
  %v75 = vld [vmem:[%s1 + $0x1c8] sm:$0xff]
  %v76 = vld [vmem:[%s1 + $0x1d0] sm:$0xff]
  %v77 = vld [vmem:[%s1 + $0x1d8] sm:$0xff]
  %v78 = vld [vmem:[%s1 + $0x1e0] sm:$0xff]
  %v79 = vld [vmem:[%s1 + $0x1e8] sm:$0xff]
  %v80 = vld [vmem:[%s1 + $0x1f0] sm:$0xff]
  %v81 = vld [vmem:[%s1 + $0x1f8] sm:$0xff]
  %v82 = vld [vmem:[%s1 + $0x200] sm:$0xff]
  %v83 = vld [vmem:[%s1 + $0x208] sm:$0xff]
  %v84 = vld [vmem:[%s1 + $0x210] sm:$0xff]
  %v85 = vld [vmem:[%s1 + $0x218] sm:$0xff]
  %v86 = vld [vmem:[%s1 + $0x220] sm:$0xff]
  %v87 = vld [vmem:[%s1 + $0x228] sm:$0xff]
  %v88 = vld [vmem:[%s1 + $0x230] sm:$0xff]
  %v89 = vld [vmem:[%s1 + $0x238] sm:$0xff]
  %v90 = vld [vmem:[%s1 + $0x240] sm:$0xff]
  %v91 = vld [vmem:[%s1 + $0x248] sm:$0xff]
  %v92 = vld [vmem:[%s1 + $0x250] sm:$0xff]
  %v93 = vld [vmem:[%s1 + $0x258] sm:$0xff]
  %v94 = vld [vmem:[%s1 + $0x260] sm:$0xff]
  %v95 = vld [vmem:[%s1 + $0x268] sm:$0xff]
  %v96 = vld [vmem:[%s1 + $0x270] sm:$0xff]
  %v97 = vld [vmem:[%s1 + $0x278] sm:$0xff]
  %v98 = vld [vmem:[%s1 + $0x280] sm:$0xff]
  %v99 = vld [vmem:[%s1 + $0x288] sm:$0xff]
  %v100 = vld [vmem:[%s1 + $0x290] sm:$0xff]
  %v101 = vld [vmem:[%s1 + $0x298] sm:$0xff]
  %v102 = vld [vmem:[%s1 + $0x2a0] sm:$0xff]
  %v103 = vld [vmem:[%s1 + $0x2a8] sm:$0xff]
  %v104 = vld [vmem:[%s1 + $0x2b0] sm:$0xff]
  %v105 = vld [vmem:[%s1 + $0x2b8] sm:$0xff]
  %v106 = vld [vmem:[%s1 + $0x2c0] sm:$0xff]
  %v107 = vld [vmem:[%s1 + $0x2c8] sm:$0xff]
  %v108 = vld [vmem:[%s1 + $0x2d0] sm:$0xff]
  %v109 = vld [vmem:[%s1 + $0x2d8] sm:$0xff]
  %v110 = vld [vmem:[%s1 + $0x2e0] sm:$0xff]
  %v111 = vld [vmem:[%s1 + $0x2e8] sm:$0xff]
  %v112 = vld [vmem:[%s1 + $0x2f0] sm:$0xff]
  %v113 = vld [vmem:[%s1 + $0x2f8] sm:$0xff]
  %v114 = vld [vmem:[%s1 + $0x300] sm:$0xff]
  %v115 = vld [vmem:[%s1 + $0x308] sm:$0xff]
  %v116 = vld [vmem:[%s1 + $0x310] sm:$0xff]
  %v117 = vld [vmem:[%s1 + $0x318] sm:$0xff]
  %v118 = vld [vmem:[%s1 + $0x320] sm:$0xff]
  %v119 = vld [vmem:[%s1 + $0x328] sm:$0xff]
  %v120 = vld [vmem:[%s1 + $0x330] sm:$0xff]
  %v121 = vld [vmem:[%s1 + $0x338] sm:$0xff]
  %v122 = vld [vmem:[%s1 + $0x340] sm:$0xff]
  %v123 = vld [vmem:[%s1 + $0x348] sm:$0xff]
  %v124 = vld [vmem:[%s1 + $0x350] sm:$0xff]
  %v125 = vld [vmem:[%s1 + $0x358] sm:$0xff]
  %v126 = vld [vmem:[%s1 + $0x360] sm:$0xff]
  %v127 = vld [vmem:[%s1 + $0x368] sm:$0xff]
  %v128 = vld [vmem:[%s1 + $0x370] sm:$0xff]
  %v129 = vld [vmem:[%s1 + $0x378] sm:$0xff]
  %v130 = vld [vmem:[%s1 + $0x380] sm:$0xff]
  %v131 = vld [vmem:[%s1 + $0x388] sm:$0xff]
  %v132 = vld [vmem:[%s1 + $0x390] sm:$0xff]
  %v133 = vld [vmem:[%s1 + $0x398] sm:$0xff]
  %v134 = vld [vmem:[%s1 + $0x3a0] sm:$0xff]
  %v135 = vld [vmem:[%s1 + $0x3a8] sm:$0xff]
  %v136 = vld [vmem:[%s1 + $0x3b0] sm:$0xff]
  %v137 = vld [vmem:[%s1 + $0x3b8] sm:$0xff]
  %v138 = vld [vmem:[%s1 + $0x3c0] sm:$0xff]
  %v139 = vld [vmem:[%s1 + $0x3c8] sm:$0xff]
  %v140 = vld [vmem:[%s1 + $0x3d0] sm:$0xff]
  %v141 = vld [vmem:[%s1 + $0x3d8] sm:$0xff]
  %v142 = vld [vmem:[%s1 + $0x3e0] sm:$0xff]
  %v143 = vld [vmem:[%s1 + $0x3e8] sm:$0xff]
  %v144 = vld [vmem:[%s1 + $0x3f0] sm:$0xff]
  %v145 = vld [vmem:[%s1 + $0x3f8] sm:$0xff]
  %v146 = vld [vmem:[%s1 + $0x400] sm:$0xff]
  %v147 = vld [vmem:[%s1 + $0x408] sm:$0xff]
  %v148 = vld [vmem:[%s1 + $0x410] sm:$0xff]
  %v149 = vld [vmem:[%s1 + $0x418] sm:$0xff]
  %v150 = vld [vmem:[%s1 + $0x420] sm:$0xff]
  %v151 = vld [vmem:[%s1 + $0x428] sm:$0xff]
  %v152 = vld [vmem:[%s1 + $0x430] sm:$0xff]
  %v153 = vld [vmem:[%s1 + $0x438] sm:$0xff]
  %v154 = vld [vmem:[%s1 + $0x440] sm:$0xff]
  %v155 = vld [vmem:[%s1 + $0x448] sm:$0xff]
  %v156 = vld [vmem:[%s1 + $0x450] sm:$0xff]
  %v157 = vld [vmem:[%s1 + $0x458] sm:$0xff]
  %v158 = vld [vmem:[%s1 + $0x460] sm:$0xff]
  %v159 = vld [vmem:[%s1 + $0x468] sm:$0xff]
  %v160 = vld [vmem:[%s1 + $0x470] sm:$0xff]
  %v161 = vld [vmem:[%s1 + $0x478] sm:$0xff]
  %v162 = vld [vmem:[%s1 + $0x480] sm:$0xff]
  %v163 = vld [vmem:[%s1 + $0x488] sm:$0xff]
  %v164 = vld [vmem:[%s1 + $0x490] sm:$0xff]
  %v165 = vld [vmem:[%s1 + $0x498] sm:$0xff]
  %v166 = vld [vmem:[%s1 + $0x4a0] sm:$0xff]
  %v167 = vld [vmem:[%s1 + $0x4a8] sm:$0xff]
  %v168 = vld [vmem:[%s1 + $0x4b0] sm:$0xff]
  %v169 = vld [vmem:[%s1 + $0x4b8] sm:$0xff]
  %v170 = vld [vmem:[%s1 + $0x4c0] sm:$0xff]
  %v171 = vld [vmem:[%s1 + $0x4c8] sm:$0xff]
  %v172 = vld [vmem:[%s1 + $0x4d0] sm:$0xff]
  %v173 = vld [vmem:[%s1 + $0x4d8] sm:$0xff]
  %v174 = vld [vmem:[%s1 + $0x4e0] sm:$0xff]
  %v175 = vld [vmem:[%s1 + $0x4e8] sm:$0xff]
  %v176 = vld [vmem:[%s1 + $0x4f0] sm:$0xff]
  %v177 = vld [vmem:[%s1 + $0x4f8] sm:$0xff]
  %v178 = vld [vmem:[%s1 + $0x500] sm:$0xff]
  %v179 = vld [vmem:[%s1 + $0x508] sm:$0xff]
  %v180 = vld [vmem:[%s1 + $0x510] sm:$0xff]
  %v181 = vld [vmem:[%s1 + $0x518] sm:$0xff]
  %v182 = vld [vmem:[%s1 + $0x520] sm:$0xff]
  %v183 = vld [vmem:[%s1 + $0x528] sm:$0xff]
  %v184 = vld [vmem:[%s1 + $0x530] sm:$0xff]
  %v185 = vld [vmem:[%s1 + $0x538] sm:$0xff]
  %v186 = vld [vmem:[%s1 + $0x540] sm:$0xff]
  %v187 = vld [vmem:[%s1 + $0x548] sm:$0xff]
  %v188 = vld [vmem:[%s1 + $0x550] sm:$0xff]
  %v189 = vld [vmem:[%s1 + $0x558] sm:$0xff]
  %v190 = vld [vmem:[%s1 + $0x560] sm:$0xff]
  %v191 = vld [vmem:[%s1 + $0x568] sm:$0xff]
  %v192 = vld [vmem:[%s1 + $0x570] sm:$0xff]
  %v193 = vld [vmem:[%s1 + $0x578] sm:$0xff]
  %v194 = vld [vmem:[%s1 + $0x580] sm:$0xff]
  %v195 = vld [vmem:[%s1 + $0x588] sm:$0xff]
  %v196 = vld [vmem:[%s1 + $0x590] sm:$0xff]
  %v197 = vld [vmem:[%s1 + $0x598] sm:$0xff]
  %v198 = vld [vmem:[%s1 + $0x5a0] sm:$0xff]
  %v199 = vld [vmem:[%s1 + $0x5a8] sm:$0xff]
  %v200 = vld [vmem:[%s1 + $0x5b0] sm:$0xff]
  %v201 = vld [vmem:[%s1 + $0x5b8] sm:$0xff]
  %v202 = vld [vmem:[%s1 + $0x5c0] sm:$0xff]
  %v203 = vld [vmem:[%s1 + $0x5c8] sm:$0xff]
  %v204 = vld [vmem:[%s1 + $0x5d0] sm:$0xff]
  %v205 = vld [vmem:[%s1 + $0x5d8] sm:$0xff]
  %v206 = vld [vmem:[%s1 + $0x5e0] sm:$0xff]
  %v207 = vld [vmem:[%s1 + $0x5e8] sm:$0xff]
  %v208 = vld [vmem:[%s1 + $0x5f0] sm:$0xff]
  %v209 = vld [vmem:[%s1 + $0x5f8] sm:$0xff]
  %v210 = vld [vmem:[%s1 + $0x600] sm:$0xff]
  %v211 = vld [vmem:[%s1 + $0x608] sm:$0xff]
  %v212 = vld [vmem:[%s1 + $0x610] sm:$0xff]
  %v213 = vld [vmem:[%s1 + $0x618] sm:$0xff]
  %v214 = vld [vmem:[%s1 + $0x620] sm:$0xff]
  %v215 = vld [vmem:[%s1 + $0x628] sm:$0xff]
  %v216 = vld [vmem:[%s1 + $0x630] sm:$0xff]
  %v217 = vld [vmem:[%s1 + $0x638] sm:$0xff]
  %v218 = vld [vmem:[%s1 + $0x640] sm:$0xff]
  %v219 = vld [vmem:[%s1 + $0x648] sm:$0xff]
  %v220 = vld [vmem:[%s1 + $0x650] sm:$0xff]
  %v221 = vld [vmem:[%s1 + $0x658] sm:$0xff]
  %v222 = vld [vmem:[%s1 + $0x660] sm:$0xff]
  %v223 = vld [vmem:[%s1 + $0x668] sm:$0xff]
  %v224 = vld [vmem:[%s1 + $0x670] sm:$0xff]
  %v225 = vld [vmem:[%s1 + $0x678] sm:$0xff]
  %v226 = vld [vmem:[%s1 + $0x680] sm:$0xff]
  %v227 = vld [vmem:[%s1 + $0x688] sm:$0xff]
  %v228 = vld [vmem:[%s1 + $0x690] sm:$0xff]
  %v229 = vld [vmem:[%s1 + $0x698] sm:$0xff]
  %v230 = vld [vmem:[%s1 + $0x6a0] sm:$0xff]
  %v231 = vld [vmem:[%s1 + $0x6a8] sm:$0xff]
  %v232 = vld [vmem:[%s1 + $0x6b0] sm:$0xff]
  %v233 = vld [vmem:[%s1 + $0x6b8] sm:$0xff]
  %v234 = vld [vmem:[%s1 + $0x6c0] sm:$0xff]
  %v235 = vld [vmem:[%s1 + $0x6c8] sm:$0xff]
  %v236 = vld [vmem:[%s1 + $0x6d0] sm:$0xff]
  %v237 = vld [vmem:[%s1 + $0x6d8] sm:$0xff]
  %v238 = vld [vmem:[%s1 + $0x6e0] sm:$0xff]
  %v239 = vld [vmem:[%s1 + $0x6e8] sm:$0xff]
  %v240 = vld [vmem:[%s1 + $0x6f0] sm:$0xff]
  %v241 = vld [vmem:[%s1 + $0x6f8] sm:$0xff]
  %v242 = vld [vmem:[%s1 + $0x700] sm:$0xff]
  %v243 = vld [vmem:[%s1 + $0x708] sm:$0xff]
  %v244 = vld [vmem:[%s1 + $0x710] sm:$0xff]
  %v245 = vld [vmem:[%s1 + $0x718] sm:$0xff]
  %v246 = vld [vmem:[%s1 + $0x720] sm:$0xff]
  %v247 = vld [vmem:[%s1 + $0x728] sm:$0xff]
  %v248 = vld [vmem:[%s1 + $0x730] sm:$0xff]
  %v249 = vld [vmem:[%s1 + $0x738] sm:$0xff]
  %v250 = vld [vmem:[%s1 + $0x740] sm:$0xff]
  %v251 = vld [vmem:[%s1 + $0x748] sm:$0xff]
  %v252 = vld [vmem:[%s1 + $0x750] sm:$0xff]
  %v253 = vld [vmem:[%s1 + $0x758] sm:$0xff]
  %v254 = vld [vmem:[%s1 + $0x760] sm:$0xff]
  %v255 = vld [vmem:[%s1 + $0x768] sm:$0xff]
  %v256 = vld [vmem:[%s1 + $0x770] sm:$0xff]
  %v257 = vld [vmem:[%s1 + $0x778] sm:$0xff]
  %v258 = vld [vmem:[%s1 + $0x780] sm:$0xff]
  %v259 = vld [vmem:[%s1 + $0x788] sm:$0xff]
  %v260 = vld [vmem:[%s1 + $0x790] sm:$0xff]
  %v261 = vld [vmem:[%s1 + $0x798] sm:$0xff]
  %v262 = vld [vmem:[%s1 + $0x7a0] sm:$0xff]
  %v263 = vld [vmem:[%s1 + $0x7a8] sm:$0xff]
  %v264 = vld [vmem:[%s1 + $0x7b0] sm:$0xff]
  %v265 = vld [vmem:[%s1 + $0x7b8] sm:$0xff]
  %v266 = vld [vmem:[%s1 + $0x7c0] sm:$0xff]
  %v267 = vld [vmem:[%s1 + $0x7c8] sm:$0xff]
  %v268 = vld [vmem:[%s1 + $0x7d0] sm:$0xff]
  %v269 = vld [vmem:[%s1 + $0x7d8] sm:$0xff]
  %v270 = vld [vmem:[%s1 + $0x7e0] sm:$0xff]
  %v271 = vld [vmem:[%s1 + $0x7e8] sm:$0xff]
  %v272 = vld [vmem:[%s1 + $0x7f0] sm:$0xff]
  %v273 = vld [vmem:[%s1 + $0x7f8] sm:$0xff]
  %v274 = vld [vmem:[%s2] sm:$0xf]
  %v276 = vperm.slane %v274, 0
  %v277 = vperm.slane %v274, 1
  %v278 = vperm.slane %v274, 2
  %v279 = vperm.slane %v274, 3
  %v288 = vunpack.c.l.b16 %v14
  %v289 = vunpack.c.h.b16 %v14
  %v290 = vunpack.c.l.b16 %v15
  %v291 = vunpack.c.h.b16 %v15
  %v292 = vunpack.c.l.b16 %v16
  %v293 = vunpack.c.h.b16 %v16
  %v294 = vunpack.c.l.b16 %v17
  %v295 = vunpack.c.h.b16 %v17
  %v296 = vpack.c.b16 %v288, %v288
  %v297 = vpack.c.b16 %v289, %v289
  %v298 = vpack.c.b16 %v290, %v290
  %v299 = vpack.c.b16 %v291, %v291
  %v300 = vpack.c.b16 %v292, %v292
  %v301 = vpack.c.b16 %v293, %v293
  %v302 = vpack.c.b16 %v294, %v294
  %v303 = vpack.c.b16 %v295, %v295
  %v568 = vunpack.c.l.b16 %v18
  %v569 = vunpack.c.h.b16 %v18
  %v570 = vunpack.c.l.b16 %v19
  %v571 = vunpack.c.h.b16 %v19
  %v572 = vunpack.c.l.b16 %v20
  %v573 = vunpack.c.h.b16 %v20
  %v574 = vunpack.c.l.b16 %v21
  %v575 = vunpack.c.h.b16 %v21
  %v576 = vunpack.c.l.b16 %v22
  %v577 = vunpack.c.h.b16 %v22
  %v578 = vunpack.c.l.b16 %v23
  %v579 = vunpack.c.h.b16 %v23
  %v580 = vunpack.c.l.b16 %v24
  %v581 = vunpack.c.h.b16 %v24
  %v582 = vunpack.c.l.b16 %v25
  %v583 = vunpack.c.h.b16 %v25
  %v584 = vunpack.c.l.b16 %v26
  %v585 = vunpack.c.h.b16 %v26
  %v586 = vunpack.c.l.b16 %v27
  %v587 = vunpack.c.h.b16 %v27
  %v588 = vunpack.c.l.b16 %v28
  %v589 = vunpack.c.h.b16 %v28
  %v590 = vunpack.c.l.b16 %v29
  %v591 = vunpack.c.h.b16 %v29
  %v592 = vunpack.c.l.b16 %v30
  %v593 = vunpack.c.h.b16 %v30
  %v594 = vunpack.c.l.b16 %v31
  %v595 = vunpack.c.h.b16 %v31
  %v596 = vunpack.c.l.b16 %v32
  %v597 = vunpack.c.h.b16 %v32
  %v598 = vunpack.c.l.b16 %v33
  %v599 = vunpack.c.h.b16 %v33
  %v600 = vunpack.c.l.b16 %v34
  %v601 = vunpack.c.h.b16 %v34
  %v602 = vunpack.c.l.b16 %v35
  %v603 = vunpack.c.h.b16 %v35
  %v604 = vunpack.c.l.b16 %v36
  %v605 = vunpack.c.h.b16 %v36
  %v606 = vunpack.c.l.b16 %v37
  %v607 = vunpack.c.h.b16 %v37
  %v608 = vunpack.c.l.b16 %v38
  %v609 = vunpack.c.h.b16 %v38
  %v610 = vunpack.c.l.b16 %v39
  %v611 = vunpack.c.h.b16 %v39
  %v612 = vunpack.c.l.b16 %v40
  %v613 = vunpack.c.h.b16 %v40
  %v614 = vunpack.c.l.b16 %v41
  %v615 = vunpack.c.h.b16 %v41
  %v616 = vunpack.c.l.b16 %v42
  %v617 = vunpack.c.h.b16 %v42
  %v618 = vunpack.c.l.b16 %v43
  %v619 = vunpack.c.h.b16 %v43
  %v620 = vunpack.c.l.b16 %v44
  %v621 = vunpack.c.h.b16 %v44
  %v622 = vunpack.c.l.b16 %v45
  %v623 = vunpack.c.h.b16 %v45
  %v624 = vunpack.c.l.b16 %v46
  %v625 = vunpack.c.h.b16 %v46
  %v626 = vunpack.c.l.b16 %v47
  %v627 = vunpack.c.h.b16 %v47
  %v628 = vunpack.c.l.b16 %v48
  %v629 = vunpack.c.h.b16 %v48
  %v630 = vunpack.c.l.b16 %v49
  %v631 = vunpack.c.h.b16 %v49
  %v632 = vunpack.c.l.b16 %v50
  %v633 = vunpack.c.h.b16 %v50
  %v634 = vunpack.c.l.b16 %v51
  %v635 = vunpack.c.h.b16 %v51
  %v636 = vunpack.c.l.b16 %v52
  %v637 = vunpack.c.h.b16 %v52
  %v638 = vunpack.c.l.b16 %v53
  %v639 = vunpack.c.h.b16 %v53
  %v640 = vunpack.c.l.b16 %v54
  %v641 = vunpack.c.h.b16 %v54
  %v642 = vunpack.c.l.b16 %v55
  %v643 = vunpack.c.h.b16 %v55
  %v644 = vunpack.c.l.b16 %v56
  %v645 = vunpack.c.h.b16 %v56
  %v646 = vunpack.c.l.b16 %v57
  %v647 = vunpack.c.h.b16 %v57
  %v648 = vunpack.c.l.b16 %v58
  %v649 = vunpack.c.h.b16 %v58
  %v650 = vunpack.c.l.b16 %v59
  %v651 = vunpack.c.h.b16 %v59
  %v652 = vunpack.c.l.b16 %v60
  %v653 = vunpack.c.h.b16 %v60
  %v654 = vunpack.c.l.b16 %v61
  %v655 = vunpack.c.h.b16 %v61
  %v656 = vunpack.c.l.b16 %v62
  %v657 = vunpack.c.h.b16 %v62
  %v658 = vunpack.c.l.b16 %v63
  %v659 = vunpack.c.h.b16 %v63
  %v660 = vunpack.c.l.b16 %v64
  %v661 = vunpack.c.h.b16 %v64
  %v662 = vunpack.c.l.b16 %v65
  %v663 = vunpack.c.h.b16 %v65
  %v664 = vunpack.c.l.b16 %v66
  %v665 = vunpack.c.h.b16 %v66
  %v666 = vunpack.c.l.b16 %v67
  %v667 = vunpack.c.h.b16 %v67
  %v668 = vunpack.c.l.b16 %v68
  %v669 = vunpack.c.h.b16 %v68
  %v670 = vunpack.c.l.b16 %v69
  %v671 = vunpack.c.h.b16 %v69
  %v672 = vunpack.c.l.b16 %v70
  %v673 = vunpack.c.h.b16 %v70
  %v674 = vunpack.c.l.b16 %v71
  %v675 = vunpack.c.h.b16 %v71
  %v676 = vunpack.c.l.b16 %v72
  %v677 = vunpack.c.h.b16 %v72
  %v678 = vunpack.c.l.b16 %v73
  %v679 = vunpack.c.h.b16 %v73
  %v680 = vunpack.c.l.b16 %v74
  %v681 = vunpack.c.h.b16 %v74
  %v682 = vunpack.c.l.b16 %v75
  %v683 = vunpack.c.h.b16 %v75
  %v684 = vunpack.c.l.b16 %v76
  %v685 = vunpack.c.h.b16 %v76
  %v686 = vunpack.c.l.b16 %v77
  %v687 = vunpack.c.h.b16 %v77
  %v688 = vunpack.c.l.b16 %v78
  %v689 = vunpack.c.h.b16 %v78
  %v690 = vunpack.c.l.b16 %v79
  %v691 = vunpack.c.h.b16 %v79
  %v692 = vunpack.c.l.b16 %v80
  %v693 = vunpack.c.h.b16 %v80
  %v694 = vunpack.c.l.b16 %v81
  %v695 = vunpack.c.h.b16 %v81
  %v696 = vunpack.c.l.b16 %v82
  %v697 = vunpack.c.h.b16 %v82
  %v698 = vunpack.c.l.b16 %v83
  %v699 = vunpack.c.h.b16 %v83
  %v700 = vunpack.c.l.b16 %v84
  %v701 = vunpack.c.h.b16 %v84
  %v702 = vunpack.c.l.b16 %v85
  %v703 = vunpack.c.h.b16 %v85
  %v704 = vunpack.c.l.b16 %v86
  %v705 = vunpack.c.h.b16 %v86
  %v706 = vunpack.c.l.b16 %v87
  %v707 = vunpack.c.h.b16 %v87
  %v708 = vunpack.c.l.b16 %v88
  %v709 = vunpack.c.h.b16 %v88
  %v710 = vunpack.c.l.b16 %v89
  %v711 = vunpack.c.h.b16 %v89
  %v712 = vunpack.c.l.b16 %v90
  %v713 = vunpack.c.h.b16 %v90
  %v714 = vunpack.c.l.b16 %v91
  %v715 = vunpack.c.h.b16 %v91
  %v716 = vunpack.c.l.b16 %v92
  %v717 = vunpack.c.h.b16 %v92
  %v718 = vunpack.c.l.b16 %v93
  %v719 = vunpack.c.h.b16 %v93
  %v720 = vunpack.c.l.b16 %v94
  %v721 = vunpack.c.h.b16 %v94
  %v722 = vunpack.c.l.b16 %v95
  %v723 = vunpack.c.h.b16 %v95
  %v724 = vunpack.c.l.b16 %v96
  %v725 = vunpack.c.h.b16 %v96
  %v726 = vunpack.c.l.b16 %v97
  %v727 = vunpack.c.h.b16 %v97
  %v728 = vunpack.c.l.b16 %v98
  %v729 = vunpack.c.h.b16 %v98
  %v730 = vunpack.c.l.b16 %v99
  %v731 = vunpack.c.h.b16 %v99
  %v732 = vunpack.c.l.b16 %v100
  %v733 = vunpack.c.h.b16 %v100
  %v734 = vunpack.c.l.b16 %v101
  %v735 = vunpack.c.h.b16 %v101
  %v736 = vunpack.c.l.b16 %v102
  %v737 = vunpack.c.h.b16 %v102
  %v738 = vunpack.c.l.b16 %v103
  %v739 = vunpack.c.h.b16 %v103
  %v740 = vunpack.c.l.b16 %v104
  %v741 = vunpack.c.h.b16 %v104
  %v742 = vunpack.c.l.b16 %v105
  %v743 = vunpack.c.h.b16 %v105
  %v744 = vunpack.c.l.b16 %v106
  %v745 = vunpack.c.h.b16 %v106
  %v746 = vunpack.c.l.b16 %v107
  %v747 = vunpack.c.h.b16 %v107
  %v748 = vunpack.c.l.b16 %v108
  %v749 = vunpack.c.h.b16 %v108
  %v750 = vunpack.c.l.b16 %v109
  %v751 = vunpack.c.h.b16 %v109
  %v752 = vunpack.c.l.b16 %v110
  %v753 = vunpack.c.h.b16 %v110
  %v754 = vunpack.c.l.b16 %v111
  %v755 = vunpack.c.h.b16 %v111
  %v756 = vunpack.c.l.b16 %v112
  %v757 = vunpack.c.h.b16 %v112
  %v758 = vunpack.c.l.b16 %v113
  %v759 = vunpack.c.h.b16 %v113
  %v760 = vunpack.c.l.b16 %v114
  %v761 = vunpack.c.h.b16 %v114
  %v762 = vunpack.c.l.b16 %v115
  %v763 = vunpack.c.h.b16 %v115
  %v764 = vunpack.c.l.b16 %v116
  %v765 = vunpack.c.h.b16 %v116
  %v766 = vunpack.c.l.b16 %v117
  %v767 = vunpack.c.h.b16 %v117
  %v768 = vunpack.c.l.b16 %v118
  %v769 = vunpack.c.h.b16 %v118
  %v770 = vunpack.c.l.b16 %v119
  %v771 = vunpack.c.h.b16 %v119
  %v772 = vunpack.c.l.b16 %v120
  %v773 = vunpack.c.h.b16 %v120
  %v774 = vunpack.c.l.b16 %v121
  %v775 = vunpack.c.h.b16 %v121
  %v776 = vunpack.c.l.b16 %v122
  %v777 = vunpack.c.h.b16 %v122
  %v778 = vunpack.c.l.b16 %v123
  %v779 = vunpack.c.h.b16 %v123
  %v780 = vunpack.c.l.b16 %v124
  %v781 = vunpack.c.h.b16 %v124
  %v782 = vunpack.c.l.b16 %v125
  %v783 = vunpack.c.h.b16 %v125
  %v784 = vunpack.c.l.b16 %v126
  %v785 = vunpack.c.h.b16 %v126
  %v786 = vunpack.c.l.b16 %v127
  %v787 = vunpack.c.h.b16 %v127
  %v788 = vunpack.c.l.b16 %v128
  %v789 = vunpack.c.h.b16 %v128
  %v790 = vunpack.c.l.b16 %v129
  %v791 = vunpack.c.h.b16 %v129
  %v792 = vunpack.c.l.b16 %v130
  %v793 = vunpack.c.h.b16 %v130
  %v794 = vunpack.c.l.b16 %v131
  %v795 = vunpack.c.h.b16 %v131
  %v796 = vunpack.c.l.b16 %v132
  %v797 = vunpack.c.h.b16 %v132
  %v798 = vunpack.c.l.b16 %v133
  %v799 = vunpack.c.h.b16 %v133
  %v800 = vunpack.c.l.b16 %v134
  %v801 = vunpack.c.h.b16 %v134
  %v802 = vunpack.c.l.b16 %v135
  %v803 = vunpack.c.h.b16 %v135
  %v804 = vunpack.c.l.b16 %v136
  %v805 = vunpack.c.h.b16 %v136
  %v806 = vunpack.c.l.b16 %v137
  %v807 = vunpack.c.h.b16 %v137
  %v808 = vunpack.c.l.b16 %v138
  %v809 = vunpack.c.h.b16 %v138
  %v810 = vunpack.c.l.b16 %v139
  %v811 = vunpack.c.h.b16 %v139
  %v812 = vunpack.c.l.b16 %v140
  %v813 = vunpack.c.h.b16 %v140
  %v814 = vunpack.c.l.b16 %v141
  %v815 = vunpack.c.h.b16 %v141
  %v816 = vunpack.c.l.b16 %v142
  %v817 = vunpack.c.h.b16 %v142
  %v818 = vunpack.c.l.b16 %v143
  %v819 = vunpack.c.h.b16 %v143
  %v820 = vunpack.c.l.b16 %v144
  %v821 = vunpack.c.h.b16 %v144
  %v822 = vunpack.c.l.b16 %v145
  %v823 = vunpack.c.h.b16 %v145
  %v824 = vunpack.c.l.b16 %v146
  %v825 = vunpack.c.h.b16 %v146
  %v826 = vunpack.c.l.b16 %v147
  %v827 = vunpack.c.h.b16 %v147
  %v828 = vunpack.c.l.b16 %v148
  %v829 = vunpack.c.h.b16 %v148
  %v830 = vunpack.c.l.b16 %v149
  %v831 = vunpack.c.h.b16 %v149
  %v832 = vunpack.c.l.b16 %v150
  %v833 = vunpack.c.h.b16 %v150
  %v834 = vunpack.c.l.b16 %v151
  %v835 = vunpack.c.h.b16 %v151
  %v836 = vunpack.c.l.b16 %v152
  %v837 = vunpack.c.h.b16 %v152
  %v838 = vunpack.c.l.b16 %v153
  %v839 = vunpack.c.h.b16 %v153
  %v840 = vunpack.c.l.b16 %v154
  %v841 = vunpack.c.h.b16 %v154
  %v842 = vunpack.c.l.b16 %v155
  %v843 = vunpack.c.h.b16 %v155
  %v844 = vunpack.c.l.b16 %v156
  %v845 = vunpack.c.h.b16 %v156
  %v846 = vunpack.c.l.b16 %v157
  %v847 = vunpack.c.h.b16 %v157
  %v848 = vunpack.c.l.b16 %v158
  %v849 = vunpack.c.h.b16 %v158
  %v850 = vunpack.c.l.b16 %v159
  %v851 = vunpack.c.h.b16 %v159
  %v852 = vunpack.c.l.b16 %v160
  %v853 = vunpack.c.h.b16 %v160
  %v854 = vunpack.c.l.b16 %v161
  %v855 = vunpack.c.h.b16 %v161
  %v856 = vunpack.c.l.b16 %v162
  %v857 = vunpack.c.h.b16 %v162
  %v858 = vunpack.c.l.b16 %v163
  %v859 = vunpack.c.h.b16 %v163
  %v860 = vunpack.c.l.b16 %v164
  %v861 = vunpack.c.h.b16 %v164
  %v862 = vunpack.c.l.b16 %v165
  %v863 = vunpack.c.h.b16 %v165
  %v864 = vunpack.c.l.b16 %v166
  %v865 = vunpack.c.h.b16 %v166
  %v866 = vunpack.c.l.b16 %v167
  %v867 = vunpack.c.h.b16 %v167
  %v868 = vunpack.c.l.b16 %v168
  %v869 = vunpack.c.h.b16 %v168
  %v870 = vunpack.c.l.b16 %v169
  %v871 = vunpack.c.h.b16 %v169
  %v872 = vunpack.c.l.b16 %v170
  %v873 = vunpack.c.h.b16 %v170
  %v874 = vunpack.c.l.b16 %v171
  %v875 = vunpack.c.h.b16 %v171
  %v876 = vunpack.c.l.b16 %v172
  %v877 = vunpack.c.h.b16 %v172
  %v878 = vunpack.c.l.b16 %v173
  %v879 = vunpack.c.h.b16 %v173
  %v880 = vunpack.c.l.b16 %v174
  %v881 = vunpack.c.h.b16 %v174
  %v882 = vunpack.c.l.b16 %v175
  %v883 = vunpack.c.h.b16 %v175
  %v884 = vunpack.c.l.b16 %v176
  %v885 = vunpack.c.h.b16 %v176
  %v886 = vunpack.c.l.b16 %v177
  %v887 = vunpack.c.h.b16 %v177
  %v888 = vunpack.c.l.b16 %v178
  %v889 = vunpack.c.h.b16 %v178
  %v890 = vunpack.c.l.b16 %v179
  %v891 = vunpack.c.h.b16 %v179
  %v892 = vunpack.c.l.b16 %v180
  %v893 = vunpack.c.h.b16 %v180
  %v894 = vunpack.c.l.b16 %v181
  %v895 = vunpack.c.h.b16 %v181
  %v896 = vunpack.c.l.b16 %v182
  %v897 = vunpack.c.h.b16 %v182
  %v898 = vunpack.c.l.b16 %v183
  %v899 = vunpack.c.h.b16 %v183
  %v900 = vunpack.c.l.b16 %v184
  %v901 = vunpack.c.h.b16 %v184
  %v902 = vunpack.c.l.b16 %v185
  %v903 = vunpack.c.h.b16 %v185
  %v904 = vunpack.c.l.b16 %v186
  %v905 = vunpack.c.h.b16 %v186
  %v906 = vunpack.c.l.b16 %v187
  %v907 = vunpack.c.h.b16 %v187
  %v908 = vunpack.c.l.b16 %v188
  %v909 = vunpack.c.h.b16 %v188
  %v910 = vunpack.c.l.b16 %v189
  %v911 = vunpack.c.h.b16 %v189
  %v912 = vunpack.c.l.b16 %v190
  %v913 = vunpack.c.h.b16 %v190
  %v914 = vunpack.c.l.b16 %v191
  %v915 = vunpack.c.h.b16 %v191
  %v916 = vunpack.c.l.b16 %v192
  %v917 = vunpack.c.h.b16 %v192
  %v918 = vunpack.c.l.b16 %v193
  %v919 = vunpack.c.h.b16 %v193
  %v920 = vunpack.c.l.b16 %v194
  %v921 = vunpack.c.h.b16 %v194
  %v922 = vunpack.c.l.b16 %v195
  %v923 = vunpack.c.h.b16 %v195
  %v924 = vunpack.c.l.b16 %v196
  %v925 = vunpack.c.h.b16 %v196
  %v926 = vunpack.c.l.b16 %v197
  %v927 = vunpack.c.h.b16 %v197
  %v928 = vunpack.c.l.b16 %v198
  %v929 = vunpack.c.h.b16 %v198
  %v930 = vunpack.c.l.b16 %v199
  %v931 = vunpack.c.h.b16 %v199
  %v932 = vunpack.c.l.b16 %v200
  %v933 = vunpack.c.h.b16 %v200
  %v934 = vunpack.c.l.b16 %v201
  %v935 = vunpack.c.h.b16 %v201
  %v936 = vunpack.c.l.b16 %v202
  %v937 = vunpack.c.h.b16 %v202
  %v938 = vunpack.c.l.b16 %v203
  %v939 = vunpack.c.h.b16 %v203
  %v940 = vunpack.c.l.b16 %v204
  %v941 = vunpack.c.h.b16 %v204
  %v942 = vunpack.c.l.b16 %v205
  %v943 = vunpack.c.h.b16 %v205
  %v944 = vunpack.c.l.b16 %v206
  %v945 = vunpack.c.h.b16 %v206
  %v946 = vunpack.c.l.b16 %v207
  %v947 = vunpack.c.h.b16 %v207
  %v948 = vunpack.c.l.b16 %v208
  %v949 = vunpack.c.h.b16 %v208
  %v950 = vunpack.c.l.b16 %v209
  %v951 = vunpack.c.h.b16 %v209
  %v952 = vunpack.c.l.b16 %v210
  %v953 = vunpack.c.h.b16 %v210
  %v954 = vunpack.c.l.b16 %v211
  %v955 = vunpack.c.h.b16 %v211
  %v956 = vunpack.c.l.b16 %v212
  %v957 = vunpack.c.h.b16 %v212
  %v958 = vunpack.c.l.b16 %v213
  %v959 = vunpack.c.h.b16 %v213
  %v960 = vunpack.c.l.b16 %v214
  %v961 = vunpack.c.h.b16 %v214
  %v962 = vunpack.c.l.b16 %v215
  %v963 = vunpack.c.h.b16 %v215
  %v964 = vunpack.c.l.b16 %v216
  %v965 = vunpack.c.h.b16 %v216
  %v966 = vunpack.c.l.b16 %v217
  %v967 = vunpack.c.h.b16 %v217
  %v968 = vunpack.c.l.b16 %v218
  %v969 = vunpack.c.h.b16 %v218
  %v970 = vunpack.c.l.b16 %v219
  %v971 = vunpack.c.h.b16 %v219
  %v972 = vunpack.c.l.b16 %v220
  %v973 = vunpack.c.h.b16 %v220
  %v974 = vunpack.c.l.b16 %v221
  %v975 = vunpack.c.h.b16 %v221
  %v976 = vunpack.c.l.b16 %v222
  %v977 = vunpack.c.h.b16 %v222
  %v978 = vunpack.c.l.b16 %v223
  %v979 = vunpack.c.h.b16 %v223
  %v980 = vunpack.c.l.b16 %v224
  %v981 = vunpack.c.h.b16 %v224
  %v982 = vunpack.c.l.b16 %v225
  %v983 = vunpack.c.h.b16 %v225
  %v984 = vunpack.c.l.b16 %v226
  %v985 = vunpack.c.h.b16 %v226
  %v986 = vunpack.c.l.b16 %v227
  %v987 = vunpack.c.h.b16 %v227
  %v988 = vunpack.c.l.b16 %v228
  %v989 = vunpack.c.h.b16 %v228
  %v990 = vunpack.c.l.b16 %v229
  %v991 = vunpack.c.h.b16 %v229
  %v992 = vunpack.c.l.b16 %v230
  %v993 = vunpack.c.h.b16 %v230
  %v994 = vunpack.c.l.b16 %v231
  %v995 = vunpack.c.h.b16 %v231
  %v996 = vunpack.c.l.b16 %v232
  %v997 = vunpack.c.h.b16 %v232
  %v998 = vunpack.c.l.b16 %v233
  %v999 = vunpack.c.h.b16 %v233
  %v1000 = vunpack.c.l.b16 %v234
  %v1001 = vunpack.c.h.b16 %v234
  %v1002 = vunpack.c.l.b16 %v235
  %v1003 = vunpack.c.h.b16 %v235
  %v1004 = vunpack.c.l.b16 %v236
  %v1005 = vunpack.c.h.b16 %v236
  %v1006 = vunpack.c.l.b16 %v237
  %v1007 = vunpack.c.h.b16 %v237
  %v1008 = vunpack.c.l.b16 %v238
  %v1009 = vunpack.c.h.b16 %v238
  %v1010 = vunpack.c.l.b16 %v239
  %v1011 = vunpack.c.h.b16 %v239
  %v1012 = vunpack.c.l.b16 %v240
  %v1013 = vunpack.c.h.b16 %v240
  %v1014 = vunpack.c.l.b16 %v241
  %v1015 = vunpack.c.h.b16 %v241
  %v1016 = vunpack.c.l.b16 %v242
  %v1017 = vunpack.c.h.b16 %v242
  %v1018 = vunpack.c.l.b16 %v243
  %v1019 = vunpack.c.h.b16 %v243
  %v1020 = vunpack.c.l.b16 %v244
  %v1021 = vunpack.c.h.b16 %v244
  %v1022 = vunpack.c.l.b16 %v245
  %v1023 = vunpack.c.h.b16 %v245
  %v1024 = vunpack.c.l.b16 %v246
  %v1025 = vunpack.c.h.b16 %v246
  %v1026 = vunpack.c.l.b16 %v247
  %v1027 = vunpack.c.h.b16 %v247
  %v1028 = vunpack.c.l.b16 %v248
  %v1029 = vunpack.c.h.b16 %v248
  %v1030 = vunpack.c.l.b16 %v249
  %v1031 = vunpack.c.h.b16 %v249
  %v1032 = vunpack.c.l.b16 %v250
  %v1033 = vunpack.c.h.b16 %v250
  %v1034 = vunpack.c.l.b16 %v251
  %v1035 = vunpack.c.h.b16 %v251
  %v1036 = vunpack.c.l.b16 %v252
  %v1037 = vunpack.c.h.b16 %v252
  %v1038 = vunpack.c.l.b16 %v253
  %v1039 = vunpack.c.h.b16 %v253
  %v1040 = vunpack.c.l.b16 %v254
  %v1041 = vunpack.c.h.b16 %v254
  %v1042 = vunpack.c.l.b16 %v255
  %v1043 = vunpack.c.h.b16 %v255
  %v1044 = vunpack.c.l.b16 %v256
  %v1045 = vunpack.c.h.b16 %v256
  %v1046 = vunpack.c.l.b16 %v257
  %v1047 = vunpack.c.h.b16 %v257
  %v1048 = vunpack.c.l.b16 %v258
  %v1049 = vunpack.c.h.b16 %v258
  %v1050 = vunpack.c.l.b16 %v259
  %v1051 = vunpack.c.h.b16 %v259
  %v1052 = vunpack.c.l.b16 %v260
  %v1053 = vunpack.c.h.b16 %v260
  %v1054 = vunpack.c.l.b16 %v261
  %v1055 = vunpack.c.h.b16 %v261
  %v1056 = vunpack.c.l.b16 %v262
  %v1057 = vunpack.c.h.b16 %v262
  %v1058 = vunpack.c.l.b16 %v263
  %v1059 = vunpack.c.h.b16 %v263
  %v1060 = vunpack.c.l.b16 %v264
  %v1061 = vunpack.c.h.b16 %v264
  %v1062 = vunpack.c.l.b16 %v265
  %v1063 = vunpack.c.h.b16 %v265
  %v1064 = vunpack.c.l.b16 %v266
  %v1065 = vunpack.c.h.b16 %v266
  %v1066 = vunpack.c.l.b16 %v267
  %v1067 = vunpack.c.h.b16 %v267
  %v1068 = vunpack.c.l.b16 %v268
  %v1069 = vunpack.c.h.b16 %v268
  %v1070 = vunpack.c.l.b16 %v269
  %v1071 = vunpack.c.h.b16 %v269
  %v1072 = vunpack.c.l.b16 %v270
  %v1073 = vunpack.c.h.b16 %v270
  %v1074 = vunpack.c.l.b16 %v271
  %v1075 = vunpack.c.h.b16 %v271
  %v1076 = vunpack.c.l.b16 %v272
  %v1077 = vunpack.c.h.b16 %v272
  %v1078 = vunpack.c.l.b16 %v273
  %v1079 = vunpack.c.h.b16 %v273
  %v1080 = vpack.c.b16 %v572, %v568
  %v1081 = vpack.c.b16 %v573, %v569
  %v1082 = vpack.c.b16 %v574, %v570
  %v1083 = vpack.c.b16 %v575, %v571
  %v1084 = vpack.c.b16 %v580, %v576
  %v1085 = vpack.c.b16 %v581, %v577
  %v1086 = vpack.c.b16 %v582, %v578
  %v1087 = vpack.c.b16 %v583, %v579
  %v1088 = vpack.c.b16 %v588, %v584
  %v1089 = vpack.c.b16 %v589, %v585
  %v1090 = vpack.c.b16 %v590, %v586
  %v1091 = vpack.c.b16 %v591, %v587
  %v1092 = vpack.c.b16 %v596, %v592
  %v1093 = vpack.c.b16 %v597, %v593
  %v1094 = vpack.c.b16 %v598, %v594
  %v1095 = vpack.c.b16 %v599, %v595
  %v1096 = vpack.c.b16 %v604, %v600
  %v1097 = vpack.c.b16 %v605, %v601
  %v1098 = vpack.c.b16 %v606, %v602
  %v1099 = vpack.c.b16 %v607, %v603
  %v1100 = vpack.c.b16 %v612, %v608
  %v1101 = vpack.c.b16 %v613, %v609
  %v1102 = vpack.c.b16 %v614, %v610
  %v1103 = vpack.c.b16 %v615, %v611
  %v1104 = vpack.c.b16 %v620, %v616
  %v1105 = vpack.c.b16 %v621, %v617
  %v1106 = vpack.c.b16 %v622, %v618
  %v1107 = vpack.c.b16 %v623, %v619
  %v1108 = vpack.c.b16 %v628, %v624
  %v1109 = vpack.c.b16 %v629, %v625
  %v1110 = vpack.c.b16 %v630, %v626
  %v1111 = vpack.c.b16 %v631, %v627
  %v1112 = vpack.c.b16 %v636, %v632
  %v1113 = vpack.c.b16 %v637, %v633
  %v1114 = vpack.c.b16 %v638, %v634
  %v1115 = vpack.c.b16 %v639, %v635
  %v1116 = vpack.c.b16 %v644, %v640
  %v1117 = vpack.c.b16 %v645, %v641
  %v1118 = vpack.c.b16 %v646, %v642
  %v1119 = vpack.c.b16 %v647, %v643
  %v1120 = vpack.c.b16 %v652, %v648
  %v1121 = vpack.c.b16 %v653, %v649
  %v1122 = vpack.c.b16 %v654, %v650
  %v1123 = vpack.c.b16 %v655, %v651
  %v1124 = vpack.c.b16 %v660, %v656
  %v1125 = vpack.c.b16 %v661, %v657
  %v1126 = vpack.c.b16 %v662, %v658
  %v1127 = vpack.c.b16 %v663, %v659
  %v1128 = vpack.c.b16 %v668, %v664
  %v1129 = vpack.c.b16 %v669, %v665
  %v1130 = vpack.c.b16 %v670, %v666
  %v1131 = vpack.c.b16 %v671, %v667
  %v1132 = vpack.c.b16 %v676, %v672
  %v1133 = vpack.c.b16 %v677, %v673
  %v1134 = vpack.c.b16 %v678, %v674
  %v1135 = vpack.c.b16 %v679, %v675
  %v1136 = vpack.c.b16 %v684, %v680
  %v1137 = vpack.c.b16 %v685, %v681
  %v1138 = vpack.c.b16 %v686, %v682
  %v1139 = vpack.c.b16 %v687, %v683
  %v1140 = vpack.c.b16 %v692, %v688
  %v1141 = vpack.c.b16 %v693, %v689
  %v1142 = vpack.c.b16 %v694, %v690
  %v1143 = vpack.c.b16 %v695, %v691
  %v1144 = vpack.c.b16 %v700, %v696
  %v1145 = vpack.c.b16 %v701, %v697
  %v1146 = vpack.c.b16 %v702, %v698
  %v1147 = vpack.c.b16 %v703, %v699
  %v1148 = vpack.c.b16 %v708, %v704
  %v1149 = vpack.c.b16 %v709, %v705
  %v1150 = vpack.c.b16 %v710, %v706
  %v1151 = vpack.c.b16 %v711, %v707
  %v1152 = vpack.c.b16 %v716, %v712
  %v1153 = vpack.c.b16 %v717, %v713
  %v1154 = vpack.c.b16 %v718, %v714
  %v1155 = vpack.c.b16 %v719, %v715
  %v1156 = vpack.c.b16 %v724, %v720
  %v1157 = vpack.c.b16 %v725, %v721
  %v1158 = vpack.c.b16 %v726, %v722
  %v1159 = vpack.c.b16 %v727, %v723
  %v1160 = vpack.c.b16 %v732, %v728
  %v1161 = vpack.c.b16 %v733, %v729
  %v1162 = vpack.c.b16 %v734, %v730
  %v1163 = vpack.c.b16 %v735, %v731
  %v1164 = vpack.c.b16 %v740, %v736
  %v1165 = vpack.c.b16 %v741, %v737
  %v1166 = vpack.c.b16 %v742, %v738
  %v1167 = vpack.c.b16 %v743, %v739
  %v1168 = vpack.c.b16 %v748, %v744
  %v1169 = vpack.c.b16 %v749, %v745
  %v1170 = vpack.c.b16 %v750, %v746
  %v1171 = vpack.c.b16 %v751, %v747
  %v1172 = vpack.c.b16 %v756, %v752
  %v1173 = vpack.c.b16 %v757, %v753
  %v1174 = vpack.c.b16 %v758, %v754
  %v1175 = vpack.c.b16 %v759, %v755
  %v1176 = vpack.c.b16 %v764, %v760
  %v1177 = vpack.c.b16 %v765, %v761
  %v1178 = vpack.c.b16 %v766, %v762
  %v1179 = vpack.c.b16 %v767, %v763
  %v1180 = vpack.c.b16 %v772, %v768
  %v1181 = vpack.c.b16 %v773, %v769
  %v1182 = vpack.c.b16 %v774, %v770
  %v1183 = vpack.c.b16 %v775, %v771
  %v1184 = vpack.c.b16 %v780, %v776
  %v1185 = vpack.c.b16 %v781, %v777
  %v1186 = vpack.c.b16 %v782, %v778
  %v1187 = vpack.c.b16 %v783, %v779
  %v1188 = vpack.c.b16 %v788, %v784
  %v1189 = vpack.c.b16 %v789, %v785
  %v1190 = vpack.c.b16 %v790, %v786
  %v1191 = vpack.c.b16 %v791, %v787
  %v1192 = vpack.c.b16 %v796, %v792
  %v1193 = vpack.c.b16 %v797, %v793
  %v1194 = vpack.c.b16 %v798, %v794
  %v1195 = vpack.c.b16 %v799, %v795
  %v1196 = vpack.c.b16 %v804, %v800
  %v1197 = vpack.c.b16 %v805, %v801
  %v1198 = vpack.c.b16 %v806, %v802
  %v1199 = vpack.c.b16 %v807, %v803
  %v1200 = vpack.c.b16 %v812, %v808
  %v1201 = vpack.c.b16 %v813, %v809
  %v1202 = vpack.c.b16 %v814, %v810
  %v1203 = vpack.c.b16 %v815, %v811
  %v1204 = vpack.c.b16 %v820, %v816
  %v1205 = vpack.c.b16 %v821, %v817
  %v1206 = vpack.c.b16 %v822, %v818
  %v1207 = vpack.c.b16 %v823, %v819
  %v1208 = vpack.c.b16 %v828, %v824
  %v1209 = vpack.c.b16 %v829, %v825
  %v1210 = vpack.c.b16 %v830, %v826
  %v1211 = vpack.c.b16 %v831, %v827
  %v1212 = vpack.c.b16 %v836, %v832
  %v1213 = vpack.c.b16 %v837, %v833
  %v1214 = vpack.c.b16 %v838, %v834
  %v1215 = vpack.c.b16 %v839, %v835
  %v1216 = vpack.c.b16 %v844, %v840
  %v1217 = vpack.c.b16 %v845, %v841
  %v1218 = vpack.c.b16 %v846, %v842
  %v1219 = vpack.c.b16 %v847, %v843
  %v1220 = vpack.c.b16 %v852, %v848
  %v1221 = vpack.c.b16 %v853, %v849
  %v1222 = vpack.c.b16 %v854, %v850
  %v1223 = vpack.c.b16 %v855, %v851
  %v1224 = vpack.c.b16 %v860, %v856
  %v1225 = vpack.c.b16 %v861, %v857
  %v1226 = vpack.c.b16 %v862, %v858
  %v1227 = vpack.c.b16 %v863, %v859
  %v1228 = vpack.c.b16 %v868, %v864
  %v1229 = vpack.c.b16 %v869, %v865
  %v1230 = vpack.c.b16 %v870, %v866
  %v1231 = vpack.c.b16 %v871, %v867
  %v1232 = vpack.c.b16 %v876, %v872
  %v1233 = vpack.c.b16 %v877, %v873
  %v1234 = vpack.c.b16 %v878, %v874
  %v1235 = vpack.c.b16 %v879, %v875
  %v1236 = vpack.c.b16 %v884, %v880
  %v1237 = vpack.c.b16 %v885, %v881
  %v1238 = vpack.c.b16 %v886, %v882
  %v1239 = vpack.c.b16 %v887, %v883
  %v1240 = vpack.c.b16 %v892, %v888
  %v1241 = vpack.c.b16 %v893, %v889
  %v1242 = vpack.c.b16 %v894, %v890
  %v1243 = vpack.c.b16 %v895, %v891
  %v1244 = vpack.c.b16 %v900, %v896
  %v1245 = vpack.c.b16 %v901, %v897
  %v1246 = vpack.c.b16 %v902, %v898
  %v1247 = vpack.c.b16 %v903, %v899
  %v1248 = vpack.c.b16 %v908, %v904
  %v1249 = vpack.c.b16 %v909, %v905
  %v1250 = vpack.c.b16 %v910, %v906
  %v1251 = vpack.c.b16 %v911, %v907
  %v1252 = vpack.c.b16 %v916, %v912
  %v1253 = vpack.c.b16 %v917, %v913
  %v1254 = vpack.c.b16 %v918, %v914
  %v1255 = vpack.c.b16 %v919, %v915
  %v1256 = vpack.c.b16 %v924, %v920
  %v1257 = vpack.c.b16 %v925, %v921
  %v1258 = vpack.c.b16 %v926, %v922
  %v1259 = vpack.c.b16 %v927, %v923
  %v1260 = vpack.c.b16 %v932, %v928
  %v1261 = vpack.c.b16 %v933, %v929
  %v1262 = vpack.c.b16 %v934, %v930
  %v1263 = vpack.c.b16 %v935, %v931
  %v1264 = vpack.c.b16 %v940, %v936
  %v1265 = vpack.c.b16 %v941, %v937
  %v1266 = vpack.c.b16 %v942, %v938
  %v1267 = vpack.c.b16 %v943, %v939
  %v1268 = vpack.c.b16 %v948, %v944
  %v1269 = vpack.c.b16 %v949, %v945
  %v1270 = vpack.c.b16 %v950, %v946
  %v1271 = vpack.c.b16 %v951, %v947
  %v1272 = vpack.c.b16 %v956, %v952
  %v1273 = vpack.c.b16 %v957, %v953
  %v1274 = vpack.c.b16 %v958, %v954
  %v1275 = vpack.c.b16 %v959, %v955
  %v1276 = vpack.c.b16 %v964, %v960
  %v1277 = vpack.c.b16 %v965, %v961
  %v1278 = vpack.c.b16 %v966, %v962
  %v1279 = vpack.c.b16 %v967, %v963
  %v1280 = vpack.c.b16 %v972, %v968
  %v1281 = vpack.c.b16 %v973, %v969
  %v1282 = vpack.c.b16 %v974, %v970
  %v1283 = vpack.c.b16 %v975, %v971
  %v1284 = vpack.c.b16 %v980, %v976
  %v1285 = vpack.c.b16 %v981, %v977
  %v1286 = vpack.c.b16 %v982, %v978
  %v1287 = vpack.c.b16 %v983, %v979
  %v1288 = vpack.c.b16 %v988, %v984
  %v1289 = vpack.c.b16 %v989, %v985
  %v1290 = vpack.c.b16 %v990, %v986
  %v1291 = vpack.c.b16 %v991, %v987
  %v1292 = vpack.c.b16 %v996, %v992
  %v1293 = vpack.c.b16 %v997, %v993
  %v1294 = vpack.c.b16 %v998, %v994
  %v1295 = vpack.c.b16 %v999, %v995
  %v1296 = vpack.c.b16 %v1004, %v1000
  %v1297 = vpack.c.b16 %v1005, %v1001
  %v1298 = vpack.c.b16 %v1006, %v1002
  %v1299 = vpack.c.b16 %v1007, %v1003
  %v1300 = vpack.c.b16 %v1012, %v1008
  %v1301 = vpack.c.b16 %v1013, %v1009
  %v1302 = vpack.c.b16 %v1014, %v1010
  %v1303 = vpack.c.b16 %v1015, %v1011
  %v1304 = vpack.c.b16 %v1020, %v1016
  %v1305 = vpack.c.b16 %v1021, %v1017
  %v1306 = vpack.c.b16 %v1022, %v1018
  %v1307 = vpack.c.b16 %v1023, %v1019
  %v1308 = vpack.c.b16 %v1028, %v1024
  %v1309 = vpack.c.b16 %v1029, %v1025
  %v1310 = vpack.c.b16 %v1030, %v1026
  %v1311 = vpack.c.b16 %v1031, %v1027
  %v1312 = vpack.c.b16 %v1036, %v1032
  %v1313 = vpack.c.b16 %v1037, %v1033
  %v1314 = vpack.c.b16 %v1038, %v1034
  %v1315 = vpack.c.b16 %v1039, %v1035
  %v1316 = vpack.c.b16 %v1044, %v1040
  %v1317 = vpack.c.b16 %v1045, %v1041
  %v1318 = vpack.c.b16 %v1046, %v1042
  %v1319 = vpack.c.b16 %v1047, %v1043
  %v1320 = vpack.c.b16 %v1052, %v1048
  %v1321 = vpack.c.b16 %v1053, %v1049
  %v1322 = vpack.c.b16 %v1054, %v1050
  %v1323 = vpack.c.b16 %v1055, %v1051
  %v1324 = vpack.c.b16 %v1060, %v1056
  %v1325 = vpack.c.b16 %v1061, %v1057
  %v1326 = vpack.c.b16 %v1062, %v1058
  %v1327 = vpack.c.b16 %v1063, %v1059
  %v1328 = vpack.c.b16 %v1068, %v1064
  %v1329 = vpack.c.b16 %v1069, %v1065
  %v1330 = vpack.c.b16 %v1070, %v1066
  %v1331 = vpack.c.b16 %v1071, %v1067
  %v1332 = vpack.c.b16 %v1076, %v1072
  %v1333 = vpack.c.b16 %v1077, %v1073
  %v1334 = vpack.c.b16 %v1078, %v1074
  %v1335 = vpack.c.b16 %v1079, %v1075
  %1592 = vmatpush.bf16.msra.mxu0 %v1108
  %1593 = vmatpush.bf16.msra.mxu0 %v1104
  %1594 = vmatpush.bf16.msra.mxu0 %v1100
  %1595 = vmatpush.bf16.msra.mxu0 %v1096
  %1596 = vmatpush.bf16.msra.mxu0 %v1092
  %1597 = vmatpush.bf16.msra.mxu0 %v1088
  %1598 = vmatpush.bf16.msra.mxu0 %v1084
  %1599 = vmatpush.bf16.msra.mxu0 %v1080
  %1600 = vmatmul.bf16.gmra.mxu0 %v296
  %v1601 = vpop.f32.mrf.mxu0
  %v1602 = vadd.f32 %v276, %v1601
  %v1603 = vpop.f32.mrf.mxu0
  %1604 = vdwg.mxu0
  %1605 = vmatpush.bf16.msra.mxu0 %v1140
  %1606 = vmatpush.bf16.msra.mxu0 %v1136
  %1607 = vmatpush.bf16.msra.mxu0 %v1132
  %1608 = vmatpush.bf16.msra.mxu0 %v1128
  %1609 = vmatpush.bf16.msra.mxu0 %v1124
  %1610 = vmatpush.bf16.msra.mxu0 %v1120
  %1611 = vmatpush.bf16.msra.mxu0 %v1116
  %1612 = vmatpush.bf16.msra.mxu0 %v1112
  %1613 = vmatmul.bf16.gmra.mxu0 %v297
  %v1614 = vpop.f32.mrf.mxu0
  %v1615 = vadd.f32 %v1602, %v1614
  %v1616 = vpop.f32.mrf.mxu0
  %1617 = vdwg.mxu0
  %1618 = vmatpush.bf16.msra.mxu0 %v1172
  %1619 = vmatpush.bf16.msra.mxu0 %v1168
  %1620 = vmatpush.bf16.msra.mxu0 %v1164
  %1621 = vmatpush.bf16.msra.mxu0 %v1160
  %1622 = vmatpush.bf16.msra.mxu0 %v1156
  %1623 = vmatpush.bf16.msra.mxu0 %v1152
  %1624 = vmatpush.bf16.msra.mxu0 %v1148
  %1625 = vmatpush.bf16.msra.mxu0 %v1144
  %1626 = vmatmul.bf16.gmra.mxu0 %v298
  %v1627 = vpop.f32.mrf.mxu0
  %v1628 = vadd.f32 %v1615, %v1627
  %v1629 = vpop.f32.mrf.mxu0
  %1630 = vdwg.mxu0
  %1631 = vmatpush.bf16.msra.mxu0 %v1204
  %1632 = vmatpush.bf16.msra.mxu0 %v1200
  %1633 = vmatpush.bf16.msra.mxu0 %v1196
  %1634 = vmatpush.bf16.msra.mxu0 %v1192
  %1635 = vmatpush.bf16.msra.mxu0 %v1188
  %1636 = vmatpush.bf16.msra.mxu0 %v1184
  %1637 = vmatpush.bf16.msra.mxu0 %v1180
  %1638 = vmatpush.bf16.msra.mxu0 %v1176
  %1639 = vmatmul.bf16.gmra.mxu0 %v299
  %v1640 = vpop.f32.mrf.mxu0
  %v1641 = vadd.f32 %v1628, %v1640
  %v1642 = vpop.f32.mrf.mxu0
  %1643 = vdwg.mxu0
  %1644 = vmatpush.bf16.msra.mxu0 %v1236
  %1645 = vmatpush.bf16.msra.mxu0 %v1232
  %1646 = vmatpush.bf16.msra.mxu0 %v1228
  %1647 = vmatpush.bf16.msra.mxu0 %v1224
  %1648 = vmatpush.bf16.msra.mxu0 %v1220
  %1649 = vmatpush.bf16.msra.mxu0 %v1216
  %1650 = vmatpush.bf16.msra.mxu0 %v1212
  %1651 = vmatpush.bf16.msra.mxu0 %v1208
  %1652 = vmatmul.bf16.gmra.mxu0 %v300
  %v1653 = vpop.f32.mrf.mxu0
  %v1654 = vadd.f32 %v1641, %v1653
  %v1655 = vpop.f32.mrf.mxu0
  %1656 = vdwg.mxu0
  %1657 = vmatpush.bf16.msra.mxu0 %v1268
  %1658 = vmatpush.bf16.msra.mxu0 %v1264
  %1659 = vmatpush.bf16.msra.mxu0 %v1260
  %1660 = vmatpush.bf16.msra.mxu0 %v1256
  %1661 = vmatpush.bf16.msra.mxu0 %v1252
  %1662 = vmatpush.bf16.msra.mxu0 %v1248
  %1663 = vmatpush.bf16.msra.mxu0 %v1244
  %1664 = vmatpush.bf16.msra.mxu0 %v1240
  %1665 = vmatmul.bf16.gmra.mxu0 %v301
  %v1666 = vpop.f32.mrf.mxu0
  %v1667 = vadd.f32 %v1654, %v1666
  %v1668 = vpop.f32.mrf.mxu0
  %1669 = vdwg.mxu0
  %1670 = vmatpush.bf16.msra.mxu0 %v1300
  %1671 = vmatpush.bf16.msra.mxu0 %v1296
  %1672 = vmatpush.bf16.msra.mxu0 %v1292
  %1673 = vmatpush.bf16.msra.mxu0 %v1288
  %1674 = vmatpush.bf16.msra.mxu0 %v1284
  %1675 = vmatpush.bf16.msra.mxu0 %v1280
  %1676 = vmatpush.bf16.msra.mxu0 %v1276
  %1677 = vmatpush.bf16.msra.mxu0 %v1272
  %1678 = vmatmul.bf16.gmra.mxu0 %v302
  %v1679 = vpop.f32.mrf.mxu0
  %v1680 = vadd.f32 %v1667, %v1679
  %v1681 = vpop.f32.mrf.mxu0
  %1682 = vdwg.mxu0
  %1683 = vmatpush.bf16.msra.mxu0 %v1332
  %1684 = vmatpush.bf16.msra.mxu0 %v1328
  %1685 = vmatpush.bf16.msra.mxu0 %v1324
  %1686 = vmatpush.bf16.msra.mxu0 %v1320
  %1687 = vmatpush.bf16.msra.mxu0 %v1316
  %1688 = vmatpush.bf16.msra.mxu0 %v1312
  %1689 = vmatpush.bf16.msra.mxu0 %v1308
  %1690 = vmatpush.bf16.msra.mxu0 %v1304
  %1691 = vmatmul.bf16.gmra.mxu0 %v303
  %v1692 = vpop.f32.mrf.mxu0
  %v1693 = vadd.f32 %v1680, %v1692
  %v1694 = vpop.f32.mrf.mxu0
  %1695 = vdwg.mxu0
  %1696 = vmatpush.bf16.msra.mxu0 %v1109
  %1697 = vmatpush.bf16.msra.mxu0 %v1105
  %1698 = vmatpush.bf16.msra.mxu0 %v1101
  %1699 = vmatpush.bf16.msra.mxu0 %v1097
  %1700 = vmatpush.bf16.msra.mxu0 %v1093
  %1701 = vmatpush.bf16.msra.mxu0 %v1089
  %1702 = vmatpush.bf16.msra.mxu0 %v1085
  %1703 = vmatpush.bf16.msra.mxu0 %v1081
  %1704 = vmatmul.bf16.gmra.mxu0 %v296
  %v1705 = vpop.f32.mrf.mxu0
  %v1706 = vadd.f32 %v277, %v1705
  %v1707 = vpop.f32.mrf.mxu0
  %1708 = vdwg.mxu0
  %1709 = vmatpush.bf16.msra.mxu0 %v1141
  %1710 = vmatpush.bf16.msra.mxu0 %v1137
  %1711 = vmatpush.bf16.msra.mxu0 %v1133
  %1712 = vmatpush.bf16.msra.mxu0 %v1129
  %1713 = vmatpush.bf16.msra.mxu0 %v1125
  %1714 = vmatpush.bf16.msra.mxu0 %v1121
  %1715 = vmatpush.bf16.msra.mxu0 %v1117
  %1716 = vmatpush.bf16.msra.mxu0 %v1113
  %1717 = vmatmul.bf16.gmra.mxu0 %v297
  %v1718 = vpop.f32.mrf.mxu0
  %v1719 = vadd.f32 %v1706, %v1718
  %v1720 = vpop.f32.mrf.mxu0
  %1721 = vdwg.mxu0
  %1722 = vmatpush.bf16.msra.mxu0 %v1173
  %1723 = vmatpush.bf16.msra.mxu0 %v1169
  %1724 = vmatpush.bf16.msra.mxu0 %v1165
  %1725 = vmatpush.bf16.msra.mxu0 %v1161
  %1726 = vmatpush.bf16.msra.mxu0 %v1157
  %1727 = vmatpush.bf16.msra.mxu0 %v1153
  %1728 = vmatpush.bf16.msra.mxu0 %v1149
  %1729 = vmatpush.bf16.msra.mxu0 %v1145
  %1730 = vmatmul.bf16.gmra.mxu0 %v298
  %v1731 = vpop.f32.mrf.mxu0
  %v1732 = vadd.f32 %v1719, %v1731
  %v1733 = vpop.f32.mrf.mxu0
  %1734 = vdwg.mxu0
  %1735 = vmatpush.bf16.msra.mxu0 %v1205
  %1736 = vmatpush.bf16.msra.mxu0 %v1201
  %1737 = vmatpush.bf16.msra.mxu0 %v1197
  %1738 = vmatpush.bf16.msra.mxu0 %v1193
  %1739 = vmatpush.bf16.msra.mxu0 %v1189
  %1740 = vmatpush.bf16.msra.mxu0 %v1185
  %1741 = vmatpush.bf16.msra.mxu0 %v1181
  %1742 = vmatpush.bf16.msra.mxu0 %v1177
  %1743 = vmatmul.bf16.gmra.mxu0 %v299
  %v1744 = vpop.f32.mrf.mxu0
  %v1745 = vadd.f32 %v1732, %v1744
  %v1746 = vpop.f32.mrf.mxu0
  %1747 = vdwg.mxu0
  %1748 = vmatpush.bf16.msra.mxu0 %v1237
  %1749 = vmatpush.bf16.msra.mxu0 %v1233
  %1750 = vmatpush.bf16.msra.mxu0 %v1229
  %1751 = vmatpush.bf16.msra.mxu0 %v1225
  %1752 = vmatpush.bf16.msra.mxu0 %v1221
  %1753 = vmatpush.bf16.msra.mxu0 %v1217
  %1754 = vmatpush.bf16.msra.mxu0 %v1213
  %1755 = vmatpush.bf16.msra.mxu0 %v1209
  %1756 = vmatmul.bf16.gmra.mxu0 %v300
  %v1757 = vpop.f32.mrf.mxu0
  %v1758 = vadd.f32 %v1745, %v1757
  %v1759 = vpop.f32.mrf.mxu0
  %1760 = vdwg.mxu0
  %1761 = vmatpush.bf16.msra.mxu0 %v1269
  %1762 = vmatpush.bf16.msra.mxu0 %v1265
  %1763 = vmatpush.bf16.msra.mxu0 %v1261
  %1764 = vmatpush.bf16.msra.mxu0 %v1257
  %1765 = vmatpush.bf16.msra.mxu0 %v1253
  %1766 = vmatpush.bf16.msra.mxu0 %v1249
  %1767 = vmatpush.bf16.msra.mxu0 %v1245
  %1768 = vmatpush.bf16.msra.mxu0 %v1241
  %1769 = vmatmul.bf16.gmra.mxu0 %v301
  %v1770 = vpop.f32.mrf.mxu0
  %v1771 = vadd.f32 %v1758, %v1770
  %v1772 = vpop.f32.mrf.mxu0
  %1773 = vdwg.mxu0
  %1774 = vmatpush.bf16.msra.mxu0 %v1301
  %1775 = vmatpush.bf16.msra.mxu0 %v1297
  %1776 = vmatpush.bf16.msra.mxu0 %v1293
  %1777 = vmatpush.bf16.msra.mxu0 %v1289
  %1778 = vmatpush.bf16.msra.mxu0 %v1285
  %1779 = vmatpush.bf16.msra.mxu0 %v1281
  %1780 = vmatpush.bf16.msra.mxu0 %v1277
  %1781 = vmatpush.bf16.msra.mxu0 %v1273
  %1782 = vmatmul.bf16.gmra.mxu0 %v302
  %v1783 = vpop.f32.mrf.mxu0
  %v1784 = vadd.f32 %v1771, %v1783
  %v1785 = vpop.f32.mrf.mxu0
  %1786 = vdwg.mxu0
  %1787 = vmatpush.bf16.msra.mxu0 %v1333
  %1788 = vmatpush.bf16.msra.mxu0 %v1329
  %1789 = vmatpush.bf16.msra.mxu0 %v1325
  %1790 = vmatpush.bf16.msra.mxu0 %v1321
  %1791 = vmatpush.bf16.msra.mxu0 %v1317
  %1792 = vmatpush.bf16.msra.mxu0 %v1313
  %1793 = vmatpush.bf16.msra.mxu0 %v1309
  %1794 = vmatpush.bf16.msra.mxu0 %v1305
  %1795 = vmatmul.bf16.gmra.mxu0 %v303
  %v1796 = vpop.f32.mrf.mxu0
  %v1797 = vadd.f32 %v1784, %v1796
  %v1798 = vpop.f32.mrf.mxu0
  %1799 = vdwg.mxu0
  %1800 = vmatpush.bf16.msra.mxu0 %v1110
  %1801 = vmatpush.bf16.msra.mxu0 %v1106
  %1802 = vmatpush.bf16.msra.mxu0 %v1102
  %1803 = vmatpush.bf16.msra.mxu0 %v1098
  %1804 = vmatpush.bf16.msra.mxu0 %v1094
  %1805 = vmatpush.bf16.msra.mxu0 %v1090
  %1806 = vmatpush.bf16.msra.mxu0 %v1086
  %1807 = vmatpush.bf16.msra.mxu0 %v1082
  %1808 = vmatmul.bf16.gmra.mxu0 %v296
  %v1809 = vpop.f32.mrf.mxu0
  %v1810 = vadd.f32 %v278, %v1809
  %v1811 = vpop.f32.mrf.mxu0
  %1812 = vdwg.mxu0
  %1813 = vmatpush.bf16.msra.mxu0 %v1142
  %1814 = vmatpush.bf16.msra.mxu0 %v1138
  %1815 = vmatpush.bf16.msra.mxu0 %v1134
  %1816 = vmatpush.bf16.msra.mxu0 %v1130
  %1817 = vmatpush.bf16.msra.mxu0 %v1126
  %1818 = vmatpush.bf16.msra.mxu0 %v1122
  %1819 = vmatpush.bf16.msra.mxu0 %v1118
  %1820 = vmatpush.bf16.msra.mxu0 %v1114
  %1821 = vmatmul.bf16.gmra.mxu0 %v297
  %v1822 = vpop.f32.mrf.mxu0
  %v1823 = vadd.f32 %v1810, %v1822
  %v1824 = vpop.f32.mrf.mxu0
  %1825 = vdwg.mxu0
  %1826 = vmatpush.bf16.msra.mxu0 %v1174
  %1827 = vmatpush.bf16.msra.mxu0 %v1170
  %1828 = vmatpush.bf16.msra.mxu0 %v1166
  %1829 = vmatpush.bf16.msra.mxu0 %v1162
  %1830 = vmatpush.bf16.msra.mxu0 %v1158
  %1831 = vmatpush.bf16.msra.mxu0 %v1154
  %1832 = vmatpush.bf16.msra.mxu0 %v1150
  %1833 = vmatpush.bf16.msra.mxu0 %v1146
  %1834 = vmatmul.bf16.gmra.mxu0 %v298
  %v1835 = vpop.f32.mrf.mxu0
  %v1836 = vadd.f32 %v1823, %v1835
  %v1837 = vpop.f32.mrf.mxu0
  %1838 = vdwg.mxu0
  %1839 = vmatpush.bf16.msra.mxu0 %v1206
  %1840 = vmatpush.bf16.msra.mxu0 %v1202
  %1841 = vmatpush.bf16.msra.mxu0 %v1198
  %1842 = vmatpush.bf16.msra.mxu0 %v1194
  %1843 = vmatpush.bf16.msra.mxu0 %v1190
  %1844 = vmatpush.bf16.msra.mxu0 %v1186
  %1845 = vmatpush.bf16.msra.mxu0 %v1182
  %1846 = vmatpush.bf16.msra.mxu0 %v1178
  %1847 = vmatmul.bf16.gmra.mxu0 %v299
  %v1848 = vpop.f32.mrf.mxu0
  %v1849 = vadd.f32 %v1836, %v1848
  %v1850 = vpop.f32.mrf.mxu0
  %1851 = vdwg.mxu0
  %1852 = vmatpush.bf16.msra.mxu0 %v1238
  %1853 = vmatpush.bf16.msra.mxu0 %v1234
  %1854 = vmatpush.bf16.msra.mxu0 %v1230
  %1855 = vmatpush.bf16.msra.mxu0 %v1226
  %1856 = vmatpush.bf16.msra.mxu0 %v1222
  %1857 = vmatpush.bf16.msra.mxu0 %v1218
  %1858 = vmatpush.bf16.msra.mxu0 %v1214
  %1859 = vmatpush.bf16.msra.mxu0 %v1210
  %1860 = vmatmul.bf16.gmra.mxu0 %v300
  %v1861 = vpop.f32.mrf.mxu0
  %v1862 = vadd.f32 %v1849, %v1861
  %v1863 = vpop.f32.mrf.mxu0
  %1864 = vdwg.mxu0
  %1865 = vmatpush.bf16.msra.mxu0 %v1270
  %1866 = vmatpush.bf16.msra.mxu0 %v1266
  %1867 = vmatpush.bf16.msra.mxu0 %v1262
  %1868 = vmatpush.bf16.msra.mxu0 %v1258
  %1869 = vmatpush.bf16.msra.mxu0 %v1254
  %1870 = vmatpush.bf16.msra.mxu0 %v1250
  %1871 = vmatpush.bf16.msra.mxu0 %v1246
  %1872 = vmatpush.bf16.msra.mxu0 %v1242
  %1873 = vmatmul.bf16.gmra.mxu0 %v301
  %v1874 = vpop.f32.mrf.mxu0
  %v1875 = vadd.f32 %v1862, %v1874
  %v1876 = vpop.f32.mrf.mxu0
  %1877 = vdwg.mxu0
  %1878 = vmatpush.bf16.msra.mxu0 %v1302
  %1879 = vmatpush.bf16.msra.mxu0 %v1298
  %1880 = vmatpush.bf16.msra.mxu0 %v1294
  %1881 = vmatpush.bf16.msra.mxu0 %v1290
  %1882 = vmatpush.bf16.msra.mxu0 %v1286
  %1883 = vmatpush.bf16.msra.mxu0 %v1282
  %1884 = vmatpush.bf16.msra.mxu0 %v1278
  %1885 = vmatpush.bf16.msra.mxu0 %v1274
  %1886 = vmatmul.bf16.gmra.mxu0 %v302
  %v1887 = vpop.f32.mrf.mxu0
  %v1888 = vadd.f32 %v1875, %v1887
  %v1889 = vpop.f32.mrf.mxu0
  %1890 = vdwg.mxu0
  %1891 = vmatpush.bf16.msra.mxu0 %v1334
  %1892 = vmatpush.bf16.msra.mxu0 %v1330
  %1893 = vmatpush.bf16.msra.mxu0 %v1326
  %1894 = vmatpush.bf16.msra.mxu0 %v1322
  %1895 = vmatpush.bf16.msra.mxu0 %v1318
  %1896 = vmatpush.bf16.msra.mxu0 %v1314
  %1897 = vmatpush.bf16.msra.mxu0 %v1310
  %1898 = vmatpush.bf16.msra.mxu0 %v1306
  %1899 = vmatmul.bf16.gmra.mxu0 %v303
  %v1900 = vpop.f32.mrf.mxu0
  %v1901 = vadd.f32 %v1888, %v1900
  %v1902 = vpop.f32.mrf.mxu0
  %1903 = vdwg.mxu0
  %1904 = vmatpush.bf16.msra.mxu0 %v1111
  %1905 = vmatpush.bf16.msra.mxu0 %v1107
  %1906 = vmatpush.bf16.msra.mxu0 %v1103
  %1907 = vmatpush.bf16.msra.mxu0 %v1099
  %1908 = vmatpush.bf16.msra.mxu0 %v1095
  %1909 = vmatpush.bf16.msra.mxu0 %v1091
  %1910 = vmatpush.bf16.msra.mxu0 %v1087
  %1911 = vmatpush.bf16.msra.mxu0 %v1083
  %1912 = vmatmul.bf16.gmra.mxu0 %v296
  %v1913 = vpop.f32.mrf.mxu0
  %v1914 = vadd.f32 %v279, %v1913
  %v1915 = vpop.f32.mrf.mxu0
  %1916 = vdwg.mxu0
  %1917 = vmatpush.bf16.msra.mxu0 %v1143
  %1918 = vmatpush.bf16.msra.mxu0 %v1139
  %1919 = vmatpush.bf16.msra.mxu0 %v1135
  %1920 = vmatpush.bf16.msra.mxu0 %v1131
  %1921 = vmatpush.bf16.msra.mxu0 %v1127
  %1922 = vmatpush.bf16.msra.mxu0 %v1123
  %1923 = vmatpush.bf16.msra.mxu0 %v1119
  %1924 = vmatpush.bf16.msra.mxu0 %v1115
  %1925 = vmatmul.bf16.gmra.mxu0 %v297
  %v1926 = vpop.f32.mrf.mxu0
  %v1927 = vadd.f32 %v1914, %v1926
  %v1928 = vpop.f32.mrf.mxu0
  %1929 = vdwg.mxu0
  %1930 = vmatpush.bf16.msra.mxu0 %v1175
  %1931 = vmatpush.bf16.msra.mxu0 %v1171
  %1932 = vmatpush.bf16.msra.mxu0 %v1167
  %1933 = vmatpush.bf16.msra.mxu0 %v1163
  %1934 = vmatpush.bf16.msra.mxu0 %v1159
  %1935 = vmatpush.bf16.msra.mxu0 %v1155
  %1936 = vmatpush.bf16.msra.mxu0 %v1151
  %1937 = vmatpush.bf16.msra.mxu0 %v1147
  %1938 = vmatmul.bf16.gmra.mxu0 %v298
  %v1939 = vpop.f32.mrf.mxu0
  %v1940 = vadd.f32 %v1927, %v1939
  %v1941 = vpop.f32.mrf.mxu0
  %1942 = vdwg.mxu0
  %1943 = vmatpush.bf16.msra.mxu0 %v1207
  %1944 = vmatpush.bf16.msra.mxu0 %v1203
  %1945 = vmatpush.bf16.msra.mxu0 %v1199
  %1946 = vmatpush.bf16.msra.mxu0 %v1195
  %1947 = vmatpush.bf16.msra.mxu0 %v1191
  %1948 = vmatpush.bf16.msra.mxu0 %v1187
  %1949 = vmatpush.bf16.msra.mxu0 %v1183
  %1950 = vmatpush.bf16.msra.mxu0 %v1179
  %1951 = vmatmul.bf16.gmra.mxu0 %v299
  %v1952 = vpop.f32.mrf.mxu0
  %v1953 = vadd.f32 %v1940, %v1952
  %v1954 = vpop.f32.mrf.mxu0
  %1955 = vdwg.mxu0
  %1956 = vmatpush.bf16.msra.mxu0 %v1239
  %1957 = vmatpush.bf16.msra.mxu0 %v1235
  %1958 = vmatpush.bf16.msra.mxu0 %v1231
  %1959 = vmatpush.bf16.msra.mxu0 %v1227
  %1960 = vmatpush.bf16.msra.mxu0 %v1223
  %1961 = vmatpush.bf16.msra.mxu0 %v1219
  %1962 = vmatpush.bf16.msra.mxu0 %v1215
  %1963 = vmatpush.bf16.msra.mxu0 %v1211
  %1964 = vmatmul.bf16.gmra.mxu0 %v300
  %v1965 = vpop.f32.mrf.mxu0
  %v1966 = vadd.f32 %v1953, %v1965
  %v1967 = vpop.f32.mrf.mxu0
  %1968 = vdwg.mxu0
  %1969 = vmatpush.bf16.msra.mxu0 %v1271
  %1970 = vmatpush.bf16.msra.mxu0 %v1267
  %1971 = vmatpush.bf16.msra.mxu0 %v1263
  %1972 = vmatpush.bf16.msra.mxu0 %v1259
  %1973 = vmatpush.bf16.msra.mxu0 %v1255
  %1974 = vmatpush.bf16.msra.mxu0 %v1251
  %1975 = vmatpush.bf16.msra.mxu0 %v1247
  %1976 = vmatpush.bf16.msra.mxu0 %v1243
  %1977 = vmatmul.bf16.gmra.mxu0 %v301
  %v1978 = vpop.f32.mrf.mxu0
  %v1979 = vadd.f32 %v1966, %v1978
  %v1980 = vpop.f32.mrf.mxu0
  %1981 = vdwg.mxu0
  %1982 = vmatpush.bf16.msra.mxu0 %v1303
  %1983 = vmatpush.bf16.msra.mxu0 %v1299
  %1984 = vmatpush.bf16.msra.mxu0 %v1295
  %1985 = vmatpush.bf16.msra.mxu0 %v1291
  %1986 = vmatpush.bf16.msra.mxu0 %v1287
  %1987 = vmatpush.bf16.msra.mxu0 %v1283
  %1988 = vmatpush.bf16.msra.mxu0 %v1279
  %1989 = vmatpush.bf16.msra.mxu0 %v1275
  %1990 = vmatmul.bf16.gmra.mxu0 %v302
  %v1991 = vpop.f32.mrf.mxu0
  %v1992 = vadd.f32 %v1979, %v1991
  %v1993 = vpop.f32.mrf.mxu0
  %1994 = vdwg.mxu0
  %1995 = vmatpush.bf16.msra.mxu0 %v1335
  %1996 = vmatpush.bf16.msra.mxu0 %v1331
  %1997 = vmatpush.bf16.msra.mxu0 %v1327
  %1998 = vmatpush.bf16.msra.mxu0 %v1323
  %1999 = vmatpush.bf16.msra.mxu0 %v1319
  %2000 = vmatpush.bf16.msra.mxu0 %v1315
  %2001 = vmatpush.bf16.msra.mxu0 %v1311
  %2002 = vmatpush.bf16.msra.mxu0 %v1307
  %2003 = vmatmul.bf16.gmra.mxu0 %v303
  %v2004 = vpop.f32.mrf.mxu0
  %v2005 = vadd.f32 %v1992, %v2004
  %v2006 = vpop.f32.mrf.mxu0
  %2007 = vdwg.mxu0
  %vm2008 = vcmp.ge.f32.partialorder %v1693, 0.0
  %vm2009 = vcmp.ge.f32.partialorder %v1797, 0.0
  %vm2010 = vcmp.ge.f32.partialorder %v1901, 0.0
  %vm2011 = vcmp.ge.f32.partialorder %v2005, 0.0
  %v2012 = vmul.f32 %v1693, 0.01
  %v2013 = vmul.f32 %v1797, 0.01
  %v2014 = vmul.f32 %v1901, 0.01
  %v2015 = vmul.f32 %v2005, 0.01
  %v2016 = vsel %vm2008, %v1693, %v2012
  %v2017 = vsel %vm2009, %v1797, %v2013
  %v2018 = vsel %vm2010, %v1901, %v2014
  %v2019 = vsel %vm2011, %v2005, %v2015
  %2020 = vst [vmem:[%s3] sm:$0xff] %v2016
  %2021 = vst [vmem:[%s3 + $0x8] sm:$0xff] %v2017
  %2022 = vst [vmem:[%s3 + $0x10] sm:$0xff] %v2018
  %2023 = vst [vmem:[%s3 + $0x18] sm:$0xff] %v2019
  // Predicated region
  $region14: #{vae_forward.16} parent=0 // pred_check
    _
  $region15: #{vae_forward.16} parent=0 // pred_check_branch
    %2025 = sbr.rel (0) target = $region17
  $region16: #{vae_forward.16} parent=0 // pred_region
    _
  $region17: #{vae_forward.16} parent=0 // pred_fallthru
    _
  // Predicated region
  $region18: #{vae_forward.16} parent=0 // pred_check
    _
  $region19: #{vae_forward.16} parent=0 // pred_check_branch
    %2027 = sbr.rel (0) target = $region21
  $region20: #{vae_forward.16} parent=0 // pred_region
    _
  $region21: #{vae_forward.16} parent=0 // pred_fallthru
    _

// kernel: tile.83
$region0: #{tile.83}
  #allocation0 [shape = 's32[1]{0}', space=sflag, size = 0x4, scoped, tag = 'scoped memory for tile.83']
  %s0 = inlined_call_operand.vmem [shape: f32[64], index: 0, kind: input, shape index: {}]
  %s1 = inlined_call_operand.vmem [shape: f32[4,64], index: 1, kind: output, shape index: {}]
  // Predicated region
  $region2: #{tile.83} parent=0 // pred_check
    _
  $region3: #{tile.83} parent=0 // pred_check_branch
    %3 = sbr.rel (0) target = $region5
  $region4: #{tile.83} parent=0 // pred_region
    _
  $region5: #{tile.83} parent=0 // pred_fallthru
    _
  %v4 = vld [vmem:[%s0] ss:$0 sm:$0xff]
  %5 = vst [vmem:[%s1] sm:$0xf] %v4

// kernel: mul.84
$region0: #{mul.84}
  %s0 = inlined_call_operand.vmem [shape: f32[4,64], index: 0, kind: input, shape index: {}]
  %s1 = inlined_call_operand.vmem [shape: f32[256], index: 1, kind: output, shape index: {}]
  $region1: #{mul.84} parent=0
    #allocation0 [shape = 'u8[4096]{0}', space=vmem, size = 0x1000, scoped, tag = 'scoped mem for output reshape']
    #allocation1 [shape = 'u8[4096]{0}', space=vmem, size = 0x1000, scoped, tag = 'scoped mem for input reshape']
    %s3 = ssub.s32 16, 1
    %v4 = vld [vmem:[%s0] sm:%s3]
    %5 = vst [vmem:[#allocation1] sm:%s3] %v4
    %s6 = smov 3
    %v7 = vld [vmem:[#allocation1] ss:$2 sm:%s6]
    %vm8 = vcmask 523264
    %9 = vst.msk [vmem:[#allocation0] sm:$0x3] %vm8, %v7
    %s10 = scalar_lea.vmem [#allocation1], 1
    %s11 = smov 3
    %v12 = vld [vmem:[%s10] ss:$2 sm:%s11]
    %13 = vrot.lane.b32.xlu0 %v12, 64
    %v14 = vpop.permute.xlu0 %13
    %vm15 = vcmask 1048064
    %16 = vst.msk [vmem:[#allocation0] sm:$0x3] %vm15, %v14
    %s18 = ssub.s32 4, 1
    %v19 = vld [vmem:[#allocation0] sm:%s18]
    %s21 = ssub.s32 4, 1
    %22 = vst [vmem:[%s1] sm:%s21] %v19

// kernel: vae_forward.17
$region0: #{vae_forward.17}
  #allocation0 [shape = 'u32[]', space=smem, size = 0x4, offset = 0x4, fixed_abs, tag = 'smem constant byte address 0x4 - core index']
  #allocation1 [shape = 'u32[72,128]{1,0:T(1,128)}', space=vmem, size = 0x9000, scoped, tag = 'internal scratch']
  %s0 = inlined_call_operand.vmem [shape: bf16[32,512], index: 0, kind: input, shape index: {}]
  %s1 = inlined_call_operand.vmem [shape: bf16[512,256], index: 1, kind: input, shape index: {}]
  %s2 = inlined_call_operand.vmem [shape: f32[1,256], index: 2, kind: input, shape index: {}]
  %s3 = inlined_call_operand.vmem [shape: f32[32,256], index: 3, kind: output, shape index: {}]
  %s4 = sld [smem:[#allocation0]]
  $region22: #{vae_forward.17} parent=0
    _
  %s6 = ssub.s32 1, %s4
  %s7 = scalar_select 0, %s6, %s4
  // Predicated region
  $region2: #{vae_forward.17} parent=0 // pred_check
    _
  $region3: #{vae_forward.17} parent=0 // pred_check_branch
    %9 = sbr.rel (0) target = $region5
  $region4: #{vae_forward.17} parent=0 // pred_region
    _
  $region5: #{vae_forward.17} parent=0 // pred_fallthru
    _
  // Predicated region
  $region6: #{vae_forward.17} parent=0 // pred_check
    _
  $region7: #{vae_forward.17} parent=0 // pred_check_branch
    %11 = sbr.rel (0) target = $region9
  $region8: #{vae_forward.17} parent=0 // pred_region
    _
  $region9: #{vae_forward.17} parent=0 // pred_fallthru
    _
  // Predicated region
  $region10: #{vae_forward.17} parent=0 // pred_check
    _
  $region11: #{vae_forward.17} parent=0 // pred_check_branch
    %13 = sbr.rel (0) target = $region13
  $region12: #{vae_forward.17} parent=0 // pred_region
    _
  $region13: #{vae_forward.17} parent=0 // pred_fallthru
    _
  %v14 = vld [vmem:[%s0] sm:$0xff]
  %v15 = vld [vmem:[%s0 + $0x8] sm:$0xff]
  %v16 = vld [vmem:[%s0 + $0x10] sm:$0xff]
  %v17 = vld [vmem:[%s0 + $0x18] sm:$0xff]
  %v18 = vld [vmem:[%s0 + $0x20] sm:$0xff]
  %v19 = vld [vmem:[%s0 + $0x28] sm:$0xff]
  %v20 = vld [vmem:[%s0 + $0x30] sm:$0xff]
  %v21 = vld [vmem:[%s0 + $0x38] sm:$0xff]
  %v22 = vld [vmem:[%s1] sm:$0xff]
  %v23 = vld [vmem:[%s1 + $0x8] sm:$0xff]
  %v24 = vld [vmem:[%s1 + $0x10] sm:$0xff]
  %v25 = vld [vmem:[%s1 + $0x18] sm:$0xff]
  %v26 = vld [vmem:[%s1 + $0x20] sm:$0xff]
  %v27 = vld [vmem:[%s1 + $0x28] sm:$0xff]
  %v28 = vld [vmem:[%s1 + $0x30] sm:$0xff]
  %v29 = vld [vmem:[%s1 + $0x38] sm:$0xff]
  %v30 = vld [vmem:[%s1 + $0x40] sm:$0xff]
  %v31 = vld [vmem:[%s1 + $0x48] sm:$0xff]
  %v32 = vld [vmem:[%s1 + $0x50] sm:$0xff]
  %v33 = vld [vmem:[%s1 + $0x58] sm:$0xff]
  %v34 = vld [vmem:[%s1 + $0x60] sm:$0xff]
  %v35 = vld [vmem:[%s1 + $0x68] sm:$0xff]
  %v36 = vld [vmem:[%s1 + $0x70] sm:$0xff]
  %v37 = vld [vmem:[%s1 + $0x78] sm:$0xff]
  %v38 = vld [vmem:[%s1 + $0x80] sm:$0xff]
  %v39 = vld [vmem:[%s1 + $0x88] sm:$0xff]
  %v40 = vld [vmem:[%s1 + $0x90] sm:$0xff]
  %v41 = vld [vmem:[%s1 + $0x98] sm:$0xff]
  %v42 = vld [vmem:[%s1 + $0xa0] sm:$0xff]
  %v43 = vld [vmem:[%s1 + $0xa8] sm:$0xff]
  %v44 = vld [vmem:[%s1 + $0xb0] sm:$0xff]
  %v45 = vld [vmem:[%s1 + $0xb8] sm:$0xff]
  %v46 = vld [vmem:[%s1 + $0xc0] sm:$0xff]
  %v47 = vld [vmem:[%s1 + $0xc8] sm:$0xff]
  %v48 = vld [vmem:[%s1 + $0xd0] sm:$0xff]
  %v49 = vld [vmem:[%s1 + $0xd8] sm:$0xff]
  %v50 = vld [vmem:[%s1 + $0xe0] sm:$0xff]
  %v51 = vld [vmem:[%s1 + $0xe8] sm:$0xff]
  %v52 = vld [vmem:[%s1 + $0xf0] sm:$0xff]
  %v53 = vld [vmem:[%s1 + $0xf8] sm:$0xff]
  %v54 = vld [vmem:[%s1 + $0x100] sm:$0xff]
  %v55 = vld [vmem:[%s1 + $0x108] sm:$0xff]
  %v56 = vld [vmem:[%s1 + $0x110] sm:$0xff]
  %v57 = vld [vmem:[%s1 + $0x118] sm:$0xff]
  %v58 = vld [vmem:[%s1 + $0x120] sm:$0xff]
  %v59 = vld [vmem:[%s1 + $0x128] sm:$0xff]
  %v60 = vld [vmem:[%s1 + $0x130] sm:$0xff]
  %v61 = vld [vmem:[%s1 + $0x138] sm:$0xff]
  %v62 = vld [vmem:[%s1 + $0x140] sm:$0xff]
  %v63 = vld [vmem:[%s1 + $0x148] sm:$0xff]
  %v64 = vld [vmem:[%s1 + $0x150] sm:$0xff]
  %v65 = vld [vmem:[%s1 + $0x158] sm:$0xff]
  %v66 = vld [vmem:[%s1 + $0x160] sm:$0xff]
  %v67 = vld [vmem:[%s1 + $0x168] sm:$0xff]
  %v68 = vld [vmem:[%s1 + $0x170] sm:$0xff]
  %v69 = vld [vmem:[%s1 + $0x178] sm:$0xff]
  %v70 = vld [vmem:[%s1 + $0x180] sm:$0xff]
  %v71 = vld [vmem:[%s1 + $0x188] sm:$0xff]
  %v72 = vld [vmem:[%s1 + $0x190] sm:$0xff]
  %v73 = vld [vmem:[%s1 + $0x198] sm:$0xff]
  %v74 = vld [vmem:[%s1 + $0x1a0] sm:$0xff]
  %v75 = vld [vmem:[%s1 + $0x1a8] sm:$0xff]
  %v76 = vld [vmem:[%s1 + $0x1b0] sm:$0xff]
  %v77 = vld [vmem:[%s1 + $0x1b8] sm:$0xff]
  %v78 = vld [vmem:[%s1 + $0x1c0] sm:$0xff]
  %v79 = vld [vmem:[%s1 + $0x1c8] sm:$0xff]
  %v80 = vld [vmem:[%s1 + $0x1d0] sm:$0xff]
  %v81 = vld [vmem:[%s1 + $0x1d8] sm:$0xff]
  %v82 = vld [vmem:[%s1 + $0x1e0] sm:$0xff]
  %v83 = vld [vmem:[%s1 + $0x1e8] sm:$0xff]
  %v84 = vld [vmem:[%s1 + $0x1f0] sm:$0xff]
  %v85 = vld [vmem:[%s1 + $0x1f8] sm:$0xff]
  %v86 = vld [vmem:[%s2] sm:$0x3]
  %v88 = vperm.slane %v86, 0
  %v89 = vperm.slane %v86, 1
  %v100 = vunpack.c.l.b16 %v14
  %v101 = vunpack.c.h.b16 %v14
  %v102 = vunpack.c.l.b16 %v15
  %v103 = vunpack.c.h.b16 %v15
  %v104 = vunpack.c.l.b16 %v16
  %v105 = vunpack.c.h.b16 %v16
  %v106 = vunpack.c.l.b16 %v17
  %v107 = vunpack.c.h.b16 %v17
  %v108 = vunpack.c.l.b16 %v18
  %v109 = vunpack.c.h.b16 %v18
  %v110 = vunpack.c.l.b16 %v19
  %v111 = vunpack.c.h.b16 %v19
  %v112 = vunpack.c.l.b16 %v20
  %v113 = vunpack.c.h.b16 %v20
  %v114 = vunpack.c.l.b16 %v21
  %v115 = vunpack.c.h.b16 %v21
  %v116 = vpack.c.b16 %v104, %v100
  %v117 = vpack.c.b16 %v105, %v101
  %v118 = vpack.c.b16 %v106, %v102
  %v119 = vpack.c.b16 %v107, %v103
  %v120 = vpack.c.b16 %v112, %v108
  %v121 = vpack.c.b16 %v113, %v109
  %v122 = vpack.c.b16 %v114, %v110
  %v123 = vpack.c.b16 %v115, %v111
  %v196 = vunpack.c.l.b16 %v22
  %v197 = vunpack.c.h.b16 %v22
  %v198 = vunpack.c.l.b16 %v23
  %v199 = vunpack.c.h.b16 %v23
  %v200 = vunpack.c.l.b16 %v24
  %v201 = vunpack.c.h.b16 %v24
  %v202 = vunpack.c.l.b16 %v25
  %v203 = vunpack.c.h.b16 %v25
  %v204 = vunpack.c.l.b16 %v26
  %v205 = vunpack.c.h.b16 %v26
  %v206 = vunpack.c.l.b16 %v27
  %v207 = vunpack.c.h.b16 %v27
  %v208 = vunpack.c.l.b16 %v28
  %v209 = vunpack.c.h.b16 %v28
  %v210 = vunpack.c.l.b16 %v29
  %v211 = vunpack.c.h.b16 %v29
  %v212 = vunpack.c.l.b16 %v30
  %v213 = vunpack.c.h.b16 %v30
  %v214 = vunpack.c.l.b16 %v31
  %v215 = vunpack.c.h.b16 %v31
  %v216 = vunpack.c.l.b16 %v32
  %v217 = vunpack.c.h.b16 %v32
  %v218 = vunpack.c.l.b16 %v33
  %v219 = vunpack.c.h.b16 %v33
  %v220 = vunpack.c.l.b16 %v34
  %v221 = vunpack.c.h.b16 %v34
  %v222 = vunpack.c.l.b16 %v35
  %v223 = vunpack.c.h.b16 %v35
  %v224 = vunpack.c.l.b16 %v36
  %v225 = vunpack.c.h.b16 %v36
  %v226 = vunpack.c.l.b16 %v37
  %v227 = vunpack.c.h.b16 %v37
  %v228 = vunpack.c.l.b16 %v38
  %v229 = vunpack.c.h.b16 %v38
  %v230 = vunpack.c.l.b16 %v39
  %v231 = vunpack.c.h.b16 %v39
  %v232 = vunpack.c.l.b16 %v40
  %v233 = vunpack.c.h.b16 %v40
  %v234 = vunpack.c.l.b16 %v41
  %v235 = vunpack.c.h.b16 %v41
  %v236 = vunpack.c.l.b16 %v42
  %v237 = vunpack.c.h.b16 %v42
  %v238 = vunpack.c.l.b16 %v43
  %v239 = vunpack.c.h.b16 %v43
  %v240 = vunpack.c.l.b16 %v44
  %v241 = vunpack.c.h.b16 %v44
  %v242 = vunpack.c.l.b16 %v45
  %v243 = vunpack.c.h.b16 %v45
  %v244 = vunpack.c.l.b16 %v46
  %v245 = vunpack.c.h.b16 %v46
  %v246 = vunpack.c.l.b16 %v47
  %v247 = vunpack.c.h.b16 %v47
  %v248 = vunpack.c.l.b16 %v48
  %v249 = vunpack.c.h.b16 %v48
  %v250 = vunpack.c.l.b16 %v49
  %v251 = vunpack.c.h.b16 %v49
  %v252 = vunpack.c.l.b16 %v50
  %v253 = vunpack.c.h.b16 %v50
  %v254 = vunpack.c.l.b16 %v51
  %v255 = vunpack.c.h.b16 %v51
  %v256 = vunpack.c.l.b16 %v52
  %v257 = vunpack.c.h.b16 %v52
  %v258 = vunpack.c.l.b16 %v53
  %v259 = vunpack.c.h.b16 %v53
  %v260 = vunpack.c.l.b16 %v54
  %v261 = vunpack.c.h.b16 %v54
  %v262 = vunpack.c.l.b16 %v55
  %v263 = vunpack.c.h.b16 %v55
  %v264 = vunpack.c.l.b16 %v56
  %v265 = vunpack.c.h.b16 %v56
  %v266 = vunpack.c.l.b16 %v57
  %v267 = vunpack.c.h.b16 %v57
  %v268 = vunpack.c.l.b16 %v58
  %v269 = vunpack.c.h.b16 %v58
  %v270 = vunpack.c.l.b16 %v59
  %v271 = vunpack.c.h.b16 %v59
  %v272 = vunpack.c.l.b16 %v60
  %v273 = vunpack.c.h.b16 %v60
  %v274 = vunpack.c.l.b16 %v61
  %v275 = vunpack.c.h.b16 %v61
  %v276 = vunpack.c.l.b16 %v62
  %v277 = vunpack.c.h.b16 %v62
  %v278 = vunpack.c.l.b16 %v63
  %v279 = vunpack.c.h.b16 %v63
  %v280 = vunpack.c.l.b16 %v64
  %v281 = vunpack.c.h.b16 %v64
  %v282 = vunpack.c.l.b16 %v65
  %v283 = vunpack.c.h.b16 %v65
  %v284 = vunpack.c.l.b16 %v66
  %v285 = vunpack.c.h.b16 %v66
  %v286 = vunpack.c.l.b16 %v67
  %v287 = vunpack.c.h.b16 %v67
  %v288 = vunpack.c.l.b16 %v68
  %v289 = vunpack.c.h.b16 %v68
  %v290 = vunpack.c.l.b16 %v69
  %v291 = vunpack.c.h.b16 %v69
  %v292 = vunpack.c.l.b16 %v70
  %v293 = vunpack.c.h.b16 %v70
  %v294 = vunpack.c.l.b16 %v71
  %v295 = vunpack.c.h.b16 %v71
  %v296 = vunpack.c.l.b16 %v72
  %v297 = vunpack.c.h.b16 %v72
  %v298 = vunpack.c.l.b16 %v73
  %v299 = vunpack.c.h.b16 %v73
  %v300 = vunpack.c.l.b16 %v74
  %v301 = vunpack.c.h.b16 %v74
  %v302 = vunpack.c.l.b16 %v75
  %v303 = vunpack.c.h.b16 %v75
  %v304 = vunpack.c.l.b16 %v76
  %v305 = vunpack.c.h.b16 %v76
  %v306 = vunpack.c.l.b16 %v77
  %v307 = vunpack.c.h.b16 %v77
  %v308 = vunpack.c.l.b16 %v78
  %v309 = vunpack.c.h.b16 %v78
  %v310 = vunpack.c.l.b16 %v79
  %v311 = vunpack.c.h.b16 %v79
  %v312 = vunpack.c.l.b16 %v80
  %v313 = vunpack.c.h.b16 %v80
  %v314 = vunpack.c.l.b16 %v81
  %v315 = vunpack.c.h.b16 %v81
  %v316 = vunpack.c.l.b16 %v82
  %v317 = vunpack.c.h.b16 %v82
  %v318 = vunpack.c.l.b16 %v83
  %v319 = vunpack.c.h.b16 %v83
  %v320 = vunpack.c.l.b16 %v84
  %v321 = vunpack.c.h.b16 %v84
  %v322 = vunpack.c.l.b16 %v85
  %v323 = vunpack.c.h.b16 %v85
  %v324 = vpack.c.b16 %v198, %v196
  %v325 = vpack.c.b16 %v199, %v197
  %v326 = vpack.c.b16 %v202, %v200
  %v327 = vpack.c.b16 %v203, %v201
  %v328 = vpack.c.b16 %v206, %v204
  %v329 = vpack.c.b16 %v207, %v205
  %v330 = vpack.c.b16 %v210, %v208
  %v331 = vpack.c.b16 %v211, %v209
  %v332 = vpack.c.b16 %v214, %v212
  %v333 = vpack.c.b16 %v215, %v213
  %v334 = vpack.c.b16 %v218, %v216
  %v335 = vpack.c.b16 %v219, %v217
  %v336 = vpack.c.b16 %v222, %v220
  %v337 = vpack.c.b16 %v223, %v221
  %v338 = vpack.c.b16 %v226, %v224
  %v339 = vpack.c.b16 %v227, %v225
  %v340 = vpack.c.b16 %v230, %v228
  %v341 = vpack.c.b16 %v231, %v229
  %v342 = vpack.c.b16 %v234, %v232
  %v343 = vpack.c.b16 %v235, %v233
  %v344 = vpack.c.b16 %v238, %v236
  %v345 = vpack.c.b16 %v239, %v237
  %v346 = vpack.c.b16 %v242, %v240
  %v347 = vpack.c.b16 %v243, %v241
  %v348 = vpack.c.b16 %v246, %v244
  %v349 = vpack.c.b16 %v247, %v245
  %v350 = vpack.c.b16 %v250, %v248
  %v351 = vpack.c.b16 %v251, %v249
  %v352 = vpack.c.b16 %v254, %v252
  %v353 = vpack.c.b16 %v255, %v253
  %v354 = vpack.c.b16 %v258, %v256
  %v355 = vpack.c.b16 %v259, %v257
  %v356 = vpack.c.b16 %v262, %v260
  %v357 = vpack.c.b16 %v263, %v261
  %v358 = vpack.c.b16 %v266, %v264
  %v359 = vpack.c.b16 %v267, %v265
  %v360 = vpack.c.b16 %v270, %v268
  %v361 = vpack.c.b16 %v271, %v269
  %v362 = vpack.c.b16 %v274, %v272
  %v363 = vpack.c.b16 %v275, %v273
  %v364 = vpack.c.b16 %v278, %v276
  %v365 = vpack.c.b16 %v279, %v277
  %v366 = vpack.c.b16 %v282, %v280
  %v367 = vpack.c.b16 %v283, %v281
  %v368 = vpack.c.b16 %v286, %v284
  %v369 = vpack.c.b16 %v287, %v285
  %v370 = vpack.c.b16 %v290, %v288
  %v371 = vpack.c.b16 %v291, %v289
  %v372 = vpack.c.b16 %v294, %v292
  %v373 = vpack.c.b16 %v295, %v293
  %v374 = vpack.c.b16 %v298, %v296
  %v375 = vpack.c.b16 %v299, %v297
  %v376 = vpack.c.b16 %v302, %v300
  %v377 = vpack.c.b16 %v303, %v301
  %v378 = vpack.c.b16 %v306, %v304
  %v379 = vpack.c.b16 %v307, %v305
  %v380 = vpack.c.b16 %v310, %v308
  %v381 = vpack.c.b16 %v311, %v309
  %v382 = vpack.c.b16 %v314, %v312
  %v383 = vpack.c.b16 %v315, %v313
  %v384 = vpack.c.b16 %v318, %v316
  %v385 = vpack.c.b16 %v319, %v317
  %v386 = vpack.c.b16 %v322, %v320
  %v387 = vpack.c.b16 %v323, %v321
  %452 = vmatpush.bf16.msra.mxu0 %v338
  %453 = vmatpush.bf16.msra.mxu0 %v336
  %454 = vmatpush.bf16.msra.mxu0 %v334
  %455 = vmatpush.bf16.msra.mxu0 %v332
  %456 = vmatpush.bf16.msra.mxu0 %v330
  %457 = vmatpush.bf16.msra.mxu0 %v328
  %458 = vmatpush.bf16.msra.mxu0 %v326
  %459 = vmatpush.bf16.msra.mxu0 %v324
  %460 = vmatmul.bf16.gmra.mxu0 %v116
  %v461 = vpop.f32.mrf.mxu0
  %v462 = vadd.f32 %v88, %v461
  %v463 = vpop.f32.mrf.mxu0
  %v464 = vadd.f32 %v88, %v463
  %465 = vmatmul.bf16.gmra.mxu0 %v120
  %v466 = vpop.f32.mrf.mxu0
  %v467 = vadd.f32 %v88, %v466
  %v468 = vpop.f32.mrf.mxu0
  %v469 = vadd.f32 %v88, %v468
  %470 = vdwg.mxu0
  %471 = vmatpush.bf16.msra.mxu0 %v354
  %472 = vmatpush.bf16.msra.mxu0 %v352
  %473 = vmatpush.bf16.msra.mxu0 %v350
  %474 = vmatpush.bf16.msra.mxu0 %v348
  %475 = vmatpush.bf16.msra.mxu0 %v346
  %476 = vmatpush.bf16.msra.mxu0 %v344
  %477 = vmatpush.bf16.msra.mxu0 %v342
  %478 = vmatpush.bf16.msra.mxu0 %v340
  %479 = vmatmul.bf16.gmra.mxu0 %v117
  %v480 = vpop.f32.mrf.mxu0
  %v481 = vadd.f32 %v462, %v480
  %v482 = vpop.f32.mrf.mxu0
  %v483 = vadd.f32 %v464, %v482
  %484 = vmatmul.bf16.gmra.mxu0 %v121
  %v485 = vpop.f32.mrf.mxu0
  %v486 = vadd.f32 %v467, %v485
  %v487 = vpop.f32.mrf.mxu0
  %v488 = vadd.f32 %v469, %v487
  %489 = vdwg.mxu0
  %490 = vmatpush.bf16.msra.mxu0 %v370
  %491 = vmatpush.bf16.msra.mxu0 %v368
  %492 = vmatpush.bf16.msra.mxu0 %v366
  %493 = vmatpush.bf16.msra.mxu0 %v364
  %494 = vmatpush.bf16.msra.mxu0 %v362
  %495 = vmatpush.bf16.msra.mxu0 %v360
  %496 = vmatpush.bf16.msra.mxu0 %v358
  %497 = vmatpush.bf16.msra.mxu0 %v356
  %498 = vmatmul.bf16.gmra.mxu0 %v118
  %v499 = vpop.f32.mrf.mxu0
  %v500 = vadd.f32 %v481, %v499
  %v501 = vpop.f32.mrf.mxu0
  %v502 = vadd.f32 %v483, %v501
  %503 = vmatmul.bf16.gmra.mxu0 %v122
  %v504 = vpop.f32.mrf.mxu0
  %v505 = vadd.f32 %v486, %v504
  %v506 = vpop.f32.mrf.mxu0
  %v507 = vadd.f32 %v488, %v506
  %508 = vdwg.mxu0
  %509 = vmatpush.bf16.msra.mxu0 %v386
  %510 = vmatpush.bf16.msra.mxu0 %v384
  %511 = vmatpush.bf16.msra.mxu0 %v382
  %512 = vmatpush.bf16.msra.mxu0 %v380
  %513 = vmatpush.bf16.msra.mxu0 %v378
  %514 = vmatpush.bf16.msra.mxu0 %v376
  %515 = vmatpush.bf16.msra.mxu0 %v374
  %516 = vmatpush.bf16.msra.mxu0 %v372
  %517 = vmatmul.bf16.gmra.mxu0 %v119
  %v518 = vpop.f32.mrf.mxu0
  %v519 = vadd.f32 %v500, %v518
  %v520 = vpop.f32.mrf.mxu0
  %v521 = vadd.f32 %v502, %v520
  %522 = vmatmul.bf16.gmra.mxu0 %v123
  %v523 = vpop.f32.mrf.mxu0
  %v524 = vadd.f32 %v505, %v523
  %v525 = vpop.f32.mrf.mxu0
  %v526 = vadd.f32 %v507, %v525
  %527 = vdwg.mxu0
  %528 = vmatpush.bf16.msra.mxu0 %v339
  %529 = vmatpush.bf16.msra.mxu0 %v337
  %530 = vmatpush.bf16.msra.mxu0 %v335
  %531 = vmatpush.bf16.msra.mxu0 %v333
  %532 = vmatpush.bf16.msra.mxu0 %v331
  %533 = vmatpush.bf16.msra.mxu0 %v329
  %534 = vmatpush.bf16.msra.mxu0 %v327
  %535 = vmatpush.bf16.msra.mxu0 %v325
  %536 = vmatmul.bf16.gmra.mxu0 %v116
  %v537 = vpop.f32.mrf.mxu0
  %v538 = vadd.f32 %v89, %v537
  %v539 = vpop.f32.mrf.mxu0
  %v540 = vadd.f32 %v89, %v539
  %541 = vmatmul.bf16.gmra.mxu0 %v120
  %v542 = vpop.f32.mrf.mxu0
  %v543 = vadd.f32 %v89, %v542
  %v544 = vpop.f32.mrf.mxu0
  %v545 = vadd.f32 %v89, %v544
  %546 = vdwg.mxu0
  %547 = vmatpush.bf16.msra.mxu0 %v355
  %548 = vmatpush.bf16.msra.mxu0 %v353
  %549 = vmatpush.bf16.msra.mxu0 %v351
  %550 = vmatpush.bf16.msra.mxu0 %v349
  %551 = vmatpush.bf16.msra.mxu0 %v347
  %552 = vmatpush.bf16.msra.mxu0 %v345
  %553 = vmatpush.bf16.msra.mxu0 %v343
  %554 = vmatpush.bf16.msra.mxu0 %v341
  %555 = vmatmul.bf16.gmra.mxu0 %v117
  %v556 = vpop.f32.mrf.mxu0
  %v557 = vadd.f32 %v538, %v556
  %v558 = vpop.f32.mrf.mxu0
  %v559 = vadd.f32 %v540, %v558
  %560 = vmatmul.bf16.gmra.mxu0 %v121
  %v561 = vpop.f32.mrf.mxu0
  %v562 = vadd.f32 %v543, %v561
  %v563 = vpop.f32.mrf.mxu0
  %v564 = vadd.f32 %v545, %v563
  %565 = vdwg.mxu0
  %566 = vmatpush.bf16.msra.mxu0 %v371
  %567 = vmatpush.bf16.msra.mxu0 %v369
  %568 = vmatpush.bf16.msra.mxu0 %v367
  %569 = vmatpush.bf16.msra.mxu0 %v365
  %570 = vmatpush.bf16.msra.mxu0 %v363
  %571 = vmatpush.bf16.msra.mxu0 %v361
  %572 = vmatpush.bf16.msra.mxu0 %v359
  %573 = vmatpush.bf16.msra.mxu0 %v357
  %574 = vmatmul.bf16.gmra.mxu0 %v118
  %v575 = vpop.f32.mrf.mxu0
  %v576 = vadd.f32 %v557, %v575
  %v577 = vpop.f32.mrf.mxu0
  %v578 = vadd.f32 %v559, %v577
  %579 = vmatmul.bf16.gmra.mxu0 %v122
  %v580 = vpop.f32.mrf.mxu0
  %v581 = vadd.f32 %v562, %v580
  %v582 = vpop.f32.mrf.mxu0
  %v583 = vadd.f32 %v564, %v582
  %584 = vdwg.mxu0
  %585 = vmatpush.bf16.msra.mxu0 %v387
  %586 = vmatpush.bf16.msra.mxu0 %v385
  %587 = vmatpush.bf16.msra.mxu0 %v383
  %588 = vmatpush.bf16.msra.mxu0 %v381
  %589 = vmatpush.bf16.msra.mxu0 %v379
  %590 = vmatpush.bf16.msra.mxu0 %v377
  %591 = vmatpush.bf16.msra.mxu0 %v375
  %592 = vmatpush.bf16.msra.mxu0 %v373
  %593 = vmatmul.bf16.gmra.mxu0 %v119
  %v594 = vpop.f32.mrf.mxu0
  %v595 = vadd.f32 %v576, %v594
  %v596 = vpop.f32.mrf.mxu0
  %v597 = vadd.f32 %v578, %v596
  %598 = vmatmul.bf16.gmra.mxu0 %v123
  %v599 = vpop.f32.mrf.mxu0
  %v600 = vadd.f32 %v581, %v599
  %v601 = vpop.f32.mrf.mxu0
  %v602 = vadd.f32 %v583, %v601
  %603 = vdwg.mxu0
  %vm604 = vcmp.ge.f32.partialorder %v519, 0.0
  %vm605 = vcmp.ge.f32.partialorder %v595, 0.0
  %vm606 = vcmp.ge.f32.partialorder %v521, 0.0
  %vm607 = vcmp.ge.f32.partialorder %v597, 0.0
  %vm608 = vcmp.ge.f32.partialorder %v524, 0.0
  %vm609 = vcmp.ge.f32.partialorder %v600, 0.0
  %vm610 = vcmp.ge.f32.partialorder %v526, 0.0
  %vm611 = vcmp.ge.f32.partialorder %v602, 0.0
  %v612 = vmul.f32 %v519, 0.01
  %v613 = vmul.f32 %v595, 0.01
  %v614 = vmul.f32 %v521, 0.01
  %v615 = vmul.f32 %v597, 0.01
  %v616 = vmul.f32 %v524, 0.01
  %v617 = vmul.f32 %v600, 0.01
  %v618 = vmul.f32 %v526, 0.01
  %v619 = vmul.f32 %v602, 0.01
  %v620 = vsel %vm604, %v519, %v612
  %v621 = vsel %vm605, %v595, %v613
  %v622 = vsel %vm606, %v521, %v614
  %v623 = vsel %vm607, %v597, %v615
  %v624 = vsel %vm608, %v524, %v616
  %v625 = vsel %vm609, %v600, %v617
  %v626 = vsel %vm610, %v526, %v618
  %v627 = vsel %vm611, %v602, %v619
  %628 = vst [vmem:[%s3] sm:$0xff] %v620
  %629 = vst [vmem:[%s3 + $0x8] sm:$0xff] %v621
  %630 = vst [vmem:[%s3 + $0x10] sm:$0xff] %v622
  %631 = vst [vmem:[%s3 + $0x18] sm:$0xff] %v623
  %632 = vst [vmem:[%s3 + $0x20] sm:$0xff] %v624
  %633 = vst [vmem:[%s3 + $0x28] sm:$0xff] %v625
  %634 = vst [vmem:[%s3 + $0x30] sm:$0xff] %v626
  %635 = vst [vmem:[%s3 + $0x38] sm:$0xff] %v627
  // Predicated region
  $region14: #{vae_forward.17} parent=0 // pred_check
    _
  $region15: #{vae_forward.17} parent=0 // pred_check_branch
    %637 = sbr.rel (0) target = $region17
  $region16: #{vae_forward.17} parent=0 // pred_region
    _
  $region17: #{vae_forward.17} parent=0 // pred_fallthru
    _
  // Predicated region
  $region18: #{vae_forward.17} parent=0 // pred_check
    _
  $region19: #{vae_forward.17} parent=0 // pred_check_branch
    %639 = sbr.rel (0) target = $region21
  $region20: #{vae_forward.17} parent=0 // pred_region
    _
  $region21: #{vae_forward.17} parent=0 // pred_fallthru
    _

// kernel: tile.99
$region0: #{tile.99}
  #allocation0 [shape = 's32[1]{0}', space=sflag, size = 0x4, scoped, tag = 'scoped memory for tile.99']
  %s0 = inlined_call_operand.vmem [shape: f32[32], index: 0, kind: input, shape index: {}]
  %s1 = inlined_call_operand.vmem [shape: f32[4,32], index: 1, kind: output, shape index: {}]
  // Predicated region
  $region2: #{tile.99} parent=0 // pred_check
    _
  $region3: #{tile.99} parent=0 // pred_check_branch
    %3 = sbr.rel (0) target = $region5
  $region4: #{tile.99} parent=0 // pred_region
    _
  $region5: #{tile.99} parent=0 // pred_fallthru
    _
  %v4 = vld [vmem:[%s0] ss:$0 sm:$0xff]
  %5 = vst [vmem:[%s1] sm:$0xf] %v4

// kernel: mul.89
$region0: #{mul.89}
  %s0 = inlined_call_operand.vmem [shape: f32[4,32], index: 0, kind: input, shape index: {}]
  %s1 = inlined_call_operand.vmem [shape: f32[128], index: 1, kind: output, shape index: {}]
  $region1: #{mul.89} parent=0
    #allocation0 [shape = 'u8[4096]{0}', space=vmem, size = 0x1000, scoped, tag = 'scoped mem for output reshape']
    #allocation1 [shape = 'u8[4096]{0}', space=vmem, size = 0x1000, scoped, tag = 'scoped mem for input reshape']
    %s3 = ssub.s32 16, 1
    %v4 = vld [vmem:[%s0] sm:%s3]
    %5 = vst [vmem:[#allocation1] sm:%s3] %v4
    %v6 = vld [vmem:[#allocation1] sm:$0x1]
    %vm7 = vcmask 261120
    %8 = vst.msk [vmem:[#allocation0] sm:$0x1] %vm7, %v6
    %s9 = scalar_lea.vmem [#allocation1], 3
    %v10 = vld [vmem:[%s9] sm:$0x1]
    %11 = vrot.lane.b32.xlu0 %v10, 96
    %v12 = vpop.permute.xlu0 %11
    %vm13 = vcmask 1048320
    %14 = vst.msk [vmem:[#allocation0] sm:$0x1] %vm13, %v12
    %s15 = scalar_lea.vmem [#allocation1], 2
    %v16 = vld [vmem:[%s15] sm:$0x1]
    %17 = vrot.lane.b32.xlu0 %v16, 64
    %v18 = vpop.permute.xlu0 %17
    %vm19 = vcmask 785920
    %20 = vst.msk [vmem:[#allocation0] sm:$0x1] %vm19, %v18
    %s21 = scalar_lea.vmem [#allocation1], 1
    %v22 = vld [vmem:[%s21] sm:$0x1]
    %23 = vrot.lane.b32.xlu0 %v22, 32
    %v24 = vpop.permute.xlu0 %23
    %vm25 = vcmask 523520
    %26 = vst.msk [vmem:[#allocation0] sm:$0x1] %vm25, %v24
    %s28 = ssub.s32 2, 1
    %v29 = vld [vmem:[#allocation0] sm:%s28]
    %s31 = ssub.s32 2, 1
    %32 = vst [vmem:[%s1] sm:%s31] %v29

// kernel: vae_forward.18
$region0: #{vae_forward.18}
  #allocation0 [shape = 'u32[]', space=smem, size = 0x4, offset = 0x4, fixed_abs, tag = 'smem constant byte address 0x4 - core index']
  #allocation1 [shape = 'u32[72,128]{1,0:T(1,128)}', space=vmem, size = 0x9000, scoped, tag = 'internal scratch']
  %s0 = inlined_call_operand.vmem [shape: bf16[128,256], index: 0, kind: input, shape index: {}]
  %s1 = inlined_call_operand.vmem [shape: bf16[256,128], index: 1, kind: input, shape index: {}]
  %s2 = inlined_call_operand.vmem [shape: f32[1,128], index: 2, kind: input, shape index: {}]
  %s3 = inlined_call_operand.vmem [shape: f32[128,128], index: 3, kind: output, shape index: {}]
  %s4 = sld [smem:[#allocation0]]
  $region22: #{vae_forward.18} parent=0
    _
  %s6 = ssub.s32 1, %s4
  %s7 = scalar_select 0, %s6, %s4
  // Predicated region
  $region2: #{vae_forward.18} parent=0 // pred_check
    _
  $region3: #{vae_forward.18} parent=0 // pred_check_branch
    %9 = sbr.rel (0) target = $region5
  $region4: #{vae_forward.18} parent=0 // pred_region
    _
  $region5: #{vae_forward.18} parent=0 // pred_fallthru
    _
  // Predicated region
  $region6: #{vae_forward.18} parent=0 // pred_check
    _
  $region7: #{vae_forward.18} parent=0 // pred_check_branch
    %11 = sbr.rel (0) target = $region9
  $region8: #{vae_forward.18} parent=0 // pred_region
    _
  $region9: #{vae_forward.18} parent=0 // pred_fallthru
    _
  // Predicated region
  $region10: #{vae_forward.18} parent=0 // pred_check
    _
  $region11: #{vae_forward.18} parent=0 // pred_check_branch
    %13 = sbr.rel (0) target = $region13
  $region12: #{vae_forward.18} parent=0 // pred_region
    _
  $region13: #{vae_forward.18} parent=0 // pred_fallthru
    _
  %v14 = vld [vmem:[%s0] sm:$0xff]
  %v15 = vld [vmem:[%s0 + $0x8] sm:$0xff]
  %v16 = vld [vmem:[%s0 + $0x10] sm:$0xff]
  %v17 = vld [vmem:[%s0 + $0x18] sm:$0xff]
  %v18 = vld [vmem:[%s0 + $0x20] sm:$0xff]
  %v19 = vld [vmem:[%s0 + $0x28] sm:$0xff]
  %v20 = vld [vmem:[%s0 + $0x30] sm:$0xff]
  %v21 = vld [vmem:[%s0 + $0x38] sm:$0xff]
  %v22 = vld [vmem:[%s0 + $0x40] sm:$0xff]
  %v23 = vld [vmem:[%s0 + $0x48] sm:$0xff]
  %v24 = vld [vmem:[%s0 + $0x50] sm:$0xff]
  %v25 = vld [vmem:[%s0 + $0x58] sm:$0xff]
  %v26 = vld [vmem:[%s0 + $0x60] sm:$0xff]
  %v27 = vld [vmem:[%s0 + $0x68] sm:$0xff]
  %v28 = vld [vmem:[%s0 + $0x70] sm:$0xff]
  %v29 = vld [vmem:[%s0 + $0x78] sm:$0xff]
  %v30 = vld [vmem:[%s1] sm:$0xf]
  %v31 = vld [vmem:[%s1 + $0x4] sm:$0xf]
  %v32 = vld [vmem:[%s1 + $0x8] sm:$0xf]
  %v33 = vld [vmem:[%s1 + $0xc] sm:$0xf]
  %v34 = vld [vmem:[%s1 + $0x10] sm:$0xf]
  %v35 = vld [vmem:[%s1 + $0x14] sm:$0xf]
  %v36 = vld [vmem:[%s1 + $0x18] sm:$0xf]
  %v37 = vld [vmem:[%s1 + $0x1c] sm:$0xf]
  %v38 = vld [vmem:[%s1 + $0x20] sm:$0xf]
  %v39 = vld [vmem:[%s1 + $0x24] sm:$0xf]
  %v40 = vld [vmem:[%s1 + $0x28] sm:$0xf]
  %v41 = vld [vmem:[%s1 + $0x2c] sm:$0xf]
  %v42 = vld [vmem:[%s1 + $0x30] sm:$0xf]
  %v43 = vld [vmem:[%s1 + $0x34] sm:$0xf]
  %v44 = vld [vmem:[%s1 + $0x38] sm:$0xf]
  %v45 = vld [vmem:[%s1 + $0x3c] sm:$0xf]
  %v46 = vld [vmem:[%s1 + $0x40] sm:$0xf]
  %v47 = vld [vmem:[%s1 + $0x44] sm:$0xf]
  %v48 = vld [vmem:[%s1 + $0x48] sm:$0xf]
  %v49 = vld [vmem:[%s1 + $0x4c] sm:$0xf]
  %v50 = vld [vmem:[%s1 + $0x50] sm:$0xf]
  %v51 = vld [vmem:[%s1 + $0x54] sm:$0xf]
  %v52 = vld [vmem:[%s1 + $0x58] sm:$0xf]
  %v53 = vld [vmem:[%s1 + $0x5c] sm:$0xf]
  %v54 = vld [vmem:[%s1 + $0x60] sm:$0xf]
  %v55 = vld [vmem:[%s1 + $0x64] sm:$0xf]
  %v56 = vld [vmem:[%s1 + $0x68] sm:$0xf]
  %v57 = vld [vmem:[%s1 + $0x6c] sm:$0xf]
  %v58 = vld [vmem:[%s1 + $0x70] sm:$0xf]
  %v59 = vld [vmem:[%s1 + $0x74] sm:$0xf]
  %v60 = vld [vmem:[%s1 + $0x78] sm:$0xf]
  %v61 = vld [vmem:[%s1 + $0x7c] sm:$0xf]
  %v62 = vld [vmem:[%s2] sm:$0x1]
  %v64 = vperm.slane %v62, 0
  %v82 = vunpack.c.l.b16 %v14
  %v83 = vunpack.c.h.b16 %v14
  %v84 = vunpack.c.l.b16 %v15
  %v85 = vunpack.c.h.b16 %v15
  %v86 = vunpack.c.l.b16 %v16
  %v87 = vunpack.c.h.b16 %v16
  %v88 = vunpack.c.l.b16 %v17
  %v89 = vunpack.c.h.b16 %v17
  %v90 = vunpack.c.l.b16 %v18
  %v91 = vunpack.c.h.b16 %v18
  %v92 = vunpack.c.l.b16 %v19
  %v93 = vunpack.c.h.b16 %v19
  %v94 = vunpack.c.l.b16 %v20
  %v95 = vunpack.c.h.b16 %v20
  %v96 = vunpack.c.l.b16 %v21
  %v97 = vunpack.c.h.b16 %v21
  %v98 = vunpack.c.l.b16 %v22
  %v99 = vunpack.c.h.b16 %v22
  %v100 = vunpack.c.l.b16 %v23
  %v101 = vunpack.c.h.b16 %v23
  %v102 = vunpack.c.l.b16 %v24
  %v103 = vunpack.c.h.b16 %v24
  %v104 = vunpack.c.l.b16 %v25
  %v105 = vunpack.c.h.b16 %v25
  %v106 = vunpack.c.l.b16 %v26
  %v107 = vunpack.c.h.b16 %v26
  %v108 = vunpack.c.l.b16 %v27
  %v109 = vunpack.c.h.b16 %v27
  %v110 = vunpack.c.l.b16 %v28
  %v111 = vunpack.c.h.b16 %v28
  %v112 = vunpack.c.l.b16 %v29
  %v113 = vunpack.c.h.b16 %v29
  %v114 = vpack.c.b16 %v84, %v82
  %v115 = vpack.c.b16 %v85, %v83
  %v116 = vpack.c.b16 %v88, %v86
  %v117 = vpack.c.b16 %v89, %v87
  %v118 = vpack.c.b16 %v92, %v90
  %v119 = vpack.c.b16 %v93, %v91
  %v120 = vpack.c.b16 %v96, %v94
  %v121 = vpack.c.b16 %v97, %v95
  %v122 = vpack.c.b16 %v100, %v98
  %v123 = vpack.c.b16 %v101, %v99
  %v124 = vpack.c.b16 %v104, %v102
  %v125 = vpack.c.b16 %v105, %v103
  %v126 = vpack.c.b16 %v108, %v106
  %v127 = vpack.c.b16 %v109, %v107
  %v128 = vpack.c.b16 %v112, %v110
  %v129 = vpack.c.b16 %v113, %v111
  %v178 = vunpack.c.l.b16 %v30
  %v179 = vunpack.c.l.b16 %v31
  %v180 = vunpack.c.l.b16 %v32
  %v181 = vunpack.c.l.b16 %v33
  %v182 = vunpack.c.l.b16 %v34
  %v183 = vunpack.c.l.b16 %v35
  %v184 = vunpack.c.l.b16 %v36
  %v185 = vunpack.c.l.b16 %v37
  %v186 = vunpack.c.l.b16 %v38
  %v187 = vunpack.c.l.b16 %v39
  %v188 = vunpack.c.l.b16 %v40
  %v189 = vunpack.c.l.b16 %v41
  %v190 = vunpack.c.l.b16 %v42
  %v191 = vunpack.c.l.b16 %v43
  %v192 = vunpack.c.l.b16 %v44
  %v193 = vunpack.c.l.b16 %v45
  %v194 = vunpack.c.l.b16 %v46
  %v195 = vunpack.c.l.b16 %v47
  %v196 = vunpack.c.l.b16 %v48
  %v197 = vunpack.c.l.b16 %v49
  %v198 = vunpack.c.l.b16 %v50
  %v199 = vunpack.c.l.b16 %v51
  %v200 = vunpack.c.l.b16 %v52
  %v201 = vunpack.c.l.b16 %v53
  %v202 = vunpack.c.l.b16 %v54
  %v203 = vunpack.c.l.b16 %v55
  %v204 = vunpack.c.l.b16 %v56
  %v205 = vunpack.c.l.b16 %v57
  %v206 = vunpack.c.l.b16 %v58
  %v207 = vunpack.c.l.b16 %v59
  %v208 = vunpack.c.l.b16 %v60
  %v209 = vunpack.c.l.b16 %v61
  %v210 = vpack.c.b16 %v179, %v178
  %v211 = vpack.c.b16 %v181, %v180
  %v212 = vpack.c.b16 %v183, %v182
  %v213 = vpack.c.b16 %v185, %v184
  %v214 = vpack.c.b16 %v187, %v186
  %v215 = vpack.c.b16 %v189, %v188
  %v216 = vpack.c.b16 %v191, %v190
  %v217 = vpack.c.b16 %v193, %v192
  %v218 = vpack.c.b16 %v195, %v194
  %v219 = vpack.c.b16 %v197, %v196
  %v220 = vpack.c.b16 %v199, %v198
  %v221 = vpack.c.b16 %v201, %v200
  %v222 = vpack.c.b16 %v203, %v202
  %v223 = vpack.c.b16 %v205, %v204
  %v224 = vpack.c.b16 %v207, %v206
  %v225 = vpack.c.b16 %v209, %v208
  %242 = vmatpush.bf16.msra.mxu0 %v217
  %243 = vmatpush.bf16.msra.mxu0 %v216
  %244 = vmatpush.bf16.msra.mxu0 %v215
  %245 = vmatpush.bf16.msra.mxu0 %v214
  %246 = vmatpush.bf16.msra.mxu0 %v213
  %247 = vmatpush.bf16.msra.mxu0 %v212
  %248 = vmatpush.bf16.msra.mxu0 %v211
  %249 = vmatpush.bf16.msra.mxu0 %v210
  %250 = vmatmul.bf16.gmra.mxu0 %v114
  %v251 = vpop.f32.mrf.mxu0
  %v252 = vadd.f32 %v64, %v251
  %v253 = vpop.f32.mrf.mxu0
  %v254 = vadd.f32 %v64, %v253
  %255 = vmatmul.bf16.gmra.mxu0 %v116
  %v256 = vpop.f32.mrf.mxu0
  %v257 = vadd.f32 %v64, %v256
  %v258 = vpop.f32.mrf.mxu0
  %v259 = vadd.f32 %v64, %v258
  %260 = vmatmul.bf16.gmra.mxu0 %v118
  %v261 = vpop.f32.mrf.mxu0
  %v262 = vadd.f32 %v64, %v261
  %v263 = vpop.f32.mrf.mxu0
  %v264 = vadd.f32 %v64, %v263
  %265 = vmatmul.bf16.gmra.mxu0 %v120
  %v266 = vpop.f32.mrf.mxu0
  %v267 = vadd.f32 %v64, %v266
  %v268 = vpop.f32.mrf.mxu0
  %v269 = vadd.f32 %v64, %v268
  %270 = vmatmul.bf16.gmra.mxu0 %v122
  %v271 = vpop.f32.mrf.mxu0
  %v272 = vadd.f32 %v64, %v271
  %v273 = vpop.f32.mrf.mxu0
  %v274 = vadd.f32 %v64, %v273
  %275 = vmatmul.bf16.gmra.mxu0 %v124
  %v276 = vpop.f32.mrf.mxu0
  %v277 = vadd.f32 %v64, %v276
  %v278 = vpop.f32.mrf.mxu0
  %v279 = vadd.f32 %v64, %v278
  %280 = vmatmul.bf16.gmra.mxu0 %v126
  %v281 = vpop.f32.mrf.mxu0
  %v282 = vadd.f32 %v64, %v281
  %v283 = vpop.f32.mrf.mxu0
  %v284 = vadd.f32 %v64, %v283
  %285 = vmatmul.bf16.gmra.mxu0 %v128
  %v286 = vpop.f32.mrf.mxu0
  %v287 = vadd.f32 %v64, %v286
  %v288 = vpop.f32.mrf.mxu0
  %v289 = vadd.f32 %v64, %v288
  %290 = vdwg.mxu0
  %291 = vmatpush.bf16.msra.mxu0 %v225
  %292 = vmatpush.bf16.msra.mxu0 %v224
  %293 = vmatpush.bf16.msra.mxu0 %v223
  %294 = vmatpush.bf16.msra.mxu0 %v222
  %295 = vmatpush.bf16.msra.mxu0 %v221
  %296 = vmatpush.bf16.msra.mxu0 %v220
  %297 = vmatpush.bf16.msra.mxu0 %v219
  %298 = vmatpush.bf16.msra.mxu0 %v218
  %299 = vmatmul.bf16.gmra.mxu0 %v115
  %v300 = vpop.f32.mrf.mxu0
  %v301 = vadd.f32 %v252, %v300
  %v302 = vpop.f32.mrf.mxu0
  %v303 = vadd.f32 %v254, %v302
  %304 = vmatmul.bf16.gmra.mxu0 %v117
  %v305 = vpop.f32.mrf.mxu0
  %v306 = vadd.f32 %v257, %v305
  %v307 = vpop.f32.mrf.mxu0
  %v308 = vadd.f32 %v259, %v307
  %309 = vmatmul.bf16.gmra.mxu0 %v119
  %v310 = vpop.f32.mrf.mxu0
  %v311 = vadd.f32 %v262, %v310
  %v312 = vpop.f32.mrf.mxu0
  %v313 = vadd.f32 %v264, %v312
  %314 = vmatmul.bf16.gmra.mxu0 %v121
  %v315 = vpop.f32.mrf.mxu0
  %v316 = vadd.f32 %v267, %v315
  %v317 = vpop.f32.mrf.mxu0
  %v318 = vadd.f32 %v269, %v317
  %319 = vmatmul.bf16.gmra.mxu0 %v123
  %v320 = vpop.f32.mrf.mxu0
  %v321 = vadd.f32 %v272, %v320
  %v322 = vpop.f32.mrf.mxu0
  %v323 = vadd.f32 %v274, %v322
  %324 = vmatmul.bf16.gmra.mxu0 %v125
  %v325 = vpop.f32.mrf.mxu0
  %v326 = vadd.f32 %v277, %v325
  %v327 = vpop.f32.mrf.mxu0
  %v328 = vadd.f32 %v279, %v327
  %329 = vmatmul.bf16.gmra.mxu0 %v127
  %v330 = vpop.f32.mrf.mxu0
  %v331 = vadd.f32 %v282, %v330
  %v332 = vpop.f32.mrf.mxu0
  %v333 = vadd.f32 %v284, %v332
  %334 = vmatmul.bf16.gmra.mxu0 %v129
  %v335 = vpop.f32.mrf.mxu0
  %v336 = vadd.f32 %v287, %v335
  %v337 = vpop.f32.mrf.mxu0
  %v338 = vadd.f32 %v289, %v337
  %339 = vdwg.mxu0
  %vm340 = vcmp.ge.f32.partialorder %v301, 0.0
  %vm341 = vcmp.ge.f32.partialorder %v303, 0.0
  %vm342 = vcmp.ge.f32.partialorder %v306, 0.0
  %vm343 = vcmp.ge.f32.partialorder %v308, 0.0
  %vm344 = vcmp.ge.f32.partialorder %v311, 0.0
  %vm345 = vcmp.ge.f32.partialorder %v313, 0.0
  %vm346 = vcmp.ge.f32.partialorder %v316, 0.0
  %vm347 = vcmp.ge.f32.partialorder %v318, 0.0
  %vm348 = vcmp.ge.f32.partialorder %v321, 0.0
  %vm349 = vcmp.ge.f32.partialorder %v323, 0.0
  %vm350 = vcmp.ge.f32.partialorder %v326, 0.0
  %vm351 = vcmp.ge.f32.partialorder %v328, 0.0
  %vm352 = vcmp.ge.f32.partialorder %v331, 0.0
  %vm353 = vcmp.ge.f32.partialorder %v333, 0.0
  %vm354 = vcmp.ge.f32.partialorder %v336, 0.0
  %vm355 = vcmp.ge.f32.partialorder %v338, 0.0
  %v356 = vmul.f32 %v301, 0.01
  %v357 = vmul.f32 %v303, 0.01
  %v358 = vmul.f32 %v306, 0.01
  %v359 = vmul.f32 %v308, 0.01
  %v360 = vmul.f32 %v311, 0.01
  %v361 = vmul.f32 %v313, 0.01
  %v362 = vmul.f32 %v316, 0.01
  %v363 = vmul.f32 %v318, 0.01
  %v364 = vmul.f32 %v321, 0.01
  %v365 = vmul.f32 %v323, 0.01
  %v366 = vmul.f32 %v326, 0.01
  %v367 = vmul.f32 %v328, 0.01
  %v368 = vmul.f32 %v331, 0.01
  %v369 = vmul.f32 %v333, 0.01
  %v370 = vmul.f32 %v336, 0.01
  %v371 = vmul.f32 %v338, 0.01
  %v372 = vsel %vm340, %v301, %v356
  %v373 = vsel %vm341, %v303, %v357
  %v374 = vsel %vm342, %v306, %v358
  %v375 = vsel %vm343, %v308, %v359
  %v376 = vsel %vm344, %v311, %v360
  %v377 = vsel %vm345, %v313, %v361
  %v378 = vsel %vm346, %v316, %v362
  %v379 = vsel %vm347, %v318, %v363
  %v380 = vsel %vm348, %v321, %v364
  %v381 = vsel %vm349, %v323, %v365
  %v382 = vsel %vm350, %v326, %v366
  %v383 = vsel %vm351, %v328, %v367
  %v384 = vsel %vm352, %v331, %v368
  %v385 = vsel %vm353, %v333, %v369
  %v386 = vsel %vm354, %v336, %v370
  %v387 = vsel %vm355, %v338, %v371
  %388 = vst [vmem:[%s3] sm:$0xff] %v372
  %389 = vst [vmem:[%s3 + $0x8] sm:$0xff] %v373
  %390 = vst [vmem:[%s3 + $0x10] sm:$0xff] %v374
  %391 = vst [vmem:[%s3 + $0x18] sm:$0xff] %v375
  %392 = vst [vmem:[%s3 + $0x20] sm:$0xff] %v376
  %393 = vst [vmem:[%s3 + $0x28] sm:$0xff] %v377
  %394 = vst [vmem:[%s3 + $0x30] sm:$0xff] %v378
  %395 = vst [vmem:[%s3 + $0x38] sm:$0xff] %v379
  %396 = vst [vmem:[%s3 + $0x40] sm:$0xff] %v380
  %397 = vst [vmem:[%s3 + $0x48] sm:$0xff] %v381
  %398 = vst [vmem:[%s3 + $0x50] sm:$0xff] %v382
  %399 = vst [vmem:[%s3 + $0x58] sm:$0xff] %v383
  %400 = vst [vmem:[%s3 + $0x60] sm:$0xff] %v384
  %401 = vst [vmem:[%s3 + $0x68] sm:$0xff] %v385
  %402 = vst [vmem:[%s3 + $0x70] sm:$0xff] %v386
  %403 = vst [vmem:[%s3 + $0x78] sm:$0xff] %v387
  // Predicated region
  $region14: #{vae_forward.18} parent=0 // pred_check
    _
  $region15: #{vae_forward.18} parent=0 // pred_check_branch
    %405 = sbr.rel (0) target = $region17
  $region16: #{vae_forward.18} parent=0 // pred_region
    _
  $region17: #{vae_forward.18} parent=0 // pred_fallthru
    _
  // Predicated region
  $region18: #{vae_forward.18} parent=0 // pred_check
    _
  $region19: #{vae_forward.18} parent=0 // pred_check_branch
    %407 = sbr.rel (0) target = $region21
  $region20: #{vae_forward.18} parent=0 // pred_region
    _
  $region21: #{vae_forward.18} parent=0 // pred_fallthru
    _

// kernel: vae_forward.20
$region0: #{vae_forward.20}
  #allocation0 [shape = 'u32[]', space=smem, size = 0x4, offset = 0x4, fixed_abs, tag = 'smem constant byte address 0x4 - core index']
  #allocation1 [shape = 'u32[72,128]{1,0:T(1,128)}', space=vmem, size = 0x9000, scoped, tag = 'internal scratch']
  %s0 = inlined_call_operand.vmem [shape: bf16[2048,384], index: 0, kind: input, shape index: {}]
  %s1 = inlined_call_operand.vmem [shape: bf16[384,128], index: 1, kind: input, shape index: {}]
  %s2 = inlined_call_operand.vmem [shape: f32[1,128], index: 2, kind: input, shape index: {}]
  %s3 = inlined_call_operand.vmem [shape: f32[2048,128], index: 3, kind: output, shape index: {}]
  %s4 = sld [smem:[#allocation0]]
  $region45: #{vae_forward.20} parent=0
    _
  %s6 = ssub.s32 1, %s4
  %s7 = scalar_select 0, %s6, %s4
  loop: start=0, step=1, limit=18
  $region2: #{vae_forward.20} parent=0 // loop_pre_header
    _
  $region3: #{vae_forward.20} parent=0 // loop_header
    %s9 = sphi 0, %s13
    %p10 = scmp.ge.s32.totalorder %s9, 18
    %s19 = sphi 0, %s21
    %s22 = sphi 0, %s19
    %s23 = sphi 0, %s22
    %s39 = sphi 0, %s23
    %s43 = sphi 0, %s43
    %s45 = sphi 0, %s43
    %s46 = sphi 0, %s45
    %s60 = sphi 0, %s46
    %s64 = sphi 0, %s64
    %s66 = sphi 0, %s64
    %s67 = sphi 0, %s66
    %s81 = sphi 0, %s67
    %s87 = sphi 0, %s89
    %s90 = sphi 0, %s87
    %s91 = sphi 0, %s90
    %s107 = sphi 0, %s91
  $region4: #{vae_forward.20} parent=0 // loop_header_branch
    %12 = sbr.rel (%p10) target = $region8
  $region5: #{vae_forward.20} parent=0 // loop_body
    %s14 = ssub.s32 %s9, 1
    %s15 = ssub.s32 %s9, 2
    %s16 = sadd.s32 %s9, 1
    %s17 = ssub.s32 %s9, %s16
    %p18 = scmp.eq.s32.totalorder %s17, 0
    %s20 = sadd.s32 %s19, 1
    %s21 = scalar_select %p18, %s19, %s20
    %p24 = pneg %p18
    %p25 = scmp.eq.s32.totalorder %s9, 15
    %p26 = por %p24, %p25
    %p27 = scmp.ne.s32.totalorder %s19, %s22
    %p28 = scmp.eq.s32.totalorder %s9, 0
    %p29 = por %p27, %p28
    %p30 = scmp.ne.s32.totalorder %s19, %s22
    %p31 = scmp.eq.s32.totalorder %s14, 15
    %p32 = por %p30, %p31
    %p33 = scmp.ne.s32.totalorder %s22, %s23
    %p34 = scmp.eq.s32.totalorder %s14, 0
    %p35 = por %p33, %p34
    %p36 = scmp.ne.s32.totalorder %s22, %s23
    %p37 = scmp.eq.s32.totalorder %s15, 15
    %p38 = por %p36, %p37
    %p40 = scmp.ne.s32.totalorder %s23, %s39
    %p41 = scmp.eq.s32.totalorder %s15, 0
    %p42 = por %p40, %p41
    %s44 = sadd.s32 %s43, 1
    %p47 = scmp.eq.s32.totalorder %s9, 15
    %p48 = scmp.ne.s32.totalorder %s43, %s45
    %p49 = scmp.eq.s32.totalorder %s9, 0
    %p50 = por %p48, %p49
    %p51 = scmp.ne.s32.totalorder %s43, %s45
    %p52 = scmp.eq.s32.totalorder %s14, 15
    %p53 = por %p51, %p52
    %p54 = scmp.ne.s32.totalorder %s45, %s46
    %p55 = scmp.eq.s32.totalorder %s14, 0
    %p56 = por %p54, %p55
    %p57 = scmp.ne.s32.totalorder %s45, %s46
    %p58 = scmp.eq.s32.totalorder %s15, 15
    %p59 = por %p57, %p58
    %p61 = scmp.ne.s32.totalorder %s46, %s60
    %p62 = scmp.eq.s32.totalorder %s15, 0
    %p63 = por %p61, %p62
    %s65 = sadd.s32 %s64, 1
    %p68 = scmp.eq.s32.totalorder %s9, 15
    %p69 = scmp.ne.s32.totalorder %s64, %s66
    %p70 = scmp.eq.s32.totalorder %s9, 0
    %p71 = por %p69, %p70
    %p72 = scmp.ne.s32.totalorder %s64, %s66
    %p73 = scmp.eq.s32.totalorder %s14, 15
    %p74 = por %p72, %p73
    %p75 = scmp.ne.s32.totalorder %s66, %s67
    %p76 = scmp.eq.s32.totalorder %s14, 0
    %p77 = por %p75, %p76
    %p78 = scmp.ne.s32.totalorder %s66, %s67
    %p79 = scmp.eq.s32.totalorder %s15, 15
    %p80 = por %p78, %p79
    %p82 = scmp.ne.s32.totalorder %s67, %s81
    %p83 = scmp.eq.s32.totalorder %s15, 0
    %p84 = por %p82, %p83
    %s85 = ssub.s32 %s9, %s16
    %p86 = scmp.eq.s32.totalorder %s85, 0
    %s88 = sadd.s32 %s87, 1
    %s89 = scalar_select %p86, %s87, %s88
    %p92 = pneg %p86
    %p93 = scmp.eq.s32.totalorder %s9, 15
    %p94 = por %p92, %p93
    %p95 = scmp.ne.s32.totalorder %s87, %s90
    %p96 = scmp.eq.s32.totalorder %s9, 0
    %p97 = por %p95, %p96
    %p98 = scmp.ne.s32.totalorder %s87, %s90
    %p99 = scmp.eq.s32.totalorder %s14, 15
    %p100 = por %p98, %p99
    %p101 = scmp.ne.s32.totalorder %s90, %s91
    %p102 = scmp.eq.s32.totalorder %s14, 0
    %p103 = por %p101, %p102
    %p104 = scmp.ne.s32.totalorder %s90, %s91
    %p105 = scmp.eq.s32.totalorder %s15, 15
    %p106 = por %p104, %p105
    %p108 = scmp.ne.s32.totalorder %s91, %s107
    %p109 = scmp.eq.s32.totalorder %s15, 0
    %p110 = por %p108, %p109
    %p111 = scmp.le.s32.totalorder 1, %s9
    %p112 = scmp.lt.s32.totalorder %s9, 17
    %p113 = pnand %p111, %p112
    %p114 = pneg %p113
    // Predicated region
    $region9: #{vae_forward.20} parent=5 // pred_check
      _
    $region10: #{vae_forward.20} parent=5 // pred_check_branch
      %116 = sbr.rel (%p113) target = $region12
    $region11: #{vae_forward.20} parent=5 // pred_region
      %s117 = ssub.s32 %s9, 1
      // Predicated region
      $region13: #{vae_forward.20} parent=11 // pred_check
        %p118 = pneg %p56
      $region14: #{vae_forward.20} parent=11 // pred_check_branch
        %120 = sbr.rel (%p118) target = $region16
      $region15: #{vae_forward.20} parent=11 // pred_region
        _
      $region16: #{vae_forward.20} parent=11 // pred_fallthru
        _
      // Predicated region
      $region17: #{vae_forward.20} parent=11 // pred_check
        %p121 = pneg %p77
      $region18: #{vae_forward.20} parent=11 // pred_check_branch
        %123 = sbr.rel (%p121) target = $region20
      $region19: #{vae_forward.20} parent=11 // pred_region
        _
      $region20: #{vae_forward.20} parent=11 // pred_fallthru
        _
    $region12: #{vae_forward.20} parent=5 // pred_fallthru
      _
    %p124 = scmp.lt.s32.totalorder %s9, 16
    // Predicated region
    $region21: #{vae_forward.20} parent=5 // pred_check
      %p125 = pneg %p124
    $region22: #{vae_forward.20} parent=5 // pred_check_branch
      %127 = sbr.rel (%p125) target = $region24
    $region23: #{vae_forward.20} parent=5 // pred_region
      // Predicated region
      $region25: #{vae_forward.20} parent=23 // pred_check
        %p128 = pneg %p29
      $region26: #{vae_forward.20} parent=23 // pred_check_branch
        %130 = sbr.rel (%p128) target = $region28
      $region27: #{vae_forward.20} parent=23 // pred_region
        %s131 = smul.u32 16, %s9
        %p132 = scmp.lt.s32.totalorder %s131, 255
        %s133 = scalar_select %p132, %s131, 255
        %s134 = smul.addr %s133, 3
        %s135 = smul.addr %s134, 4
        %s136 = scalar_lea.vmem %s0, %s135
        %s137 = smul.u32 16, %s9
      $region28: #{vae_forward.20} parent=23 // pred_fallthru
        _
    $region24: #{vae_forward.20} parent=5 // pred_fallthru
      _
    %p138 = scmp.le.s32.totalorder 1, %s9
    %p139 = scmp.lt.s32.totalorder %s9, 17
    %p140 = pnand %p138, %p139
    %p141 = pneg %p140
    // Predicated region
    $region29: #{vae_forward.20} parent=5 // pred_check
      _
    $region30: #{vae_forward.20} parent=5 // pred_check_branch
      %143 = sbr.rel (%p140) target = $region32
    $region31: #{vae_forward.20} parent=5 // pred_region
      %s144 = ssub.s32 %s9, 1
      %s145 = smul.u32 16, %s14
      %p146 = scmp.lt.s32.totalorder %s145, 255
      %s147 = scalar_select %p146, %s145, 255
      %s148 = smul.addr %s147, 3
      %s149 = smul.addr %s148, 4
      %s150 = scalar_lea.vmem %s0, %s149
      %p151 = pneg %p35
      %p152 = pneg %p32
      %p153 = pneg %p56
      %p154 = pneg %p53
      %p155 = pneg %p77
      %p156 = pneg %p74
      %p157 = pneg %p103
      %p158 = pneg %p100
      %s159 = smul.u32 16, %s14
      %p160 = scmp.lt.s32.totalorder %s159, 255
      %s161 = scalar_select %p160, %s159, 255
      %s162 = smul.addr %s161, 8
      %s163 = scalar_lea.vmem %s3, %s162
      %s164 = smul.u32 16, %s14
      %p165 = scmp.lt.s32.totalorder %s164, 255
      %s166 = scalar_select %p165, %s164, 255
      %s167 = smul.addr %s166, 3
      %s168 = smul.addr %s167, 4
      %s169 = scalar_lea.vmem %s0, %s168
      %s170 = smul.u32 16, %s14
      %s171 = smul.u32 16, %s14
      %p172 = scmp.lt.s32.totalorder %s171, 255
      %s173 = scalar_select %p172, %s171, 255
      %s174 = smul.addr %s173, 8
      %s175 = scalar_lea.vmem %s3, %s174
      %s176 = smul.u32 16, %s14
      %v177 = vld [vmem:[%s169] sm:$0xff]
      %v178 = vld [vmem:[%s169 + $0x8] sm:$0xf]
      %v179 = vld [vmem:[%s169 + $0xc] sm:$0xff]
      %v180 = vld [vmem:[%s169 + $0x14] sm:$0xf]
      %v181 = vld [vmem:[%s169 + $0x18] sm:$0xff]
      %v182 = vld [vmem:[%s169 + $0x20] sm:$0xf]
      %v183 = vld [vmem:[%s169 + $0x24] sm:$0xff]
      %v184 = vld [vmem:[%s169 + $0x2c] sm:$0xf]
      %v185 = vld [vmem:[%s169 + $0x30] sm:$0xff]
      %v186 = vld [vmem:[%s169 + $0x38] sm:$0xf]
      %v187 = vld [vmem:[%s169 + $0x3c] sm:$0xff]
      %v188 = vld [vmem:[%s169 + $0x44] sm:$0xf]
      %v189 = vld [vmem:[%s169 + $0x48] sm:$0xff]
      %v190 = vld [vmem:[%s169 + $0x50] sm:$0xf]
      %v191 = vld [vmem:[%s169 + $0x54] sm:$0xff]
      %v192 = vld [vmem:[%s169 + $0x5c] sm:$0xf]
      %v193 = vld [vmem:[%s169 + $0x60] sm:$0xff]
      %v194 = vld [vmem:[%s169 + $0x68] sm:$0xf]
      %v195 = vld [vmem:[%s169 + $0x6c] sm:$0xff]
      %v196 = vld [vmem:[%s169 + $0x74] sm:$0xf]
      %v197 = vld [vmem:[%s169 + $0x78] sm:$0xff]
      %v198 = vld [vmem:[%s169 + $0x80] sm:$0xf]
      %v199 = vld [vmem:[%s169 + $0x84] sm:$0xff]
      %v200 = vld [vmem:[%s169 + $0x8c] sm:$0xf]
      %v201 = vld [vmem:[%s169 + $0x90] sm:$0xff]
      %v202 = vld [vmem:[%s169 + $0x98] sm:$0xf]
      %v203 = vld [vmem:[%s169 + $0x9c] sm:$0xff]
      %v204 = vld [vmem:[%s169 + $0xa4] sm:$0xf]
      %v205 = vld [vmem:[%s169 + $0xa8] sm:$0xff]
      %v206 = vld [vmem:[%s169 + $0xb0] sm:$0xf]
      %v207 = vld [vmem:[%s169 + $0xb4] sm:$0xff]
      %v208 = vld [vmem:[%s169 + $0xbc] sm:$0xf]
      %v209 = vld [vmem:[%s1] sm:$0xf]
      %v210 = vld [vmem:[%s1 + $0x4] sm:$0xf]
      %v211 = vld [vmem:[%s1 + $0x8] sm:$0xf]
      %v212 = vld [vmem:[%s1 + $0xc] sm:$0xf]
      %v213 = vld [vmem:[%s1 + $0x10] sm:$0xf]
      %v214 = vld [vmem:[%s1 + $0x14] sm:$0xf]
      %v215 = vld [vmem:[%s1 + $0x18] sm:$0xf]
      %v216 = vld [vmem:[%s1 + $0x1c] sm:$0xf]
      %v217 = vld [vmem:[%s1 + $0x20] sm:$0xf]
      %v218 = vld [vmem:[%s1 + $0x24] sm:$0xf]
      %v219 = vld [vmem:[%s1 + $0x28] sm:$0xf]
      %v220 = vld [vmem:[%s1 + $0x2c] sm:$0xf]
      %v221 = vld [vmem:[%s1 + $0x30] sm:$0xf]
      %v222 = vld [vmem:[%s1 + $0x34] sm:$0xf]
      %v223 = vld [vmem:[%s1 + $0x38] sm:$0xf]
      %v224 = vld [vmem:[%s1 + $0x3c] sm:$0xf]
      %v225 = vld [vmem:[%s1 + $0x40] sm:$0xf]
      %v226 = vld [vmem:[%s1 + $0x44] sm:$0xf]
      %v227 = vld [vmem:[%s1 + $0x48] sm:$0xf]
      %v228 = vld [vmem:[%s1 + $0x4c] sm:$0xf]
      %v229 = vld [vmem:[%s1 + $0x50] sm:$0xf]
      %v230 = vld [vmem:[%s1 + $0x54] sm:$0xf]
      %v231 = vld [vmem:[%s1 + $0x58] sm:$0xf]
      %v232 = vld [vmem:[%s1 + $0x5c] sm:$0xf]
      %v233 = vld [vmem:[%s1 + $0x60] sm:$0xf]
      %v234 = vld [vmem:[%s1 + $0x64] sm:$0xf]
      %v235 = vld [vmem:[%s1 + $0x68] sm:$0xf]
      %v236 = vld [vmem:[%s1 + $0x6c] sm:$0xf]
      %v237 = vld [vmem:[%s1 + $0x70] sm:$0xf]
      %v238 = vld [vmem:[%s1 + $0x74] sm:$0xf]
      %v239 = vld [vmem:[%s1 + $0x78] sm:$0xf]
      %v240 = vld [vmem:[%s1 + $0x7c] sm:$0xf]
      %v241 = vld [vmem:[%s1 + $0x80] sm:$0xf]
      %v242 = vld [vmem:[%s1 + $0x84] sm:$0xf]
      %v243 = vld [vmem:[%s1 + $0x88] sm:$0xf]
      %v244 = vld [vmem:[%s1 + $0x8c] sm:$0xf]
      %v245 = vld [vmem:[%s1 + $0x90] sm:$0xf]
      %v246 = vld [vmem:[%s1 + $0x94] sm:$0xf]
      %v247 = vld [vmem:[%s1 + $0x98] sm:$0xf]
      %v248 = vld [vmem:[%s1 + $0x9c] sm:$0xf]
      %v249 = vld [vmem:[%s1 + $0xa0] sm:$0xf]
      %v250 = vld [vmem:[%s1 + $0xa4] sm:$0xf]
      %v251 = vld [vmem:[%s1 + $0xa8] sm:$0xf]
      %v252 = vld [vmem:[%s1 + $0xac] sm:$0xf]
      %v253 = vld [vmem:[%s1 + $0xb0] sm:$0xf]
      %v254 = vld [vmem:[%s1 + $0xb4] sm:$0xf]
      %v255 = vld [vmem:[%s1 + $0xb8] sm:$0xf]
      %v256 = vld [vmem:[%s1 + $0xbc] sm:$0xf]
      %v257 = vld [vmem:[%s2] sm:$0x1]
      %v259 = vperm.slane %v257, 0
      %v293 = vunpack.c.l.b16 %v177
      %v294 = vunpack.c.h.b16 %v177
      %v295 = vunpack.c.l.b16 %v178
      %v296 = vunpack.c.l.b16 %v179
      %v297 = vunpack.c.h.b16 %v179
      %v298 = vunpack.c.l.b16 %v180
      %v299 = vunpack.c.l.b16 %v181
      %v300 = vunpack.c.h.b16 %v181
      %v301 = vunpack.c.l.b16 %v182
      %v302 = vunpack.c.l.b16 %v183
      %v303 = vunpack.c.h.b16 %v183
      %v304 = vunpack.c.l.b16 %v184
      %v305 = vunpack.c.l.b16 %v185
      %v306 = vunpack.c.h.b16 %v185
      %v307 = vunpack.c.l.b16 %v186
      %v308 = vunpack.c.l.b16 %v187
      %v309 = vunpack.c.h.b16 %v187
      %v310 = vunpack.c.l.b16 %v188
      %v311 = vunpack.c.l.b16 %v189
      %v312 = vunpack.c.h.b16 %v189
      %v313 = vunpack.c.l.b16 %v190
      %v314 = vunpack.c.l.b16 %v191
      %v315 = vunpack.c.h.b16 %v191
      %v316 = vunpack.c.l.b16 %v192
      %v317 = vunpack.c.l.b16 %v193
      %v318 = vunpack.c.h.b16 %v193
      %v319 = vunpack.c.l.b16 %v194
      %v320 = vunpack.c.l.b16 %v195
      %v321 = vunpack.c.h.b16 %v195
      %v322 = vunpack.c.l.b16 %v196
      %v323 = vunpack.c.l.b16 %v197
      %v324 = vunpack.c.h.b16 %v197
      %v325 = vunpack.c.l.b16 %v198
      %v326 = vunpack.c.l.b16 %v199
      %v327 = vunpack.c.h.b16 %v199
      %v328 = vunpack.c.l.b16 %v200
      %v329 = vunpack.c.l.b16 %v201
      %v330 = vunpack.c.h.b16 %v201
      %v331 = vunpack.c.l.b16 %v202
      %v332 = vunpack.c.l.b16 %v203
      %v333 = vunpack.c.h.b16 %v203
      %v334 = vunpack.c.l.b16 %v204
      %v335 = vunpack.c.l.b16 %v205
      %v336 = vunpack.c.h.b16 %v205
      %v337 = vunpack.c.l.b16 %v206
      %v338 = vunpack.c.l.b16 %v207
      %v339 = vunpack.c.h.b16 %v207
      %v340 = vunpack.c.l.b16 %v208
      %v341 = vpack.c.b16 %v296, %v293
      %v342 = vpack.c.b16 %v297, %v294
      %v343 = vpack.c.b16 %v298, %v295
      %v344 = vpack.c.b16 %v302, %v299
      %v345 = vpack.c.b16 %v303, %v300
      %v346 = vpack.c.b16 %v304, %v301
      %v347 = vpack.c.b16 %v308, %v305
      %v348 = vpack.c.b16 %v309, %v306
      %v349 = vpack.c.b16 %v310, %v307
      %v350 = vpack.c.b16 %v314, %v311
      %v351 = vpack.c.b16 %v315, %v312
      %v352 = vpack.c.b16 %v316, %v313
      %v353 = vpack.c.b16 %v320, %v317
      %v354 = vpack.c.b16 %v321, %v318
      %v355 = vpack.c.b16 %v322, %v319
      %v356 = vpack.c.b16 %v326, %v323
      %v357 = vpack.c.b16 %v327, %v324
      %v358 = vpack.c.b16 %v328, %v325
      %v359 = vpack.c.b16 %v332, %v329
      %v360 = vpack.c.b16 %v333, %v330
      %v361 = vpack.c.b16 %v334, %v331
      %v362 = vpack.c.b16 %v338, %v335
      %v363 = vpack.c.b16 %v339, %v336
      %v364 = vpack.c.b16 %v340, %v337
      %v437 = vunpack.c.l.b16 %v209
      %v438 = vunpack.c.l.b16 %v210
      %v439 = vunpack.c.l.b16 %v211
      %v440 = vunpack.c.l.b16 %v212
      %v441 = vunpack.c.l.b16 %v213
      %v442 = vunpack.c.l.b16 %v214
      %v443 = vunpack.c.l.b16 %v215
      %v444 = vunpack.c.l.b16 %v216
      %v445 = vunpack.c.l.b16 %v217
      %v446 = vunpack.c.l.b16 %v218
      %v447 = vunpack.c.l.b16 %v219
      %v448 = vunpack.c.l.b16 %v220
      %v449 = vunpack.c.l.b16 %v221
      %v450 = vunpack.c.l.b16 %v222
      %v451 = vunpack.c.l.b16 %v223
      %v452 = vunpack.c.l.b16 %v224
      %v453 = vunpack.c.l.b16 %v225
      %v454 = vunpack.c.l.b16 %v226
      %v455 = vunpack.c.l.b16 %v227
      %v456 = vunpack.c.l.b16 %v228
      %v457 = vunpack.c.l.b16 %v229
      %v458 = vunpack.c.l.b16 %v230
      %v459 = vunpack.c.l.b16 %v231
      %v460 = vunpack.c.l.b16 %v232
      %v461 = vunpack.c.l.b16 %v233
      %v462 = vunpack.c.l.b16 %v234
      %v463 = vunpack.c.l.b16 %v235
      %v464 = vunpack.c.l.b16 %v236
      %v465 = vunpack.c.l.b16 %v237
      %v466 = vunpack.c.l.b16 %v238
      %v467 = vunpack.c.l.b16 %v239
      %v468 = vunpack.c.l.b16 %v240
      %v469 = vunpack.c.l.b16 %v241
      %v470 = vunpack.c.l.b16 %v242
      %v471 = vunpack.c.l.b16 %v243
      %v472 = vunpack.c.l.b16 %v244
      %v473 = vunpack.c.l.b16 %v245
      %v474 = vunpack.c.l.b16 %v246
      %v475 = vunpack.c.l.b16 %v247
      %v476 = vunpack.c.l.b16 %v248
      %v477 = vunpack.c.l.b16 %v249
      %v478 = vunpack.c.l.b16 %v250
      %v479 = vunpack.c.l.b16 %v251
      %v480 = vunpack.c.l.b16 %v252
      %v481 = vunpack.c.l.b16 %v253
      %v482 = vunpack.c.l.b16 %v254
      %v483 = vunpack.c.l.b16 %v255
      %v484 = vunpack.c.l.b16 %v256
      %v485 = vpack.c.b16 %v438, %v437
      %v486 = vpack.c.b16 %v440, %v439
      %v487 = vpack.c.b16 %v442, %v441
      %v488 = vpack.c.b16 %v444, %v443
      %v489 = vpack.c.b16 %v446, %v445
      %v490 = vpack.c.b16 %v448, %v447
      %v491 = vpack.c.b16 %v450, %v449
      %v492 = vpack.c.b16 %v452, %v451
      %v493 = vpack.c.b16 %v454, %v453
      %v494 = vpack.c.b16 %v456, %v455
      %v495 = vpack.c.b16 %v458, %v457
      %v496 = vpack.c.b16 %v460, %v459
      %v497 = vpack.c.b16 %v462, %v461
      %v498 = vpack.c.b16 %v464, %v463
      %v499 = vpack.c.b16 %v466, %v465
      %v500 = vpack.c.b16 %v468, %v467
      %v501 = vpack.c.b16 %v470, %v469
      %v502 = vpack.c.b16 %v472, %v471
      %v503 = vpack.c.b16 %v474, %v473
      %v504 = vpack.c.b16 %v476, %v475
      %v505 = vpack.c.b16 %v478, %v477
      %v506 = vpack.c.b16 %v480, %v479
      %v507 = vpack.c.b16 %v482, %v481
      %v508 = vpack.c.b16 %v484, %v483
      %533 = vmatpush.bf16.msra.mxu0 %v492
      %534 = vmatpush.bf16.msra.mxu0 %v491
      %535 = vmatpush.bf16.msra.mxu0 %v490
      %536 = vmatpush.bf16.msra.mxu0 %v489
      %537 = vmatpush.bf16.msra.mxu0 %v488
      %538 = vmatpush.bf16.msra.mxu0 %v487
      %539 = vmatpush.bf16.msra.mxu0 %v486
      %540 = vmatpush.bf16.msra.mxu0 %v485
      %541 = vmatmul.bf16.gmra.mxu0 %v341
      %v542 = vpop.f32.mrf.mxu0
      %v543 = vadd.f32 %v259, %v542
      %v544 = vpop.f32.mrf.mxu0
      %v545 = vadd.f32 %v259, %v544
      %546 = vmatmul.bf16.gmra.mxu0 %v344
      %v547 = vpop.f32.mrf.mxu0
      %v548 = vadd.f32 %v259, %v547
      %v549 = vpop.f32.mrf.mxu0
      %v550 = vadd.f32 %v259, %v549
      %551 = vmatmul.bf16.gmra.mxu0 %v347
      %v552 = vpop.f32.mrf.mxu0
      %v553 = vadd.f32 %v259, %v552
      %v554 = vpop.f32.mrf.mxu0
      %v555 = vadd.f32 %v259, %v554
      %556 = vmatmul.bf16.gmra.mxu0 %v350
      %v557 = vpop.f32.mrf.mxu0
      %v558 = vadd.f32 %v259, %v557
      %v559 = vpop.f32.mrf.mxu0
      %v560 = vadd.f32 %v259, %v559
      %561 = vmatmul.bf16.gmra.mxu0 %v353
      %v562 = vpop.f32.mrf.mxu0
      %v563 = vadd.f32 %v259, %v562
      %v564 = vpop.f32.mrf.mxu0
      %v565 = vadd.f32 %v259, %v564
      %566 = vmatmul.bf16.gmra.mxu0 %v356
      %v567 = vpop.f32.mrf.mxu0
      %v568 = vadd.f32 %v259, %v567
      %v569 = vpop.f32.mrf.mxu0
      %v570 = vadd.f32 %v259, %v569
      %571 = vmatmul.bf16.gmra.mxu0 %v359
      %v572 = vpop.f32.mrf.mxu0
      %v573 = vadd.f32 %v259, %v572
      %v574 = vpop.f32.mrf.mxu0
      %v575 = vadd.f32 %v259, %v574
      %576 = vmatmul.bf16.gmra.mxu0 %v362
      %v577 = vpop.f32.mrf.mxu0
      %v578 = vadd.f32 %v259, %v577
      %v579 = vpop.f32.mrf.mxu0
      %v580 = vadd.f32 %v259, %v579
      %581 = vdwg.mxu0
      %582 = vmatpush.bf16.msra.mxu0 %v500
      %583 = vmatpush.bf16.msra.mxu0 %v499
      %584 = vmatpush.bf16.msra.mxu0 %v498
      %585 = vmatpush.bf16.msra.mxu0 %v497
      %586 = vmatpush.bf16.msra.mxu0 %v496
      %587 = vmatpush.bf16.msra.mxu0 %v495
      %588 = vmatpush.bf16.msra.mxu0 %v494
      %589 = vmatpush.bf16.msra.mxu0 %v493
      %590 = vmatmul.bf16.gmra.mxu0 %v342
      %v591 = vpop.f32.mrf.mxu0
      %v592 = vadd.f32 %v543, %v591
      %v593 = vpop.f32.mrf.mxu0
      %v594 = vadd.f32 %v545, %v593
      %595 = vmatmul.bf16.gmra.mxu0 %v345
      %v596 = vpop.f32.mrf.mxu0
      %v597 = vadd.f32 %v548, %v596
      %v598 = vpop.f32.mrf.mxu0
      %v599 = vadd.f32 %v550, %v598
      %600 = vmatmul.bf16.gmra.mxu0 %v348
      %v601 = vpop.f32.mrf.mxu0
      %v602 = vadd.f32 %v553, %v601
      %v603 = vpop.f32.mrf.mxu0
      %v604 = vadd.f32 %v555, %v603
      %605 = vmatmul.bf16.gmra.mxu0 %v351
      %v606 = vpop.f32.mrf.mxu0
      %v607 = vadd.f32 %v558, %v606
      %v608 = vpop.f32.mrf.mxu0
      %v609 = vadd.f32 %v560, %v608
      %610 = vmatmul.bf16.gmra.mxu0 %v354
      %v611 = vpop.f32.mrf.mxu0
      %v612 = vadd.f32 %v563, %v611
      %v613 = vpop.f32.mrf.mxu0
      %v614 = vadd.f32 %v565, %v613
      %615 = vmatmul.bf16.gmra.mxu0 %v357
      %v616 = vpop.f32.mrf.mxu0
      %v617 = vadd.f32 %v568, %v616
      %v618 = vpop.f32.mrf.mxu0
      %v619 = vadd.f32 %v570, %v618
      %620 = vmatmul.bf16.gmra.mxu0 %v360
      %v621 = vpop.f32.mrf.mxu0
      %v622 = vadd.f32 %v573, %v621
      %v623 = vpop.f32.mrf.mxu0
      %v624 = vadd.f32 %v575, %v623
      %625 = vmatmul.bf16.gmra.mxu0 %v363
      %v626 = vpop.f32.mrf.mxu0
      %v627 = vadd.f32 %v578, %v626
      %v628 = vpop.f32.mrf.mxu0
      %v629 = vadd.f32 %v580, %v628
      %630 = vdwg.mxu0
      %631 = vmatpush.bf16.msra.mxu0 %v508
      %632 = vmatpush.bf16.msra.mxu0 %v507
      %633 = vmatpush.bf16.msra.mxu0 %v506
      %634 = vmatpush.bf16.msra.mxu0 %v505
      %635 = vmatpush.bf16.msra.mxu0 %v504
      %636 = vmatpush.bf16.msra.mxu0 %v503
      %637 = vmatpush.bf16.msra.mxu0 %v502
      %638 = vmatpush.bf16.msra.mxu0 %v501
      %639 = vmatmul.bf16.gmra.mxu0 %v343
      %v640 = vpop.f32.mrf.mxu0
      %v641 = vadd.f32 %v592, %v640
      %v642 = vpop.f32.mrf.mxu0
      %v643 = vadd.f32 %v594, %v642
      %644 = vmatmul.bf16.gmra.mxu0 %v346
      %v645 = vpop.f32.mrf.mxu0
      %v646 = vadd.f32 %v597, %v645
      %v647 = vpop.f32.mrf.mxu0
      %v648 = vadd.f32 %v599, %v647
      %649 = vmatmul.bf16.gmra.mxu0 %v349
      %v650 = vpop.f32.mrf.mxu0
      %v651 = vadd.f32 %v602, %v650
      %v652 = vpop.f32.mrf.mxu0
      %v653 = vadd.f32 %v604, %v652
      %654 = vmatmul.bf16.gmra.mxu0 %v352
      %v655 = vpop.f32.mrf.mxu0
      %v656 = vadd.f32 %v607, %v655
      %v657 = vpop.f32.mrf.mxu0
      %v658 = vadd.f32 %v609, %v657
      %659 = vmatmul.bf16.gmra.mxu0 %v355
      %v660 = vpop.f32.mrf.mxu0
      %v661 = vadd.f32 %v612, %v660
      %v662 = vpop.f32.mrf.mxu0
      %v663 = vadd.f32 %v614, %v662
      %664 = vmatmul.bf16.gmra.mxu0 %v358
      %v665 = vpop.f32.mrf.mxu0
      %v666 = vadd.f32 %v617, %v665
      %v667 = vpop.f32.mrf.mxu0
      %v668 = vadd.f32 %v619, %v667
      %669 = vmatmul.bf16.gmra.mxu0 %v361
      %v670 = vpop.f32.mrf.mxu0
      %v671 = vadd.f32 %v622, %v670
      %v672 = vpop.f32.mrf.mxu0
      %v673 = vadd.f32 %v624, %v672
      %674 = vmatmul.bf16.gmra.mxu0 %v364
      %v675 = vpop.f32.mrf.mxu0
      %v676 = vadd.f32 %v627, %v675
      %v677 = vpop.f32.mrf.mxu0
      %v678 = vadd.f32 %v629, %v677
      %679 = vdwg.mxu0
      %680 = vst [vmem:[%s175] sm:$0xff] %v641
      %681 = vst [vmem:[%s175 + $0x8] sm:$0xff] %v643
      %682 = vst [vmem:[%s175 + $0x10] sm:$0xff] %v646
      %683 = vst [vmem:[%s175 + $0x18] sm:$0xff] %v648
      %684 = vst [vmem:[%s175 + $0x20] sm:$0xff] %v651
      %685 = vst [vmem:[%s175 + $0x28] sm:$0xff] %v653
      %686 = vst [vmem:[%s175 + $0x30] sm:$0xff] %v656
      %687 = vst [vmem:[%s175 + $0x38] sm:$0xff] %v658
      %688 = vst [vmem:[%s175 + $0x40] sm:$0xff] %v661
      %689 = vst [vmem:[%s175 + $0x48] sm:$0xff] %v663
      %690 = vst [vmem:[%s175 + $0x50] sm:$0xff] %v666
      %691 = vst [vmem:[%s175 + $0x58] sm:$0xff] %v668
      %692 = vst [vmem:[%s175 + $0x60] sm:$0xff] %v671
      %693 = vst [vmem:[%s175 + $0x68] sm:$0xff] %v673
      %694 = vst [vmem:[%s175 + $0x70] sm:$0xff] %v676
      %695 = vst [vmem:[%s175 + $0x78] sm:$0xff] %v678
      %s696 = smul.u32 16, %s14
      %p697 = scmp.lt.s32.totalorder %s696, 255
      %s698 = scalar_select %p697, %s696, 255
      %s699 = smul.addr %s698, 8
      %s700 = scalar_lea.vmem %s3, %s699
      // Predicated region
      $region33: #{vae_forward.20} parent=31 // pred_check
        %p701 = pneg %p100
      $region34: #{vae_forward.20} parent=31 // pred_check_branch
        %703 = sbr.rel (%p701) target = $region36
      $region35: #{vae_forward.20} parent=31 // pred_region
        %s704 = smul.u32 16, %s14
      $region36: #{vae_forward.20} parent=31 // pred_fallthru
        _
    $region32: #{vae_forward.20} parent=5 // pred_fallthru
      _
    %p705 = scmp.le.s32.totalorder 2, %s9
    // Predicated region
    $region37: #{vae_forward.20} parent=5 // pred_check
      %p706 = pneg %p705
    $region38: #{vae_forward.20} parent=5 // pred_check_branch
      %708 = sbr.rel (%p706) target = $region40
    $region39: #{vae_forward.20} parent=5 // pred_region
      %s709 = ssub.s32 %s9, 2
      // Predicated region
      $region41: #{vae_forward.20} parent=39 // pred_check
        %p710 = pneg %p106
      $region42: #{vae_forward.20} parent=39 // pred_check_branch
        %712 = sbr.rel (%p710) target = $region44
      $region43: #{vae_forward.20} parent=39 // pred_region
        %s713 = smul.u32 16, %s15
        %p714 = scmp.lt.s32.totalorder %s713, 255
        %s715 = scalar_select %p714, %s713, 255
        %s716 = smul.addr %s715, 8
        %s717 = scalar_lea.vmem %s3, %s716
      $region44: #{vae_forward.20} parent=39 // pred_fallthru
        _
    $region40: #{vae_forward.20} parent=5 // pred_fallthru
      _
  $region6: #{vae_forward.20} parent=0 // loop_footer
    %s13 = sadd.s32 1, %s9
  $region7: #{vae_forward.20} parent=0 // loop_footer_branch
    %8 = sbr.rel target = $region3
  $region8: #{vae_forward.20} parent=0 // loop_exit
    _

// kernel: vae_forward.21
$region0: #{vae_forward.21}
  #allocation0 [shape = 'u32[]', space=smem, size = 0x4, offset = 0x4, fixed_abs, tag = 'smem constant byte address 0x4 - core index']
  #allocation1 [shape = 'u32[72,128]{1,0:T(1,128)}', space=vmem, size = 0x9000, scoped, tag = 'internal scratch']
  %s0 = inlined_call_operand.vmem [shape: bf16[8,1024], index: 0, kind: input, shape index: {}]
  %s1 = inlined_call_operand.vmem [shape: bf16[1024,896], index: 1, kind: input, shape index: {}]
  %s2 = inlined_call_operand.vmem [shape: f32[1,896], index: 2, kind: input, shape index: {}]
  %s3 = inlined_call_operand.vmem [shape: f32[8,896], index: 3, kind: output, shape index: {}]
  %s4 = sld [smem:[#allocation0]]
  $region22: #{vae_forward.21} parent=0
    _
  %s6 = ssub.s32 1, %s4
  %s7 = scalar_select 0, %s6, %s4
  // Predicated region
  $region2: #{vae_forward.21} parent=0 // pred_check
    _
  $region3: #{vae_forward.21} parent=0 // pred_check_branch
    %9 = sbr.rel (0) target = $region5
  $region4: #{vae_forward.21} parent=0 // pred_region
    _
  $region5: #{vae_forward.21} parent=0 // pred_fallthru
    _
  // Predicated region
  $region6: #{vae_forward.21} parent=0 // pred_check
    _
  $region7: #{vae_forward.21} parent=0 // pred_check_branch
    %11 = sbr.rel (0) target = $region9
  $region8: #{vae_forward.21} parent=0 // pred_region
    _
  $region9: #{vae_forward.21} parent=0 // pred_fallthru
    _
  // Predicated region
  $region10: #{vae_forward.21} parent=0 // pred_check
    _
  $region11: #{vae_forward.21} parent=0 // pred_check_branch
    %13 = sbr.rel (0) target = $region13
  $region12: #{vae_forward.21} parent=0 // pred_region
    _
  $region13: #{vae_forward.21} parent=0 // pred_fallthru
    _
  %v14 = vld [vmem:[%s0] sm:$0xff]
  %v15 = vld [vmem:[%s0 + $0x8] sm:$0xff]
  %v16 = vld [vmem:[%s0 + $0x10] sm:$0xff]
  %v17 = vld [vmem:[%s0 + $0x18] sm:$0xff]
  %v18 = vld [vmem:[%s1] sm:$0xff]
  %v19 = vld [vmem:[%s1 + $0x8] sm:$0xff]
  %v20 = vld [vmem:[%s1 + $0x10] sm:$0xff]
  %v21 = vld [vmem:[%s1 + $0x18] sm:$0xf]
  %v22 = vld [vmem:[%s1 + $0x1c] sm:$0xff]
  %v23 = vld [vmem:[%s1 + $0x24] sm:$0xff]
  %v24 = vld [vmem:[%s1 + $0x2c] sm:$0xff]
  %v25 = vld [vmem:[%s1 + $0x34] sm:$0xf]
  %v26 = vld [vmem:[%s1 + $0x38] sm:$0xff]
  %v27 = vld [vmem:[%s1 + $0x40] sm:$0xff]
  %v28 = vld [vmem:[%s1 + $0x48] sm:$0xff]
  %v29 = vld [vmem:[%s1 + $0x50] sm:$0xf]
  %v30 = vld [vmem:[%s1 + $0x54] sm:$0xff]
  %v31 = vld [vmem:[%s1 + $0x5c] sm:$0xff]
  %v32 = vld [vmem:[%s1 + $0x64] sm:$0xff]
  %v33 = vld [vmem:[%s1 + $0x6c] sm:$0xf]
  %v34 = vld [vmem:[%s1 + $0x70] sm:$0xff]
  %v35 = vld [vmem:[%s1 + $0x78] sm:$0xff]
  %v36 = vld [vmem:[%s1 + $0x80] sm:$0xff]
  %v37 = vld [vmem:[%s1 + $0x88] sm:$0xf]
  %v38 = vld [vmem:[%s1 + $0x8c] sm:$0xff]
  %v39 = vld [vmem:[%s1 + $0x94] sm:$0xff]
  %v40 = vld [vmem:[%s1 + $0x9c] sm:$0xff]
  %v41 = vld [vmem:[%s1 + $0xa4] sm:$0xf]
  %v42 = vld [vmem:[%s1 + $0xa8] sm:$0xff]
  %v43 = vld [vmem:[%s1 + $0xb0] sm:$0xff]
  %v44 = vld [vmem:[%s1 + $0xb8] sm:$0xff]
  %v45 = vld [vmem:[%s1 + $0xc0] sm:$0xf]
  %v46 = vld [vmem:[%s1 + $0xc4] sm:$0xff]
  %v47 = vld [vmem:[%s1 + $0xcc] sm:$0xff]
  %v48 = vld [vmem:[%s1 + $0xd4] sm:$0xff]
  %v49 = vld [vmem:[%s1 + $0xdc] sm:$0xf]
  %v50 = vld [vmem:[%s1 + $0xe0] sm:$0xff]
  %v51 = vld [vmem:[%s1 + $0xe8] sm:$0xff]
  %v52 = vld [vmem:[%s1 + $0xf0] sm:$0xff]
  %v53 = vld [vmem:[%s1 + $0xf8] sm:$0xf]
  %v54 = vld [vmem:[%s1 + $0xfc] sm:$0xff]
  %v55 = vld [vmem:[%s1 + $0x104] sm:$0xff]
  %v56 = vld [vmem:[%s1 + $0x10c] sm:$0xff]
  %v57 = vld [vmem:[%s1 + $0x114] sm:$0xf]
  %v58 = vld [vmem:[%s1 + $0x118] sm:$0xff]
  %v59 = vld [vmem:[%s1 + $0x120] sm:$0xff]
  %v60 = vld [vmem:[%s1 + $0x128] sm:$0xff]
  %v61 = vld [vmem:[%s1 + $0x130] sm:$0xf]
  %v62 = vld [vmem:[%s1 + $0x134] sm:$0xff]
  %v63 = vld [vmem:[%s1 + $0x13c] sm:$0xff]
  %v64 = vld [vmem:[%s1 + $0x144] sm:$0xff]
  %v65 = vld [vmem:[%s1 + $0x14c] sm:$0xf]
  %v66 = vld [vmem:[%s1 + $0x150] sm:$0xff]
  %v67 = vld [vmem:[%s1 + $0x158] sm:$0xff]
  %v68 = vld [vmem:[%s1 + $0x160] sm:$0xff]
  %v69 = vld [vmem:[%s1 + $0x168] sm:$0xf]
  %v70 = vld [vmem:[%s1 + $0x16c] sm:$0xff]
  %v71 = vld [vmem:[%s1 + $0x174] sm:$0xff]
  %v72 = vld [vmem:[%s1 + $0x17c] sm:$0xff]
  %v73 = vld [vmem:[%s1 + $0x184] sm:$0xf]
  %v74 = vld [vmem:[%s1 + $0x188] sm:$0xff]
  %v75 = vld [vmem:[%s1 + $0x190] sm:$0xff]
  %v76 = vld [vmem:[%s1 + $0x198] sm:$0xff]
  %v77 = vld [vmem:[%s1 + $0x1a0] sm:$0xf]
  %v78 = vld [vmem:[%s1 + $0x1a4] sm:$0xff]
  %v79 = vld [vmem:[%s1 + $0x1ac] sm:$0xff]
  %v80 = vld [vmem:[%s1 + $0x1b4] sm:$0xff]
  %v81 = vld [vmem:[%s1 + $0x1bc] sm:$0xf]
  %v82 = vld [vmem:[%s1 + $0x1c0] sm:$0xff]
  %v83 = vld [vmem:[%s1 + $0x1c8] sm:$0xff]
  %v84 = vld [vmem:[%s1 + $0x1d0] sm:$0xff]
  %v85 = vld [vmem:[%s1 + $0x1d8] sm:$0xf]
  %v86 = vld [vmem:[%s1 + $0x1dc] sm:$0xff]
  %v87 = vld [vmem:[%s1 + $0x1e4] sm:$0xff]
  %v88 = vld [vmem:[%s1 + $0x1ec] sm:$0xff]
  %v89 = vld [vmem:[%s1 + $0x1f4] sm:$0xf]
  %v90 = vld [vmem:[%s1 + $0x1f8] sm:$0xff]
  %v91 = vld [vmem:[%s1 + $0x200] sm:$0xff]
  %v92 = vld [vmem:[%s1 + $0x208] sm:$0xff]
  %v93 = vld [vmem:[%s1 + $0x210] sm:$0xf]
  %v94 = vld [vmem:[%s1 + $0x214] sm:$0xff]
  %v95 = vld [vmem:[%s1 + $0x21c] sm:$0xff]
  %v96 = vld [vmem:[%s1 + $0x224] sm:$0xff]
  %v97 = vld [vmem:[%s1 + $0x22c] sm:$0xf]
  %v98 = vld [vmem:[%s1 + $0x230] sm:$0xff]
  %v99 = vld [vmem:[%s1 + $0x238] sm:$0xff]
  %v100 = vld [vmem:[%s1 + $0x240] sm:$0xff]
  %v101 = vld [vmem:[%s1 + $0x248] sm:$0xf]
  %v102 = vld [vmem:[%s1 + $0x24c] sm:$0xff]
  %v103 = vld [vmem:[%s1 + $0x254] sm:$0xff]
  %v104 = vld [vmem:[%s1 + $0x25c] sm:$0xff]
  %v105 = vld [vmem:[%s1 + $0x264] sm:$0xf]
  %v106 = vld [vmem:[%s1 + $0x268] sm:$0xff]
  %v107 = vld [vmem:[%s1 + $0x270] sm:$0xff]
  %v108 = vld [vmem:[%s1 + $0x278] sm:$0xff]
  %v109 = vld [vmem:[%s1 + $0x280] sm:$0xf]
  %v110 = vld [vmem:[%s1 + $0x284] sm:$0xff]
  %v111 = vld [vmem:[%s1 + $0x28c] sm:$0xff]
  %v112 = vld [vmem:[%s1 + $0x294] sm:$0xff]
  %v113 = vld [vmem:[%s1 + $0x29c] sm:$0xf]
  %v114 = vld [vmem:[%s1 + $0x2a0] sm:$0xff]
  %v115 = vld [vmem:[%s1 + $0x2a8] sm:$0xff]
  %v116 = vld [vmem:[%s1 + $0x2b0] sm:$0xff]
  %v117 = vld [vmem:[%s1 + $0x2b8] sm:$0xf]
  %v118 = vld [vmem:[%s1 + $0x2bc] sm:$0xff]
  %v119 = vld [vmem:[%s1 + $0x2c4] sm:$0xff]
  %v120 = vld [vmem:[%s1 + $0x2cc] sm:$0xff]
  %v121 = vld [vmem:[%s1 + $0x2d4] sm:$0xf]
  %v122 = vld [vmem:[%s1 + $0x2d8] sm:$0xff]
  %v123 = vld [vmem:[%s1 + $0x2e0] sm:$0xff]
  %v124 = vld [vmem:[%s1 + $0x2e8] sm:$0xff]
  %v125 = vld [vmem:[%s1 + $0x2f0] sm:$0xf]
  %v126 = vld [vmem:[%s1 + $0x2f4] sm:$0xff]
  %v127 = vld [vmem:[%s1 + $0x2fc] sm:$0xff]
  %v128 = vld [vmem:[%s1 + $0x304] sm:$0xff]
  %v129 = vld [vmem:[%s1 + $0x30c] sm:$0xf]
  %v130 = vld [vmem:[%s1 + $0x310] sm:$0xff]
  %v131 = vld [vmem:[%s1 + $0x318] sm:$0xff]
  %v132 = vld [vmem:[%s1 + $0x320] sm:$0xff]
  %v133 = vld [vmem:[%s1 + $0x328] sm:$0xf]
  %v134 = vld [vmem:[%s1 + $0x32c] sm:$0xff]
  %v135 = vld [vmem:[%s1 + $0x334] sm:$0xff]
  %v136 = vld [vmem:[%s1 + $0x33c] sm:$0xff]
  %v137 = vld [vmem:[%s1 + $0x344] sm:$0xf]
  %v138 = vld [vmem:[%s1 + $0x348] sm:$0xff]
  %v139 = vld [vmem:[%s1 + $0x350] sm:$0xff]
  %v140 = vld [vmem:[%s1 + $0x358] sm:$0xff]
  %v141 = vld [vmem:[%s1 + $0x360] sm:$0xf]
  %v142 = vld [vmem:[%s1 + $0x364] sm:$0xff]
  %v143 = vld [vmem:[%s1 + $0x36c] sm:$0xff]
  %v144 = vld [vmem:[%s1 + $0x374] sm:$0xff]
  %v145 = vld [vmem:[%s1 + $0x37c] sm:$0xf]
  %v146 = vld [vmem:[%s1 + $0x380] sm:$0xff]
  %v147 = vld [vmem:[%s1 + $0x388] sm:$0xff]
  %v148 = vld [vmem:[%s1 + $0x390] sm:$0xff]
  %v149 = vld [vmem:[%s1 + $0x398] sm:$0xf]
  %v150 = vld [vmem:[%s1 + $0x39c] sm:$0xff]
  %v151 = vld [vmem:[%s1 + $0x3a4] sm:$0xff]
  %v152 = vld [vmem:[%s1 + $0x3ac] sm:$0xff]
  %v153 = vld [vmem:[%s1 + $0x3b4] sm:$0xf]
  %v154 = vld [vmem:[%s1 + $0x3b8] sm:$0xff]
  %v155 = vld [vmem:[%s1 + $0x3c0] sm:$0xff]
  %v156 = vld [vmem:[%s1 + $0x3c8] sm:$0xff]
  %v157 = vld [vmem:[%s1 + $0x3d0] sm:$0xf]
  %v158 = vld [vmem:[%s1 + $0x3d4] sm:$0xff]
  %v159 = vld [vmem:[%s1 + $0x3dc] sm:$0xff]
  %v160 = vld [vmem:[%s1 + $0x3e4] sm:$0xff]
  %v161 = vld [vmem:[%s1 + $0x3ec] sm:$0xf]
  %v162 = vld [vmem:[%s1 + $0x3f0] sm:$0xff]
  %v163 = vld [vmem:[%s1 + $0x3f8] sm:$0xff]
  %v164 = vld [vmem:[%s1 + $0x400] sm:$0xff]
  %v165 = vld [vmem:[%s1 + $0x408] sm:$0xf]
  %v166 = vld [vmem:[%s1 + $0x40c] sm:$0xff]
  %v167 = vld [vmem:[%s1 + $0x414] sm:$0xff]
  %v168 = vld [vmem:[%s1 + $0x41c] sm:$0xff]
  %v169 = vld [vmem:[%s1 + $0x424] sm:$0xf]
  %v170 = vld [vmem:[%s1 + $0x428] sm:$0xff]
  %v171 = vld [vmem:[%s1 + $0x430] sm:$0xff]
  %v172 = vld [vmem:[%s1 + $0x438] sm:$0xff]
  %v173 = vld [vmem:[%s1 + $0x440] sm:$0xf]
  %v174 = vld [vmem:[%s1 + $0x444] sm:$0xff]
  %v175 = vld [vmem:[%s1 + $0x44c] sm:$0xff]
  %v176 = vld [vmem:[%s1 + $0x454] sm:$0xff]
  %v177 = vld [vmem:[%s1 + $0x45c] sm:$0xf]
  %v178 = vld [vmem:[%s1 + $0x460] sm:$0xff]
  %v179 = vld [vmem:[%s1 + $0x468] sm:$0xff]
  %v180 = vld [vmem:[%s1 + $0x470] sm:$0xff]
  %v181 = vld [vmem:[%s1 + $0x478] sm:$0xf]
  %v182 = vld [vmem:[%s1 + $0x47c] sm:$0xff]
  %v183 = vld [vmem:[%s1 + $0x484] sm:$0xff]
  %v184 = vld [vmem:[%s1 + $0x48c] sm:$0xff]
  %v185 = vld [vmem:[%s1 + $0x494] sm:$0xf]
  %v186 = vld [vmem:[%s1 + $0x498] sm:$0xff]
  %v187 = vld [vmem:[%s1 + $0x4a0] sm:$0xff]
  %v188 = vld [vmem:[%s1 + $0x4a8] sm:$0xff]
  %v189 = vld [vmem:[%s1 + $0x4b0] sm:$0xf]
  %v190 = vld [vmem:[%s1 + $0x4b4] sm:$0xff]
  %v191 = vld [vmem:[%s1 + $0x4bc] sm:$0xff]
  %v192 = vld [vmem:[%s1 + $0x4c4] sm:$0xff]
  %v193 = vld [vmem:[%s1 + $0x4cc] sm:$0xf]
  %v194 = vld [vmem:[%s1 + $0x4d0] sm:$0xff]
  %v195 = vld [vmem:[%s1 + $0x4d8] sm:$0xff]
  %v196 = vld [vmem:[%s1 + $0x4e0] sm:$0xff]
  %v197 = vld [vmem:[%s1 + $0x4e8] sm:$0xf]
  %v198 = vld [vmem:[%s1 + $0x4ec] sm:$0xff]
  %v199 = vld [vmem:[%s1 + $0x4f4] sm:$0xff]
  %v200 = vld [vmem:[%s1 + $0x4fc] sm:$0xff]
  %v201 = vld [vmem:[%s1 + $0x504] sm:$0xf]
  %v202 = vld [vmem:[%s1 + $0x508] sm:$0xff]
  %v203 = vld [vmem:[%s1 + $0x510] sm:$0xff]
  %v204 = vld [vmem:[%s1 + $0x518] sm:$0xff]
  %v205 = vld [vmem:[%s1 + $0x520] sm:$0xf]
  %v206 = vld [vmem:[%s1 + $0x524] sm:$0xff]
  %v207 = vld [vmem:[%s1 + $0x52c] sm:$0xff]
  %v208 = vld [vmem:[%s1 + $0x534] sm:$0xff]
  %v209 = vld [vmem:[%s1 + $0x53c] sm:$0xf]
  %v210 = vld [vmem:[%s1 + $0x540] sm:$0xff]
  %v211 = vld [vmem:[%s1 + $0x548] sm:$0xff]
  %v212 = vld [vmem:[%s1 + $0x550] sm:$0xff]
  %v213 = vld [vmem:[%s1 + $0x558] sm:$0xf]
  %v214 = vld [vmem:[%s1 + $0x55c] sm:$0xff]
  %v215 = vld [vmem:[%s1 + $0x564] sm:$0xff]
  %v216 = vld [vmem:[%s1 + $0x56c] sm:$0xff]
  %v217 = vld [vmem:[%s1 + $0x574] sm:$0xf]
  %v218 = vld [vmem:[%s1 + $0x578] sm:$0xff]
  %v219 = vld [vmem:[%s1 + $0x580] sm:$0xff]
  %v220 = vld [vmem:[%s1 + $0x588] sm:$0xff]
  %v221 = vld [vmem:[%s1 + $0x590] sm:$0xf]
  %v222 = vld [vmem:[%s1 + $0x594] sm:$0xff]
  %v223 = vld [vmem:[%s1 + $0x59c] sm:$0xff]
  %v224 = vld [vmem:[%s1 + $0x5a4] sm:$0xff]
  %v225 = vld [vmem:[%s1 + $0x5ac] sm:$0xf]
  %v226 = vld [vmem:[%s1 + $0x5b0] sm:$0xff]
  %v227 = vld [vmem:[%s1 + $0x5b8] sm:$0xff]
  %v228 = vld [vmem:[%s1 + $0x5c0] sm:$0xff]
  %v229 = vld [vmem:[%s1 + $0x5c8] sm:$0xf]
  %v230 = vld [vmem:[%s1 + $0x5cc] sm:$0xff]
  %v231 = vld [vmem:[%s1 + $0x5d4] sm:$0xff]
  %v232 = vld [vmem:[%s1 + $0x5dc] sm:$0xff]
  %v233 = vld [vmem:[%s1 + $0x5e4] sm:$0xf]
  %v234 = vld [vmem:[%s1 + $0x5e8] sm:$0xff]
  %v235 = vld [vmem:[%s1 + $0x5f0] sm:$0xff]
  %v236 = vld [vmem:[%s1 + $0x5f8] sm:$0xff]
  %v237 = vld [vmem:[%s1 + $0x600] sm:$0xf]
  %v238 = vld [vmem:[%s1 + $0x604] sm:$0xff]
  %v239 = vld [vmem:[%s1 + $0x60c] sm:$0xff]
  %v240 = vld [vmem:[%s1 + $0x614] sm:$0xff]
  %v241 = vld [vmem:[%s1 + $0x61c] sm:$0xf]
  %v242 = vld [vmem:[%s1 + $0x620] sm:$0xff]
  %v243 = vld [vmem:[%s1 + $0x628] sm:$0xff]
  %v244 = vld [vmem:[%s1 + $0x630] sm:$0xff]
  %v245 = vld [vmem:[%s1 + $0x638] sm:$0xf]
  %v246 = vld [vmem:[%s1 + $0x63c] sm:$0xff]
  %v247 = vld [vmem:[%s1 + $0x644] sm:$0xff]
  %v248 = vld [vmem:[%s1 + $0x64c] sm:$0xff]
  %v249 = vld [vmem:[%s1 + $0x654] sm:$0xf]
  %v250 = vld [vmem:[%s1 + $0x658] sm:$0xff]
  %v251 = vld [vmem:[%s1 + $0x660] sm:$0xff]
  %v252 = vld [vmem:[%s1 + $0x668] sm:$0xff]
  %v253 = vld [vmem:[%s1 + $0x670] sm:$0xf]
  %v254 = vld [vmem:[%s1 + $0x674] sm:$0xff]
  %v255 = vld [vmem:[%s1 + $0x67c] sm:$0xff]
  %v256 = vld [vmem:[%s1 + $0x684] sm:$0xff]
  %v257 = vld [vmem:[%s1 + $0x68c] sm:$0xf]
  %v258 = vld [vmem:[%s1 + $0x690] sm:$0xff]
  %v259 = vld [vmem:[%s1 + $0x698] sm:$0xff]
  %v260 = vld [vmem:[%s1 + $0x6a0] sm:$0xff]
  %v261 = vld [vmem:[%s1 + $0x6a8] sm:$0xf]
  %v262 = vld [vmem:[%s1 + $0x6ac] sm:$0xff]
  %v263 = vld [vmem:[%s1 + $0x6b4] sm:$0xff]
  %v264 = vld [vmem:[%s1 + $0x6bc] sm:$0xff]
  %v265 = vld [vmem:[%s1 + $0x6c4] sm:$0xf]
  %v266 = vld [vmem:[%s1 + $0x6c8] sm:$0xff]
  %v267 = vld [vmem:[%s1 + $0x6d0] sm:$0xff]
  %v268 = vld [vmem:[%s1 + $0x6d8] sm:$0xff]
  %v269 = vld [vmem:[%s1 + $0x6e0] sm:$0xf]
  %v270 = vld [vmem:[%s1 + $0x6e4] sm:$0xff]
  %v271 = vld [vmem:[%s1 + $0x6ec] sm:$0xff]
  %v272 = vld [vmem:[%s1 + $0x6f4] sm:$0xff]
  %v273 = vld [vmem:[%s1 + $0x6fc] sm:$0xf]
  %v274 = vld [vmem:[%s1 + $0x700] sm:$0xff]
  %v275 = vld [vmem:[%s1 + $0x708] sm:$0xff]
  %v276 = vld [vmem:[%s1 + $0x710] sm:$0xff]
  %v277 = vld [vmem:[%s1 + $0x718] sm:$0xf]
  %v278 = vld [vmem:[%s1 + $0x71c] sm:$0xff]
  %v279 = vld [vmem:[%s1 + $0x724] sm:$0xff]
  %v280 = vld [vmem:[%s1 + $0x72c] sm:$0xff]
  %v281 = vld [vmem:[%s1 + $0x734] sm:$0xf]
  %v282 = vld [vmem:[%s1 + $0x738] sm:$0xff]
  %v283 = vld [vmem:[%s1 + $0x740] sm:$0xff]
  %v284 = vld [vmem:[%s1 + $0x748] sm:$0xff]
  %v285 = vld [vmem:[%s1 + $0x750] sm:$0xf]
  %v286 = vld [vmem:[%s1 + $0x754] sm:$0xff]
  %v287 = vld [vmem:[%s1 + $0x75c] sm:$0xff]
  %v288 = vld [vmem:[%s1 + $0x764] sm:$0xff]
  %v289 = vld [vmem:[%s1 + $0x76c] sm:$0xf]
  %v290 = vld [vmem:[%s1 + $0x770] sm:$0xff]
  %v291 = vld [vmem:[%s1 + $0x778] sm:$0xff]
  %v292 = vld [vmem:[%s1 + $0x780] sm:$0xff]
  %v293 = vld [vmem:[%s1 + $0x788] sm:$0xf]
  %v294 = vld [vmem:[%s1 + $0x78c] sm:$0xff]
  %v295 = vld [vmem:[%s1 + $0x794] sm:$0xff]
  %v296 = vld [vmem:[%s1 + $0x79c] sm:$0xff]
  %v297 = vld [vmem:[%s1 + $0x7a4] sm:$0xf]
  %v298 = vld [vmem:[%s1 + $0x7a8] sm:$0xff]
  %v299 = vld [vmem:[%s1 + $0x7b0] sm:$0xff]
  %v300 = vld [vmem:[%s1 + $0x7b8] sm:$0xff]
  %v301 = vld [vmem:[%s1 + $0x7c0] sm:$0xf]
  %v302 = vld [vmem:[%s1 + $0x7c4] sm:$0xff]
  %v303 = vld [vmem:[%s1 + $0x7cc] sm:$0xff]
  %v304 = vld [vmem:[%s1 + $0x7d4] sm:$0xff]
  %v305 = vld [vmem:[%s1 + $0x7dc] sm:$0xf]
  %v306 = vld [vmem:[%s1 + $0x7e0] sm:$0xff]
  %v307 = vld [vmem:[%s1 + $0x7e8] sm:$0xff]
  %v308 = vld [vmem:[%s1 + $0x7f0] sm:$0xff]
  %v309 = vld [vmem:[%s1 + $0x7f8] sm:$0xf]
  %v310 = vld [vmem:[%s1 + $0x7fc] sm:$0xff]
  %v311 = vld [vmem:[%s1 + $0x804] sm:$0xff]
  %v312 = vld [vmem:[%s1 + $0x80c] sm:$0xff]
  %v313 = vld [vmem:[%s1 + $0x814] sm:$0xf]
  %v314 = vld [vmem:[%s1 + $0x818] sm:$0xff]
  %v315 = vld [vmem:[%s1 + $0x820] sm:$0xff]
  %v316 = vld [vmem:[%s1 + $0x828] sm:$0xff]
  %v317 = vld [vmem:[%s1 + $0x830] sm:$0xf]
  %v318 = vld [vmem:[%s1 + $0x834] sm:$0xff]
  %v319 = vld [vmem:[%s1 + $0x83c] sm:$0xff]
  %v320 = vld [vmem:[%s1 + $0x844] sm:$0xff]
  %v321 = vld [vmem:[%s1 + $0x84c] sm:$0xf]
  %v322 = vld [vmem:[%s1 + $0x850] sm:$0xff]
  %v323 = vld [vmem:[%s1 + $0x858] sm:$0xff]
  %v324 = vld [vmem:[%s1 + $0x860] sm:$0xff]
  %v325 = vld [vmem:[%s1 + $0x868] sm:$0xf]
  %v326 = vld [vmem:[%s1 + $0x86c] sm:$0xff]
  %v327 = vld [vmem:[%s1 + $0x874] sm:$0xff]
  %v328 = vld [vmem:[%s1 + $0x87c] sm:$0xff]
  %v329 = vld [vmem:[%s1 + $0x884] sm:$0xf]
  %v330 = vld [vmem:[%s1 + $0x888] sm:$0xff]
  %v331 = vld [vmem:[%s1 + $0x890] sm:$0xff]
  %v332 = vld [vmem:[%s1 + $0x898] sm:$0xff]
  %v333 = vld [vmem:[%s1 + $0x8a0] sm:$0xf]
  %v334 = vld [vmem:[%s1 + $0x8a4] sm:$0xff]
  %v335 = vld [vmem:[%s1 + $0x8ac] sm:$0xff]
  %v336 = vld [vmem:[%s1 + $0x8b4] sm:$0xff]
  %v337 = vld [vmem:[%s1 + $0x8bc] sm:$0xf]
  %v338 = vld [vmem:[%s1 + $0x8c0] sm:$0xff]
  %v339 = vld [vmem:[%s1 + $0x8c8] sm:$0xff]
  %v340 = vld [vmem:[%s1 + $0x8d0] sm:$0xff]
  %v341 = vld [vmem:[%s1 + $0x8d8] sm:$0xf]
  %v342 = vld [vmem:[%s1 + $0x8dc] sm:$0xff]
  %v343 = vld [vmem:[%s1 + $0x8e4] sm:$0xff]
  %v344 = vld [vmem:[%s1 + $0x8ec] sm:$0xff]
  %v345 = vld [vmem:[%s1 + $0x8f4] sm:$0xf]
  %v346 = vld [vmem:[%s1 + $0x8f8] sm:$0xff]
  %v347 = vld [vmem:[%s1 + $0x900] sm:$0xff]
  %v348 = vld [vmem:[%s1 + $0x908] sm:$0xff]
  %v349 = vld [vmem:[%s1 + $0x910] sm:$0xf]
  %v350 = vld [vmem:[%s1 + $0x914] sm:$0xff]
  %v351 = vld [vmem:[%s1 + $0x91c] sm:$0xff]
  %v352 = vld [vmem:[%s1 + $0x924] sm:$0xff]
  %v353 = vld [vmem:[%s1 + $0x92c] sm:$0xf]
  %v354 = vld [vmem:[%s1 + $0x930] sm:$0xff]
  %v355 = vld [vmem:[%s1 + $0x938] sm:$0xff]
  %v356 = vld [vmem:[%s1 + $0x940] sm:$0xff]
  %v357 = vld [vmem:[%s1 + $0x948] sm:$0xf]
  %v358 = vld [vmem:[%s1 + $0x94c] sm:$0xff]
  %v359 = vld [vmem:[%s1 + $0x954] sm:$0xff]
  %v360 = vld [vmem:[%s1 + $0x95c] sm:$0xff]
  %v361 = vld [vmem:[%s1 + $0x964] sm:$0xf]
  %v362 = vld [vmem:[%s1 + $0x968] sm:$0xff]
  %v363 = vld [vmem:[%s1 + $0x970] sm:$0xff]
  %v364 = vld [vmem:[%s1 + $0x978] sm:$0xff]
  %v365 = vld [vmem:[%s1 + $0x980] sm:$0xf]
  %v366 = vld [vmem:[%s1 + $0x984] sm:$0xff]
  %v367 = vld [vmem:[%s1 + $0x98c] sm:$0xff]
  %v368 = vld [vmem:[%s1 + $0x994] sm:$0xff]
  %v369 = vld [vmem:[%s1 + $0x99c] sm:$0xf]
  %v370 = vld [vmem:[%s1 + $0x9a0] sm:$0xff]
  %v371 = vld [vmem:[%s1 + $0x9a8] sm:$0xff]
  %v372 = vld [vmem:[%s1 + $0x9b0] sm:$0xff]
  %v373 = vld [vmem:[%s1 + $0x9b8] sm:$0xf]
  %v374 = vld [vmem:[%s1 + $0x9bc] sm:$0xff]
  %v375 = vld [vmem:[%s1 + $0x9c4] sm:$0xff]
  %v376 = vld [vmem:[%s1 + $0x9cc] sm:$0xff]
  %v377 = vld [vmem:[%s1 + $0x9d4] sm:$0xf]
  %v378 = vld [vmem:[%s1 + $0x9d8] sm:$0xff]
  %v379 = vld [vmem:[%s1 + $0x9e0] sm:$0xff]
  %v380 = vld [vmem:[%s1 + $0x9e8] sm:$0xff]
  %v381 = vld [vmem:[%s1 + $0x9f0] sm:$0xf]
  %v382 = vld [vmem:[%s1 + $0x9f4] sm:$0xff]
  %v383 = vld [vmem:[%s1 + $0x9fc] sm:$0xff]
  %v384 = vld [vmem:[%s1 + $0xa04] sm:$0xff]
  %v385 = vld [vmem:[%s1 + $0xa0c] sm:$0xf]
  %v386 = vld [vmem:[%s1 + $0xa10] sm:$0xff]
  %v387 = vld [vmem:[%s1 + $0xa18] sm:$0xff]
  %v388 = vld [vmem:[%s1 + $0xa20] sm:$0xff]
  %v389 = vld [vmem:[%s1 + $0xa28] sm:$0xf]
  %v390 = vld [vmem:[%s1 + $0xa2c] sm:$0xff]
  %v391 = vld [vmem:[%s1 + $0xa34] sm:$0xff]
  %v392 = vld [vmem:[%s1 + $0xa3c] sm:$0xff]
  %v393 = vld [vmem:[%s1 + $0xa44] sm:$0xf]
  %v394 = vld [vmem:[%s1 + $0xa48] sm:$0xff]
  %v395 = vld [vmem:[%s1 + $0xa50] sm:$0xff]
  %v396 = vld [vmem:[%s1 + $0xa58] sm:$0xff]
  %v397 = vld [vmem:[%s1 + $0xa60] sm:$0xf]
  %v398 = vld [vmem:[%s1 + $0xa64] sm:$0xff]
  %v399 = vld [vmem:[%s1 + $0xa6c] sm:$0xff]
  %v400 = vld [vmem:[%s1 + $0xa74] sm:$0xff]
  %v401 = vld [vmem:[%s1 + $0xa7c] sm:$0xf]
  %v402 = vld [vmem:[%s1 + $0xa80] sm:$0xff]
  %v403 = vld [vmem:[%s1 + $0xa88] sm:$0xff]
  %v404 = vld [vmem:[%s1 + $0xa90] sm:$0xff]
  %v405 = vld [vmem:[%s1 + $0xa98] sm:$0xf]
  %v406 = vld [vmem:[%s1 + $0xa9c] sm:$0xff]
  %v407 = vld [vmem:[%s1 + $0xaa4] sm:$0xff]
  %v408 = vld [vmem:[%s1 + $0xaac] sm:$0xff]
  %v409 = vld [vmem:[%s1 + $0xab4] sm:$0xf]
  %v410 = vld [vmem:[%s1 + $0xab8] sm:$0xff]
  %v411 = vld [vmem:[%s1 + $0xac0] sm:$0xff]
  %v412 = vld [vmem:[%s1 + $0xac8] sm:$0xff]
  %v413 = vld [vmem:[%s1 + $0xad0] sm:$0xf]
  %v414 = vld [vmem:[%s1 + $0xad4] sm:$0xff]
  %v415 = vld [vmem:[%s1 + $0xadc] sm:$0xff]
  %v416 = vld [vmem:[%s1 + $0xae4] sm:$0xff]
  %v417 = vld [vmem:[%s1 + $0xaec] sm:$0xf]
  %v418 = vld [vmem:[%s1 + $0xaf0] sm:$0xff]
  %v419 = vld [vmem:[%s1 + $0xaf8] sm:$0xff]
  %v420 = vld [vmem:[%s1 + $0xb00] sm:$0xff]
  %v421 = vld [vmem:[%s1 + $0xb08] sm:$0xf]
  %v422 = vld [vmem:[%s1 + $0xb0c] sm:$0xff]
  %v423 = vld [vmem:[%s1 + $0xb14] sm:$0xff]
  %v424 = vld [vmem:[%s1 + $0xb1c] sm:$0xff]
  %v425 = vld [vmem:[%s1 + $0xb24] sm:$0xf]
  %v426 = vld [vmem:[%s1 + $0xb28] sm:$0xff]
  %v427 = vld [vmem:[%s1 + $0xb30] sm:$0xff]
  %v428 = vld [vmem:[%s1 + $0xb38] sm:$0xff]
  %v429 = vld [vmem:[%s1 + $0xb40] sm:$0xf]
  %v430 = vld [vmem:[%s1 + $0xb44] sm:$0xff]
  %v431 = vld [vmem:[%s1 + $0xb4c] sm:$0xff]
  %v432 = vld [vmem:[%s1 + $0xb54] sm:$0xff]
  %v433 = vld [vmem:[%s1 + $0xb5c] sm:$0xf]
  %v434 = vld [vmem:[%s1 + $0xb60] sm:$0xff]
  %v435 = vld [vmem:[%s1 + $0xb68] sm:$0xff]
  %v436 = vld [vmem:[%s1 + $0xb70] sm:$0xff]
  %v437 = vld [vmem:[%s1 + $0xb78] sm:$0xf]
  %v438 = vld [vmem:[%s1 + $0xb7c] sm:$0xff]
  %v439 = vld [vmem:[%s1 + $0xb84] sm:$0xff]
  %v440 = vld [vmem:[%s1 + $0xb8c] sm:$0xff]
  %v441 = vld [vmem:[%s1 + $0xb94] sm:$0xf]
  %v442 = vld [vmem:[%s1 + $0xb98] sm:$0xff]
  %v443 = vld [vmem:[%s1 + $0xba0] sm:$0xff]
  %v444 = vld [vmem:[%s1 + $0xba8] sm:$0xff]
  %v445 = vld [vmem:[%s1 + $0xbb0] sm:$0xf]
  %v446 = vld [vmem:[%s1 + $0xbb4] sm:$0xff]
  %v447 = vld [vmem:[%s1 + $0xbbc] sm:$0xff]
  %v448 = vld [vmem:[%s1 + $0xbc4] sm:$0xff]
  %v449 = vld [vmem:[%s1 + $0xbcc] sm:$0xf]
  %v450 = vld [vmem:[%s1 + $0xbd0] sm:$0xff]
  %v451 = vld [vmem:[%s1 + $0xbd8] sm:$0xff]
  %v452 = vld [vmem:[%s1 + $0xbe0] sm:$0xff]
  %v453 = vld [vmem:[%s1 + $0xbe8] sm:$0xf]
  %v454 = vld [vmem:[%s1 + $0xbec] sm:$0xff]
  %v455 = vld [vmem:[%s1 + $0xbf4] sm:$0xff]
  %v456 = vld [vmem:[%s1 + $0xbfc] sm:$0xff]
  %v457 = vld [vmem:[%s1 + $0xc04] sm:$0xf]
  %v458 = vld [vmem:[%s1 + $0xc08] sm:$0xff]
  %v459 = vld [vmem:[%s1 + $0xc10] sm:$0xff]
  %v460 = vld [vmem:[%s1 + $0xc18] sm:$0xff]
  %v461 = vld [vmem:[%s1 + $0xc20] sm:$0xf]
  %v462 = vld [vmem:[%s1 + $0xc24] sm:$0xff]
  %v463 = vld [vmem:[%s1 + $0xc2c] sm:$0xff]
  %v464 = vld [vmem:[%s1 + $0xc34] sm:$0xff]
  %v465 = vld [vmem:[%s1 + $0xc3c] sm:$0xf]
  %v466 = vld [vmem:[%s1 + $0xc40] sm:$0xff]
  %v467 = vld [vmem:[%s1 + $0xc48] sm:$0xff]
  %v468 = vld [vmem:[%s1 + $0xc50] sm:$0xff]
  %v469 = vld [vmem:[%s1 + $0xc58] sm:$0xf]
  %v470 = vld [vmem:[%s1 + $0xc5c] sm:$0xff]
  %v471 = vld [vmem:[%s1 + $0xc64] sm:$0xff]
  %v472 = vld [vmem:[%s1 + $0xc6c] sm:$0xff]
  %v473 = vld [vmem:[%s1 + $0xc74] sm:$0xf]
  %v474 = vld [vmem:[%s1 + $0xc78] sm:$0xff]
  %v475 = vld [vmem:[%s1 + $0xc80] sm:$0xff]
  %v476 = vld [vmem:[%s1 + $0xc88] sm:$0xff]
  %v477 = vld [vmem:[%s1 + $0xc90] sm:$0xf]
  %v478 = vld [vmem:[%s1 + $0xc94] sm:$0xff]
  %v479 = vld [vmem:[%s1 + $0xc9c] sm:$0xff]
  %v480 = vld [vmem:[%s1 + $0xca4] sm:$0xff]
  %v481 = vld [vmem:[%s1 + $0xcac] sm:$0xf]
  %v482 = vld [vmem:[%s1 + $0xcb0] sm:$0xff]
  %v483 = vld [vmem:[%s1 + $0xcb8] sm:$0xff]
  %v484 = vld [vmem:[%s1 + $0xcc0] sm:$0xff]
  %v485 = vld [vmem:[%s1 + $0xcc8] sm:$0xf]
  %v486 = vld [vmem:[%s1 + $0xccc] sm:$0xff]
  %v487 = vld [vmem:[%s1 + $0xcd4] sm:$0xff]
  %v488 = vld [vmem:[%s1 + $0xcdc] sm:$0xff]
  %v489 = vld [vmem:[%s1 + $0xce4] sm:$0xf]
  %v490 = vld [vmem:[%s1 + $0xce8] sm:$0xff]
  %v491 = vld [vmem:[%s1 + $0xcf0] sm:$0xff]
  %v492 = vld [vmem:[%s1 + $0xcf8] sm:$0xff]
  %v493 = vld [vmem:[%s1 + $0xd00] sm:$0xf]
  %v494 = vld [vmem:[%s1 + $0xd04] sm:$0xff]
  %v495 = vld [vmem:[%s1 + $0xd0c] sm:$0xff]
  %v496 = vld [vmem:[%s1 + $0xd14] sm:$0xff]
  %v497 = vld [vmem:[%s1 + $0xd1c] sm:$0xf]
  %v498 = vld [vmem:[%s1 + $0xd20] sm:$0xff]
  %v499 = vld [vmem:[%s1 + $0xd28] sm:$0xff]
  %v500 = vld [vmem:[%s1 + $0xd30] sm:$0xff]
  %v501 = vld [vmem:[%s1 + $0xd38] sm:$0xf]
  %v502 = vld [vmem:[%s1 + $0xd3c] sm:$0xff]
  %v503 = vld [vmem:[%s1 + $0xd44] sm:$0xff]
  %v504 = vld [vmem:[%s1 + $0xd4c] sm:$0xff]
  %v505 = vld [vmem:[%s1 + $0xd54] sm:$0xf]
  %v506 = vld [vmem:[%s1 + $0xd58] sm:$0xff]
  %v507 = vld [vmem:[%s1 + $0xd60] sm:$0xff]
  %v508 = vld [vmem:[%s1 + $0xd68] sm:$0xff]
  %v509 = vld [vmem:[%s1 + $0xd70] sm:$0xf]
  %v510 = vld [vmem:[%s1 + $0xd74] sm:$0xff]
  %v511 = vld [vmem:[%s1 + $0xd7c] sm:$0xff]
  %v512 = vld [vmem:[%s1 + $0xd84] sm:$0xff]
  %v513 = vld [vmem:[%s1 + $0xd8c] sm:$0xf]
  %v514 = vld [vmem:[%s1 + $0xd90] sm:$0xff]
  %v515 = vld [vmem:[%s1 + $0xd98] sm:$0xff]
  %v516 = vld [vmem:[%s1 + $0xda0] sm:$0xff]
  %v517 = vld [vmem:[%s1 + $0xda8] sm:$0xf]
  %v518 = vld [vmem:[%s1 + $0xdac] sm:$0xff]
  %v519 = vld [vmem:[%s1 + $0xdb4] sm:$0xff]
  %v520 = vld [vmem:[%s1 + $0xdbc] sm:$0xff]
  %v521 = vld [vmem:[%s1 + $0xdc4] sm:$0xf]
  %v522 = vld [vmem:[%s1 + $0xdc8] sm:$0xff]
  %v523 = vld [vmem:[%s1 + $0xdd0] sm:$0xff]
  %v524 = vld [vmem:[%s1 + $0xdd8] sm:$0xff]
  %v525 = vld [vmem:[%s1 + $0xde0] sm:$0xf]
  %v526 = vld [vmem:[%s1 + $0xde4] sm:$0xff]
  %v527 = vld [vmem:[%s1 + $0xdec] sm:$0xff]
  %v528 = vld [vmem:[%s1 + $0xdf4] sm:$0xff]
  %v529 = vld [vmem:[%s1 + $0xdfc] sm:$0xf]
  %v530 = vld [vmem:[%s2] sm:$0xff]
  %v532 = vperm.slane %v530, 0
  %v533 = vperm.slane %v530, 1
  %v534 = vperm.slane %v530, 2
  %v535 = vperm.slane %v530, 3
  %v536 = vperm.slane %v530, 4
  %v537 = vperm.slane %v530, 5
  %v538 = vperm.slane %v530, 6
  %v550 = vunpack.c.l.b16 %v14
  %v551 = vunpack.c.h.b16 %v14
  %v552 = vunpack.c.l.b16 %v15
  %v553 = vunpack.c.h.b16 %v15
  %v554 = vunpack.c.l.b16 %v16
  %v555 = vunpack.c.h.b16 %v16
  %v556 = vunpack.c.l.b16 %v17
  %v557 = vunpack.c.h.b16 %v17
  %v558 = vpack.c.b16 %v550, %v550
  %v559 = vpack.c.b16 %v551, %v551
  %v560 = vpack.c.b16 %v552, %v552
  %v561 = vpack.c.b16 %v553, %v553
  %v562 = vpack.c.b16 %v554, %v554
  %v563 = vpack.c.b16 %v555, %v555
  %v564 = vpack.c.b16 %v556, %v556
  %v565 = vpack.c.b16 %v557, %v557
  %v1086 = vunpack.c.l.b16 %v18
  %v1087 = vunpack.c.h.b16 %v18
  %v1088 = vunpack.c.l.b16 %v19
  %v1089 = vunpack.c.h.b16 %v19
  %v1090 = vunpack.c.l.b16 %v20
  %v1091 = vunpack.c.h.b16 %v20
  %v1092 = vunpack.c.l.b16 %v21
  %v1093 = vunpack.c.l.b16 %v22
  %v1094 = vunpack.c.h.b16 %v22
  %v1095 = vunpack.c.l.b16 %v23
  %v1096 = vunpack.c.h.b16 %v23
  %v1097 = vunpack.c.l.b16 %v24
  %v1098 = vunpack.c.h.b16 %v24
  %v1099 = vunpack.c.l.b16 %v25
  %v1100 = vunpack.c.l.b16 %v26
  %v1101 = vunpack.c.h.b16 %v26
  %v1102 = vunpack.c.l.b16 %v27
  %v1103 = vunpack.c.h.b16 %v27
  %v1104 = vunpack.c.l.b16 %v28
  %v1105 = vunpack.c.h.b16 %v28
  %v1106 = vunpack.c.l.b16 %v29
  %v1107 = vunpack.c.l.b16 %v30
  %v1108 = vunpack.c.h.b16 %v30
  %v1109 = vunpack.c.l.b16 %v31
  %v1110 = vunpack.c.h.b16 %v31
  %v1111 = vunpack.c.l.b16 %v32
  %v1112 = vunpack.c.h.b16 %v32
  %v1113 = vunpack.c.l.b16 %v33
  %v1114 = vunpack.c.l.b16 %v34
  %v1115 = vunpack.c.h.b16 %v34
  %v1116 = vunpack.c.l.b16 %v35
  %v1117 = vunpack.c.h.b16 %v35
  %v1118 = vunpack.c.l.b16 %v36
  %v1119 = vunpack.c.h.b16 %v36
  %v1120 = vunpack.c.l.b16 %v37
  %v1121 = vunpack.c.l.b16 %v38
  %v1122 = vunpack.c.h.b16 %v38
  %v1123 = vunpack.c.l.b16 %v39
  %v1124 = vunpack.c.h.b16 %v39
  %v1125 = vunpack.c.l.b16 %v40
  %v1126 = vunpack.c.h.b16 %v40
  %v1127 = vunpack.c.l.b16 %v41
  %v1128 = vunpack.c.l.b16 %v42
  %v1129 = vunpack.c.h.b16 %v42
  %v1130 = vunpack.c.l.b16 %v43
  %v1131 = vunpack.c.h.b16 %v43
  %v1132 = vunpack.c.l.b16 %v44
  %v1133 = vunpack.c.h.b16 %v44
  %v1134 = vunpack.c.l.b16 %v45
  %v1135 = vunpack.c.l.b16 %v46
  %v1136 = vunpack.c.h.b16 %v46
  %v1137 = vunpack.c.l.b16 %v47
  %v1138 = vunpack.c.h.b16 %v47
  %v1139 = vunpack.c.l.b16 %v48
  %v1140 = vunpack.c.h.b16 %v48
  %v1141 = vunpack.c.l.b16 %v49
  %v1142 = vunpack.c.l.b16 %v50
  %v1143 = vunpack.c.h.b16 %v50
  %v1144 = vunpack.c.l.b16 %v51
  %v1145 = vunpack.c.h.b16 %v51
  %v1146 = vunpack.c.l.b16 %v52
  %v1147 = vunpack.c.h.b16 %v52
  %v1148 = vunpack.c.l.b16 %v53
  %v1149 = vunpack.c.l.b16 %v54
  %v1150 = vunpack.c.h.b16 %v54
  %v1151 = vunpack.c.l.b16 %v55
  %v1152 = vunpack.c.h.b16 %v55
  %v1153 = vunpack.c.l.b16 %v56
  %v1154 = vunpack.c.h.b16 %v56
  %v1155 = vunpack.c.l.b16 %v57
  %v1156 = vunpack.c.l.b16 %v58
  %v1157 = vunpack.c.h.b16 %v58
  %v1158 = vunpack.c.l.b16 %v59
  %v1159 = vunpack.c.h.b16 %v59
  %v1160 = vunpack.c.l.b16 %v60
  %v1161 = vunpack.c.h.b16 %v60
  %v1162 = vunpack.c.l.b16 %v61
  %v1163 = vunpack.c.l.b16 %v62
  %v1164 = vunpack.c.h.b16 %v62
  %v1165 = vunpack.c.l.b16 %v63
  %v1166 = vunpack.c.h.b16 %v63
  %v1167 = vunpack.c.l.b16 %v64
  %v1168 = vunpack.c.h.b16 %v64
  %v1169 = vunpack.c.l.b16 %v65
  %v1170 = vunpack.c.l.b16 %v66
  %v1171 = vunpack.c.h.b16 %v66
  %v1172 = vunpack.c.l.b16 %v67
  %v1173 = vunpack.c.h.b16 %v67
  %v1174 = vunpack.c.l.b16 %v68
  %v1175 = vunpack.c.h.b16 %v68
  %v1176 = vunpack.c.l.b16 %v69
  %v1177 = vunpack.c.l.b16 %v70
  %v1178 = vunpack.c.h.b16 %v70
  %v1179 = vunpack.c.l.b16 %v71
  %v1180 = vunpack.c.h.b16 %v71
  %v1181 = vunpack.c.l.b16 %v72
  %v1182 = vunpack.c.h.b16 %v72
  %v1183 = vunpack.c.l.b16 %v73
  %v1184 = vunpack.c.l.b16 %v74
  %v1185 = vunpack.c.h.b16 %v74
  %v1186 = vunpack.c.l.b16 %v75
  %v1187 = vunpack.c.h.b16 %v75
  %v1188 = vunpack.c.l.b16 %v76
  %v1189 = vunpack.c.h.b16 %v76
  %v1190 = vunpack.c.l.b16 %v77
  %v1191 = vunpack.c.l.b16 %v78
  %v1192 = vunpack.c.h.b16 %v78
  %v1193 = vunpack.c.l.b16 %v79
  %v1194 = vunpack.c.h.b16 %v79
  %v1195 = vunpack.c.l.b16 %v80
  %v1196 = vunpack.c.h.b16 %v80
  %v1197 = vunpack.c.l.b16 %v81
  %v1198 = vunpack.c.l.b16 %v82
  %v1199 = vunpack.c.h.b16 %v82
  %v1200 = vunpack.c.l.b16 %v83
  %v1201 = vunpack.c.h.b16 %v83
  %v1202 = vunpack.c.l.b16 %v84
  %v1203 = vunpack.c.h.b16 %v84
  %v1204 = vunpack.c.l.b16 %v85
  %v1205 = vunpack.c.l.b16 %v86
  %v1206 = vunpack.c.h.b16 %v86
  %v1207 = vunpack.c.l.b16 %v87
  %v1208 = vunpack.c.h.b16 %v87
  %v1209 = vunpack.c.l.b16 %v88
  %v1210 = vunpack.c.h.b16 %v88
  %v1211 = vunpack.c.l.b16 %v89
  %v1212 = vunpack.c.l.b16 %v90
  %v1213 = vunpack.c.h.b16 %v90
  %v1214 = vunpack.c.l.b16 %v91
  %v1215 = vunpack.c.h.b16 %v91
  %v1216 = vunpack.c.l.b16 %v92
  %v1217 = vunpack.c.h.b16 %v92
  %v1218 = vunpack.c.l.b16 %v93
  %v1219 = vunpack.c.l.b16 %v94
  %v1220 = vunpack.c.h.b16 %v94
  %v1221 = vunpack.c.l.b16 %v95
  %v1222 = vunpack.c.h.b16 %v95
  %v1223 = vunpack.c.l.b16 %v96
  %v1224 = vunpack.c.h.b16 %v96
  %v1225 = vunpack.c.l.b16 %v97
  %v1226 = vunpack.c.l.b16 %v98
  %v1227 = vunpack.c.h.b16 %v98
  %v1228 = vunpack.c.l.b16 %v99
  %v1229 = vunpack.c.h.b16 %v99
  %v1230 = vunpack.c.l.b16 %v100
  %v1231 = vunpack.c.h.b16 %v100
  %v1232 = vunpack.c.l.b16 %v101
  %v1233 = vunpack.c.l.b16 %v102
  %v1234 = vunpack.c.h.b16 %v102
  %v1235 = vunpack.c.l.b16 %v103
  %v1236 = vunpack.c.h.b16 %v103
  %v1237 = vunpack.c.l.b16 %v104
  %v1238 = vunpack.c.h.b16 %v104
  %v1239 = vunpack.c.l.b16 %v105
  %v1240 = vunpack.c.l.b16 %v106
  %v1241 = vunpack.c.h.b16 %v106
  %v1242 = vunpack.c.l.b16 %v107
  %v1243 = vunpack.c.h.b16 %v107
  %v1244 = vunpack.c.l.b16 %v108
  %v1245 = vunpack.c.h.b16 %v108
  %v1246 = vunpack.c.l.b16 %v109
  %v1247 = vunpack.c.l.b16 %v110
  %v1248 = vunpack.c.h.b16 %v110
  %v1249 = vunpack.c.l.b16 %v111
  %v1250 = vunpack.c.h.b16 %v111
  %v1251 = vunpack.c.l.b16 %v112
  %v1252 = vunpack.c.h.b16 %v112
  %v1253 = vunpack.c.l.b16 %v113
  %v1254 = vunpack.c.l.b16 %v114
  %v1255 = vunpack.c.h.b16 %v114
  %v1256 = vunpack.c.l.b16 %v115
  %v1257 = vunpack.c.h.b16 %v115
  %v1258 = vunpack.c.l.b16 %v116
  %v1259 = vunpack.c.h.b16 %v116
  %v1260 = vunpack.c.l.b16 %v117
  %v1261 = vunpack.c.l.b16 %v118
  %v1262 = vunpack.c.h.b16 %v118
  %v1263 = vunpack.c.l.b16 %v119
  %v1264 = vunpack.c.h.b16 %v119
  %v1265 = vunpack.c.l.b16 %v120
  %v1266 = vunpack.c.h.b16 %v120
  %v1267 = vunpack.c.l.b16 %v121
  %v1268 = vunpack.c.l.b16 %v122
  %v1269 = vunpack.c.h.b16 %v122
  %v1270 = vunpack.c.l.b16 %v123
  %v1271 = vunpack.c.h.b16 %v123
  %v1272 = vunpack.c.l.b16 %v124
  %v1273 = vunpack.c.h.b16 %v124
  %v1274 = vunpack.c.l.b16 %v125
  %v1275 = vunpack.c.l.b16 %v126
  %v1276 = vunpack.c.h.b16 %v126
  %v1277 = vunpack.c.l.b16 %v127
  %v1278 = vunpack.c.h.b16 %v127
  %v1279 = vunpack.c.l.b16 %v128
  %v1280 = vunpack.c.h.b16 %v128
  %v1281 = vunpack.c.l.b16 %v129
  %v1282 = vunpack.c.l.b16 %v130
  %v1283 = vunpack.c.h.b16 %v130
  %v1284 = vunpack.c.l.b16 %v131
  %v1285 = vunpack.c.h.b16 %v131
  %v1286 = vunpack.c.l.b16 %v132
  %v1287 = vunpack.c.h.b16 %v132
  %v1288 = vunpack.c.l.b16 %v133
  %v1289 = vunpack.c.l.b16 %v134
  %v1290 = vunpack.c.h.b16 %v134
  %v1291 = vunpack.c.l.b16 %v135
  %v1292 = vunpack.c.h.b16 %v135
  %v1293 = vunpack.c.l.b16 %v136
  %v1294 = vunpack.c.h.b16 %v136
  %v1295 = vunpack.c.l.b16 %v137
  %v1296 = vunpack.c.l.b16 %v138
  %v1297 = vunpack.c.h.b16 %v138
  %v1298 = vunpack.c.l.b16 %v139
  %v1299 = vunpack.c.h.b16 %v139
  %v1300 = vunpack.c.l.b16 %v140
  %v1301 = vunpack.c.h.b16 %v140
  %v1302 = vunpack.c.l.b16 %v141
  %v1303 = vunpack.c.l.b16 %v142
  %v1304 = vunpack.c.h.b16 %v142
  %v1305 = vunpack.c.l.b16 %v143
  %v1306 = vunpack.c.h.b16 %v143
  %v1307 = vunpack.c.l.b16 %v144
  %v1308 = vunpack.c.h.b16 %v144
  %v1309 = vunpack.c.l.b16 %v145
  %v1310 = vunpack.c.l.b16 %v146
  %v1311 = vunpack.c.h.b16 %v146
  %v1312 = vunpack.c.l.b16 %v147
  %v1313 = vunpack.c.h.b16 %v147
  %v1314 = vunpack.c.l.b16 %v148
  %v1315 = vunpack.c.h.b16 %v148
  %v1316 = vunpack.c.l.b16 %v149
  %v1317 = vunpack.c.l.b16 %v150
  %v1318 = vunpack.c.h.b16 %v150
  %v1319 = vunpack.c.l.b16 %v151
  %v1320 = vunpack.c.h.b16 %v151
  %v1321 = vunpack.c.l.b16 %v152
  %v1322 = vunpack.c.h.b16 %v152
  %v1323 = vunpack.c.l.b16 %v153
  %v1324 = vunpack.c.l.b16 %v154
  %v1325 = vunpack.c.h.b16 %v154
  %v1326 = vunpack.c.l.b16 %v155
  %v1327 = vunpack.c.h.b16 %v155
  %v1328 = vunpack.c.l.b16 %v156
  %v1329 = vunpack.c.h.b16 %v156
  %v1330 = vunpack.c.l.b16 %v157
  %v1331 = vunpack.c.l.b16 %v158
  %v1332 = vunpack.c.h.b16 %v158
  %v1333 = vunpack.c.l.b16 %v159
  %v1334 = vunpack.c.h.b16 %v159
  %v1335 = vunpack.c.l.b16 %v160
  %v1336 = vunpack.c.h.b16 %v160
  %v1337 = vunpack.c.l.b16 %v161
  %v1338 = vunpack.c.l.b16 %v162
  %v1339 = vunpack.c.h.b16 %v162
  %v1340 = vunpack.c.l.b16 %v163
  %v1341 = vunpack.c.h.b16 %v163
  %v1342 = vunpack.c.l.b16 %v164
  %v1343 = vunpack.c.h.b16 %v164
  %v1344 = vunpack.c.l.b16 %v165
  %v1345 = vunpack.c.l.b16 %v166
  %v1346 = vunpack.c.h.b16 %v166
  %v1347 = vunpack.c.l.b16 %v167
  %v1348 = vunpack.c.h.b16 %v167
  %v1349 = vunpack.c.l.b16 %v168
  %v1350 = vunpack.c.h.b16 %v168
  %v1351 = vunpack.c.l.b16 %v169
  %v1352 = vunpack.c.l.b16 %v170
  %v1353 = vunpack.c.h.b16 %v170
  %v1354 = vunpack.c.l.b16 %v171
  %v1355 = vunpack.c.h.b16 %v171
  %v1356 = vunpack.c.l.b16 %v172
  %v1357 = vunpack.c.h.b16 %v172
  %v1358 = vunpack.c.l.b16 %v173
  %v1359 = vunpack.c.l.b16 %v174
  %v1360 = vunpack.c.h.b16 %v174
  %v1361 = vunpack.c.l.b16 %v175
  %v1362 = vunpack.c.h.b16 %v175
  %v1363 = vunpack.c.l.b16 %v176
  %v1364 = vunpack.c.h.b16 %v176
  %v1365 = vunpack.c.l.b16 %v177
  %v1366 = vunpack.c.l.b16 %v178
  %v1367 = vunpack.c.h.b16 %v178
  %v1368 = vunpack.c.l.b16 %v179
  %v1369 = vunpack.c.h.b16 %v179
  %v1370 = vunpack.c.l.b16 %v180
  %v1371 = vunpack.c.h.b16 %v180
  %v1372 = vunpack.c.l.b16 %v181
  %v1373 = vunpack.c.l.b16 %v182
  %v1374 = vunpack.c.h.b16 %v182
  %v1375 = vunpack.c.l.b16 %v183
  %v1376 = vunpack.c.h.b16 %v183
  %v1377 = vunpack.c.l.b16 %v184
  %v1378 = vunpack.c.h.b16 %v184
  %v1379 = vunpack.c.l.b16 %v185
  %v1380 = vunpack.c.l.b16 %v186
  %v1381 = vunpack.c.h.b16 %v186
  %v1382 = vunpack.c.l.b16 %v187
  %v1383 = vunpack.c.h.b16 %v187
  %v1384 = vunpack.c.l.b16 %v188
  %v1385 = vunpack.c.h.b16 %v188
  %v1386 = vunpack.c.l.b16 %v189
  %v1387 = vunpack.c.l.b16 %v190
  %v1388 = vunpack.c.h.b16 %v190
  %v1389 = vunpack.c.l.b16 %v191
  %v1390 = vunpack.c.h.b16 %v191
  %v1391 = vunpack.c.l.b16 %v192
  %v1392 = vunpack.c.h.b16 %v192
  %v1393 = vunpack.c.l.b16 %v193
  %v1394 = vunpack.c.l.b16 %v194
  %v1395 = vunpack.c.h.b16 %v194
  %v1396 = vunpack.c.l.b16 %v195
  %v1397 = vunpack.c.h.b16 %v195
  %v1398 = vunpack.c.l.b16 %v196
  %v1399 = vunpack.c.h.b16 %v196
  %v1400 = vunpack.c.l.b16 %v197
  %v1401 = vunpack.c.l.b16 %v198
  %v1402 = vunpack.c.h.b16 %v198
  %v1403 = vunpack.c.l.b16 %v199
  %v1404 = vunpack.c.h.b16 %v199
  %v1405 = vunpack.c.l.b16 %v200
  %v1406 = vunpack.c.h.b16 %v200
  %v1407 = vunpack.c.l.b16 %v201
  %v1408 = vunpack.c.l.b16 %v202
  %v1409 = vunpack.c.h.b16 %v202
  %v1410 = vunpack.c.l.b16 %v203
  %v1411 = vunpack.c.h.b16 %v203
  %v1412 = vunpack.c.l.b16 %v204
  %v1413 = vunpack.c.h.b16 %v204
  %v1414 = vunpack.c.l.b16 %v205
  %v1415 = vunpack.c.l.b16 %v206
  %v1416 = vunpack.c.h.b16 %v206
  %v1417 = vunpack.c.l.b16 %v207
  %v1418 = vunpack.c.h.b16 %v207
  %v1419 = vunpack.c.l.b16 %v208
  %v1420 = vunpack.c.h.b16 %v208
  %v1421 = vunpack.c.l.b16 %v209
  %v1422 = vunpack.c.l.b16 %v210
  %v1423 = vunpack.c.h.b16 %v210
  %v1424 = vunpack.c.l.b16 %v211
  %v1425 = vunpack.c.h.b16 %v211
  %v1426 = vunpack.c.l.b16 %v212
  %v1427 = vunpack.c.h.b16 %v212
  %v1428 = vunpack.c.l.b16 %v213
  %v1429 = vunpack.c.l.b16 %v214
  %v1430 = vunpack.c.h.b16 %v214
  %v1431 = vunpack.c.l.b16 %v215
  %v1432 = vunpack.c.h.b16 %v215
  %v1433 = vunpack.c.l.b16 %v216
  %v1434 = vunpack.c.h.b16 %v216
  %v1435 = vunpack.c.l.b16 %v217
  %v1436 = vunpack.c.l.b16 %v218
  %v1437 = vunpack.c.h.b16 %v218
  %v1438 = vunpack.c.l.b16 %v219
  %v1439 = vunpack.c.h.b16 %v219
  %v1440 = vunpack.c.l.b16 %v220
  %v1441 = vunpack.c.h.b16 %v220
  %v1442 = vunpack.c.l.b16 %v221
  %v1443 = vunpack.c.l.b16 %v222
  %v1444 = vunpack.c.h.b16 %v222
  %v1445 = vunpack.c.l.b16 %v223
  %v1446 = vunpack.c.h.b16 %v223
  %v1447 = vunpack.c.l.b16 %v224
  %v1448 = vunpack.c.h.b16 %v224
  %v1449 = vunpack.c.l.b16 %v225
  %v1450 = vunpack.c.l.b16 %v226
  %v1451 = vunpack.c.h.b16 %v226
  %v1452 = vunpack.c.l.b16 %v227
  %v1453 = vunpack.c.h.b16 %v227
  %v1454 = vunpack.c.l.b16 %v228
  %v1455 = vunpack.c.h.b16 %v228
  %v1456 = vunpack.c.l.b16 %v229
  %v1457 = vunpack.c.l.b16 %v230
  %v1458 = vunpack.c.h.b16 %v230
  %v1459 = vunpack.c.l.b16 %v231
  %v1460 = vunpack.c.h.b16 %v231
  %v1461 = vunpack.c.l.b16 %v232
  %v1462 = vunpack.c.h.b16 %v232
  %v1463 = vunpack.c.l.b16 %v233
  %v1464 = vunpack.c.l.b16 %v234
  %v1465 = vunpack.c.h.b16 %v234
  %v1466 = vunpack.c.l.b16 %v235
  %v1467 = vunpack.c.h.b16 %v235
  %v1468 = vunpack.c.l.b16 %v236
  %v1469 = vunpack.c.h.b16 %v236
  %v1470 = vunpack.c.l.b16 %v237
  %v1471 = vunpack.c.l.b16 %v238
  %v1472 = vunpack.c.h.b16 %v238
  %v1473 = vunpack.c.l.b16 %v239
  %v1474 = vunpack.c.h.b16 %v239
  %v1475 = vunpack.c.l.b16 %v240
  %v1476 = vunpack.c.h.b16 %v240
  %v1477 = vunpack.c.l.b16 %v241
  %v1478 = vunpack.c.l.b16 %v242
  %v1479 = vunpack.c.h.b16 %v242
  %v1480 = vunpack.c.l.b16 %v243
  %v1481 = vunpack.c.h.b16 %v243
  %v1482 = vunpack.c.l.b16 %v244
  %v1483 = vunpack.c.h.b16 %v244
  %v1484 = vunpack.c.l.b16 %v245
  %v1485 = vunpack.c.l.b16 %v246
  %v1486 = vunpack.c.h.b16 %v246
  %v1487 = vunpack.c.l.b16 %v247
  %v1488 = vunpack.c.h.b16 %v247
  %v1489 = vunpack.c.l.b16 %v248
  %v1490 = vunpack.c.h.b16 %v248
  %v1491 = vunpack.c.l.b16 %v249
  %v1492 = vunpack.c.l.b16 %v250
  %v1493 = vunpack.c.h.b16 %v250
  %v1494 = vunpack.c.l.b16 %v251
  %v1495 = vunpack.c.h.b16 %v251
  %v1496 = vunpack.c.l.b16 %v252
  %v1497 = vunpack.c.h.b16 %v252
  %v1498 = vunpack.c.l.b16 %v253
  %v1499 = vunpack.c.l.b16 %v254
  %v1500 = vunpack.c.h.b16 %v254
  %v1501 = vunpack.c.l.b16 %v255
  %v1502 = vunpack.c.h.b16 %v255
  %v1503 = vunpack.c.l.b16 %v256
  %v1504 = vunpack.c.h.b16 %v256
  %v1505 = vunpack.c.l.b16 %v257
  %v1506 = vunpack.c.l.b16 %v258
  %v1507 = vunpack.c.h.b16 %v258
  %v1508 = vunpack.c.l.b16 %v259
  %v1509 = vunpack.c.h.b16 %v259
  %v1510 = vunpack.c.l.b16 %v260
  %v1511 = vunpack.c.h.b16 %v260
  %v1512 = vunpack.c.l.b16 %v261
  %v1513 = vunpack.c.l.b16 %v262
  %v1514 = vunpack.c.h.b16 %v262
  %v1515 = vunpack.c.l.b16 %v263
  %v1516 = vunpack.c.h.b16 %v263
  %v1517 = vunpack.c.l.b16 %v264
  %v1518 = vunpack.c.h.b16 %v264
  %v1519 = vunpack.c.l.b16 %v265
  %v1520 = vunpack.c.l.b16 %v266
  %v1521 = vunpack.c.h.b16 %v266
  %v1522 = vunpack.c.l.b16 %v267
  %v1523 = vunpack.c.h.b16 %v267
  %v1524 = vunpack.c.l.b16 %v268
  %v1525 = vunpack.c.h.b16 %v268
  %v1526 = vunpack.c.l.b16 %v269
  %v1527 = vunpack.c.l.b16 %v270
  %v1528 = vunpack.c.h.b16 %v270
  %v1529 = vunpack.c.l.b16 %v271
  %v1530 = vunpack.c.h.b16 %v271
  %v1531 = vunpack.c.l.b16 %v272
  %v1532 = vunpack.c.h.b16 %v272
  %v1533 = vunpack.c.l.b16 %v273
  %v1534 = vunpack.c.l.b16 %v274
  %v1535 = vunpack.c.h.b16 %v274
  %v1536 = vunpack.c.l.b16 %v275
  %v1537 = vunpack.c.h.b16 %v275
  %v1538 = vunpack.c.l.b16 %v276
  %v1539 = vunpack.c.h.b16 %v276
  %v1540 = vunpack.c.l.b16 %v277
  %v1541 = vunpack.c.l.b16 %v278
  %v1542 = vunpack.c.h.b16 %v278
  %v1543 = vunpack.c.l.b16 %v279
  %v1544 = vunpack.c.h.b16 %v279
  %v1545 = vunpack.c.l.b16 %v280
  %v1546 = vunpack.c.h.b16 %v280
  %v1547 = vunpack.c.l.b16 %v281
  %v1548 = vunpack.c.l.b16 %v282
  %v1549 = vunpack.c.h.b16 %v282
  %v1550 = vunpack.c.l.b16 %v283
  %v1551 = vunpack.c.h.b16 %v283
  %v1552 = vunpack.c.l.b16 %v284
  %v1553 = vunpack.c.h.b16 %v284
  %v1554 = vunpack.c.l.b16 %v285
  %v1555 = vunpack.c.l.b16 %v286
  %v1556 = vunpack.c.h.b16 %v286
  %v1557 = vunpack.c.l.b16 %v287
  %v1558 = vunpack.c.h.b16 %v287
  %v1559 = vunpack.c.l.b16 %v288
  %v1560 = vunpack.c.h.b16 %v288
  %v1561 = vunpack.c.l.b16 %v289
  %v1562 = vunpack.c.l.b16 %v290
  %v1563 = vunpack.c.h.b16 %v290
  %v1564 = vunpack.c.l.b16 %v291
  %v1565 = vunpack.c.h.b16 %v291
  %v1566 = vunpack.c.l.b16 %v292
  %v1567 = vunpack.c.h.b16 %v292
  %v1568 = vunpack.c.l.b16 %v293
  %v1569 = vunpack.c.l.b16 %v294
  %v1570 = vunpack.c.h.b16 %v294
  %v1571 = vunpack.c.l.b16 %v295
  %v1572 = vunpack.c.h.b16 %v295
  %v1573 = vunpack.c.l.b16 %v296
  %v1574 = vunpack.c.h.b16 %v296
  %v1575 = vunpack.c.l.b16 %v297
  %v1576 = vunpack.c.l.b16 %v298
  %v1577 = vunpack.c.h.b16 %v298
  %v1578 = vunpack.c.l.b16 %v299
  %v1579 = vunpack.c.h.b16 %v299
  %v1580 = vunpack.c.l.b16 %v300
  %v1581 = vunpack.c.h.b16 %v300
  %v1582 = vunpack.c.l.b16 %v301
  %v1583 = vunpack.c.l.b16 %v302
  %v1584 = vunpack.c.h.b16 %v302
  %v1585 = vunpack.c.l.b16 %v303
  %v1586 = vunpack.c.h.b16 %v303
  %v1587 = vunpack.c.l.b16 %v304
  %v1588 = vunpack.c.h.b16 %v304
  %v1589 = vunpack.c.l.b16 %v305
  %v1590 = vunpack.c.l.b16 %v306
  %v1591 = vunpack.c.h.b16 %v306
  %v1592 = vunpack.c.l.b16 %v307
  %v1593 = vunpack.c.h.b16 %v307
  %v1594 = vunpack.c.l.b16 %v308
  %v1595 = vunpack.c.h.b16 %v308
  %v1596 = vunpack.c.l.b16 %v309
  %v1597 = vunpack.c.l.b16 %v310
  %v1598 = vunpack.c.h.b16 %v310
  %v1599 = vunpack.c.l.b16 %v311
  %v1600 = vunpack.c.h.b16 %v311
  %v1601 = vunpack.c.l.b16 %v312
  %v1602 = vunpack.c.h.b16 %v312
  %v1603 = vunpack.c.l.b16 %v313
  %v1604 = vunpack.c.l.b16 %v314
  %v1605 = vunpack.c.h.b16 %v314
  %v1606 = vunpack.c.l.b16 %v315
  %v1607 = vunpack.c.h.b16 %v315
  %v1608 = vunpack.c.l.b16 %v316
  %v1609 = vunpack.c.h.b16 %v316
  %v1610 = vunpack.c.l.b16 %v317
  %v1611 = vunpack.c.l.b16 %v318
  %v1612 = vunpack.c.h.b16 %v318
  %v1613 = vunpack.c.l.b16 %v319
  %v1614 = vunpack.c.h.b16 %v319
  %v1615 = vunpack.c.l.b16 %v320
  %v1616 = vunpack.c.h.b16 %v320
  %v1617 = vunpack.c.l.b16 %v321
  %v1618 = vunpack.c.l.b16 %v322
  %v1619 = vunpack.c.h.b16 %v322
  %v1620 = vunpack.c.l.b16 %v323
  %v1621 = vunpack.c.h.b16 %v323
  %v1622 = vunpack.c.l.b16 %v324
  %v1623 = vunpack.c.h.b16 %v324
  %v1624 = vunpack.c.l.b16 %v325
  %v1625 = vunpack.c.l.b16 %v326
  %v1626 = vunpack.c.h.b16 %v326
  %v1627 = vunpack.c.l.b16 %v327
  %v1628 = vunpack.c.h.b16 %v327
  %v1629 = vunpack.c.l.b16 %v328
  %v1630 = vunpack.c.h.b16 %v328
  %v1631 = vunpack.c.l.b16 %v329
  %v1632 = vunpack.c.l.b16 %v330
  %v1633 = vunpack.c.h.b16 %v330
  %v1634 = vunpack.c.l.b16 %v331
  %v1635 = vunpack.c.h.b16 %v331
  %v1636 = vunpack.c.l.b16 %v332
  %v1637 = vunpack.c.h.b16 %v332
  %v1638 = vunpack.c.l.b16 %v333
  %v1639 = vunpack.c.l.b16 %v334
  %v1640 = vunpack.c.h.b16 %v334
  %v1641 = vunpack.c.l.b16 %v335
  %v1642 = vunpack.c.h.b16 %v335
  %v1643 = vunpack.c.l.b16 %v336
  %v1644 = vunpack.c.h.b16 %v336
  %v1645 = vunpack.c.l.b16 %v337
  %v1646 = vunpack.c.l.b16 %v338
  %v1647 = vunpack.c.h.b16 %v338
  %v1648 = vunpack.c.l.b16 %v339
  %v1649 = vunpack.c.h.b16 %v339
  %v1650 = vunpack.c.l.b16 %v340
  %v1651 = vunpack.c.h.b16 %v340
  %v1652 = vunpack.c.l.b16 %v341
  %v1653 = vunpack.c.l.b16 %v342
  %v1654 = vunpack.c.h.b16 %v342
  %v1655 = vunpack.c.l.b16 %v343
  %v1656 = vunpack.c.h.b16 %v343
  %v1657 = vunpack.c.l.b16 %v344
  %v1658 = vunpack.c.h.b16 %v344
  %v1659 = vunpack.c.l.b16 %v345
  %v1660 = vunpack.c.l.b16 %v346
  %v1661 = vunpack.c.h.b16 %v346
  %v1662 = vunpack.c.l.b16 %v347
  %v1663 = vunpack.c.h.b16 %v347
  %v1664 = vunpack.c.l.b16 %v348
  %v1665 = vunpack.c.h.b16 %v348
  %v1666 = vunpack.c.l.b16 %v349
  %v1667 = vunpack.c.l.b16 %v350
  %v1668 = vunpack.c.h.b16 %v350
  %v1669 = vunpack.c.l.b16 %v351
  %v1670 = vunpack.c.h.b16 %v351
  %v1671 = vunpack.c.l.b16 %v352
  %v1672 = vunpack.c.h.b16 %v352
  %v1673 = vunpack.c.l.b16 %v353
  %v1674 = vunpack.c.l.b16 %v354
  %v1675 = vunpack.c.h.b16 %v354
  %v1676 = vunpack.c.l.b16 %v355
  %v1677 = vunpack.c.h.b16 %v355
  %v1678 = vunpack.c.l.b16 %v356
  %v1679 = vunpack.c.h.b16 %v356
  %v1680 = vunpack.c.l.b16 %v357
  %v1681 = vunpack.c.l.b16 %v358
  %v1682 = vunpack.c.h.b16 %v358
  %v1683 = vunpack.c.l.b16 %v359
  %v1684 = vunpack.c.h.b16 %v359
  %v1685 = vunpack.c.l.b16 %v360
  %v1686 = vunpack.c.h.b16 %v360
  %v1687 = vunpack.c.l.b16 %v361
  %v1688 = vunpack.c.l.b16 %v362
  %v1689 = vunpack.c.h.b16 %v362
  %v1690 = vunpack.c.l.b16 %v363
  %v1691 = vunpack.c.h.b16 %v363
  %v1692 = vunpack.c.l.b16 %v364
  %v1693 = vunpack.c.h.b16 %v364
  %v1694 = vunpack.c.l.b16 %v365
  %v1695 = vunpack.c.l.b16 %v366
  %v1696 = vunpack.c.h.b16 %v366
  %v1697 = vunpack.c.l.b16 %v367
  %v1698 = vunpack.c.h.b16 %v367
  %v1699 = vunpack.c.l.b16 %v368
  %v1700 = vunpack.c.h.b16 %v368
  %v1701 = vunpack.c.l.b16 %v369
  %v1702 = vunpack.c.l.b16 %v370
  %v1703 = vunpack.c.h.b16 %v370
  %v1704 = vunpack.c.l.b16 %v371
  %v1705 = vunpack.c.h.b16 %v371
  %v1706 = vunpack.c.l.b16 %v372
  %v1707 = vunpack.c.h.b16 %v372
  %v1708 = vunpack.c.l.b16 %v373
  %v1709 = vunpack.c.l.b16 %v374
  %v1710 = vunpack.c.h.b16 %v374
  %v1711 = vunpack.c.l.b16 %v375
  %v1712 = vunpack.c.h.b16 %v375
  %v1713 = vunpack.c.l.b16 %v376
  %v1714 = vunpack.c.h.b16 %v376
  %v1715 = vunpack.c.l.b16 %v377
  %v1716 = vunpack.c.l.b16 %v378
  %v1717 = vunpack.c.h.b16 %v378
  %v1718 = vunpack.c.l.b16 %v379
  %v1719 = vunpack.c.h.b16 %v379
  %v1720 = vunpack.c.l.b16 %v380
  %v1721 = vunpack.c.h.b16 %v380
  %v1722 = vunpack.c.l.b16 %v381
  %v1723 = vunpack.c.l.b16 %v382
  %v1724 = vunpack.c.h.b16 %v382
  %v1725 = vunpack.c.l.b16 %v383
  %v1726 = vunpack.c.h.b16 %v383
  %v1727 = vunpack.c.l.b16 %v384
  %v1728 = vunpack.c.h.b16 %v384
  %v1729 = vunpack.c.l.b16 %v385
  %v1730 = vunpack.c.l.b16 %v386
  %v1731 = vunpack.c.h.b16 %v386
  %v1732 = vunpack.c.l.b16 %v387
  %v1733 = vunpack.c.h.b16 %v387
  %v1734 = vunpack.c.l.b16 %v388
  %v1735 = vunpack.c.h.b16 %v388
  %v1736 = vunpack.c.l.b16 %v389
  %v1737 = vunpack.c.l.b16 %v390
  %v1738 = vunpack.c.h.b16 %v390
  %v1739 = vunpack.c.l.b16 %v391
  %v1740 = vunpack.c.h.b16 %v391
  %v1741 = vunpack.c.l.b16 %v392
  %v1742 = vunpack.c.h.b16 %v392
  %v1743 = vunpack.c.l.b16 %v393
  %v1744 = vunpack.c.l.b16 %v394
  %v1745 = vunpack.c.h.b16 %v394
  %v1746 = vunpack.c.l.b16 %v395
  %v1747 = vunpack.c.h.b16 %v395
  %v1748 = vunpack.c.l.b16 %v396
  %v1749 = vunpack.c.h.b16 %v396
  %v1750 = vunpack.c.l.b16 %v397
  %v1751 = vunpack.c.l.b16 %v398
  %v1752 = vunpack.c.h.b16 %v398
  %v1753 = vunpack.c.l.b16 %v399
  %v1754 = vunpack.c.h.b16 %v399
  %v1755 = vunpack.c.l.b16 %v400
  %v1756 = vunpack.c.h.b16 %v400
  %v1757 = vunpack.c.l.b16 %v401
  %v1758 = vunpack.c.l.b16 %v402
  %v1759 = vunpack.c.h.b16 %v402
  %v1760 = vunpack.c.l.b16 %v403
  %v1761 = vunpack.c.h.b16 %v403
  %v1762 = vunpack.c.l.b16 %v404
  %v1763 = vunpack.c.h.b16 %v404
  %v1764 = vunpack.c.l.b16 %v405
  %v1765 = vunpack.c.l.b16 %v406
  %v1766 = vunpack.c.h.b16 %v406
  %v1767 = vunpack.c.l.b16 %v407
  %v1768 = vunpack.c.h.b16 %v407
  %v1769 = vunpack.c.l.b16 %v408
  %v1770 = vunpack.c.h.b16 %v408
  %v1771 = vunpack.c.l.b16 %v409
  %v1772 = vunpack.c.l.b16 %v410
  %v1773 = vunpack.c.h.b16 %v410
  %v1774 = vunpack.c.l.b16 %v411
  %v1775 = vunpack.c.h.b16 %v411
  %v1776 = vunpack.c.l.b16 %v412
  %v1777 = vunpack.c.h.b16 %v412
  %v1778 = vunpack.c.l.b16 %v413
  %v1779 = vunpack.c.l.b16 %v414
  %v1780 = vunpack.c.h.b16 %v414
  %v1781 = vunpack.c.l.b16 %v415
  %v1782 = vunpack.c.h.b16 %v415
  %v1783 = vunpack.c.l.b16 %v416
  %v1784 = vunpack.c.h.b16 %v416
  %v1785 = vunpack.c.l.b16 %v417
  %v1786 = vunpack.c.l.b16 %v418
  %v1787 = vunpack.c.h.b16 %v418
  %v1788 = vunpack.c.l.b16 %v419
  %v1789 = vunpack.c.h.b16 %v419
  %v1790 = vunpack.c.l.b16 %v420
  %v1791 = vunpack.c.h.b16 %v420
  %v1792 = vunpack.c.l.b16 %v421
  %v1793 = vunpack.c.l.b16 %v422
  %v1794 = vunpack.c.h.b16 %v422
  %v1795 = vunpack.c.l.b16 %v423
  %v1796 = vunpack.c.h.b16 %v423
  %v1797 = vunpack.c.l.b16 %v424
  %v1798 = vunpack.c.h.b16 %v424
  %v1799 = vunpack.c.l.b16 %v425
  %v1800 = vunpack.c.l.b16 %v426
  %v1801 = vunpack.c.h.b16 %v426
  %v1802 = vunpack.c.l.b16 %v427
  %v1803 = vunpack.c.h.b16 %v427
  %v1804 = vunpack.c.l.b16 %v428
  %v1805 = vunpack.c.h.b16 %v428
  %v1806 = vunpack.c.l.b16 %v429
  %v1807 = vunpack.c.l.b16 %v430
  %v1808 = vunpack.c.h.b16 %v430
  %v1809 = vunpack.c.l.b16 %v431
  %v1810 = vunpack.c.h.b16 %v431
  %v1811 = vunpack.c.l.b16 %v432
  %v1812 = vunpack.c.h.b16 %v432
  %v1813 = vunpack.c.l.b16 %v433
  %v1814 = vunpack.c.l.b16 %v434
  %v1815 = vunpack.c.h.b16 %v434
  %v1816 = vunpack.c.l.b16 %v435
  %v1817 = vunpack.c.h.b16 %v435
  %v1818 = vunpack.c.l.b16 %v436
  %v1819 = vunpack.c.h.b16 %v436
  %v1820 = vunpack.c.l.b16 %v437
  %v1821 = vunpack.c.l.b16 %v438
  %v1822 = vunpack.c.h.b16 %v438
  %v1823 = vunpack.c.l.b16 %v439
  %v1824 = vunpack.c.h.b16 %v439
  %v1825 = vunpack.c.l.b16 %v440
  %v1826 = vunpack.c.h.b16 %v440
  %v1827 = vunpack.c.l.b16 %v441
  %v1828 = vunpack.c.l.b16 %v442
  %v1829 = vunpack.c.h.b16 %v442
  %v1830 = vunpack.c.l.b16 %v443
  %v1831 = vunpack.c.h.b16 %v443
  %v1832 = vunpack.c.l.b16 %v444
  %v1833 = vunpack.c.h.b16 %v444
  %v1834 = vunpack.c.l.b16 %v445
  %v1835 = vunpack.c.l.b16 %v446
  %v1836 = vunpack.c.h.b16 %v446
  %v1837 = vunpack.c.l.b16 %v447
  %v1838 = vunpack.c.h.b16 %v447
  %v1839 = vunpack.c.l.b16 %v448
  %v1840 = vunpack.c.h.b16 %v448
  %v1841 = vunpack.c.l.b16 %v449
  %v1842 = vunpack.c.l.b16 %v450
  %v1843 = vunpack.c.h.b16 %v450
  %v1844 = vunpack.c.l.b16 %v451
  %v1845 = vunpack.c.h.b16 %v451
  %v1846 = vunpack.c.l.b16 %v452
  %v1847 = vunpack.c.h.b16 %v452
  %v1848 = vunpack.c.l.b16 %v453
  %v1849 = vunpack.c.l.b16 %v454
  %v1850 = vunpack.c.h.b16 %v454
  %v1851 = vunpack.c.l.b16 %v455
  %v1852 = vunpack.c.h.b16 %v455
  %v1853 = vunpack.c.l.b16 %v456
  %v1854 = vunpack.c.h.b16 %v456
  %v1855 = vunpack.c.l.b16 %v457
  %v1856 = vunpack.c.l.b16 %v458
  %v1857 = vunpack.c.h.b16 %v458
  %v1858 = vunpack.c.l.b16 %v459
  %v1859 = vunpack.c.h.b16 %v459
  %v1860 = vunpack.c.l.b16 %v460
  %v1861 = vunpack.c.h.b16 %v460
  %v1862 = vunpack.c.l.b16 %v461
  %v1863 = vunpack.c.l.b16 %v462
  %v1864 = vunpack.c.h.b16 %v462
  %v1865 = vunpack.c.l.b16 %v463
  %v1866 = vunpack.c.h.b16 %v463
  %v1867 = vunpack.c.l.b16 %v464
  %v1868 = vunpack.c.h.b16 %v464
  %v1869 = vunpack.c.l.b16 %v465
  %v1870 = vunpack.c.l.b16 %v466
  %v1871 = vunpack.c.h.b16 %v466
  %v1872 = vunpack.c.l.b16 %v467
  %v1873 = vunpack.c.h.b16 %v467
  %v1874 = vunpack.c.l.b16 %v468
  %v1875 = vunpack.c.h.b16 %v468
  %v1876 = vunpack.c.l.b16 %v469
  %v1877 = vunpack.c.l.b16 %v470
  %v1878 = vunpack.c.h.b16 %v470
  %v1879 = vunpack.c.l.b16 %v471
  %v1880 = vunpack.c.h.b16 %v471
  %v1881 = vunpack.c.l.b16 %v472
  %v1882 = vunpack.c.h.b16 %v472
  %v1883 = vunpack.c.l.b16 %v473
  %v1884 = vunpack.c.l.b16 %v474
  %v1885 = vunpack.c.h.b16 %v474
  %v1886 = vunpack.c.l.b16 %v475
  %v1887 = vunpack.c.h.b16 %v475
  %v1888 = vunpack.c.l.b16 %v476
  %v1889 = vunpack.c.h.b16 %v476
  %v1890 = vunpack.c.l.b16 %v477
  %v1891 = vunpack.c.l.b16 %v478
  %v1892 = vunpack.c.h.b16 %v478
  %v1893 = vunpack.c.l.b16 %v479
  %v1894 = vunpack.c.h.b16 %v479
  %v1895 = vunpack.c.l.b16 %v480
  %v1896 = vunpack.c.h.b16 %v480
  %v1897 = vunpack.c.l.b16 %v481
  %v1898 = vunpack.c.l.b16 %v482
  %v1899 = vunpack.c.h.b16 %v482
  %v1900 = vunpack.c.l.b16 %v483
  %v1901 = vunpack.c.h.b16 %v483
  %v1902 = vunpack.c.l.b16 %v484
  %v1903 = vunpack.c.h.b16 %v484
  %v1904 = vunpack.c.l.b16 %v485
  %v1905 = vunpack.c.l.b16 %v486
  %v1906 = vunpack.c.h.b16 %v486
  %v1907 = vunpack.c.l.b16 %v487
  %v1908 = vunpack.c.h.b16 %v487
  %v1909 = vunpack.c.l.b16 %v488
  %v1910 = vunpack.c.h.b16 %v488
  %v1911 = vunpack.c.l.b16 %v489
  %v1912 = vunpack.c.l.b16 %v490
  %v1913 = vunpack.c.h.b16 %v490
  %v1914 = vunpack.c.l.b16 %v491
  %v1915 = vunpack.c.h.b16 %v491
  %v1916 = vunpack.c.l.b16 %v492
  %v1917 = vunpack.c.h.b16 %v492
  %v1918 = vunpack.c.l.b16 %v493
  %v1919 = vunpack.c.l.b16 %v494
  %v1920 = vunpack.c.h.b16 %v494
  %v1921 = vunpack.c.l.b16 %v495
  %v1922 = vunpack.c.h.b16 %v495
  %v1923 = vunpack.c.l.b16 %v496
  %v1924 = vunpack.c.h.b16 %v496
  %v1925 = vunpack.c.l.b16 %v497
  %v1926 = vunpack.c.l.b16 %v498
  %v1927 = vunpack.c.h.b16 %v498
  %v1928 = vunpack.c.l.b16 %v499
  %v1929 = vunpack.c.h.b16 %v499
  %v1930 = vunpack.c.l.b16 %v500
  %v1931 = vunpack.c.h.b16 %v500
  %v1932 = vunpack.c.l.b16 %v501
  %v1933 = vunpack.c.l.b16 %v502
  %v1934 = vunpack.c.h.b16 %v502
  %v1935 = vunpack.c.l.b16 %v503
  %v1936 = vunpack.c.h.b16 %v503
  %v1937 = vunpack.c.l.b16 %v504
  %v1938 = vunpack.c.h.b16 %v504
  %v1939 = vunpack.c.l.b16 %v505
  %v1940 = vunpack.c.l.b16 %v506
  %v1941 = vunpack.c.h.b16 %v506
  %v1942 = vunpack.c.l.b16 %v507
  %v1943 = vunpack.c.h.b16 %v507
  %v1944 = vunpack.c.l.b16 %v508
  %v1945 = vunpack.c.h.b16 %v508
  %v1946 = vunpack.c.l.b16 %v509
  %v1947 = vunpack.c.l.b16 %v510
  %v1948 = vunpack.c.h.b16 %v510
  %v1949 = vunpack.c.l.b16 %v511
  %v1950 = vunpack.c.h.b16 %v511
  %v1951 = vunpack.c.l.b16 %v512
  %v1952 = vunpack.c.h.b16 %v512
  %v1953 = vunpack.c.l.b16 %v513
  %v1954 = vunpack.c.l.b16 %v514
  %v1955 = vunpack.c.h.b16 %v514
  %v1956 = vunpack.c.l.b16 %v515
  %v1957 = vunpack.c.h.b16 %v515
  %v1958 = vunpack.c.l.b16 %v516
  %v1959 = vunpack.c.h.b16 %v516
  %v1960 = vunpack.c.l.b16 %v517
  %v1961 = vunpack.c.l.b16 %v518
  %v1962 = vunpack.c.h.b16 %v518
  %v1963 = vunpack.c.l.b16 %v519
  %v1964 = vunpack.c.h.b16 %v519
  %v1965 = vunpack.c.l.b16 %v520
  %v1966 = vunpack.c.h.b16 %v520
  %v1967 = vunpack.c.l.b16 %v521
  %v1968 = vunpack.c.l.b16 %v522
  %v1969 = vunpack.c.h.b16 %v522
  %v1970 = vunpack.c.l.b16 %v523
  %v1971 = vunpack.c.h.b16 %v523
  %v1972 = vunpack.c.l.b16 %v524
  %v1973 = vunpack.c.h.b16 %v524
  %v1974 = vunpack.c.l.b16 %v525
  %v1975 = vunpack.c.l.b16 %v526
  %v1976 = vunpack.c.h.b16 %v526
  %v1977 = vunpack.c.l.b16 %v527
  %v1978 = vunpack.c.h.b16 %v527
  %v1979 = vunpack.c.l.b16 %v528
  %v1980 = vunpack.c.h.b16 %v528
  %v1981 = vunpack.c.l.b16 %v529
  %v1982 = vpack.c.b16 %v1093, %v1086
  %v1983 = vpack.c.b16 %v1094, %v1087
  %v1984 = vpack.c.b16 %v1095, %v1088
  %v1985 = vpack.c.b16 %v1096, %v1089
  %v1986 = vpack.c.b16 %v1097, %v1090
  %v1987 = vpack.c.b16 %v1098, %v1091
  %v1988 = vpack.c.b16 %v1099, %v1092
  %v1989 = vpack.c.b16 %v1107, %v1100
  %v1990 = vpack.c.b16 %v1108, %v1101
  %v1991 = vpack.c.b16 %v1109, %v1102
  %v1992 = vpack.c.b16 %v1110, %v1103
  %v1993 = vpack.c.b16 %v1111, %v1104
  %v1994 = vpack.c.b16 %v1112, %v1105
  %v1995 = vpack.c.b16 %v1113, %v1106
  %v1996 = vpack.c.b16 %v1121, %v1114
  %v1997 = vpack.c.b16 %v1122, %v1115
  %v1998 = vpack.c.b16 %v1123, %v1116
  %v1999 = vpack.c.b16 %v1124, %v1117
  %v2000 = vpack.c.b16 %v1125, %v1118
  %v2001 = vpack.c.b16 %v1126, %v1119
  %v2002 = vpack.c.b16 %v1127, %v1120
  %v2003 = vpack.c.b16 %v1135, %v1128
  %v2004 = vpack.c.b16 %v1136, %v1129
  %v2005 = vpack.c.b16 %v1137, %v1130
  %v2006 = vpack.c.b16 %v1138, %v1131
  %v2007 = vpack.c.b16 %v1139, %v1132
  %v2008 = vpack.c.b16 %v1140, %v1133
  %v2009 = vpack.c.b16 %v1141, %v1134
  %v2010 = vpack.c.b16 %v1149, %v1142
  %v2011 = vpack.c.b16 %v1150, %v1143
  %v2012 = vpack.c.b16 %v1151, %v1144
  %v2013 = vpack.c.b16 %v1152, %v1145
  %v2014 = vpack.c.b16 %v1153, %v1146
  %v2015 = vpack.c.b16 %v1154, %v1147
  %v2016 = vpack.c.b16 %v1155, %v1148
  %v2017 = vpack.c.b16 %v1163, %v1156
  %v2018 = vpack.c.b16 %v1164, %v1157
  %v2019 = vpack.c.b16 %v1165, %v1158
  %v2020 = vpack.c.b16 %v1166, %v1159
  %v2021 = vpack.c.b16 %v1167, %v1160
  %v2022 = vpack.c.b16 %v1168, %v1161
  %v2023 = vpack.c.b16 %v1169, %v1162
  %v2024 = vpack.c.b16 %v1177, %v1170
  %v2025 = vpack.c.b16 %v1178, %v1171
  %v2026 = vpack.c.b16 %v1179, %v1172
  %v2027 = vpack.c.b16 %v1180, %v1173
  %v2028 = vpack.c.b16 %v1181, %v1174
  %v2029 = vpack.c.b16 %v1182, %v1175
  %v2030 = vpack.c.b16 %v1183, %v1176
  %v2031 = vpack.c.b16 %v1191, %v1184
  %v2032 = vpack.c.b16 %v1192, %v1185
  %v2033 = vpack.c.b16 %v1193, %v1186
  %v2034 = vpack.c.b16 %v1194, %v1187
  %v2035 = vpack.c.b16 %v1195, %v1188
  %v2036 = vpack.c.b16 %v1196, %v1189
  %v2037 = vpack.c.b16 %v1197, %v1190
  %v2038 = vpack.c.b16 %v1205, %v1198
  %v2039 = vpack.c.b16 %v1206, %v1199
  %v2040 = vpack.c.b16 %v1207, %v1200
  %v2041 = vpack.c.b16 %v1208, %v1201
  %v2042 = vpack.c.b16 %v1209, %v1202
  %v2043 = vpack.c.b16 %v1210, %v1203
  %v2044 = vpack.c.b16 %v1211, %v1204
  %v2045 = vpack.c.b16 %v1219, %v1212
  %v2046 = vpack.c.b16 %v1220, %v1213
  %v2047 = vpack.c.b16 %v1221, %v1214
  %v2048 = vpack.c.b16 %v1222, %v1215
  %v2049 = vpack.c.b16 %v1223, %v1216
  %v2050 = vpack.c.b16 %v1224, %v1217
  %v2051 = vpack.c.b16 %v1225, %v1218
  %v2052 = vpack.c.b16 %v1233, %v1226
  %v2053 = vpack.c.b16 %v1234, %v1227
  %v2054 = vpack.c.b16 %v1235, %v1228
  %v2055 = vpack.c.b16 %v1236, %v1229
  %v2056 = vpack.c.b16 %v1237, %v1230
  %v2057 = vpack.c.b16 %v1238, %v1231
  %v2058 = vpack.c.b16 %v1239, %v1232
  %v2059 = vpack.c.b16 %v1247, %v1240
  %v2060 = vpack.c.b16 %v1248, %v1241
  %v2061 = vpack.c.b16 %v1249, %v1242
  %v2062 = vpack.c.b16 %v1250, %v1243
  %v2063 = vpack.c.b16 %v1251, %v1244
  %v2064 = vpack.c.b16 %v1252, %v1245
  %v2065 = vpack.c.b16 %v1253, %v1246
  %v2066 = vpack.c.b16 %v1261, %v1254
  %v2067 = vpack.c.b16 %v1262, %v1255
  %v2068 = vpack.c.b16 %v1263, %v1256
  %v2069 = vpack.c.b16 %v1264, %v1257
  %v2070 = vpack.c.b16 %v1265, %v1258
  %v2071 = vpack.c.b16 %v1266, %v1259
  %v2072 = vpack.c.b16 %v1267, %v1260
  %v2073 = vpack.c.b16 %v1275, %v1268
  %v2074 = vpack.c.b16 %v1276, %v1269
  %v2075 = vpack.c.b16 %v1277, %v1270
  %v2076 = vpack.c.b16 %v1278, %v1271
  %v2077 = vpack.c.b16 %v1279, %v1272
  %v2078 = vpack.c.b16 %v1280, %v1273
  %v2079 = vpack.c.b16 %v1281, %v1274
  %v2080 = vpack.c.b16 %v1289, %v1282
  %v2081 = vpack.c.b16 %v1290, %v1283
  %v2082 = vpack.c.b16 %v1291, %v1284
  %v2083 = vpack.c.b16 %v1292, %v1285
  %v2084 = vpack.c.b16 %v1293, %v1286
  %v2085 = vpack.c.b16 %v1294, %v1287
  %v2086 = vpack.c.b16 %v1295, %v1288
  %v2087 = vpack.c.b16 %v1303, %v1296
  %v2088 = vpack.c.b16 %v1304, %v1297
  %v2089 = vpack.c.b16 %v1305, %v1298
  %v2090 = vpack.c.b16 %v1306, %v1299
  %v2091 = vpack.c.b16 %v1307, %v1300
  %v2092 = vpack.c.b16 %v1308, %v1301
  %v2093 = vpack.c.b16 %v1309, %v1302
  %v2094 = vpack.c.b16 %v1317, %v1310
  %v2095 = vpack.c.b16 %v1318, %v1311
  %v2096 = vpack.c.b16 %v1319, %v1312
  %v2097 = vpack.c.b16 %v1320, %v1313
  %v2098 = vpack.c.b16 %v1321, %v1314
  %v2099 = vpack.c.b16 %v1322, %v1315
  %v2100 = vpack.c.b16 %v1323, %v1316
  %v2101 = vpack.c.b16 %v1331, %v1324
  %v2102 = vpack.c.b16 %v1332, %v1325
  %v2103 = vpack.c.b16 %v1333, %v1326
  %v2104 = vpack.c.b16 %v1334, %v1327
  %v2105 = vpack.c.b16 %v1335, %v1328
  %v2106 = vpack.c.b16 %v1336, %v1329
  %v2107 = vpack.c.b16 %v1337, %v1330
  %v2108 = vpack.c.b16 %v1345, %v1338
  %v2109 = vpack.c.b16 %v1346, %v1339
  %v2110 = vpack.c.b16 %v1347, %v1340
  %v2111 = vpack.c.b16 %v1348, %v1341
  %v2112 = vpack.c.b16 %v1349, %v1342
  %v2113 = vpack.c.b16 %v1350, %v1343
  %v2114 = vpack.c.b16 %v1351, %v1344
  %v2115 = vpack.c.b16 %v1359, %v1352
  %v2116 = vpack.c.b16 %v1360, %v1353
  %v2117 = vpack.c.b16 %v1361, %v1354
  %v2118 = vpack.c.b16 %v1362, %v1355
  %v2119 = vpack.c.b16 %v1363, %v1356
  %v2120 = vpack.c.b16 %v1364, %v1357
  %v2121 = vpack.c.b16 %v1365, %v1358
  %v2122 = vpack.c.b16 %v1373, %v1366
  %v2123 = vpack.c.b16 %v1374, %v1367
  %v2124 = vpack.c.b16 %v1375, %v1368
  %v2125 = vpack.c.b16 %v1376, %v1369
  %v2126 = vpack.c.b16 %v1377, %v1370
  %v2127 = vpack.c.b16 %v1378, %v1371
  %v2128 = vpack.c.b16 %v1379, %v1372
  %v2129 = vpack.c.b16 %v1387, %v1380
  %v2130 = vpack.c.b16 %v1388, %v1381
  %v2131 = vpack.c.b16 %v1389, %v1382
  %v2132 = vpack.c.b16 %v1390, %v1383
  %v2133 = vpack.c.b16 %v1391, %v1384
  %v2134 = vpack.c.b16 %v1392, %v1385
  %v2135 = vpack.c.b16 %v1393, %v1386
  %v2136 = vpack.c.b16 %v1401, %v1394
  %v2137 = vpack.c.b16 %v1402, %v1395
  %v2138 = vpack.c.b16 %v1403, %v1396
  %v2139 = vpack.c.b16 %v1404, %v1397
  %v2140 = vpack.c.b16 %v1405, %v1398
  %v2141 = vpack.c.b16 %v1406, %v1399
  %v2142 = vpack.c.b16 %v1407, %v1400
  %v2143 = vpack.c.b16 %v1415, %v1408
  %v2144 = vpack.c.b16 %v1416, %v1409
  %v2145 = vpack.c.b16 %v1417, %v1410
  %v2146 = vpack.c.b16 %v1418, %v1411
  %v2147 = vpack.c.b16 %v1419, %v1412
  %v2148 = vpack.c.b16 %v1420, %v1413
  %v2149 = vpack.c.b16 %v1421, %v1414
  %v2150 = vpack.c.b16 %v1429, %v1422
  %v2151 = vpack.c.b16 %v1430, %v1423
  %v2152 = vpack.c.b16 %v1431, %v1424
  %v2153 = vpack.c.b16 %v1432, %v1425
  %v2154 = vpack.c.b16 %v1433, %v1426
  %v2155 = vpack.c.b16 %v1434, %v1427
  %v2156 = vpack.c.b16 %v1435, %v1428
  %v2157 = vpack.c.b16 %v1443, %v1436
  %v2158 = vpack.c.b16 %v1444, %v1437
  %v2159 = vpack.c.b16 %v1445, %v1438
  %v2160 = vpack.c.b16 %v1446, %v1439
  %v2161 = vpack.c.b16 %v1447, %v1440
  %v2162 = vpack.c.b16 %v1448, %v1441
  %v2163 = vpack.c.b16 %v1449, %v1442
  %v2164 = vpack.c.b16 %v1457, %v1450
  %v2165 = vpack.c.b16 %v1458, %v1451
  %v2166 = vpack.c.b16 %v1459, %v1452
  %v2167 = vpack.c.b16 %v1460, %v1453
  %v2168 = vpack.c.b16 %v1461, %v1454
  %v2169 = vpack.c.b16 %v1462, %v1455
  %v2170 = vpack.c.b16 %v1463, %v1456
  %v2171 = vpack.c.b16 %v1471, %v1464
  %v2172 = vpack.c.b16 %v1472, %v1465
  %v2173 = vpack.c.b16 %v1473, %v1466
  %v2174 = vpack.c.b16 %v1474, %v1467
  %v2175 = vpack.c.b16 %v1475, %v1468
  %v2176 = vpack.c.b16 %v1476, %v1469
  %v2177 = vpack.c.b16 %v1477, %v1470
  %v2178 = vpack.c.b16 %v1485, %v1478
  %v2179 = vpack.c.b16 %v1486, %v1479
  %v2180 = vpack.c.b16 %v1487, %v1480
  %v2181 = vpack.c.b16 %v1488, %v1481
  %v2182 = vpack.c.b16 %v1489, %v1482
  %v2183 = vpack.c.b16 %v1490, %v1483
  %v2184 = vpack.c.b16 %v1491, %v1484
  %v2185 = vpack.c.b16 %v1499, %v1492
  %v2186 = vpack.c.b16 %v1500, %v1493
  %v2187 = vpack.c.b16 %v1501, %v1494
  %v2188 = vpack.c.b16 %v1502, %v1495
  %v2189 = vpack.c.b16 %v1503, %v1496
  %v2190 = vpack.c.b16 %v1504, %v1497
  %v2191 = vpack.c.b16 %v1505, %v1498
  %v2192 = vpack.c.b16 %v1513, %v1506
  %v2193 = vpack.c.b16 %v1514, %v1507
  %v2194 = vpack.c.b16 %v1515, %v1508
  %v2195 = vpack.c.b16 %v1516, %v1509
  %v2196 = vpack.c.b16 %v1517, %v1510
  %v2197 = vpack.c.b16 %v1518, %v1511
  %v2198 = vpack.c.b16 %v1519, %v1512
  %v2199 = vpack.c.b16 %v1527, %v1520
  %v2200 = vpack.c.b16 %v1528, %v1521
  %v2201 = vpack.c.b16 %v1529, %v1522
  %v2202 = vpack.c.b16 %v1530, %v1523
  %v2203 = vpack.c.b16 %v1531, %v1524
  %v2204 = vpack.c.b16 %v1532, %v1525
  %v2205 = vpack.c.b16 %v1533, %v1526
  %v2206 = vpack.c.b16 %v1541, %v1534
  %v2207 = vpack.c.b16 %v1542, %v1535
  %v2208 = vpack.c.b16 %v1543, %v1536
  %v2209 = vpack.c.b16 %v1544, %v1537
  %v2210 = vpack.c.b16 %v1545, %v1538
  %v2211 = vpack.c.b16 %v1546, %v1539
  %v2212 = vpack.c.b16 %v1547, %v1540
  %v2213 = vpack.c.b16 %v1555, %v1548
  %v2214 = vpack.c.b16 %v1556, %v1549
  %v2215 = vpack.c.b16 %v1557, %v1550
  %v2216 = vpack.c.b16 %v1558, %v1551
  %v2217 = vpack.c.b16 %v1559, %v1552
  %v2218 = vpack.c.b16 %v1560, %v1553
  %v2219 = vpack.c.b16 %v1561, %v1554
  %v2220 = vpack.c.b16 %v1569, %v1562
  %v2221 = vpack.c.b16 %v1570, %v1563
  %v2222 = vpack.c.b16 %v1571, %v1564
  %v2223 = vpack.c.b16 %v1572, %v1565
  %v2224 = vpack.c.b16 %v1573, %v1566
  %v2225 = vpack.c.b16 %v1574, %v1567
  %v2226 = vpack.c.b16 %v1575, %v1568
  %v2227 = vpack.c.b16 %v1583, %v1576
  %v2228 = vpack.c.b16 %v1584, %v1577
  %v2229 = vpack.c.b16 %v1585, %v1578
  %v2230 = vpack.c.b16 %v1586, %v1579
  %v2231 = vpack.c.b16 %v1587, %v1580
  %v2232 = vpack.c.b16 %v1588, %v1581
  %v2233 = vpack.c.b16 %v1589, %v1582
  %v2234 = vpack.c.b16 %v1597, %v1590
  %v2235 = vpack.c.b16 %v1598, %v1591
  %v2236 = vpack.c.b16 %v1599, %v1592
  %v2237 = vpack.c.b16 %v1600, %v1593
  %v2238 = vpack.c.b16 %v1601, %v1594
  %v2239 = vpack.c.b16 %v1602, %v1595
  %v2240 = vpack.c.b16 %v1603, %v1596
  %v2241 = vpack.c.b16 %v1611, %v1604
  %v2242 = vpack.c.b16 %v1612, %v1605
  %v2243 = vpack.c.b16 %v1613, %v1606
  %v2244 = vpack.c.b16 %v1614, %v1607
  %v2245 = vpack.c.b16 %v1615, %v1608
  %v2246 = vpack.c.b16 %v1616, %v1609
  %v2247 = vpack.c.b16 %v1617, %v1610
  %v2248 = vpack.c.b16 %v1625, %v1618
  %v2249 = vpack.c.b16 %v1626, %v1619
  %v2250 = vpack.c.b16 %v1627, %v1620
  %v2251 = vpack.c.b16 %v1628, %v1621
  %v2252 = vpack.c.b16 %v1629, %v1622
  %v2253 = vpack.c.b16 %v1630, %v1623
  %v2254 = vpack.c.b16 %v1631, %v1624
  %v2255 = vpack.c.b16 %v1639, %v1632
  %v2256 = vpack.c.b16 %v1640, %v1633
  %v2257 = vpack.c.b16 %v1641, %v1634
  %v2258 = vpack.c.b16 %v1642, %v1635
  %v2259 = vpack.c.b16 %v1643, %v1636
  %v2260 = vpack.c.b16 %v1644, %v1637
  %v2261 = vpack.c.b16 %v1645, %v1638
  %v2262 = vpack.c.b16 %v1653, %v1646
  %v2263 = vpack.c.b16 %v1654, %v1647
  %v2264 = vpack.c.b16 %v1655, %v1648
  %v2265 = vpack.c.b16 %v1656, %v1649
  %v2266 = vpack.c.b16 %v1657, %v1650
  %v2267 = vpack.c.b16 %v1658, %v1651
  %v2268 = vpack.c.b16 %v1659, %v1652
  %v2269 = vpack.c.b16 %v1667, %v1660
  %v2270 = vpack.c.b16 %v1668, %v1661
  %v2271 = vpack.c.b16 %v1669, %v1662
  %v2272 = vpack.c.b16 %v1670, %v1663
  %v2273 = vpack.c.b16 %v1671, %v1664
  %v2274 = vpack.c.b16 %v1672, %v1665
  %v2275 = vpack.c.b16 %v1673, %v1666
  %v2276 = vpack.c.b16 %v1681, %v1674
  %v2277 = vpack.c.b16 %v1682, %v1675
  %v2278 = vpack.c.b16 %v1683, %v1676
  %v2279 = vpack.c.b16 %v1684, %v1677
  %v2280 = vpack.c.b16 %v1685, %v1678
  %v2281 = vpack.c.b16 %v1686, %v1679
  %v2282 = vpack.c.b16 %v1687, %v1680
  %v2283 = vpack.c.b16 %v1695, %v1688
  %v2284 = vpack.c.b16 %v1696, %v1689
  %v2285 = vpack.c.b16 %v1697, %v1690
  %v2286 = vpack.c.b16 %v1698, %v1691
  %v2287 = vpack.c.b16 %v1699, %v1692
  %v2288 = vpack.c.b16 %v1700, %v1693
  %v2289 = vpack.c.b16 %v1701, %v1694
  %v2290 = vpack.c.b16 %v1709, %v1702
  %v2291 = vpack.c.b16 %v1710, %v1703
  %v2292 = vpack.c.b16 %v1711, %v1704
  %v2293 = vpack.c.b16 %v1712, %v1705
  %v2294 = vpack.c.b16 %v1713, %v1706
  %v2295 = vpack.c.b16 %v1714, %v1707
  %v2296 = vpack.c.b16 %v1715, %v1708
  %v2297 = vpack.c.b16 %v1723, %v1716
  %v2298 = vpack.c.b16 %v1724, %v1717
  %v2299 = vpack.c.b16 %v1725, %v1718
  %v2300 = vpack.c.b16 %v1726, %v1719
  %v2301 = vpack.c.b16 %v1727, %v1720
  %v2302 = vpack.c.b16 %v1728, %v1721
  %v2303 = vpack.c.b16 %v1729, %v1722
  %v2304 = vpack.c.b16 %v1737, %v1730
  %v2305 = vpack.c.b16 %v1738, %v1731
  %v2306 = vpack.c.b16 %v1739, %v1732
  %v2307 = vpack.c.b16 %v1740, %v1733
  %v2308 = vpack.c.b16 %v1741, %v1734
  %v2309 = vpack.c.b16 %v1742, %v1735
  %v2310 = vpack.c.b16 %v1743, %v1736
  %v2311 = vpack.c.b16 %v1751, %v1744
  %v2312 = vpack.c.b16 %v1752, %v1745
  %v2313 = vpack.c.b16 %v1753, %v1746
  %v2314 = vpack.c.b16 %v1754, %v1747
  %v2315 = vpack.c.b16 %v1755, %v1748
  %v2316 = vpack.c.b16 %v1756, %v1749
  %v2317 = vpack.c.b16 %v1757, %v1750
  %v2318 = vpack.c.b16 %v1765, %v1758
  %v2319 = vpack.c.b16 %v1766, %v1759
  %v2320 = vpack.c.b16 %v1767, %v1760
  %v2321 = vpack.c.b16 %v1768, %v1761
  %v2322 = vpack.c.b16 %v1769, %v1762
  %v2323 = vpack.c.b16 %v1770, %v1763
  %v2324 = vpack.c.b16 %v1771, %v1764
  %v2325 = vpack.c.b16 %v1779, %v1772
  %v2326 = vpack.c.b16 %v1780, %v1773
  %v2327 = vpack.c.b16 %v1781, %v1774
  %v2328 = vpack.c.b16 %v1782, %v1775
  %v2329 = vpack.c.b16 %v1783, %v1776
  %v2330 = vpack.c.b16 %v1784, %v1777
  %v2331 = vpack.c.b16 %v1785, %v1778
  %v2332 = vpack.c.b16 %v1793, %v1786
  %v2333 = vpack.c.b16 %v1794, %v1787
  %v2334 = vpack.c.b16 %v1795, %v1788
  %v2335 = vpack.c.b16 %v1796, %v1789
  %v2336 = vpack.c.b16 %v1797, %v1790
  %v2337 = vpack.c.b16 %v1798, %v1791
  %v2338 = vpack.c.b16 %v1799, %v1792
  %v2339 = vpack.c.b16 %v1807, %v1800
  %v2340 = vpack.c.b16 %v1808, %v1801
  %v2341 = vpack.c.b16 %v1809, %v1802
  %v2342 = vpack.c.b16 %v1810, %v1803
  %v2343 = vpack.c.b16 %v1811, %v1804
  %v2344 = vpack.c.b16 %v1812, %v1805
  %v2345 = vpack.c.b16 %v1813, %v1806
  %v2346 = vpack.c.b16 %v1821, %v1814
  %v2347 = vpack.c.b16 %v1822, %v1815
  %v2348 = vpack.c.b16 %v1823, %v1816
  %v2349 = vpack.c.b16 %v1824, %v1817
  %v2350 = vpack.c.b16 %v1825, %v1818
  %v2351 = vpack.c.b16 %v1826, %v1819
  %v2352 = vpack.c.b16 %v1827, %v1820
  %v2353 = vpack.c.b16 %v1835, %v1828
  %v2354 = vpack.c.b16 %v1836, %v1829
  %v2355 = vpack.c.b16 %v1837, %v1830
  %v2356 = vpack.c.b16 %v1838, %v1831
  %v2357 = vpack.c.b16 %v1839, %v1832
  %v2358 = vpack.c.b16 %v1840, %v1833
  %v2359 = vpack.c.b16 %v1841, %v1834
  %v2360 = vpack.c.b16 %v1849, %v1842
  %v2361 = vpack.c.b16 %v1850, %v1843
  %v2362 = vpack.c.b16 %v1851, %v1844
  %v2363 = vpack.c.b16 %v1852, %v1845
  %v2364 = vpack.c.b16 %v1853, %v1846
  %v2365 = vpack.c.b16 %v1854, %v1847
  %v2366 = vpack.c.b16 %v1855, %v1848
  %v2367 = vpack.c.b16 %v1863, %v1856
  %v2368 = vpack.c.b16 %v1864, %v1857
  %v2369 = vpack.c.b16 %v1865, %v1858
  %v2370 = vpack.c.b16 %v1866, %v1859
  %v2371 = vpack.c.b16 %v1867, %v1860
  %v2372 = vpack.c.b16 %v1868, %v1861
  %v2373 = vpack.c.b16 %v1869, %v1862
  %v2374 = vpack.c.b16 %v1877, %v1870
  %v2375 = vpack.c.b16 %v1878, %v1871
  %v2376 = vpack.c.b16 %v1879, %v1872
  %v2377 = vpack.c.b16 %v1880, %v1873
  %v2378 = vpack.c.b16 %v1881, %v1874
  %v2379 = vpack.c.b16 %v1882, %v1875
  %v2380 = vpack.c.b16 %v1883, %v1876
  %v2381 = vpack.c.b16 %v1891, %v1884
  %v2382 = vpack.c.b16 %v1892, %v1885
  %v2383 = vpack.c.b16 %v1893, %v1886
  %v2384 = vpack.c.b16 %v1894, %v1887
  %v2385 = vpack.c.b16 %v1895, %v1888
  %v2386 = vpack.c.b16 %v1896, %v1889
  %v2387 = vpack.c.b16 %v1897, %v1890
  %v2388 = vpack.c.b16 %v1905, %v1898
  %v2389 = vpack.c.b16 %v1906, %v1899
  %v2390 = vpack.c.b16 %v1907, %v1900
  %v2391 = vpack.c.b16 %v1908, %v1901
  %v2392 = vpack.c.b16 %v1909, %v1902
  %v2393 = vpack.c.b16 %v1910, %v1903
  %v2394 = vpack.c.b16 %v1911, %v1904
  %v2395 = vpack.c.b16 %v1919, %v1912
  %v2396 = vpack.c.b16 %v1920, %v1913
  %v2397 = vpack.c.b16 %v1921, %v1914
  %v2398 = vpack.c.b16 %v1922, %v1915
  %v2399 = vpack.c.b16 %v1923, %v1916
  %v2400 = vpack.c.b16 %v1924, %v1917
  %v2401 = vpack.c.b16 %v1925, %v1918
  %v2402 = vpack.c.b16 %v1933, %v1926
  %v2403 = vpack.c.b16 %v1934, %v1927
  %v2404 = vpack.c.b16 %v1935, %v1928
  %v2405 = vpack.c.b16 %v1936, %v1929
  %v2406 = vpack.c.b16 %v1937, %v1930
  %v2407 = vpack.c.b16 %v1938, %v1931
  %v2408 = vpack.c.b16 %v1939, %v1932
  %v2409 = vpack.c.b16 %v1947, %v1940
  %v2410 = vpack.c.b16 %v1948, %v1941
  %v2411 = vpack.c.b16 %v1949, %v1942
  %v2412 = vpack.c.b16 %v1950, %v1943
  %v2413 = vpack.c.b16 %v1951, %v1944
  %v2414 = vpack.c.b16 %v1952, %v1945
  %v2415 = vpack.c.b16 %v1953, %v1946
  %v2416 = vpack.c.b16 %v1961, %v1954
  %v2417 = vpack.c.b16 %v1962, %v1955
  %v2418 = vpack.c.b16 %v1963, %v1956
  %v2419 = vpack.c.b16 %v1964, %v1957
  %v2420 = vpack.c.b16 %v1965, %v1958
  %v2421 = vpack.c.b16 %v1966, %v1959
  %v2422 = vpack.c.b16 %v1967, %v1960
  %v2423 = vpack.c.b16 %v1975, %v1968
  %v2424 = vpack.c.b16 %v1976, %v1969
  %v2425 = vpack.c.b16 %v1977, %v1970
  %v2426 = vpack.c.b16 %v1978, %v1971
  %v2427 = vpack.c.b16 %v1979, %v1972
  %v2428 = vpack.c.b16 %v1980, %v1973
  %v2429 = vpack.c.b16 %v1981, %v1974
  %2878 = vmatpush.bf16.msra.mxu0 %v2031
  %2879 = vmatpush.bf16.msra.mxu0 %v2024
  %2880 = vmatpush.bf16.msra.mxu0 %v2017
  %2881 = vmatpush.bf16.msra.mxu0 %v2010
  %2882 = vmatpush.bf16.msra.mxu0 %v2003
  %2883 = vmatpush.bf16.msra.mxu0 %v1996
  %2884 = vmatpush.bf16.msra.mxu0 %v1989
  %2885 = vmatpush.bf16.msra.mxu0 %v1982
  %2886 = vmatmul.bf16.gmra.mxu0 %v558
  %v2887 = vpop.f32.mrf.mxu0
  %v2888 = vadd.f32 %v532, %v2887
  %v2889 = vpop.f32.mrf.mxu0
  %2890 = vdwg.mxu0
  %2891 = vmatpush.bf16.msra.mxu0 %v2087
  %2892 = vmatpush.bf16.msra.mxu0 %v2080
  %2893 = vmatpush.bf16.msra.mxu0 %v2073
  %2894 = vmatpush.bf16.msra.mxu0 %v2066
  %2895 = vmatpush.bf16.msra.mxu0 %v2059
  %2896 = vmatpush.bf16.msra.mxu0 %v2052
  %2897 = vmatpush.bf16.msra.mxu0 %v2045
  %2898 = vmatpush.bf16.msra.mxu0 %v2038
  %2899 = vmatmul.bf16.gmra.mxu0 %v559
  %v2900 = vpop.f32.mrf.mxu0
  %v2901 = vadd.f32 %v2888, %v2900
  %v2902 = vpop.f32.mrf.mxu0
  %2903 = vdwg.mxu0
  %2904 = vmatpush.bf16.msra.mxu0 %v2143
  %2905 = vmatpush.bf16.msra.mxu0 %v2136
  %2906 = vmatpush.bf16.msra.mxu0 %v2129
  %2907 = vmatpush.bf16.msra.mxu0 %v2122
  %2908 = vmatpush.bf16.msra.mxu0 %v2115
  %2909 = vmatpush.bf16.msra.mxu0 %v2108
  %2910 = vmatpush.bf16.msra.mxu0 %v2101
  %2911 = vmatpush.bf16.msra.mxu0 %v2094
  %2912 = vmatmul.bf16.gmra.mxu0 %v560
  %v2913 = vpop.f32.mrf.mxu0
  %v2914 = vadd.f32 %v2901, %v2913
  %v2915 = vpop.f32.mrf.mxu0
  %2916 = vdwg.mxu0
  %2917 = vmatpush.bf16.msra.mxu0 %v2199
  %2918 = vmatpush.bf16.msra.mxu0 %v2192
  %2919 = vmatpush.bf16.msra.mxu0 %v2185
  %2920 = vmatpush.bf16.msra.mxu0 %v2178
  %2921 = vmatpush.bf16.msra.mxu0 %v2171
  %2922 = vmatpush.bf16.msra.mxu0 %v2164
  %2923 = vmatpush.bf16.msra.mxu0 %v2157
  %2924 = vmatpush.bf16.msra.mxu0 %v2150
  %2925 = vmatmul.bf16.gmra.mxu0 %v561
  %v2926 = vpop.f32.mrf.mxu0
  %v2927 = vadd.f32 %v2914, %v2926
  %v2928 = vpop.f32.mrf.mxu0
  %2929 = vdwg.mxu0
  %2930 = vmatpush.bf16.msra.mxu0 %v2255
  %2931 = vmatpush.bf16.msra.mxu0 %v2248
  %2932 = vmatpush.bf16.msra.mxu0 %v2241
  %2933 = vmatpush.bf16.msra.mxu0 %v2234
  %2934 = vmatpush.bf16.msra.mxu0 %v2227
  %2935 = vmatpush.bf16.msra.mxu0 %v2220
  %2936 = vmatpush.bf16.msra.mxu0 %v2213
  %2937 = vmatpush.bf16.msra.mxu0 %v2206
  %2938 = vmatmul.bf16.gmra.mxu0 %v562
  %v2939 = vpop.f32.mrf.mxu0
  %v2940 = vadd.f32 %v2927, %v2939
  %v2941 = vpop.f32.mrf.mxu0
  %2942 = vdwg.mxu0
  %2943 = vmatpush.bf16.msra.mxu0 %v2311
  %2944 = vmatpush.bf16.msra.mxu0 %v2304
  %2945 = vmatpush.bf16.msra.mxu0 %v2297
  %2946 = vmatpush.bf16.msra.mxu0 %v2290
  %2947 = vmatpush.bf16.msra.mxu0 %v2283
  %2948 = vmatpush.bf16.msra.mxu0 %v2276
  %2949 = vmatpush.bf16.msra.mxu0 %v2269
  %2950 = vmatpush.bf16.msra.mxu0 %v2262
  %2951 = vmatmul.bf16.gmra.mxu0 %v563
  %v2952 = vpop.f32.mrf.mxu0
  %v2953 = vadd.f32 %v2940, %v2952
  %v2954 = vpop.f32.mrf.mxu0
  %2955 = vdwg.mxu0
  %2956 = vmatpush.bf16.msra.mxu0 %v2367
  %2957 = vmatpush.bf16.msra.mxu0 %v2360
  %2958 = vmatpush.bf16.msra.mxu0 %v2353
  %2959 = vmatpush.bf16.msra.mxu0 %v2346
  %2960 = vmatpush.bf16.msra.mxu0 %v2339
  %2961 = vmatpush.bf16.msra.mxu0 %v2332
  %2962 = vmatpush.bf16.msra.mxu0 %v2325
  %2963 = vmatpush.bf16.msra.mxu0 %v2318
  %2964 = vmatmul.bf16.gmra.mxu0 %v564
  %v2965 = vpop.f32.mrf.mxu0
  %v2966 = vadd.f32 %v2953, %v2965
  %v2967 = vpop.f32.mrf.mxu0
  %2968 = vdwg.mxu0
  %2969 = vmatpush.bf16.msra.mxu0 %v2423
  %2970 = vmatpush.bf16.msra.mxu0 %v2416
  %2971 = vmatpush.bf16.msra.mxu0 %v2409
  %2972 = vmatpush.bf16.msra.mxu0 %v2402
  %2973 = vmatpush.bf16.msra.mxu0 %v2395
  %2974 = vmatpush.bf16.msra.mxu0 %v2388
  %2975 = vmatpush.bf16.msra.mxu0 %v2381
  %2976 = vmatpush.bf16.msra.mxu0 %v2374
  %2977 = vmatmul.bf16.gmra.mxu0 %v565
  %v2978 = vpop.f32.mrf.mxu0
  %v2979 = vadd.f32 %v2966, %v2978
  %v2980 = vpop.f32.mrf.mxu0
  %2981 = vdwg.mxu0
  %2982 = vmatpush.bf16.msra.mxu0 %v2032
  %2983 = vmatpush.bf16.msra.mxu0 %v2025
  %2984 = vmatpush.bf16.msra.mxu0 %v2018
  %2985 = vmatpush.bf16.msra.mxu0 %v2011
  %2986 = vmatpush.bf16.msra.mxu0 %v2004
  %2987 = vmatpush.bf16.msra.mxu0 %v1997
  %2988 = vmatpush.bf16.msra.mxu0 %v1990
  %2989 = vmatpush.bf16.msra.mxu0 %v1983
  %2990 = vmatmul.bf16.gmra.mxu0 %v558
  %v2991 = vpop.f32.mrf.mxu0
  %v2992 = vadd.f32 %v533, %v2991
  %v2993 = vpop.f32.mrf.mxu0
  %2994 = vdwg.mxu0
  %2995 = vmatpush.bf16.msra.mxu0 %v2088
  %2996 = vmatpush.bf16.msra.mxu0 %v2081
  %2997 = vmatpush.bf16.msra.mxu0 %v2074
  %2998 = vmatpush.bf16.msra.mxu0 %v2067
  %2999 = vmatpush.bf16.msra.mxu0 %v2060
  %3000 = vmatpush.bf16.msra.mxu0 %v2053
  %3001 = vmatpush.bf16.msra.mxu0 %v2046
  %3002 = vmatpush.bf16.msra.mxu0 %v2039
  %3003 = vmatmul.bf16.gmra.mxu0 %v559
  %v3004 = vpop.f32.mrf.mxu0
  %v3005 = vadd.f32 %v2992, %v3004
  %v3006 = vpop.f32.mrf.mxu0
  %3007 = vdwg.mxu0
  %3008 = vmatpush.bf16.msra.mxu0 %v2144
  %3009 = vmatpush.bf16.msra.mxu0 %v2137
  %3010 = vmatpush.bf16.msra.mxu0 %v2130
  %3011 = vmatpush.bf16.msra.mxu0 %v2123
  %3012 = vmatpush.bf16.msra.mxu0 %v2116
  %3013 = vmatpush.bf16.msra.mxu0 %v2109
  %3014 = vmatpush.bf16.msra.mxu0 %v2102
  %3015 = vmatpush.bf16.msra.mxu0 %v2095
  %3016 = vmatmul.bf16.gmra.mxu0 %v560
  %v3017 = vpop.f32.mrf.mxu0
  %v3018 = vadd.f32 %v3005, %v3017
  %v3019 = vpop.f32.mrf.mxu0
  %3020 = vdwg.mxu0
  %3021 = vmatpush.bf16.msra.mxu0 %v2200
  %3022 = vmatpush.bf16.msra.mxu0 %v2193
  %3023 = vmatpush.bf16.msra.mxu0 %v2186
  %3024 = vmatpush.bf16.msra.mxu0 %v2179
  %3025 = vmatpush.bf16.msra.mxu0 %v2172
  %3026 = vmatpush.bf16.msra.mxu0 %v2165
  %3027 = vmatpush.bf16.msra.mxu0 %v2158
  %3028 = vmatpush.bf16.msra.mxu0 %v2151
  %3029 = vmatmul.bf16.gmra.mxu0 %v561
  %v3030 = vpop.f32.mrf.mxu0
  %v3031 = vadd.f32 %v3018, %v3030
  %v3032 = vpop.f32.mrf.mxu0
  %3033 = vdwg.mxu0
  %3034 = vmatpush.bf16.msra.mxu0 %v2256
  %3035 = vmatpush.bf16.msra.mxu0 %v2249
  %3036 = vmatpush.bf16.msra.mxu0 %v2242
  %3037 = vmatpush.bf16.msra.mxu0 %v2235
  %3038 = vmatpush.bf16.msra.mxu0 %v2228
  %3039 = vmatpush.bf16.msra.mxu0 %v2221
  %3040 = vmatpush.bf16.msra.mxu0 %v2214
  %3041 = vmatpush.bf16.msra.mxu0 %v2207
  %3042 = vmatmul.bf16.gmra.mxu0 %v562
  %v3043 = vpop.f32.mrf.mxu0
  %v3044 = vadd.f32 %v3031, %v3043
  %v3045 = vpop.f32.mrf.mxu0
  %3046 = vdwg.mxu0
  %3047 = vmatpush.bf16.msra.mxu0 %v2312
  %3048 = vmatpush.bf16.msra.mxu0 %v2305
  %3049 = vmatpush.bf16.msra.mxu0 %v2298
  %3050 = vmatpush.bf16.msra.mxu0 %v2291
  %3051 = vmatpush.bf16.msra.mxu0 %v2284
  %3052 = vmatpush.bf16.msra.mxu0 %v2277
  %3053 = vmatpush.bf16.msra.mxu0 %v2270
  %3054 = vmatpush.bf16.msra.mxu0 %v2263
  %3055 = vmatmul.bf16.gmra.mxu0 %v563
  %v3056 = vpop.f32.mrf.mxu0
  %v3057 = vadd.f32 %v3044, %v3056
  %v3058 = vpop.f32.mrf.mxu0
  %3059 = vdwg.mxu0
  %3060 = vmatpush.bf16.msra.mxu0 %v2368
  %3061 = vmatpush.bf16.msra.mxu0 %v2361
  %3062 = vmatpush.bf16.msra.mxu0 %v2354
  %3063 = vmatpush.bf16.msra.mxu0 %v2347
  %3064 = vmatpush.bf16.msra.mxu0 %v2340
  %3065 = vmatpush.bf16.msra.mxu0 %v2333
  %3066 = vmatpush.bf16.msra.mxu0 %v2326
  %3067 = vmatpush.bf16.msra.mxu0 %v2319
  %3068 = vmatmul.bf16.gmra.mxu0 %v564
  %v3069 = vpop.f32.mrf.mxu0
  %v3070 = vadd.f32 %v3057, %v3069
  %v3071 = vpop.f32.mrf.mxu0
  %3072 = vdwg.mxu0
  %3073 = vmatpush.bf16.msra.mxu0 %v2424
  %3074 = vmatpush.bf16.msra.mxu0 %v2417
  %3075 = vmatpush.bf16.msra.mxu0 %v2410
  %3076 = vmatpush.bf16.msra.mxu0 %v2403
  %3077 = vmatpush.bf16.msra.mxu0 %v2396
  %3078 = vmatpush.bf16.msra.mxu0 %v2389
  %3079 = vmatpush.bf16.msra.mxu0 %v2382
  %3080 = vmatpush.bf16.msra.mxu0 %v2375
  %3081 = vmatmul.bf16.gmra.mxu0 %v565
  %v3082 = vpop.f32.mrf.mxu0
  %v3083 = vadd.f32 %v3070, %v3082
  %v3084 = vpop.f32.mrf.mxu0
  %3085 = vdwg.mxu0
  %3086 = vmatpush.bf16.msra.mxu0 %v2033
  %3087 = vmatpush.bf16.msra.mxu0 %v2026
  %3088 = vmatpush.bf16.msra.mxu0 %v2019
  %3089 = vmatpush.bf16.msra.mxu0 %v2012
  %3090 = vmatpush.bf16.msra.mxu0 %v2005
  %3091 = vmatpush.bf16.msra.mxu0 %v1998
  %3092 = vmatpush.bf16.msra.mxu0 %v1991
  %3093 = vmatpush.bf16.msra.mxu0 %v1984
  %3094 = vmatmul.bf16.gmra.mxu0 %v558
  %v3095 = vpop.f32.mrf.mxu0
  %v3096 = vadd.f32 %v534, %v3095
  %v3097 = vpop.f32.mrf.mxu0
  %3098 = vdwg.mxu0
  %3099 = vmatpush.bf16.msra.mxu0 %v2089
  %3100 = vmatpush.bf16.msra.mxu0 %v2082
  %3101 = vmatpush.bf16.msra.mxu0 %v2075
  %3102 = vmatpush.bf16.msra.mxu0 %v2068
  %3103 = vmatpush.bf16.msra.mxu0 %v2061
  %3104 = vmatpush.bf16.msra.mxu0 %v2054
  %3105 = vmatpush.bf16.msra.mxu0 %v2047
  %3106 = vmatpush.bf16.msra.mxu0 %v2040
  %3107 = vmatmul.bf16.gmra.mxu0 %v559
  %v3108 = vpop.f32.mrf.mxu0
  %v3109 = vadd.f32 %v3096, %v3108
  %v3110 = vpop.f32.mrf.mxu0
  %3111 = vdwg.mxu0
  %3112 = vmatpush.bf16.msra.mxu0 %v2145
  %3113 = vmatpush.bf16.msra.mxu0 %v2138
  %3114 = vmatpush.bf16.msra.mxu0 %v2131
  %3115 = vmatpush.bf16.msra.mxu0 %v2124
  %3116 = vmatpush.bf16.msra.mxu0 %v2117
  %3117 = vmatpush.bf16.msra.mxu0 %v2110
  %3118 = vmatpush.bf16.msra.mxu0 %v2103
  %3119 = vmatpush.bf16.msra.mxu0 %v2096
  %3120 = vmatmul.bf16.gmra.mxu0 %v560
  %v3121 = vpop.f32.mrf.mxu0
  %v3122 = vadd.f32 %v3109, %v3121
  %v3123 = vpop.f32.mrf.mxu0
  %3124 = vdwg.mxu0
  %3125 = vmatpush.bf16.msra.mxu0 %v2201
  %3126 = vmatpush.bf16.msra.mxu0 %v2194
  %3127 = vmatpush.bf16.msra.mxu0 %v2187
  %3128 = vmatpush.bf16.msra.mxu0 %v2180
  %3129 = vmatpush.bf16.msra.mxu0 %v2173
  %3130 = vmatpush.bf16.msra.mxu0 %v2166
  %3131 = vmatpush.bf16.msra.mxu0 %v2159
  %3132 = vmatpush.bf16.msra.mxu0 %v2152
  %3133 = vmatmul.bf16.gmra.mxu0 %v561
  %v3134 = vpop.f32.mrf.mxu0
  %v3135 = vadd.f32 %v3122, %v3134
  %v3136 = vpop.f32.mrf.mxu0
  %3137 = vdwg.mxu0
  %3138 = vmatpush.bf16.msra.mxu0 %v2257
  %3139 = vmatpush.bf16.msra.mxu0 %v2250
  %3140 = vmatpush.bf16.msra.mxu0 %v2243
  %3141 = vmatpush.bf16.msra.mxu0 %v2236
  %3142 = vmatpush.bf16.msra.mxu0 %v2229
  %3143 = vmatpush.bf16.msra.mxu0 %v2222
  %3144 = vmatpush.bf16.msra.mxu0 %v2215
  %3145 = vmatpush.bf16.msra.mxu0 %v2208
  %3146 = vmatmul.bf16.gmra.mxu0 %v562
  %v3147 = vpop.f32.mrf.mxu0
  %v3148 = vadd.f32 %v3135, %v3147
  %v3149 = vpop.f32.mrf.mxu0
  %3150 = vdwg.mxu0
  %3151 = vmatpush.bf16.msra.mxu0 %v2313
  %3152 = vmatpush.bf16.msra.mxu0 %v2306
  %3153 = vmatpush.bf16.msra.mxu0 %v2299
  %3154 = vmatpush.bf16.msra.mxu0 %v2292
  %3155 = vmatpush.bf16.msra.mxu0 %v2285
  %3156 = vmatpush.bf16.msra.mxu0 %v2278
  %3157 = vmatpush.bf16.msra.mxu0 %v2271
  %3158 = vmatpush.bf16.msra.mxu0 %v2264
  %3159 = vmatmul.bf16.gmra.mxu0 %v563
  %v3160 = vpop.f32.mrf.mxu0
  %v3161 = vadd.f32 %v3148, %v3160
  %v3162 = vpop.f32.mrf.mxu0
  %3163 = vdwg.mxu0
  %3164 = vmatpush.bf16.msra.mxu0 %v2369
  %3165 = vmatpush.bf16.msra.mxu0 %v2362
  %3166 = vmatpush.bf16.msra.mxu0 %v2355
  %3167 = vmatpush.bf16.msra.mxu0 %v2348
  %3168 = vmatpush.bf16.msra.mxu0 %v2341
  %3169 = vmatpush.bf16.msra.mxu0 %v2334
  %3170 = vmatpush.bf16.msra.mxu0 %v2327
  %3171 = vmatpush.bf16.msra.mxu0 %v2320
  %3172 = vmatmul.bf16.gmra.mxu0 %v564
  %v3173 = vpop.f32.mrf.mxu0
  %v3174 = vadd.f32 %v3161, %v3173
  %v3175 = vpop.f32.mrf.mxu0
  %3176 = vdwg.mxu0
  %3177 = vmatpush.bf16.msra.mxu0 %v2425
  %3178 = vmatpush.bf16.msra.mxu0 %v2418
  %3179 = vmatpush.bf16.msra.mxu0 %v2411
  %3180 = vmatpush.bf16.msra.mxu0 %v2404
  %3181 = vmatpush.bf16.msra.mxu0 %v2397
  %3182 = vmatpush.bf16.msra.mxu0 %v2390
  %3183 = vmatpush.bf16.msra.mxu0 %v2383
  %3184 = vmatpush.bf16.msra.mxu0 %v2376
  %3185 = vmatmul.bf16.gmra.mxu0 %v565
  %v3186 = vpop.f32.mrf.mxu0
  %v3187 = vadd.f32 %v3174, %v3186
  %v3188 = vpop.f32.mrf.mxu0
  %3189 = vdwg.mxu0
  %3190 = vmatpush.bf16.msra.mxu0 %v2034
  %3191 = vmatpush.bf16.msra.mxu0 %v2027
  %3192 = vmatpush.bf16.msra.mxu0 %v2020
  %3193 = vmatpush.bf16.msra.mxu0 %v2013
  %3194 = vmatpush.bf16.msra.mxu0 %v2006
  %3195 = vmatpush.bf16.msra.mxu0 %v1999
  %3196 = vmatpush.bf16.msra.mxu0 %v1992
  %3197 = vmatpush.bf16.msra.mxu0 %v1985
  %3198 = vmatmul.bf16.gmra.mxu0 %v558
  %v3199 = vpop.f32.mrf.mxu0
  %v3200 = vadd.f32 %v535, %v3199
  %v3201 = vpop.f32.mrf.mxu0
  %3202 = vdwg.mxu0
  %3203 = vmatpush.bf16.msra.mxu0 %v2090
  %3204 = vmatpush.bf16.msra.mxu0 %v2083
  %3205 = vmatpush.bf16.msra.mxu0 %v2076
  %3206 = vmatpush.bf16.msra.mxu0 %v2069
  %3207 = vmatpush.bf16.msra.mxu0 %v2062
  %3208 = vmatpush.bf16.msra.mxu0 %v2055
  %3209 = vmatpush.bf16.msra.mxu0 %v2048
  %3210 = vmatpush.bf16.msra.mxu0 %v2041
  %3211 = vmatmul.bf16.gmra.mxu0 %v559
  %v3212 = vpop.f32.mrf.mxu0
  %v3213 = vadd.f32 %v3200, %v3212
  %v3214 = vpop.f32.mrf.mxu0
  %3215 = vdwg.mxu0
  %3216 = vmatpush.bf16.msra.mxu0 %v2146
  %3217 = vmatpush.bf16.msra.mxu0 %v2139
  %3218 = vmatpush.bf16.msra.mxu0 %v2132
  %3219 = vmatpush.bf16.msra.mxu0 %v2125
  %3220 = vmatpush.bf16.msra.mxu0 %v2118
  %3221 = vmatpush.bf16.msra.mxu0 %v2111
  %3222 = vmatpush.bf16.msra.mxu0 %v2104
  %3223 = vmatpush.bf16.msra.mxu0 %v2097
  %3224 = vmatmul.bf16.gmra.mxu0 %v560
  %v3225 = vpop.f32.mrf.mxu0
  %v3226 = vadd.f32 %v3213, %v3225
  %v3227 = vpop.f32.mrf.mxu0
  %3228 = vdwg.mxu0
  %3229 = vmatpush.bf16.msra.mxu0 %v2202
  %3230 = vmatpush.bf16.msra.mxu0 %v2195
  %3231 = vmatpush.bf16.msra.mxu0 %v2188
  %3232 = vmatpush.bf16.msra.mxu0 %v2181
  %3233 = vmatpush.bf16.msra.mxu0 %v2174
  %3234 = vmatpush.bf16.msra.mxu0 %v2167
  %3235 = vmatpush.bf16.msra.mxu0 %v2160
  %3236 = vmatpush.bf16.msra.mxu0 %v2153
  %3237 = vmatmul.bf16.gmra.mxu0 %v561
  %v3238 = vpop.f32.mrf.mxu0
  %v3239 = vadd.f32 %v3226, %v3238
  %v3240 = vpop.f32.mrf.mxu0
  %3241 = vdwg.mxu0
  %3242 = vmatpush.bf16.msra.mxu0 %v2258
  %3243 = vmatpush.bf16.msra.mxu0 %v2251
  %3244 = vmatpush.bf16.msra.mxu0 %v2244
  %3245 = vmatpush.bf16.msra.mxu0 %v2237
  %3246 = vmatpush.bf16.msra.mxu0 %v2230
  %3247 = vmatpush.bf16.msra.mxu0 %v2223
  %3248 = vmatpush.bf16.msra.mxu0 %v2216
  %3249 = vmatpush.bf16.msra.mxu0 %v2209
  %3250 = vmatmul.bf16.gmra.mxu0 %v562
  %v3251 = vpop.f32.mrf.mxu0
  %v3252 = vadd.f32 %v3239, %v3251
  %v3253 = vpop.f32.mrf.mxu0
  %3254 = vdwg.mxu0
  %3255 = vmatpush.bf16.msra.mxu0 %v2314
  %3256 = vmatpush.bf16.msra.mxu0 %v2307
  %3257 = vmatpush.bf16.msra.mxu0 %v2300
  %3258 = vmatpush.bf16.msra.mxu0 %v2293
  %3259 = vmatpush.bf16.msra.mxu0 %v2286
  %3260 = vmatpush.bf16.msra.mxu0 %v2279
  %3261 = vmatpush.bf16.msra.mxu0 %v2272
  %3262 = vmatpush.bf16.msra.mxu0 %v2265
  %3263 = vmatmul.bf16.gmra.mxu0 %v563
  %v3264 = vpop.f32.mrf.mxu0
  %v3265 = vadd.f32 %v3252, %v3264
  %v3266 = vpop.f32.mrf.mxu0
  %3267 = vdwg.mxu0
  %3268 = vmatpush.bf16.msra.mxu0 %v2370
  %3269 = vmatpush.bf16.msra.mxu0 %v2363
  %3270 = vmatpush.bf16.msra.mxu0 %v2356
  %3271 = vmatpush.bf16.msra.mxu0 %v2349
  %3272 = vmatpush.bf16.msra.mxu0 %v2342
  %3273 = vmatpush.bf16.msra.mxu0 %v2335
  %3274 = vmatpush.bf16.msra.mxu0 %v2328
  %3275 = vmatpush.bf16.msra.mxu0 %v2321
  %3276 = vmatmul.bf16.gmra.mxu0 %v564
  %v3277 = vpop.f32.mrf.mxu0
  %v3278 = vadd.f32 %v3265, %v3277
  %v3279 = vpop.f32.mrf.mxu0
  %3280 = vdwg.mxu0
  %3281 = vmatpush.bf16.msra.mxu0 %v2426
  %3282 = vmatpush.bf16.msra.mxu0 %v2419
  %3283 = vmatpush.bf16.msra.mxu0 %v2412
  %3284 = vmatpush.bf16.msra.mxu0 %v2405
  %3285 = vmatpush.bf16.msra.mxu0 %v2398
  %3286 = vmatpush.bf16.msra.mxu0 %v2391
  %3287 = vmatpush.bf16.msra.mxu0 %v2384
  %3288 = vmatpush.bf16.msra.mxu0 %v2377
  %3289 = vmatmul.bf16.gmra.mxu0 %v565
  %v3290 = vpop.f32.mrf.mxu0
  %v3291 = vadd.f32 %v3278, %v3290
  %v3292 = vpop.f32.mrf.mxu0
  %3293 = vdwg.mxu0
  %3294 = vmatpush.bf16.msra.mxu0 %v2035
  %3295 = vmatpush.bf16.msra.mxu0 %v2028
  %3296 = vmatpush.bf16.msra.mxu0 %v2021
  %3297 = vmatpush.bf16.msra.mxu0 %v2014
  %3298 = vmatpush.bf16.msra.mxu0 %v2007
  %3299 = vmatpush.bf16.msra.mxu0 %v2000
  %3300 = vmatpush.bf16.msra.mxu0 %v1993
  %3301 = vmatpush.bf16.msra.mxu0 %v1986
  %3302 = vmatmul.bf16.gmra.mxu0 %v558
  %v3303 = vpop.f32.mrf.mxu0
  %v3304 = vadd.f32 %v536, %v3303
  %v3305 = vpop.f32.mrf.mxu0
  %3306 = vdwg.mxu0
  %3307 = vmatpush.bf16.msra.mxu0 %v2091
  %3308 = vmatpush.bf16.msra.mxu0 %v2084
  %3309 = vmatpush.bf16.msra.mxu0 %v2077
  %3310 = vmatpush.bf16.msra.mxu0 %v2070
  %3311 = vmatpush.bf16.msra.mxu0 %v2063
  %3312 = vmatpush.bf16.msra.mxu0 %v2056
  %3313 = vmatpush.bf16.msra.mxu0 %v2049
  %3314 = vmatpush.bf16.msra.mxu0 %v2042
  %3315 = vmatmul.bf16.gmra.mxu0 %v559
  %v3316 = vpop.f32.mrf.mxu0
  %v3317 = vadd.f32 %v3304, %v3316
  %v3318 = vpop.f32.mrf.mxu0
  %3319 = vdwg.mxu0
  %3320 = vmatpush.bf16.msra.mxu0 %v2147
  %3321 = vmatpush.bf16.msra.mxu0 %v2140
  %3322 = vmatpush.bf16.msra.mxu0 %v2133
  %3323 = vmatpush.bf16.msra.mxu0 %v2126
  %3324 = vmatpush.bf16.msra.mxu0 %v2119
  %3325 = vmatpush.bf16.msra.mxu0 %v2112
  %3326 = vmatpush.bf16.msra.mxu0 %v2105
  %3327 = vmatpush.bf16.msra.mxu0 %v2098
  %3328 = vmatmul.bf16.gmra.mxu0 %v560
  %v3329 = vpop.f32.mrf.mxu0
  %v3330 = vadd.f32 %v3317, %v3329
  %v3331 = vpop.f32.mrf.mxu0
  %3332 = vdwg.mxu0
  %3333 = vmatpush.bf16.msra.mxu0 %v2203
  %3334 = vmatpush.bf16.msra.mxu0 %v2196
  %3335 = vmatpush.bf16.msra.mxu0 %v2189
  %3336 = vmatpush.bf16.msra.mxu0 %v2182
  %3337 = vmatpush.bf16.msra.mxu0 %v2175
  %3338 = vmatpush.bf16.msra.mxu0 %v2168
  %3339 = vmatpush.bf16.msra.mxu0 %v2161
  %3340 = vmatpush.bf16.msra.mxu0 %v2154
  %3341 = vmatmul.bf16.gmra.mxu0 %v561
  %v3342 = vpop.f32.mrf.mxu0
  %v3343 = vadd.f32 %v3330, %v3342
  %v3344 = vpop.f32.mrf.mxu0
  %3345 = vdwg.mxu0
  %3346 = vmatpush.bf16.msra.mxu0 %v2259
  %3347 = vmatpush.bf16.msra.mxu0 %v2252
  %3348 = vmatpush.bf16.msra.mxu0 %v2245
  %3349 = vmatpush.bf16.msra.mxu0 %v2238
  %3350 = vmatpush.bf16.msra.mxu0 %v2231
  %3351 = vmatpush.bf16.msra.mxu0 %v2224
  %3352 = vmatpush.bf16.msra.mxu0 %v2217
  %3353 = vmatpush.bf16.msra.mxu0 %v2210
  %3354 = vmatmul.bf16.gmra.mxu0 %v562
  %v3355 = vpop.f32.mrf.mxu0
  %v3356 = vadd.f32 %v3343, %v3355
  %v3357 = vpop.f32.mrf.mxu0
  %3358 = vdwg.mxu0
  %3359 = vmatpush.bf16.msra.mxu0 %v2315
  %3360 = vmatpush.bf16.msra.mxu0 %v2308
  %3361 = vmatpush.bf16.msra.mxu0 %v2301
  %3362 = vmatpush.bf16.msra.mxu0 %v2294
  %3363 = vmatpush.bf16.msra.mxu0 %v2287
  %3364 = vmatpush.bf16.msra.mxu0 %v2280
  %3365 = vmatpush.bf16.msra.mxu0 %v2273
  %3366 = vmatpush.bf16.msra.mxu0 %v2266
  %3367 = vmatmul.bf16.gmra.mxu0 %v563
  %v3368 = vpop.f32.mrf.mxu0
  %v3369 = vadd.f32 %v3356, %v3368
  %v3370 = vpop.f32.mrf.mxu0
  %3371 = vdwg.mxu0
  %3372 = vmatpush.bf16.msra.mxu0 %v2371
  %3373 = vmatpush.bf16.msra.mxu0 %v2364
  %3374 = vmatpush.bf16.msra.mxu0 %v2357
  %3375 = vmatpush.bf16.msra.mxu0 %v2350
  %3376 = vmatpush.bf16.msra.mxu0 %v2343
  %3377 = vmatpush.bf16.msra.mxu0 %v2336
  %3378 = vmatpush.bf16.msra.mxu0 %v2329
  %3379 = vmatpush.bf16.msra.mxu0 %v2322
  %3380 = vmatmul.bf16.gmra.mxu0 %v564
  %v3381 = vpop.f32.mrf.mxu0
  %v3382 = vadd.f32 %v3369, %v3381
  %v3383 = vpop.f32.mrf.mxu0
  %3384 = vdwg.mxu0
  %3385 = vmatpush.bf16.msra.mxu0 %v2427
  %3386 = vmatpush.bf16.msra.mxu0 %v2420
  %3387 = vmatpush.bf16.msra.mxu0 %v2413
  %3388 = vmatpush.bf16.msra.mxu0 %v2406
  %3389 = vmatpush.bf16.msra.mxu0 %v2399
  %3390 = vmatpush.bf16.msra.mxu0 %v2392
  %3391 = vmatpush.bf16.msra.mxu0 %v2385
  %3392 = vmatpush.bf16.msra.mxu0 %v2378
  %3393 = vmatmul.bf16.gmra.mxu0 %v565
  %v3394 = vpop.f32.mrf.mxu0
  %v3395 = vadd.f32 %v3382, %v3394
  %v3396 = vpop.f32.mrf.mxu0
  %3397 = vdwg.mxu0
  %3398 = vmatpush.bf16.msra.mxu0 %v2036
  %3399 = vmatpush.bf16.msra.mxu0 %v2029
  %3400 = vmatpush.bf16.msra.mxu0 %v2022
  %3401 = vmatpush.bf16.msra.mxu0 %v2015
  %3402 = vmatpush.bf16.msra.mxu0 %v2008
  %3403 = vmatpush.bf16.msra.mxu0 %v2001
  %3404 = vmatpush.bf16.msra.mxu0 %v1994
  %3405 = vmatpush.bf16.msra.mxu0 %v1987
  %3406 = vmatmul.bf16.gmra.mxu0 %v558
  %v3407 = vpop.f32.mrf.mxu0
  %v3408 = vadd.f32 %v537, %v3407
  %v3409 = vpop.f32.mrf.mxu0
  %3410 = vdwg.mxu0
  %3411 = vmatpush.bf16.msra.mxu0 %v2092
  %3412 = vmatpush.bf16.msra.mxu0 %v2085
  %3413 = vmatpush.bf16.msra.mxu0 %v2078
  %3414 = vmatpush.bf16.msra.mxu0 %v2071
  %3415 = vmatpush.bf16.msra.mxu0 %v2064
  %3416 = vmatpush.bf16.msra.mxu0 %v2057
  %3417 = vmatpush.bf16.msra.mxu0 %v2050
  %3418 = vmatpush.bf16.msra.mxu0 %v2043
  %3419 = vmatmul.bf16.gmra.mxu0 %v559
  %v3420 = vpop.f32.mrf.mxu0
  %v3421 = vadd.f32 %v3408, %v3420
  %v3422 = vpop.f32.mrf.mxu0
  %3423 = vdwg.mxu0
  %3424 = vmatpush.bf16.msra.mxu0 %v2148
  %3425 = vmatpush.bf16.msra.mxu0 %v2141
  %3426 = vmatpush.bf16.msra.mxu0 %v2134
  %3427 = vmatpush.bf16.msra.mxu0 %v2127
  %3428 = vmatpush.bf16.msra.mxu0 %v2120
  %3429 = vmatpush.bf16.msra.mxu0 %v2113
  %3430 = vmatpush.bf16.msra.mxu0 %v2106
  %3431 = vmatpush.bf16.msra.mxu0 %v2099
  %3432 = vmatmul.bf16.gmra.mxu0 %v560
  %v3433 = vpop.f32.mrf.mxu0
  %v3434 = vadd.f32 %v3421, %v3433
  %v3435 = vpop.f32.mrf.mxu0
  %3436 = vdwg.mxu0
  %3437 = vmatpush.bf16.msra.mxu0 %v2204
  %3438 = vmatpush.bf16.msra.mxu0 %v2197
  %3439 = vmatpush.bf16.msra.mxu0 %v2190
  %3440 = vmatpush.bf16.msra.mxu0 %v2183
  %3441 = vmatpush.bf16.msra.mxu0 %v2176
  %3442 = vmatpush.bf16.msra.mxu0 %v2169
  %3443 = vmatpush.bf16.msra.mxu0 %v2162
  %3444 = vmatpush.bf16.msra.mxu0 %v2155
  %3445 = vmatmul.bf16.gmra.mxu0 %v561
  %v3446 = vpop.f32.mrf.mxu0
  %v3447 = vadd.f32 %v3434, %v3446
  %v3448 = vpop.f32.mrf.mxu0
  %3449 = vdwg.mxu0
  %3450 = vmatpush.bf16.msra.mxu0 %v2260
  %3451 = vmatpush.bf16.msra.mxu0 %v2253
  %3452 = vmatpush.bf16.msra.mxu0 %v2246
  %3453 = vmatpush.bf16.msra.mxu0 %v2239
  %3454 = vmatpush.bf16.msra.mxu0 %v2232
  %3455 = vmatpush.bf16.msra.mxu0 %v2225
  %3456 = vmatpush.bf16.msra.mxu0 %v2218
  %3457 = vmatpush.bf16.msra.mxu0 %v2211
  %3458 = vmatmul.bf16.gmra.mxu0 %v562
  %v3459 = vpop.f32.mrf.mxu0
  %v3460 = vadd.f32 %v3447, %v3459
  %v3461 = vpop.f32.mrf.mxu0
  %3462 = vdwg.mxu0
  %3463 = vmatpush.bf16.msra.mxu0 %v2316
  %3464 = vmatpush.bf16.msra.mxu0 %v2309
  %3465 = vmatpush.bf16.msra.mxu0 %v2302
  %3466 = vmatpush.bf16.msra.mxu0 %v2295
  %3467 = vmatpush.bf16.msra.mxu0 %v2288
  %3468 = vmatpush.bf16.msra.mxu0 %v2281
  %3469 = vmatpush.bf16.msra.mxu0 %v2274
  %3470 = vmatpush.bf16.msra.mxu0 %v2267
  %3471 = vmatmul.bf16.gmra.mxu0 %v563
  %v3472 = vpop.f32.mrf.mxu0
  %v3473 = vadd.f32 %v3460, %v3472
  %v3474 = vpop.f32.mrf.mxu0
  %3475 = vdwg.mxu0
  %3476 = vmatpush.bf16.msra.mxu0 %v2372
  %3477 = vmatpush.bf16.msra.mxu0 %v2365
  %3478 = vmatpush.bf16.msra.mxu0 %v2358
  %3479 = vmatpush.bf16.msra.mxu0 %v2351
  %3480 = vmatpush.bf16.msra.mxu0 %v2344
  %3481 = vmatpush.bf16.msra.mxu0 %v2337
  %3482 = vmatpush.bf16.msra.mxu0 %v2330
  %3483 = vmatpush.bf16.msra.mxu0 %v2323
  %3484 = vmatmul.bf16.gmra.mxu0 %v564
  %v3485 = vpop.f32.mrf.mxu0
  %v3486 = vadd.f32 %v3473, %v3485
  %v3487 = vpop.f32.mrf.mxu0
  %3488 = vdwg.mxu0
  %3489 = vmatpush.bf16.msra.mxu0 %v2428
  %3490 = vmatpush.bf16.msra.mxu0 %v2421
  %3491 = vmatpush.bf16.msra.mxu0 %v2414
  %3492 = vmatpush.bf16.msra.mxu0 %v2407
  %3493 = vmatpush.bf16.msra.mxu0 %v2400
  %3494 = vmatpush.bf16.msra.mxu0 %v2393
  %3495 = vmatpush.bf16.msra.mxu0 %v2386
  %3496 = vmatpush.bf16.msra.mxu0 %v2379
  %3497 = vmatmul.bf16.gmra.mxu0 %v565
  %v3498 = vpop.f32.mrf.mxu0
  %v3499 = vadd.f32 %v3486, %v3498
  %v3500 = vpop.f32.mrf.mxu0
  %3501 = vdwg.mxu0
  %3502 = vmatpush.bf16.msra.mxu0 %v2037
  %3503 = vmatpush.bf16.msra.mxu0 %v2030
  %3504 = vmatpush.bf16.msra.mxu0 %v2023
  %3505 = vmatpush.bf16.msra.mxu0 %v2016
  %3506 = vmatpush.bf16.msra.mxu0 %v2009
  %3507 = vmatpush.bf16.msra.mxu0 %v2002
  %3508 = vmatpush.bf16.msra.mxu0 %v1995
  %3509 = vmatpush.bf16.msra.mxu0 %v1988
  %3510 = vmatmul.bf16.gmra.mxu0 %v558
  %v3511 = vpop.f32.mrf.mxu0
  %v3512 = vadd.f32 %v538, %v3511
  %v3513 = vpop.f32.mrf.mxu0
  %3514 = vdwg.mxu0
  %3515 = vmatpush.bf16.msra.mxu0 %v2093
  %3516 = vmatpush.bf16.msra.mxu0 %v2086
  %3517 = vmatpush.bf16.msra.mxu0 %v2079
  %3518 = vmatpush.bf16.msra.mxu0 %v2072
  %3519 = vmatpush.bf16.msra.mxu0 %v2065
  %3520 = vmatpush.bf16.msra.mxu0 %v2058
  %3521 = vmatpush.bf16.msra.mxu0 %v2051
  %3522 = vmatpush.bf16.msra.mxu0 %v2044
  %3523 = vmatmul.bf16.gmra.mxu0 %v559
  %v3524 = vpop.f32.mrf.mxu0
  %v3525 = vadd.f32 %v3512, %v3524
  %v3526 = vpop.f32.mrf.mxu0
  %3527 = vdwg.mxu0
  %3528 = vmatpush.bf16.msra.mxu0 %v2149
  %3529 = vmatpush.bf16.msra.mxu0 %v2142
  %3530 = vmatpush.bf16.msra.mxu0 %v2135
  %3531 = vmatpush.bf16.msra.mxu0 %v2128
  %3532 = vmatpush.bf16.msra.mxu0 %v2121
  %3533 = vmatpush.bf16.msra.mxu0 %v2114
  %3534 = vmatpush.bf16.msra.mxu0 %v2107
  %3535 = vmatpush.bf16.msra.mxu0 %v2100
  %3536 = vmatmul.bf16.gmra.mxu0 %v560
  %v3537 = vpop.f32.mrf.mxu0
  %v3538 = vadd.f32 %v3525, %v3537
  %v3539 = vpop.f32.mrf.mxu0
  %3540 = vdwg.mxu0
  %3541 = vmatpush.bf16.msra.mxu0 %v2205
  %3542 = vmatpush.bf16.msra.mxu0 %v2198
  %3543 = vmatpush.bf16.msra.mxu0 %v2191
  %3544 = vmatpush.bf16.msra.mxu0 %v2184
  %3545 = vmatpush.bf16.msra.mxu0 %v2177
  %3546 = vmatpush.bf16.msra.mxu0 %v2170
  %3547 = vmatpush.bf16.msra.mxu0 %v2163
  %3548 = vmatpush.bf16.msra.mxu0 %v2156
  %3549 = vmatmul.bf16.gmra.mxu0 %v561
  %v3550 = vpop.f32.mrf.mxu0
  %v3551 = vadd.f32 %v3538, %v3550
  %v3552 = vpop.f32.mrf.mxu0
  %3553 = vdwg.mxu0
  %3554 = vmatpush.bf16.msra.mxu0 %v2261
  %3555 = vmatpush.bf16.msra.mxu0 %v2254
  %3556 = vmatpush.bf16.msra.mxu0 %v2247
  %3557 = vmatpush.bf16.msra.mxu0 %v2240
  %3558 = vmatpush.bf16.msra.mxu0 %v2233
  %3559 = vmatpush.bf16.msra.mxu0 %v2226
  %3560 = vmatpush.bf16.msra.mxu0 %v2219
  %3561 = vmatpush.bf16.msra.mxu0 %v2212
  %3562 = vmatmul.bf16.gmra.mxu0 %v562
  %v3563 = vpop.f32.mrf.mxu0
  %v3564 = vadd.f32 %v3551, %v3563
  %v3565 = vpop.f32.mrf.mxu0
  %3566 = vdwg.mxu0
  %3567 = vmatpush.bf16.msra.mxu0 %v2317
  %3568 = vmatpush.bf16.msra.mxu0 %v2310
  %3569 = vmatpush.bf16.msra.mxu0 %v2303
  %3570 = vmatpush.bf16.msra.mxu0 %v2296
  %3571 = vmatpush.bf16.msra.mxu0 %v2289
  %3572 = vmatpush.bf16.msra.mxu0 %v2282
  %3573 = vmatpush.bf16.msra.mxu0 %v2275
  %3574 = vmatpush.bf16.msra.mxu0 %v2268
  %3575 = vmatmul.bf16.gmra.mxu0 %v563
  %v3576 = vpop.f32.mrf.mxu0
  %v3577 = vadd.f32 %v3564, %v3576
  %v3578 = vpop.f32.mrf.mxu0
  %3579 = vdwg.mxu0
  %3580 = vmatpush.bf16.msra.mxu0 %v2373
  %3581 = vmatpush.bf16.msra.mxu0 %v2366
  %3582 = vmatpush.bf16.msra.mxu0 %v2359
  %3583 = vmatpush.bf16.msra.mxu0 %v2352
  %3584 = vmatpush.bf16.msra.mxu0 %v2345
  %3585 = vmatpush.bf16.msra.mxu0 %v2338
  %3586 = vmatpush.bf16.msra.mxu0 %v2331
  %3587 = vmatpush.bf16.msra.mxu0 %v2324
  %3588 = vmatmul.bf16.gmra.mxu0 %v564
  %v3589 = vpop.f32.mrf.mxu0
  %v3590 = vadd.f32 %v3577, %v3589
  %v3591 = vpop.f32.mrf.mxu0
  %3592 = vdwg.mxu0
  %3593 = vmatpush.bf16.msra.mxu0 %v2429
  %3594 = vmatpush.bf16.msra.mxu0 %v2422
  %3595 = vmatpush.bf16.msra.mxu0 %v2415
  %3596 = vmatpush.bf16.msra.mxu0 %v2408
  %3597 = vmatpush.bf16.msra.mxu0 %v2401
  %3598 = vmatpush.bf16.msra.mxu0 %v2394
  %3599 = vmatpush.bf16.msra.mxu0 %v2387
  %3600 = vmatpush.bf16.msra.mxu0 %v2380
  %3601 = vmatmul.bf16.gmra.mxu0 %v565
  %v3602 = vpop.f32.mrf.mxu0
  %v3603 = vadd.f32 %v3590, %v3602
  %v3604 = vpop.f32.mrf.mxu0
  %3605 = vdwg.mxu0
  %3606 = vst [vmem:[%s3] sm:$0xff] %v2979
  %3607 = vst [vmem:[%s3 + $0x8] sm:$0xff] %v3083
  %3608 = vst [vmem:[%s3 + $0x10] sm:$0xff] %v3187
  %3609 = vst [vmem:[%s3 + $0x18] sm:$0xff] %v3291
  %3610 = vst [vmem:[%s3 + $0x20] sm:$0xff] %v3395
  %3611 = vst [vmem:[%s3 + $0x28] sm:$0xff] %v3499
  %3612 = vst [vmem:[%s3 + $0x30] sm:$0xff] %v3603
  // Predicated region
  $region14: #{vae_forward.21} parent=0 // pred_check
    _
  $region15: #{vae_forward.21} parent=0 // pred_check_branch
    %3614 = sbr.rel (0) target = $region17
  $region16: #{vae_forward.21} parent=0 // pred_region
    _
  $region17: #{vae_forward.21} parent=0 // pred_fallthru
    _
  // Predicated region
  $region18: #{vae_forward.21} parent=0 // pred_check
    _
  $region19: #{vae_forward.21} parent=0 // pred_check_branch
    %3616 = sbr.rel (0) target = $region21
  $region20: #{vae_forward.21} parent=0 // pred_region
    _
  $region21: #{vae_forward.21} parent=0 // pred_fallthru
    _

</llo_original>
